<compile_context>
chip_gen: v7x
topology: tpu7x:2x2x1
jax: 0.10.0
libtpu: 0.0.40
codegen_flags: <defaults>
</compile_context>

<pallas_src>
import functools

import numpy as np
import jax
import jax.numpy as jnp
from jax.experimental import pallas as pl
from jax.experimental.pallas import tpu as pltpu

BN_EPS = 1e-5
LANE = 128


def _round_up(v, m):
    return ((v + m - 1) // m) * m


# ----------------------------------------------------------------------------
# Pallas kernels (hot path).  Each call is a single grid-less whole-VMEM
# invocation: the largest operand set (enc2) is ~2.2 MB, far under scoped VMEM
# on every generation, so BlockSpec tiling would only add per-step overhead.
# ----------------------------------------------------------------------------

def _msb_bn_relu_kernel(seg_sizes, p_ref, w_ref, o_ref):
    """Fused MultiScaleConvBlock kernel (all 3 pyramid levels of one block).

    (M_total, Kpad) @ (Kpad, 128)  ->  per-level-segment BatchNorm (training
    batch statistics, gamma=1, beta=0)  ->  ReLU  ->  bf16 lane-dense store.

    The conv bias is omitted on purpose: a per-channel constant is exactly
    cancelled by the batch-mean subtraction.  Padded (zero-weight) columns
    produce y=0, mean=0, var=0 -> output 0; they are sliced off in XLA.
    """
    y = jnp.dot(p_ref[...], w_ref[...], preferred_element_type=jnp.float32)
    off = 0
    for m in seg_sizes:                       # static unroll (3 segments)
        ys = y[off:off + m]                   # segment sizes are 8-aligned
        inv_m = jnp.float32(1.0 / m)
        mean = jnp.sum(ys, axis=0, keepdims=True) * inv_m
        var = jnp.sum(ys * ys, axis=0, keepdims=True) * inv_m - mean * mean
        var = jnp.maximum(var, 0.0)           # E[x^2]-E[x]^2 cancellation guard
        scale = jax.lax.rsqrt(var + BN_EPS)   # gamma = 1, beta = 0
        o_ref[off:off + m, :] = jnp.maximum((ys - mean) * scale, 0.0).astype(o_ref.dtype)
        off += m


def fused_msb_matmul(patches, w_mat, seg_sizes):
    """patches (M,Kpad) bf16 @ w_mat (Kpad,128) bf16 -> per-segment BN -> ReLU."""
    M, _ = patches.shape
    c_pad = w_mat.shape[1]
    kernel = functools.partial(_msb_bn_relu_kernel, tuple(seg_sizes))
    # TODO(synk): on v7x, expose a "parallel" grid axis over pyramid levels to
    # use the second TensorCore; at N=2 / 16x16 one grid-less call is cheaper.
    return pl.pallas_call(
        kernel,
        out_shape=jax.ShapeDtypeStruct((M, c_pad), jnp.bfloat16),
        in_specs=[pl.BlockSpec(memory_space=pltpu.MemorySpace.VMEM),
                  pl.BlockSpec(memory_space=pltpu.MemorySpace.VMEM)],
        out_specs=pl.BlockSpec(memory_space=pltpu.MemorySpace.VMEM),
    )(patches, w_mat)


def _matmul_bias_kernel(p_ref, w_ref, b_ref, o_ref):
    y = jnp.dot(p_ref[...], w_ref[...], preferred_element_type=jnp.float32)
    o_ref[...] = (y + b_ref[...]).astype(o_ref.dtype)


def matmul_bias(patches, w_mat, bias):
    """patches (M,Kpad) bf16 @ w_mat (Kpad,Cpad) bf16 + bias -> bf16."""
    M, _ = patches.shape
    c_pad = w_mat.shape[1]
    return pl.pallas_call(
        _matmul_bias_kernel,
        out_shape=jax.ShapeDtypeStruct((M, c_pad), jnp.bfloat16),
        in_specs=[pl.BlockSpec(memory_space=pltpu.MemorySpace.VMEM)] * 3,
        out_specs=pl.BlockSpec(memory_space=pltpu.MemorySpace.VMEM),
    )(patches, w_mat, bias.reshape(1, c_pad).astype(jnp.float32))


# ----------------------------------------------------------------------------
# Plain-JAX layout glue (pure data movement, fused by XLA under jit)
# ----------------------------------------------------------------------------
# TODO(synk): im2col remains XLA glue.  For the high-Cin blocks (enc2 Cin=144,
# dec1 Cin=32) an in-kernel shifted-accumulate over the padded level input
# would remove the 25x patch materialization in HBM; that is the next lever if
# batch / resolution grows (at 2x16x16 launch overhead still dominates).

def _im2col_same(x_bf16, K, k_pad):
    """(N,H,W,C) -> 'same'-padding patches (N*H*W, k_pad) bf16 (zero-pad cols)."""
    N, H, W, C = x_bf16.shape
    p = K // 2
    xp = jnp.pad(x_bf16, ((0, 0), (p, p), (p, p), (0, 0)))
    cols = [xp[:, dy:dy + H, dx:dx + W, :] for dy in range(K) for dx in range(K)]
    patches = jnp.concatenate(cols, axis=-1).reshape(N * H * W, K * K * C)
    if k_pad > K * K * C:
        patches = jnp.pad(patches, ((0, 0), (0, k_pad - K * K * C)))
    return patches


def pool2x2(x, mode):
    N, H, W, C = x.shape
    xr = x.reshape(N, H // 2, 2, W // 2, 2, C)
    if mode == "max":
        return xr.max(axis=(2, 4))
    return xr.mean(axis=(2, 4))


def upsample_nearest(x, factor):
    # F.interpolate(mode='nearest') with integer scale factor == pixel repeat.
    return jnp.repeat(jnp.repeat(x, factor, axis=1), factor, axis=2)


# ----------------------------------------------------------------------------
# Model building blocks
# ----------------------------------------------------------------------------

def multi_scale_conv_block(x, w_mat, out_ch):
    """MultiScaleConvBlock: 3-level Gaussian pyramid; the {k=1,3,5} convs of
    all 3 levels run as ONE fused matmul + per-level BatchNorm(batch stats) +
    ReLU Pallas call; nearest upsample back to full resolution; channel concat
    in reference order (level-major, then k=1|3|5)."""
    N, H0, W0, _ = x.shape
    k_pad = w_mat.shape[0]
    c3 = 3 * out_ch                                   # real output columns

    pyramid = [x]
    cur = x
    for _ in range(2):                                # GaussianPyramid(levels=3)
        cur = pool2x2(cur, "avg")
        pyramid.append(cur)

    patch_segs = [_im2col_same(lvl.astype(jnp.bfloat16), 5, k_pad) for lvl in pyramid]
    seg_sizes = [p.shape[0] for p in patch_segs]      # e.g. (512, 128, 32)
    patches = jnp.concatenate(patch_segs, axis=0)

    y = fused_msb_matmul(patches, w_mat, seg_sizes)   # (M_total, 128) bf16
    y = y[:, :c3]                                     # drop lane padding

    feats, off = [], 0
    for lvl, m in zip(pyramid, seg_sizes):
        Hl, Wl = lvl.shape[1], lvl.shape[2]
        f = y[off:off + m].reshape(N, Hl, Wl, c3)
        if Hl != H0:
            f = upsample_nearest(f, H0 // Hl)
        feats.append(f)
        off += m
    return jnp.concatenate(feats, axis=-1)


def conv_transpose_2x(x, tparams, out_ch):
    """ConvTranspose2d(k=3, stride=2, padding=1, output_padding=1) as its 4
    output-phase sub-convolutions folded into a single lane-dense matmul."""
    w_mat, b_pad = tparams                 # (Kpad, Cpad) bf16, (Cpad,) f32
    N, H, W, Cin = x.shape
    c4 = 4 * out_ch
    k_pad = w_mat.shape[0]
    xp = jnp.pad(x.astype(jnp.bfloat16), ((0, 0), (0, 1), (0, 1), (0, 0)))
    shifts = [xp[:, sy:sy + H, sx:sx + W, :] for sy in (0, 1) for sx in (0, 1)]
    patches = jnp.concatenate(shifts, axis=-1).reshape(N * H * W, 4 * Cin)
    if k_pad > 4 * Cin:
        patches = jnp.pad(patches, ((0, 0), (0, k_pad - 4 * Cin)))
    y = matmul_bias(patches, w_mat, b_pad)            # (N*H*W, Cpad) bf16
    y = y[:, :c4].reshape(N, H, W, 2, 2, out_ch)
    y = jnp.transpose(y, (0, 1, 3, 2, 4, 5)).reshape(N, 2 * H, 2 * W, out_ch)
    return y


def final_conv_sigmoid(x, fparams):
    """1x1 conv + sigmoid in plain XLA (512x72 @ 72x1 -- launch > work)."""
    w, b = fparams                                    # (Cin, Cout) f32, (Cout,)
    y = jnp.einsum("nhwc,co->nhwo", x.astype(jnp.float32), w) + b
    return jax.nn.sigmoid(y)


# ----------------------------------------------------------------------------
# Deterministic parameter initialization (shapes mirror MSCDAE.__init__)
# ----------------------------------------------------------------------------

def _init_conv(key, K, cin, cout):
    key, kw, kb = jax.random.split(key, 3)
    w = jax.random.normal(kw, (K, K, cin, cout), jnp.float32) / np.sqrt(K * K * cin)
    b = 0.01 * jax.random.normal(kb, (cout,), jnp.float32)
    return key, (w, b)


def _init_msb(key, cin, cout):
    params = []
    for K in (1, 3, 5):
        key, wb = _init_conv(key, K, cin, cout)
        params.append(wb)
    return key, params


def init_mscdae_params(seed=42, input_channels=1):
    key = jax.random.PRNGKey(seed)
    p = {}
    key, p["enc1"] = _init_msb(key, input_channels, 16)    # -> 144 channels
    key, p["enc2"] = _init_msb(key, 144, 32)               # -> 288 channels
    key, p["upconv1"] = _init_conv(key, 3, 288, 32)
    key, p["dec1"] = _init_msb(key, 32, 16)                # -> 144 channels
    key, p["upconv2"] = _init_conv(key, 3, 144, 16)
    key, p["dec2"] = _init_msb(key, 16, 8)                 # -> 72 channels
    key, p["final"] = _init_conv(key, 1, 72, input_channels)
    return p


# ----------------------------------------------------------------------------
# Parameter preparation: fuse weights into the on-chip matmul layouts
# ----------------------------------------------------------------------------

def _fuse_msb_weights(params):
    """Zero-pad k=1/k=3 kernels to 5x5, concat [k1|k3|k5] along Cout, flatten
    to (25*Cin, 3*Cout), then zero-pad rows (K) and columns (lanes) to
    multiples of 128.  Conv biases are DROPPED: cancelled exactly by the
    batch-mean subtraction of the following BatchNorm (gamma=1, beta=0)."""
    (w1, _b1), (w3, _b3), (w5, _b5) = params
    Cin, Cout = w5.shape[2], w5.shape[3]
    w1p = jnp.zeros((5, 5, Cin, Cout), jnp.float32).at[2, 2].set(w1[0, 0])
    w3p = jnp.zeros((5, 5, Cin, Cout), jnp.float32).at[1:4, 1:4].set(w3)
    w = jnp.concatenate([w1p, w3p, w5], axis=-1)           # (5,5,Cin,3*Cout)
    k_real, c_real = 25 * Cin, 3 * Cout
    w_mat = w.reshape(k_real, c_real)
    k_pad = _round_up(k_real, LANE)
    c_pad = _round_up(c_real, LANE)                        # 48/96/24 -> 128
    w_mat = jnp.pad(w_mat, ((0, k_pad - k_real), (0, c_pad - c_real)))
    return w_mat.astype(jnp.bfloat16)


def _phase_decompose_convtranspose(w_eq, b):
    """Build the (4*Cin, 4*Cout) phase matrix for ConvTranspose2d(3,2,1,1),
    zero-padded to lane-dense (Kpad, 128).

    Row blocks: input shift (sy,sx); col blocks: output phase (ry,rx).
    Per axis: out[2y] = w[1]*x[y];  out[2y+1] = w[0]*x[y] + w[2]*x[y+1].
    TODO(synk): w_eq is treated as the flipped/equivalent regular-conv weight
    (HWIO); flip/transpose accordingly when importing real PyTorch
    ConvTranspose2d (Cin,Cout,kH,kW) weights.
    """
    Cin, Cout = w_eq.shape[2], w_eq.shape[3]

    def tap(r, s):  # kernel index contributing to phase r from shift s
        if r == 0:
            return 1 if s == 0 else None
        return 0 if s == 0 else 2

    w_mat = jnp.zeros((4 * Cin, 4 * Cout), jnp.float32)
    for sy in (0, 1):
        for sx in (0, 1):
            for ry in (0, 1):
                for rx in (0, 1):
                    dy, dx = tap(ry, sy), tap(rx, sx)
                    if dy is None or dx is None:
                        continue
                    r0 = (2 * sy + sx) * Cin
                    c0 = (2 * ry + rx) * Cout
                    w_mat = w_mat.at[r0:r0 + Cin, c0:c0 + Cout].set(w_eq[dy, dx])
    k_real, c_real = 4 * Cin, 4 * Cout
    k_pad = _round_up(k_real, LANE)
    c_pad = _round_up(c_real, LANE)
    w_mat = jnp.pad(w_mat, ((0, k_pad - k_real), (0, c_pad - c_real)))
    b_pad = jnp.pad(jnp.tile(b, 4), (0, c_pad - c_real)).astype(jnp.float32)
    return w_mat.astype(jnp.bfloat16), b_pad


def prepare_params(raw):
    return {
        "enc1": _fuse_msb_weights(raw["enc1"]),      # (128, 128)  K=25
        "enc2": _fuse_msb_weights(raw["enc2"]),      # (3712, 128) K=3600
        "upconv1": _phase_decompose_convtranspose(*raw["upconv1"]),  # (1152,128)
        "dec1": _fuse_msb_weights(raw["dec1"]),      # (896, 128)  K=800
        "upconv2": _phase_decompose_convtranspose(*raw["upconv2"]),  # (640,128)
        "dec2": _fuse_msb_weights(raw["dec2"]),      # (512, 128)  K=400
        "final": (raw["final"][0][0, 0].astype(jnp.float32),          # (72, 1)
                  raw["final"][1].astype(jnp.float32)),
    }


# ----------------------------------------------------------------------------
# MSCDAE forward
# ----------------------------------------------------------------------------
# TODO(synk): BatchNorm uses training-mode batch statistics with gamma=1,
# beta=0 (a freshly initialized module in train()); eval-mode running stats /
# learned affine parameters are not modeled.

def mscdae_forward(params, x_nchw, noise_key):
    # layout: NCHW in / NCHW out; NHWC internally.
    x = jnp.transpose(x_nchw, (0, 2, 3, 1)).astype(jnp.float32)

    # Denoising-AE input corruption (randn_like -> jax.random.normal).
    noise_level = 0.1 * jnp.mean(x)
    noise = jax.random.normal(noise_key, x.shape, jnp.float32) * noise_level
    x_noisy = jnp.clip(x + noise, 0.0, 1.0)

    e1 = multi_scale_conv_block(x_noisy, params["enc1"], 16)     # (N,16,16,144)
    e1p = pool2x2(e1, "max")                                      # (N, 8, 8,144)
    e2 = multi_scale_conv_block(e1p, params["enc2"], 32)          # (N, 8, 8,288)
    e2p = pool2x2(e2, "max")                                      # (N, 4, 4,288)

    d1 = conv_transpose_2x(e2p, params["upconv1"], 32)            # (N, 8, 8, 32)
    d1b = multi_scale_conv_block(d1, params["dec1"], 16)          # (N, 8, 8,144)
    d2 = conv_transpose_2x(d1b, params["upconv2"], 16)            # (N,16,16, 16)
    d2b = multi_scale_conv_block(d2, params["dec2"], 8)           # (N,16,16, 72)

    out = final_conv_sigmoid(d2b, params["final"])                # (N,16,16, 1)
    return jnp.transpose(out, (0, 3, 1, 2))                       # NCHW f32


if __name__ == "__main__":
    key = jax.random.PRNGKey(0)
    xkey, nkey = jax.random.split(key)
    x = jax.random.uniform(xkey, (2, 1, 16, 16), jnp.float32)     # NCHW input
    params = prepare_params(init_mscdae_params(seed=42, input_channels=1))

    forward = jax.jit(mscdae_forward)
    out = jax.block_until_ready(forward(params, x, nkey))

    assert out.shape == (2, 1, 16, 16), out.shape
    assert out.dtype == jnp.float32
    assert bool(jnp.all(jnp.isfinite(out)))
    assert bool(jnp.all((out >= 0.0) & (out <= 1.0)))             # sigmoid output
    print("KERNEL_OK")
</pallas_src>

<mosaic_0001>
module attributes {stable_mosaic.version = 11 : i64} {
  func.func @_msb_bn_relu_kernel(%arg0: memref<672x128xbf16, #tpu.memory_space<vmem>>, %arg1: memref<128x128xbf16, #tpu.memory_space<vmem>>, %arg2: memref<672x128xbf16, #tpu.memory_space<vmem>>) attributes {dimension_semantics = [], scalar_prefetch = 0 : i64, scratch_operands = 0 : i64, tpu.core_type = #tpu.core_type<tc>} {
    %c0 = arith.constant 0 : index
    %c0_0 = arith.constant 0 : index
    %0 = vector.load %arg0[%c0, %c0_0] : memref<672x128xbf16, #tpu.memory_space<vmem>>, vector<672x128xbf16>
    %c0_1 = arith.constant 0 : index
    %c0_2 = arith.constant 0 : index
    %1 = vector.load %arg1[%c0_1, %c0_2] : memref<128x128xbf16, #tpu.memory_space<vmem>>, vector<128x128xbf16>
    %cst = arith.constant dense<0.000000e+00> : vector<672x128xf32>
    %2 = tpu.matmul %0, %1, %cst {dimension_numbers = #tpu.dot_dimension_numbers<[1], [0], [0], [1], [0, 0, 1, 1], [], []>} : vector<672x128xbf16>, vector<128x128xbf16>, vector<672x128xf32> -> vector<672x128xf32>
    %3 = vector.extract_strided_slice %2 {offsets = [0, 0], sizes = [512, 128], strides = [1, 1]} : vector<672x128xf32> to vector<512x128xf32>
    %cst_3 = arith.constant dense<0.000000e+00> : vector<128xf32>
    %4 = vector.multi_reduction <add>, %3, %cst_3 [0] : vector<512x128xf32> to vector<128xf32>
    %5 = vector.shape_cast %4 : vector<128xf32> to vector<1x128xf32>
    %cst_4 = arith.constant 0.001953125 : f32
    %6 = vector.broadcast %cst_4 : f32 to vector<1x128xf32>
    %7 = arith.mulf %5, %6 : vector<1x128xf32>
    %8 = arith.mulf %3, %3 : vector<512x128xf32>
    %cst_5 = arith.constant dense<0.000000e+00> : vector<128xf32>
    %9 = vector.multi_reduction <add>, %8, %cst_5 [0] : vector<512x128xf32> to vector<128xf32>
    %10 = vector.shape_cast %9 : vector<128xf32> to vector<1x128xf32>
    %cst_6 = arith.constant 0.001953125 : f32
    %11 = vector.broadcast %cst_6 : f32 to vector<1x128xf32>
    %12 = arith.mulf %10, %11 : vector<1x128xf32>
    %13 = arith.mulf %7, %7 : vector<1x128xf32>
    %14 = arith.subf %12, %13 : vector<1x128xf32>
    %cst_7 = arith.constant 0.000000e+00 : f32
    %15 = vector.broadcast %cst_7 : f32 to vector<1x128xf32>
    %16 = arith.maximumf %14, %15 : vector<1x128xf32>
    %cst_8 = arith.constant 9.99999974E-6 : f32
    %17 = vector.broadcast %cst_8 : f32 to vector<1x128xf32>
    %18 = arith.addf %16, %17 : vector<1x128xf32>
    %19 = math.rsqrt %18 : vector<1x128xf32>
    %20 = vector.broadcast %7 : vector<1x128xf32> to vector<512x128xf32>
    %21 = arith.subf %3, %20 : vector<512x128xf32>
    %22 = vector.broadcast %19 : vector<1x128xf32> to vector<512x128xf32>
    %23 = arith.mulf %21, %22 : vector<512x128xf32>
    %cst_9 = arith.constant 0.000000e+00 : f32
    %24 = vector.broadcast %cst_9 : f32 to vector<512x128xf32>
    %25 = arith.maximumf %23, %24 : vector<512x128xf32>
    %26 = arith.truncf %25 : vector<512x128xf32> to vector<512x128xbf16>
    %c0_10 = arith.constant 0 : index
    %c0_11 = arith.constant 0 : index
    %27 = vector.load %arg2[%c0_10, %c0_11] : memref<672x128xbf16, #tpu.memory_space<vmem>>, vector<512x128xbf16>
    tpu.vector_store %arg2[%c0_10, %c0_11], %26 {strides = array<i32>} : memref<672x128xbf16, #tpu.memory_space<vmem>>, vector<512x128xbf16>,
    %28 = vector.extract_strided_slice %2 {offsets = [512, 0], sizes = [128, 128], strides = [1, 1]} : vector<672x128xf32> to vector<128x128xf32>
    %cst_12 = arith.constant dense<0.000000e+00> : vector<128xf32>
    %29 = vector.multi_reduction <add>, %28, %cst_12 [0] : vector<128x128xf32> to vector<128xf32>
    %30 = vector.shape_cast %29 : vector<128xf32> to vector<1x128xf32>
    %cst_13 = arith.constant 7.812500e-03 : f32
    %31 = vector.broadcast %cst_13 : f32 to vector<1x128xf32>
    %32 = arith.mulf %30, %31 : vector<1x128xf32>
    %33 = arith.mulf %28, %28 : vector<128x128xf32>
    %cst_14 = arith.constant dense<0.000000e+00> : vector<128xf32>
    %34 = vector.multi_reduction <add>, %33, %cst_14 [0] : vector<128x128xf32> to vector<128xf32>
    %35 = vector.shape_cast %34 : vector<128xf32> to vector<1x128xf32>
    %cst_15 = arith.constant 7.812500e-03 : f32
    %36 = vector.broadcast %cst_15 : f32 to vector<1x128xf32>
    %37 = arith.mulf %35, %36 : vector<1x128xf32>
    %38 = arith.mulf %32, %32 : vector<1x128xf32>
    %39 = arith.subf %37, %38 : vector<1x128xf32>
    %cst_16 = arith.constant 0.000000e+00 : f32
    %40 = vector.broadcast %cst_16 : f32 to vector<1x128xf32>
    %41 = arith.maximumf %39, %40 : vector<1x128xf32>
    %cst_17 = arith.constant 9.99999974E-6 : f32
    %42 = vector.broadcast %cst_17 : f32 to vector<1x128xf32>
    %43 = arith.addf %41, %42 : vector<1x128xf32>
    %44 = math.rsqrt %43 : vector<1x128xf32>
    %45 = vector.broadcast %32 : vector<1x128xf32> to vector<128x128xf32>
    %46 = arith.subf %28, %45 : vector<128x128xf32>
    %47 = vector.broadcast %44 : vector<1x128xf32> to vector<128x128xf32>
    %48 = arith.mulf %46, %47 : vector<128x128xf32>
    %cst_18 = arith.constant 0.000000e+00 : f32
    %49 = vector.broadcast %cst_18 : f32 to vector<128x128xf32>
    %50 = arith.maximumf %48, %49 : vector<128x128xf32>
    %51 = arith.truncf %50 : vector<128x128xf32> to vector<128x128xbf16>
    %c512 = arith.constant 512 : index
    %c0_19 = arith.constant 0 : index
    %52 = vector.load %arg2[%c512, %c0_19] : memref<672x128xbf16, #tpu.memory_space<vmem>>, vector<128x128xbf16>
    tpu.vector_store %arg2[%c512, %c0_19], %51 {strides = array<i32>} : memref<672x128xbf16, #tpu.memory_space<vmem>>, vector<128x128xbf16>,
    %53 = vector.extract_strided_slice %2 {offsets = [640, 0], sizes = [32, 128], strides = [1, 1]} : vector<672x128xf32> to vector<32x128xf32>
    %cst_20 = arith.constant dense<0.000000e+00> : vector<128xf32>
    %54 = vector.multi_reduction <add>, %53, %cst_20 [0] : vector<32x128xf32> to vector<128xf32>
    %55 = vector.shape_cast %54 : vector<128xf32> to vector<1x128xf32>
    %cst_21 = arith.constant 3.125000e-02 : f32
    %56 = vector.broadcast %cst_21 : f32 to vector<1x128xf32>
    %57 = arith.mulf %55, %56 : vector<1x128xf32>
    %58 = arith.mulf %53, %53 : vector<32x128xf32>
    %cst_22 = arith.constant dense<0.000000e+00> : vector<128xf32>
    %59 = vector.multi_reduction <add>, %58, %cst_22 [0] : vector<32x128xf32> to vector<128xf32>
    %60 = vector.shape_cast %59 : vector<128xf32> to vector<1x128xf32>
    %cst_23 = arith.constant 3.125000e-02 : f32
    %61 = vector.broadcast %cst_23 : f32 to vector<1x128xf32>
    %62 = arith.mulf %60, %61 : vector<1x128xf32>
    %63 = arith.mulf %57, %57 : vector<1x128xf32>
    %64 = arith.subf %62, %63 : vector<1x128xf32>
    %cst_24 = arith.constant 0.000000e+00 : f32
    %65 = vector.broadcast %cst_24 : f32 to vector<1x128xf32>
    %66 = arith.maximumf %64, %65 : vector<1x128xf32>
    %cst_25 = arith.constant 9.99999974E-6 : f32
    %67 = vector.broadcast %cst_25 : f32 to vector<1x128xf32>
    %68 = arith.addf %66, %67 : vector<1x128xf32>
    %69 = math.rsqrt %68 : vector<1x128xf32>
    %70 = vector.broadcast %57 : vector<1x128xf32> to vector<32x128xf32>
    %71 = arith.subf %53, %70 : vector<32x128xf32>
    %72 = vector.broadcast %69 : vector<1x128xf32> to vector<32x128xf32>
    %73 = arith.mulf %71, %72 : vector<32x128xf32>
    %cst_26 = arith.constant 0.000000e+00 : f32
    %74 = vector.broadcast %cst_26 : f32 to vector<32x128xf32>
    %75 = arith.maximumf %73, %74 : vector<32x128xf32>
    %76 = arith.truncf %75 : vector<32x128xf32> to vector<32x128xbf16>
    %c640 = arith.constant 640 : index
    %c0_27 = arith.constant 0 : index
    %77 = vector.load %arg2[%c640, %c0_27] : memref<672x128xbf16, #tpu.memory_space<vmem>>, vector<32x128xbf16>
    tpu.vector_store %arg2[%c640, %c0_27], %76 {strides = array<i32>} : memref<672x128xbf16, #tpu.memory_space<vmem>>, vector<32x128xbf16>,
    return
  }
}

module attributes {stable_mosaic.version = 11 : i64} {
  func.func @_msb_bn_relu_kernel(%arg0: memref<168x3712xbf16, #tpu.memory_space<vmem>>, %arg1: memref<3712x128xbf16, #tpu.memory_space<vmem>>, %arg2: memref<168x128xbf16, #tpu.memory_space<vmem>>) attributes {dimension_semantics = [], scalar_prefetch = 0 : i64, scratch_operands = 0 : i64, tpu.core_type = #tpu.core_type<tc>} {
    %c0 = arith.constant 0 : index
    %c0_0 = arith.constant 0 : index
    %0 = vector.load %arg0[%c0, %c0_0] : memref<168x3712xbf16, #tpu.memory_space<vmem>>, vector<168x3712xbf16>
    %c0_1 = arith.constant 0 : index
    %c0_2 = arith.constant 0 : index
    %1 = vector.load %arg1[%c0_1, %c0_2] : memref<3712x128xbf16, #tpu.memory_space<vmem>>, vector<3712x128xbf16>
    %cst = arith.constant dense<0.000000e+00> : vector<168x128xf32>
    %2 = tpu.matmul %0, %1, %cst {dimension_numbers = #tpu.dot_dimension_numbers<[1], [0], [0], [1], [0, 0, 1, 1], [], []>} : vector<168x3712xbf16>, vector<3712x128xbf16>, vector<168x128xf32> -> vector<168x128xf32>
    %3 = vector.extract_strided_slice %2 {offsets = [0, 0], sizes = [128, 128], strides = [1, 1]} : vector<168x128xf32> to vector<128x128xf32>
    %cst_3 = arith.constant dense<0.000000e+00> : vector<128xf32>
    %4 = vector.multi_reduction <add>, %3, %cst_3 [0] : vector<128x128xf32> to vector<128xf32>
    %5 = vector.shape_cast %4 : vector<128xf32> to vector<1x128xf32>
    %cst_4 = arith.constant 7.812500e-03 : f32
    %6 = vector.broadcast %cst_4 : f32 to vector<1x128xf32>
    %7 = arith.mulf %5, %6 : vector<1x128xf32>
    %8 = arith.mulf %3, %3 : vector<128x128xf32>
    %cst_5 = arith.constant dense<0.000000e+00> : vector<128xf32>
    %9 = vector.multi_reduction <add>, %8, %cst_5 [0] : vector<128x128xf32> to vector<128xf32>
    %10 = vector.shape_cast %9 : vector<128xf32> to vector<1x128xf32>
    %cst_6 = arith.constant 7.812500e-03 : f32
    %11 = vector.broadcast %cst_6 : f32 to vector<1x128xf32>
    %12 = arith.mulf %10, %11 : vector<1x128xf32>
    %13 = arith.mulf %7, %7 : vector<1x128xf32>
    %14 = arith.subf %12, %13 : vector<1x128xf32>
    %cst_7 = arith.constant 0.000000e+00 : f32
    %15 = vector.broadcast %cst_7 : f32 to vector<1x128xf32>
    %16 = arith.maximumf %14, %15 : vector<1x128xf32>
    %cst_8 = arith.constant 9.99999974E-6 : f32
    %17 = vector.broadcast %cst_8 : f32 to vector<1x128xf32>
    %18 = arith.addf %16, %17 : vector<1x128xf32>
    %19 = math.rsqrt %18 : vector<1x128xf32>
    %20 = vector.broadcast %7 : vector<1x128xf32> to vector<128x128xf32>
    %21 = arith.subf %3, %20 : vector<128x128xf32>
    %22 = vector.broadcast %19 : vector<1x128xf32> to vector<128x128xf32>
    %23 = arith.mulf %21, %22 : vector<128x128xf32>
    %cst_9 = arith.constant 0.000000e+00 : f32
    %24 = vector.broadcast %cst_9 : f32 to vector<128x128xf32>
    %25 = arith.maximumf %23, %24 : vector<128x128xf32>
    %26 = arith.truncf %25 : vector<128x128xf32> to vector<128x128xbf16>
    %c0_10 = arith.constant 0 : index
    %c0_11 = arith.constant 0 : index
    %27 = vector.load %arg2[%c0_10, %c0_11] : memref<168x128xbf16, #tpu.memory_space<vmem>>, vector<128x128xbf16>
    tpu.vector_store %arg2[%c0_10, %c0_11], %26 {strides = array<i32>} : memref<168x128xbf16, #tpu.memory_space<vmem>>, vector<128x128xbf16>,
    %28 = vector.extract_strided_slice %2 {offsets = [128, 0], sizes = [32, 128], strides = [1, 1]} : vector<168x128xf32> to vector<32x128xf32>
    %cst_12 = arith.constant dense<0.000000e+00> : vector<128xf32>
    %29 = vector.multi_reduction <add>, %28, %cst_12 [0] : vector<32x128xf32> to vector<128xf32>
    %30 = vector.shape_cast %29 : vector<128xf32> to vector<1x128xf32>
    %cst_13 = arith.constant 3.125000e-02 : f32
    %31 = vector.broadcast %cst_13 : f32 to vector<1x128xf32>
    %32 = arith.mulf %30, %31 : vector<1x128xf32>
    %33 = arith.mulf %28, %28 : vector<32x128xf32>
    %cst_14 = arith.constant dense<0.000000e+00> : vector<128xf32>
    %34 = vector.multi_reduction <add>, %33, %cst_14 [0] : vector<32x128xf32> to vector<128xf32>
    %35 = vector.shape_cast %34 : vector<128xf32> to vector<1x128xf32>
    %cst_15 = arith.constant 3.125000e-02 : f32
    %36 = vector.broadcast %cst_15 : f32 to vector<1x128xf32>
    %37 = arith.mulf %35, %36 : vector<1x128xf32>
    %38 = arith.mulf %32, %32 : vector<1x128xf32>
    %39 = arith.subf %37, %38 : vector<1x128xf32>
    %cst_16 = arith.constant 0.000000e+00 : f32
    %40 = vector.broadcast %cst_16 : f32 to vector<1x128xf32>
    %41 = arith.maximumf %39, %40 : vector<1x128xf32>
    %cst_17 = arith.constant 9.99999974E-6 : f32
    %42 = vector.broadcast %cst_17 : f32 to vector<1x128xf32>
    %43 = arith.addf %41, %42 : vector<1x128xf32>
    %44 = math.rsqrt %43 : vector<1x128xf32>
    %45 = vector.broadcast %32 : vector<1x128xf32> to vector<32x128xf32>
    %46 = arith.subf %28, %45 : vector<32x128xf32>
    %47 = vector.broadcast %44 : vector<1x128xf32> to vector<32x128xf32>
    %48 = arith.mulf %46, %47 : vector<32x128xf32>
    %cst_18 = arith.constant 0.000000e+00 : f32
    %49 = vector.broadcast %cst_18 : f32 to vector<32x128xf32>
    %50 = arith.maximumf %48, %49 : vector<32x128xf32>
    %51 = arith.truncf %50 : vector<32x128xf32> to vector<32x128xbf16>
    %c128 = arith.constant 128 : index
    %c0_19 = arith.constant 0 : index
    %52 = vector.load %arg2[%c128, %c0_19] : memref<168x128xbf16, #tpu.memory_space<vmem>>, vector<32x128xbf16>
    tpu.vector_store %arg2[%c128, %c0_19], %51 {strides = array<i32>} : memref<168x128xbf16, #tpu.memory_space<vmem>>, vector<32x128xbf16>,
    %53 = vector.extract_strided_slice %2 {offsets = [160, 0], sizes = [8, 128], strides = [1, 1]} : vector<168x128xf32> to vector<8x128xf32>
    %cst_20 = arith.constant dense<0.000000e+00> : vector<128xf32>
    %54 = vector.multi_reduction <add>, %53, %cst_20 [0] : vector<8x128xf32> to vector<128xf32>
    %55 = vector.shape_cast %54 : vector<128xf32> to vector<1x128xf32>
    %cst_21 = arith.constant 1.250000e-01 : f32
    %56 = vector.broadcast %cst_21 : f32 to vector<1x128xf32>
    %57 = arith.mulf %55, %56 : vector<1x128xf32>
    %58 = arith.mulf %53, %53 : vector<8x128xf32>
    %cst_22 = arith.constant dense<0.000000e+00> : vector<128xf32>
    %59 = vector.multi_reduction <add>, %58, %cst_22 [0] : vector<8x128xf32> to vector<128xf32>
    %60 = vector.shape_cast %59 : vector<128xf32> to vector<1x128xf32>
    %cst_23 = arith.constant 1.250000e-01 : f32
    %61 = vector.broadcast %cst_23 : f32 to vector<1x128xf32>
    %62 = arith.mulf %60, %61 : vector<1x128xf32>
    %63 = arith.mulf %57, %57 : vector<1x128xf32>
    %64 = arith.subf %62, %63 : vector<1x128xf32>
    %cst_24 = arith.constant 0.000000e+00 : f32
    %65 = vector.broadcast %cst_24 : f32 to vector<1x128xf32>
    %66 = arith.maximumf %64, %65 : vector<1x128xf32>
    %cst_25 = arith.constant 9.99999974E-6 : f32
    %67 = vector.broadcast %cst_25 : f32 to vector<1x128xf32>
    %68 = arith.addf %66, %67 : vector<1x128xf32>
    %69 = math.rsqrt %68 : vector<1x128xf32>
    %70 = vector.broadcast %57 : vector<1x128xf32> to vector<8x128xf32>
    %71 = arith.subf %53, %70 : vector<8x128xf32>
    %72 = vector.broadcast %69 : vector<1x128xf32> to vector<8x128xf32>
    %73 = arith.mulf %71, %72 : vector<8x128xf32>
    %cst_26 = arith.constant 0.000000e+00 : f32
    %74 = vector.broadcast %cst_26 : f32 to vector<8x128xf32>
    %75 = arith.maximumf %73, %74 : vector<8x128xf32>
    %76 = arith.truncf %75 : vector<8x128xf32> to vector<8x128xbf16>
    %c160 = arith.constant 160 : index
    %c0_27 = arith.constant 0 : index
    %77 = vector.load %arg2[%c160, %c0_27] : memref<168x128xbf16, #tpu.memory_space<vmem>>, vector<8x128xbf16>
    tpu.vector_store %arg2[%c160, %c0_27], %76 {strides = array<i32>} : memref<168x128xbf16, #tpu.memory_space<vmem>>, vector<8x128xbf16>,
    return
  }
}

module attributes {stable_mosaic.version = 11 : i64} {
  func.func @_matmul_bias_kernel(%arg0: memref<32x1152xbf16, #tpu.memory_space<vmem>>, %arg1: memref<1152x128xbf16, #tpu.memory_space<vmem>>, %arg2: memref<1x128xf32, #tpu.memory_space<vmem>>, %arg3: memref<32x128xbf16, #tpu.memory_space<vmem>>) attributes {dimension_semantics = [], scalar_prefetch = 0 : i64, scratch_operands = 0 : i64, tpu.core_type = #tpu.core_type<tc>} {
    %c0 = arith.constant 0 : index
    %c0_0 = arith.constant 0 : index
    %0 = vector.load %arg0[%c0, %c0_0] : memref<32x1152xbf16, #tpu.memory_space<vmem>>, vector<32x1152xbf16>
    %c0_1 = arith.constant 0 : index
    %c0_2 = arith.constant 0 : index
    %1 = vector.load %arg1[%c0_1, %c0_2] : memref<1152x128xbf16, #tpu.memory_space<vmem>>, vector<1152x128xbf16>
    %cst = arith.constant dense<0.000000e+00> : vector<32x128xf32>
    %2 = tpu.matmul %0, %1, %cst {dimension_numbers = #tpu.dot_dimension_numbers<[1], [0], [0], [1], [0, 0, 1, 1], [], []>} : vector<32x1152xbf16>, vector<1152x128xbf16>, vector<32x128xf32> -> vector<32x128xf32>
    %c0_3 = arith.constant 0 : index
    %c0_4 = arith.constant 0 : index
    %3 = vector.load %arg2[%c0_3, %c0_4] : memref<1x128xf32, #tpu.memory_space<vmem>>, vector<1x128xf32>
    %4 = vector.broadcast %3 : vector<1x128xf32> to vector<32x128xf32>
    %5 = arith.addf %2, %4 : vector<32x128xf32>
    %6 = arith.truncf %5 : vector<32x128xf32> to vector<32x128xbf16>
    %c0_5 = arith.constant 0 : index
    %c0_6 = arith.constant 0 : index
    %7 = vector.load %arg3[%c0_5, %c0_6] : memref<32x128xbf16, #tpu.memory_space<vmem>>, vector<32x128xbf16>
    tpu.vector_store %arg3[%c0_5, %c0_6], %6 {strides = array<i32>} : memref<32x128xbf16, #tpu.memory_space<vmem>>, vector<32x128xbf16>,
    return
  }
}

module attributes {stable_mosaic.version = 11 : i64} {
  func.func @_msb_bn_relu_kernel(%arg0: memref<168x896xbf16, #tpu.memory_space<vmem>>, %arg1: memref<896x128xbf16, #tpu.memory_space<vmem>>, %arg2: memref<168x128xbf16, #tpu.memory_space<vmem>>) attributes {dimension_semantics = [], scalar_prefetch = 0 : i64, scratch_operands = 0 : i64, tpu.core_type = #tpu.core_type<tc>} {
    %c0 = arith.constant 0 : index
    %c0_0 = arith.constant 0 : index
    %0 = vector.load %arg0[%c0, %c0_0] : memref<168x896xbf16, #tpu.memory_space<vmem>>, vector<168x896xbf16>
    %c0_1 = arith.constant 0 : index
    %c0_2 = arith.constant 0 : index
    %1 = vector.load %arg1[%c0_1, %c0_2] : memref<896x128xbf16, #tpu.memory_space<vmem>>, vector<896x128xbf16>
    %cst = arith.constant dense<0.000000e+00> : vector<168x128xf32>
    %2 = tpu.matmul %0, %1, %cst {dimension_numbers = #tpu.dot_dimension_numbers<[1], [0], [0], [1], [0, 0, 1, 1], [], []>} : vector<168x896xbf16>, vector<896x128xbf16>, vector<168x128xf32> -> vector<168x128xf32>
    %3 = vector.extract_strided_slice %2 {offsets = [0, 0], sizes = [128, 128], strides = [1, 1]} : vector<168x128xf32> to vector<128x128xf32>
    %cst_3 = arith.constant dense<0.000000e+00> : vector<128xf32>
    %4 = vector.multi_reduction <add>, %3, %cst_3 [0] : vector<128x128xf32> to vector<128xf32>
    %5 = vector.shape_cast %4 : vector<128xf32> to vector<1x128xf32>
    %cst_4 = arith.constant 7.812500e-03 : f32
    %6 = vector.broadcast %cst_4 : f32 to vector<1x128xf32>
    %7 = arith.mulf %5, %6 : vector<1x128xf32>
    %8 = arith.mulf %3, %3 : vector<128x128xf32>
    %cst_5 = arith.constant dense<0.000000e+00> : vector<128xf32>
    %9 = vector.multi_reduction <add>, %8, %cst_5 [0] : vector<128x128xf32> to vector<128xf32>
    %10 = vector.shape_cast %9 : vector<128xf32> to vector<1x128xf32>
    %cst_6 = arith.constant 7.812500e-03 : f32
    %11 = vector.broadcast %cst_6 : f32 to vector<1x128xf32>
    %12 = arith.mulf %10, %11 : vector<1x128xf32>
    %13 = arith.mulf %7, %7 : vector<1x128xf32>
    %14 = arith.subf %12, %13 : vector<1x128xf32>
    %cst_7 = arith.constant 0.000000e+00 : f32
    %15 = vector.broadcast %cst_7 : f32 to vector<1x128xf32>
    %16 = arith.maximumf %14, %15 : vector<1x128xf32>
    %cst_8 = arith.constant 9.99999974E-6 : f32
    %17 = vector.broadcast %cst_8 : f32 to vector<1x128xf32>
    %18 = arith.addf %16, %17 : vector<1x128xf32>
    %19 = math.rsqrt %18 : vector<1x128xf32>
    %20 = vector.broadcast %7 : vector<1x128xf32> to vector<128x128xf32>
    %21 = arith.subf %3, %20 : vector<128x128xf32>
    %22 = vector.broadcast %19 : vector<1x128xf32> to vector<128x128xf32>
    %23 = arith.mulf %21, %22 : vector<128x128xf32>
    %cst_9 = arith.constant 0.000000e+00 : f32
    %24 = vector.broadcast %cst_9 : f32 to vector<128x128xf32>
    %25 = arith.maximumf %23, %24 : vector<128x128xf32>
    %26 = arith.truncf %25 : vector<128x128xf32> to vector<128x128xbf16>
    %c0_10 = arith.constant 0 : index
    %c0_11 = arith.constant 0 : index
    %27 = vector.load %arg2[%c0_10, %c0_11] : memref<168x128xbf16, #tpu.memory_space<vmem>>, vector<128x128xbf16>
    tpu.vector_store %arg2[%c0_10, %c0_11], %26 {strides = array<i32>} : memref<168x128xbf16, #tpu.memory_space<vmem>>, vector<128x128xbf16>,
    %28 = vector.extract_strided_slice %2 {offsets = [128, 0], sizes = [32, 128], strides = [1, 1]} : vector<168x128xf32> to vector<32x128xf32>
    %cst_12 = arith.constant dense<0.000000e+00> : vector<128xf32>
    %29 = vector.multi_reduction <add>, %28, %cst_12 [0] : vector<32x128xf32> to vector<128xf32>
    %30 = vector.shape_cast %29 : vector<128xf32> to vector<1x128xf32>
    %cst_13 = arith.constant 3.125000e-02 : f32
    %31 = vector.broadcast %cst_13 : f32 to vector<1x128xf32>
    %32 = arith.mulf %30, %31 : vector<1x128xf32>
    %33 = arith.mulf %28, %28 : vector<32x128xf32>
    %cst_14 = arith.constant dense<0.000000e+00> : vector<128xf32>
    %34 = vector.multi_reduction <add>, %33, %cst_14 [0] : vector<32x128xf32> to vector<128xf32>
    %35 = vector.shape_cast %34 : vector<128xf32> to vector<1x128xf32>
    %cst_15 = arith.constant 3.125000e-02 : f32
    %36 = vector.broadcast %cst_15 : f32 to vector<1x128xf32>
    %37 = arith.mulf %35, %36 : vector<1x128xf32>
    %38 = arith.mulf %32, %32 : vector<1x128xf32>
    %39 = arith.subf %37, %38 : vector<1x128xf32>
    %cst_16 = arith.constant 0.000000e+00 : f32
    %40 = vector.broadcast %cst_16 : f32 to vector<1x128xf32>
    %41 = arith.maximumf %39, %40 : vector<1x128xf32>
    %cst_17 = arith.constant 9.99999974E-6 : f32
    %42 = vector.broadcast %cst_17 : f32 to vector<1x128xf32>
    %43 = arith.addf %41, %42 : vector<1x128xf32>
    %44 = math.rsqrt %43 : vector<1x128xf32>
    %45 = vector.broadcast %32 : vector<1x128xf32> to vector<32x128xf32>
    %46 = arith.subf %28, %45 : vector<32x128xf32>
    %47 = vector.broadcast %44 : vector<1x128xf32> to vector<32x128xf32>
    %48 = arith.mulf %46, %47 : vector<32x128xf32>
    %cst_18 = arith.constant 0.000000e+00 : f32
    %49 = vector.broadcast %cst_18 : f32 to vector<32x128xf32>
    %50 = arith.maximumf %48, %49 : vector<32x128xf32>
    %51 = arith.truncf %50 : vector<32x128xf32> to vector<32x128xbf16>
    %c128 = arith.constant 128 : index
    %c0_19 = arith.constant 0 : index
    %52 = vector.load %arg2[%c128, %c0_19] : memref<168x128xbf16, #tpu.memory_space<vmem>>, vector<32x128xbf16>
    tpu.vector_store %arg2[%c128, %c0_19], %51 {strides = array<i32>} : memref<168x128xbf16, #tpu.memory_space<vmem>>, vector<32x128xbf16>,
    %53 = vector.extract_strided_slice %2 {offsets = [160, 0], sizes = [8, 128], strides = [1, 1]} : vector<168x128xf32> to vector<8x128xf32>
    %cst_20 = arith.constant dense<0.000000e+00> : vector<128xf32>
    %54 = vector.multi_reduction <add>, %53, %cst_20 [0] : vector<8x128xf32> to vector<128xf32>
    %55 = vector.shape_cast %54 : vector<128xf32> to vector<1x128xf32>
    %cst_21 = arith.constant 1.250000e-01 : f32
    %56 = vector.broadcast %cst_21 : f32 to vector<1x128xf32>
    %57 = arith.mulf %55, %56 : vector<1x128xf32>
    %58 = arith.mulf %53, %53 : vector<8x128xf32>
    %cst_22 = arith.constant dense<0.000000e+00> : vector<128xf32>
    %59 = vector.multi_reduction <add>, %58, %cst_22 [0] : vector<8x128xf32> to vector<128xf32>
    %60 = vector.shape_cast %59 : vector<128xf32> to vector<1x128xf32>
    %cst_23 = arith.constant 1.250000e-01 : f32
    %61 = vector.broadcast %cst_23 : f32 to vector<1x128xf32>
    %62 = arith.mulf %60, %61 : vector<1x128xf32>
    %63 = arith.mulf %57, %57 : vector<1x128xf32>
    %64 = arith.subf %62, %63 : vector<1x128xf32>
    %cst_24 = arith.constant 0.000000e+00 : f32
    %65 = vector.broadcast %cst_24 : f32 to vector<1x128xf32>
    %66 = arith.maximumf %64, %65 : vector<1x128xf32>
    %cst_25 = arith.constant 9.99999974E-6 : f32
    %67 = vector.broadcast %cst_25 : f32 to vector<1x128xf32>
    %68 = arith.addf %66, %67 : vector<1x128xf32>
    %69 = math.rsqrt %68 : vector<1x128xf32>
    %70 = vector.broadcast %57 : vector<1x128xf32> to vector<8x128xf32>
    %71 = arith.subf %53, %70 : vector<8x128xf32>
    %72 = vector.broadcast %69 : vector<1x128xf32> to vector<8x128xf32>
    %73 = arith.mulf %71, %72 : vector<8x128xf32>
    %cst_26 = arith.constant 0.000000e+00 : f32
    %74 = vector.broadcast %cst_26 : f32 to vector<8x128xf32>
    %75 = arith.maximumf %73, %74 : vector<8x128xf32>
    %76 = arith.truncf %75 : vector<8x128xf32> to vector<8x128xbf16>
    %c160 = arith.constant 160 : index
    %c0_27 = arith.constant 0 : index
    %77 = vector.load %arg2[%c160, %c0_27] : memref<168x128xbf16, #tpu.memory_space<vmem>>, vector<8x128xbf16>
    tpu.vector_store %arg2[%c160, %c0_27], %76 {strides = array<i32>} : memref<168x128xbf16, #tpu.memory_space<vmem>>, vector<8x128xbf16>,
    return
  }
}

module attributes {stable_mosaic.version = 11 : i64} {
  func.func @_matmul_bias_kernel(%arg0: memref<128x640xbf16, #tpu.memory_space<vmem>>, %arg1: memref<640x128xbf16, #tpu.memory_space<vmem>>, %arg2: memref<1x128xf32, #tpu.memory_space<vmem>>, %arg3: memref<128x128xbf16, #tpu.memory_space<vmem>>) attributes {dimension_semantics = [], scalar_prefetch = 0 : i64, scratch_operands = 0 : i64, tpu.core_type = #tpu.core_type<tc>} {
    %c0 = arith.constant 0 : index
    %c0_0 = arith.constant 0 : index
    %0 = vector.load %arg0[%c0, %c0_0] : memref<128x640xbf16, #tpu.memory_space<vmem>>, vector<128x640xbf16>
    %c0_1 = arith.constant 0 : index
    %c0_2 = arith.constant 0 : index
    %1 = vector.load %arg1[%c0_1, %c0_2] : memref<640x128xbf16, #tpu.memory_space<vmem>>, vector<640x128xbf16>
    %cst = arith.constant dense<0.000000e+00> : vector<128x128xf32>
    %2 = tpu.matmul %0, %1, %cst {dimension_numbers = #tpu.dot_dimension_numbers<[1], [0], [0], [1], [0, 0, 1, 1], [], []>} : vector<128x640xbf16>, vector<640x128xbf16>, vector<128x128xf32> -> vector<128x128xf32>
    %c0_3 = arith.constant 0 : index
    %c0_4 = arith.constant 0 : index
    %3 = vector.load %arg2[%c0_3, %c0_4] : memref<1x128xf32, #tpu.memory_space<vmem>>, vector<1x128xf32>
    %4 = vector.broadcast %3 : vector<1x128xf32> to vector<128x128xf32>
    %5 = arith.addf %2, %4 : vector<128x128xf32>
    %6 = arith.truncf %5 : vector<128x128xf32> to vector<128x128xbf16>
    %c0_5 = arith.constant 0 : index
    %c0_6 = arith.constant 0 : index
    %7 = vector.load %arg3[%c0_5, %c0_6] : memref<128x128xbf16, #tpu.memory_space<vmem>>, vector<128x128xbf16>
    tpu.vector_store %arg3[%c0_5, %c0_6], %6 {strides = array<i32>} : memref<128x128xbf16, #tpu.memory_space<vmem>>, vector<128x128xbf16>,
    return
  }
}

module attributes {stable_mosaic.version = 11 : i64} {
  func.func @_msb_bn_relu_kernel(%arg0: memref<672x512xbf16, #tpu.memory_space<vmem>>, %arg1: memref<512x128xbf16, #tpu.memory_space<vmem>>, %arg2: memref<672x128xbf16, #tpu.memory_space<vmem>>) attributes {dimension_semantics = [], scalar_prefetch = 0 : i64, scratch_operands = 0 : i64, tpu.core_type = #tpu.core_type<tc>} {
    %c0 = arith.constant 0 : index
    %c0_0 = arith.constant 0 : index
    %0 = vector.load %arg0[%c0, %c0_0] : memref<672x512xbf16, #tpu.memory_space<vmem>>, vector<672x512xbf16>
    %c0_1 = arith.constant 0 : index
    %c0_2 = arith.constant 0 : index
    %1 = vector.load %arg1[%c0_1, %c0_2] : memref<512x128xbf16, #tpu.memory_space<vmem>>, vector<512x128xbf16>
    %cst = arith.constant dense<0.000000e+00> : vector<672x128xf32>
    %2 = tpu.matmul %0, %1, %cst {dimension_numbers = #tpu.dot_dimension_numbers<[1], [0], [0], [1], [0, 0, 1, 1], [], []>} : vector<672x512xbf16>, vector<512x128xbf16>, vector<672x128xf32> -> vector<672x128xf32>
    %3 = vector.extract_strided_slice %2 {offsets = [0, 0], sizes = [512, 128], strides = [1, 1]} : vector<672x128xf32> to vector<512x128xf32>
    %cst_3 = arith.constant dense<0.000000e+00> : vector<128xf32>
    %4 = vector.multi_reduction <add>, %3, %cst_3 [0] : vector<512x128xf32> to vector<128xf32>
    %5 = vector.shape_cast %4 : vector<128xf32> to vector<1x128xf32>
    %cst_4 = arith.constant 0.001953125 : f32
    %6 = vector.broadcast %cst_4 : f32 to vector<1x128xf32>
    %7 = arith.mulf %5, %6 : vector<1x128xf32>
    %8 = arith.mulf %3, %3 : vector<512x128xf32>
    %cst_5 = arith.constant dense<0.000000e+00> : vector<128xf32>
    %9 = vector.multi_reduction <add>, %8, %cst_5 [0] : vector<512x128xf32> to vector<128xf32>
    %10 = vector.shape_cast %9 : vector<128xf32> to vector<1x128xf32>
    %cst_6 = arith.constant 0.001953125 : f32
    %11 = vector.broadcast %cst_6 : f32 to vector<1x128xf32>
    %12 = arith.mulf %10, %11 : vector<1x128xf32>
    %13 = arith.mulf %7, %7 : vector<1x128xf32>
    %14 = arith.subf %12, %13 : vector<1x128xf32>
    %cst_7 = arith.constant 0.000000e+00 : f32
    %15 = vector.broadcast %cst_7 : f32 to vector<1x128xf32>
    %16 = arith.maximumf %14, %15 : vector<1x128xf32>
    %cst_8 = arith.constant 9.99999974E-6 : f32
    %17 = vector.broadcast %cst_8 : f32 to vector<1x128xf32>
    %18 = arith.addf %16, %17 : vector<1x128xf32>
    %19 = math.rsqrt %18 : vector<1x128xf32>
    %20 = vector.broadcast %7 : vector<1x128xf32> to vector<512x128xf32>
    %21 = arith.subf %3, %20 : vector<512x128xf32>
    %22 = vector.broadcast %19 : vector<1x128xf32> to vector<512x128xf32>
    %23 = arith.mulf %21, %22 : vector<512x128xf32>
    %cst_9 = arith.constant 0.000000e+00 : f32
    %24 = vector.broadcast %cst_9 : f32 to vector<512x128xf32>
    %25 = arith.maximumf %23, %24 : vector<512x128xf32>
    %26 = arith.truncf %25 : vector<512x128xf32> to vector<512x128xbf16>
    %c0_10 = arith.constant 0 : index
    %c0_11 = arith.constant 0 : index
    %27 = vector.load %arg2[%c0_10, %c0_11] : memref<672x128xbf16, #tpu.memory_space<vmem>>, vector<512x128xbf16>
    tpu.vector_store %arg2[%c0_10, %c0_11], %26 {strides = array<i32>} : memref<672x128xbf16, #tpu.memory_space<vmem>>, vector<512x128xbf16>,
    %28 = vector.extract_strided_slice %2 {offsets = [512, 0], sizes = [128, 128], strides = [1, 1]} : vector<672x128xf32> to vector<128x128xf32>
    %cst_12 = arith.constant dense<0.000000e+00> : vector<128xf32>
    %29 = vector.multi_reduction <add>, %28, %cst_12 [0] : vector<128x128xf32> to vector<128xf32>
    %30 = vector.shape_cast %29 : vector<128xf32> to vector<1x128xf32>
    %cst_13 = arith.constant 7.812500e-03 : f32
    %31 = vector.broadcast %cst_13 : f32 to vector<1x128xf32>
    %32 = arith.mulf %30, %31 : vector<1x128xf32>
    %33 = arith.mulf %28, %28 : vector<128x128xf32>
    %cst_14 = arith.constant dense<0.000000e+00> : vector<128xf32>
    %34 = vector.multi_reduction <add>, %33, %cst_14 [0] : vector<128x128xf32> to vector<128xf32>
    %35 = vector.shape_cast %34 : vector<128xf32> to vector<1x128xf32>
    %cst_15 = arith.constant 7.812500e-03 : f32
    %36 = vector.broadcast %cst_15 : f32 to vector<1x128xf32>
    %37 = arith.mulf %35, %36 : vector<1x128xf32>
    %38 = arith.mulf %32, %32 : vector<1x128xf32>
    %39 = arith.subf %37, %38 : vector<1x128xf32>
    %cst_16 = arith.constant 0.000000e+00 : f32
    %40 = vector.broadcast %cst_16 : f32 to vector<1x128xf32>
    %41 = arith.maximumf %39, %40 : vector<1x128xf32>
    %cst_17 = arith.constant 9.99999974E-6 : f32
    %42 = vector.broadcast %cst_17 : f32 to vector<1x128xf32>
    %43 = arith.addf %41, %42 : vector<1x128xf32>
    %44 = math.rsqrt %43 : vector<1x128xf32>
    %45 = vector.broadcast %32 : vector<1x128xf32> to vector<128x128xf32>
    %46 = arith.subf %28, %45 : vector<128x128xf32>
    %47 = vector.broadcast %44 : vector<1x128xf32> to vector<128x128xf32>
    %48 = arith.mulf %46, %47 : vector<128x128xf32>
    %cst_18 = arith.constant 0.000000e+00 : f32
    %49 = vector.broadcast %cst_18 : f32 to vector<128x128xf32>
    %50 = arith.maximumf %48, %49 : vector<128x128xf32>
    %51 = arith.truncf %50 : vector<128x128xf32> to vector<128x128xbf16>
    %c512 = arith.constant 512 : index
    %c0_19 = arith.constant 0 : index
    %52 = vector.load %arg2[%c512, %c0_19] : memref<672x128xbf16, #tpu.memory_space<vmem>>, vector<128x128xbf16>
    tpu.vector_store %arg2[%c512, %c0_19], %51 {strides = array<i32>} : memref<672x128xbf16, #tpu.memory_space<vmem>>, vector<128x128xbf16>,
    %53 = vector.extract_strided_slice %2 {offsets = [640, 0], sizes = [32, 128], strides = [1, 1]} : vector<672x128xf32> to vector<32x128xf32>
    %cst_20 = arith.constant dense<0.000000e+00> : vector<128xf32>
    %54 = vector.multi_reduction <add>, %53, %cst_20 [0] : vector<32x128xf32> to vector<128xf32>
    %55 = vector.shape_cast %54 : vector<128xf32> to vector<1x128xf32>
    %cst_21 = arith.constant 3.125000e-02 : f32
    %56 = vector.broadcast %cst_21 : f32 to vector<1x128xf32>
    %57 = arith.mulf %55, %56 : vector<1x128xf32>
    %58 = arith.mulf %53, %53 : vector<32x128xf32>
    %cst_22 = arith.constant dense<0.000000e+00> : vector<128xf32>
    %59 = vector.multi_reduction <add>, %58, %cst_22 [0] : vector<32x128xf32> to vector<128xf32>
    %60 = vector.shape_cast %59 : vector<128xf32> to vector<1x128xf32>
    %cst_23 = arith.constant 3.125000e-02 : f32
    %61 = vector.broadcast %cst_23 : f32 to vector<1x128xf32>
    %62 = arith.mulf %60, %61 : vector<1x128xf32>
    %63 = arith.mulf %57, %57 : vector<1x128xf32>
    %64 = arith.subf %62, %63 : vector<1x128xf32>
    %cst_24 = arith.constant 0.000000e+00 : f32
    %65 = vector.broadcast %cst_24 : f32 to vector<1x128xf32>
    %66 = arith.maximumf %64, %65 : vector<1x128xf32>
    %cst_25 = arith.constant 9.99999974E-6 : f32
    %67 = vector.broadcast %cst_25 : f32 to vector<1x128xf32>
    %68 = arith.addf %66, %67 : vector<1x128xf32>
    %69 = math.rsqrt %68 : vector<1x128xf32>
    %70 = vector.broadcast %57 : vector<1x128xf32> to vector<32x128xf32>
    %71 = arith.subf %53, %70 : vector<32x128xf32>
    %72 = vector.broadcast %69 : vector<1x128xf32> to vector<32x128xf32>
    %73 = arith.mulf %71, %72 : vector<32x128xf32>
    %cst_26 = arith.constant 0.000000e+00 : f32
    %74 = vector.broadcast %cst_26 : f32 to vector<32x128xf32>
    %75 = arith.maximumf %73, %74 : vector<32x128xf32>
    %76 = arith.truncf %75 : vector<32x128xf32> to vector<32x128xbf16>
    %c640 = arith.constant 640 : index
    %c0_27 = arith.constant 0 : index
    %77 = vector.load %arg2[%c640, %c0_27] : memref<672x128xbf16, #tpu.memory_space<vmem>>, vector<32x128xbf16>
    tpu.vector_store %arg2[%c640, %c0_27], %76 {strides = array<i32>} : memref<672x128xbf16, #tpu.memory_space<vmem>>, vector<32x128xbf16>,
    return
  }
}

</mosaic_0001>

<llo_original>
// kernel: mscdae_forward.6
$region0: #{mscdae_forward.6}
  #allocation0 [shape = 'u32[]', space=smem, size = 0x4, offset = 0x4, fixed_abs, tag = 'smem constant byte address 0x4 - core index']
  #allocation1 [shape = 'u32[144,128]{1,0:T(1,128)}', space=vmem, size = 0x12000, scoped, tag = 'internal scratch']
  %s0 = inlined_call_operand.vmem [shape: bf16[672,128], index: 0, kind: input, shape index: {}]
  %s1 = inlined_call_operand.vmem [shape: bf16[128,128], index: 1, kind: input, shape index: {}]
  %s2 = inlined_call_operand.vmem [shape: bf16[672,128], index: 2, kind: output, shape index: {}]
  %s3 = sld [smem:[#allocation0]]
  $region18: #{mscdae_forward.6} parent=0
    _
  %s5 = ssub.s32 1, %s3
  %s6 = scalar_select 0, %s5, %s3
  // Predicated region
  $region2: #{mscdae_forward.6} parent=0 // pred_check
    _
  $region3: #{mscdae_forward.6} parent=0 // pred_check_branch
    %8 = sbr.rel (0) target = $region5
  $region4: #{mscdae_forward.6} parent=0 // pred_region
    _
  $region5: #{mscdae_forward.6} parent=0 // pred_fallthru
    _
  // Predicated region
  $region6: #{mscdae_forward.6} parent=0 // pred_check
    _
  $region7: #{mscdae_forward.6} parent=0 // pred_check_branch
    %10 = sbr.rel (0) target = $region9
  $region8: #{mscdae_forward.6} parent=0 // pred_region
    _
  $region9: #{mscdae_forward.6} parent=0 // pred_fallthru
    _
  %v12 = vld [vmem:[%s0] sm:$0xf]
  %v13 = vld [vmem:[%s0 + $0x4] sm:$0xf]
  %v14 = vld [vmem:[%s0 + $0x8] sm:$0xf]
  %v15 = vld [vmem:[%s0 + $0xc] sm:$0xf]
  %v16 = vld [vmem:[%s0 + $0x10] sm:$0xf]
  %v17 = vld [vmem:[%s0 + $0x14] sm:$0xf]
  %v18 = vld [vmem:[%s0 + $0x18] sm:$0xf]
  %v19 = vld [vmem:[%s0 + $0x1c] sm:$0xf]
  %v20 = vld [vmem:[%s0 + $0x20] sm:$0xf]
  %v21 = vld [vmem:[%s0 + $0x24] sm:$0xf]
  %v22 = vld [vmem:[%s0 + $0x28] sm:$0xf]
  %v23 = vld [vmem:[%s0 + $0x2c] sm:$0xf]
  %v24 = vld [vmem:[%s0 + $0x30] sm:$0xf]
  %v25 = vld [vmem:[%s0 + $0x34] sm:$0xf]
  %v26 = vld [vmem:[%s0 + $0x38] sm:$0xf]
  %v27 = vld [vmem:[%s0 + $0x3c] sm:$0xf]
  %v28 = vld [vmem:[%s0 + $0x40] sm:$0xf]
  %v29 = vld [vmem:[%s0 + $0x44] sm:$0xf]
  %v30 = vld [vmem:[%s0 + $0x48] sm:$0xf]
  %v31 = vld [vmem:[%s0 + $0x4c] sm:$0xf]
  %v32 = vld [vmem:[%s0 + $0x50] sm:$0xf]
  %v33 = vld [vmem:[%s0 + $0x54] sm:$0xf]
  %v34 = vld [vmem:[%s0 + $0x58] sm:$0xf]
  %v35 = vld [vmem:[%s0 + $0x5c] sm:$0xf]
  %v36 = vld [vmem:[%s0 + $0x60] sm:$0xf]
  %v37 = vld [vmem:[%s0 + $0x64] sm:$0xf]
  %v38 = vld [vmem:[%s0 + $0x68] sm:$0xf]
  %v39 = vld [vmem:[%s0 + $0x6c] sm:$0xf]
  %v40 = vld [vmem:[%s0 + $0x70] sm:$0xf]
  %v41 = vld [vmem:[%s0 + $0x74] sm:$0xf]
  %v42 = vld [vmem:[%s0 + $0x78] sm:$0xf]
  %v43 = vld [vmem:[%s0 + $0x7c] sm:$0xf]
  %v44 = vld [vmem:[%s0 + $0x80] sm:$0xf]
  %v45 = vld [vmem:[%s0 + $0x84] sm:$0xf]
  %v46 = vld [vmem:[%s0 + $0x88] sm:$0xf]
  %v47 = vld [vmem:[%s0 + $0x8c] sm:$0xf]
  %v48 = vld [vmem:[%s0 + $0x90] sm:$0xf]
  %v49 = vld [vmem:[%s0 + $0x94] sm:$0xf]
  %v50 = vld [vmem:[%s0 + $0x98] sm:$0xf]
  %v51 = vld [vmem:[%s0 + $0x9c] sm:$0xf]
  %v52 = vld [vmem:[%s0 + $0xa0] sm:$0xf]
  %v53 = vld [vmem:[%s0 + $0xa4] sm:$0xf]
  %v54 = vld [vmem:[%s0 + $0xa8] sm:$0xf]
  %v55 = vld [vmem:[%s0 + $0xac] sm:$0xf]
  %v56 = vld [vmem:[%s0 + $0xb0] sm:$0xf]
  %v57 = vld [vmem:[%s0 + $0xb4] sm:$0xf]
  %v58 = vld [vmem:[%s0 + $0xb8] sm:$0xf]
  %v59 = vld [vmem:[%s0 + $0xbc] sm:$0xf]
  %v60 = vld [vmem:[%s0 + $0xc0] sm:$0xf]
  %v61 = vld [vmem:[%s0 + $0xc4] sm:$0xf]
  %v62 = vld [vmem:[%s0 + $0xc8] sm:$0xf]
  %v63 = vld [vmem:[%s0 + $0xcc] sm:$0xf]
  %v64 = vld [vmem:[%s0 + $0xd0] sm:$0xf]
  %v65 = vld [vmem:[%s0 + $0xd4] sm:$0xf]
  %v66 = vld [vmem:[%s0 + $0xd8] sm:$0xf]
  %v67 = vld [vmem:[%s0 + $0xdc] sm:$0xf]
  %v68 = vld [vmem:[%s0 + $0xe0] sm:$0xf]
  %v69 = vld [vmem:[%s0 + $0xe4] sm:$0xf]
  %v70 = vld [vmem:[%s0 + $0xe8] sm:$0xf]
  %v71 = vld [vmem:[%s0 + $0xec] sm:$0xf]
  %v72 = vld [vmem:[%s0 + $0xf0] sm:$0xf]
  %v73 = vld [vmem:[%s0 + $0xf4] sm:$0xf]
  %v74 = vld [vmem:[%s0 + $0xf8] sm:$0xf]
  %v75 = vld [vmem:[%s0 + $0xfc] sm:$0xf]
  %v76 = vld [vmem:[%s0 + $0x100] sm:$0xf]
  %v77 = vld [vmem:[%s0 + $0x104] sm:$0xf]
  %v78 = vld [vmem:[%s0 + $0x108] sm:$0xf]
  %v79 = vld [vmem:[%s0 + $0x10c] sm:$0xf]
  %v80 = vld [vmem:[%s0 + $0x110] sm:$0xf]
  %v81 = vld [vmem:[%s0 + $0x114] sm:$0xf]
  %v82 = vld [vmem:[%s0 + $0x118] sm:$0xf]
  %v83 = vld [vmem:[%s0 + $0x11c] sm:$0xf]
  %v84 = vld [vmem:[%s0 + $0x120] sm:$0xf]
  %v85 = vld [vmem:[%s0 + $0x124] sm:$0xf]
  %v86 = vld [vmem:[%s0 + $0x128] sm:$0xf]
  %v87 = vld [vmem:[%s0 + $0x12c] sm:$0xf]
  %v88 = vld [vmem:[%s0 + $0x130] sm:$0xf]
  %v89 = vld [vmem:[%s0 + $0x134] sm:$0xf]
  %v90 = vld [vmem:[%s0 + $0x138] sm:$0xf]
  %v91 = vld [vmem:[%s0 + $0x13c] sm:$0xf]
  %v92 = vld [vmem:[%s0 + $0x140] sm:$0xf]
  %v93 = vld [vmem:[%s0 + $0x144] sm:$0xf]
  %v94 = vld [vmem:[%s0 + $0x148] sm:$0xf]
  %v95 = vld [vmem:[%s0 + $0x14c] sm:$0xf]
  %v96 = vld [vmem:[%s1] sm:$0xf]
  %v97 = vld [vmem:[%s1 + $0x4] sm:$0xf]
  %v98 = vld [vmem:[%s1 + $0x8] sm:$0xf]
  %v99 = vld [vmem:[%s1 + $0xc] sm:$0xf]
  %v100 = vld [vmem:[%s1 + $0x10] sm:$0xf]
  %v101 = vld [vmem:[%s1 + $0x14] sm:$0xf]
  %v102 = vld [vmem:[%s1 + $0x18] sm:$0xf]
  %v103 = vld [vmem:[%s1 + $0x1c] sm:$0xf]
  %v104 = vld [vmem:[%s1 + $0x20] sm:$0xf]
  %v105 = vld [vmem:[%s1 + $0x24] sm:$0xf]
  %v106 = vld [vmem:[%s1 + $0x28] sm:$0xf]
  %v107 = vld [vmem:[%s1 + $0x2c] sm:$0xf]
  %v108 = vld [vmem:[%s1 + $0x30] sm:$0xf]
  %v109 = vld [vmem:[%s1 + $0x34] sm:$0xf]
  %v110 = vld [vmem:[%s1 + $0x38] sm:$0xf]
  %v111 = vld [vmem:[%s1 + $0x3c] sm:$0xf]
  %v196 = vunpack.c.l.b16 %v12
  %v197 = vunpack.c.l.b16 %v13
  %v198 = vunpack.c.l.b16 %v14
  %v199 = vunpack.c.l.b16 %v15
  %v200 = vunpack.c.l.b16 %v16
  %v201 = vunpack.c.l.b16 %v17
  %v202 = vunpack.c.l.b16 %v18
  %v203 = vunpack.c.l.b16 %v19
  %v204 = vunpack.c.l.b16 %v20
  %v205 = vunpack.c.l.b16 %v21
  %v206 = vunpack.c.l.b16 %v22
  %v207 = vunpack.c.l.b16 %v23
  %v208 = vunpack.c.l.b16 %v24
  %v209 = vunpack.c.l.b16 %v25
  %v210 = vunpack.c.l.b16 %v26
  %v211 = vunpack.c.l.b16 %v27
  %v212 = vunpack.c.l.b16 %v28
  %v213 = vunpack.c.l.b16 %v29
  %v214 = vunpack.c.l.b16 %v30
  %v215 = vunpack.c.l.b16 %v31
  %v216 = vunpack.c.l.b16 %v32
  %v217 = vunpack.c.l.b16 %v33
  %v218 = vunpack.c.l.b16 %v34
  %v219 = vunpack.c.l.b16 %v35
  %v220 = vunpack.c.l.b16 %v36
  %v221 = vunpack.c.l.b16 %v37
  %v222 = vunpack.c.l.b16 %v38
  %v223 = vunpack.c.l.b16 %v39
  %v224 = vunpack.c.l.b16 %v40
  %v225 = vunpack.c.l.b16 %v41
  %v226 = vunpack.c.l.b16 %v42
  %v227 = vunpack.c.l.b16 %v43
  %v228 = vunpack.c.l.b16 %v44
  %v229 = vunpack.c.l.b16 %v45
  %v230 = vunpack.c.l.b16 %v46
  %v231 = vunpack.c.l.b16 %v47
  %v232 = vunpack.c.l.b16 %v48
  %v233 = vunpack.c.l.b16 %v49
  %v234 = vunpack.c.l.b16 %v50
  %v235 = vunpack.c.l.b16 %v51
  %v236 = vunpack.c.l.b16 %v52
  %v237 = vunpack.c.l.b16 %v53
  %v238 = vunpack.c.l.b16 %v54
  %v239 = vunpack.c.l.b16 %v55
  %v240 = vunpack.c.l.b16 %v56
  %v241 = vunpack.c.l.b16 %v57
  %v242 = vunpack.c.l.b16 %v58
  %v243 = vunpack.c.l.b16 %v59
  %v244 = vunpack.c.l.b16 %v60
  %v245 = vunpack.c.l.b16 %v61
  %v246 = vunpack.c.l.b16 %v62
  %v247 = vunpack.c.l.b16 %v63
  %v248 = vunpack.c.l.b16 %v64
  %v249 = vunpack.c.l.b16 %v65
  %v250 = vunpack.c.l.b16 %v66
  %v251 = vunpack.c.l.b16 %v67
  %v252 = vunpack.c.l.b16 %v68
  %v253 = vunpack.c.l.b16 %v69
  %v254 = vunpack.c.l.b16 %v70
  %v255 = vunpack.c.l.b16 %v71
  %v256 = vunpack.c.l.b16 %v72
  %v257 = vunpack.c.l.b16 %v73
  %v258 = vunpack.c.l.b16 %v74
  %v259 = vunpack.c.l.b16 %v75
  %v260 = vunpack.c.l.b16 %v76
  %v261 = vunpack.c.l.b16 %v77
  %v262 = vunpack.c.l.b16 %v78
  %v263 = vunpack.c.l.b16 %v79
  %v264 = vunpack.c.l.b16 %v80
  %v265 = vunpack.c.l.b16 %v81
  %v266 = vunpack.c.l.b16 %v82
  %v267 = vunpack.c.l.b16 %v83
  %v268 = vunpack.c.l.b16 %v84
  %v269 = vunpack.c.l.b16 %v85
  %v270 = vunpack.c.l.b16 %v86
  %v271 = vunpack.c.l.b16 %v87
  %v272 = vunpack.c.l.b16 %v88
  %v273 = vunpack.c.l.b16 %v89
  %v274 = vunpack.c.l.b16 %v90
  %v275 = vunpack.c.l.b16 %v91
  %v276 = vunpack.c.l.b16 %v92
  %v277 = vunpack.c.l.b16 %v93
  %v278 = vunpack.c.l.b16 %v94
  %v279 = vunpack.c.l.b16 %v95
  %v280 = vpack.c.b16 %v197, %v196
  %v281 = vpack.c.b16 %v199, %v198
  %v282 = vpack.c.b16 %v201, %v200
  %v283 = vpack.c.b16 %v203, %v202
  %v284 = vpack.c.b16 %v205, %v204
  %v285 = vpack.c.b16 %v207, %v206
  %v286 = vpack.c.b16 %v209, %v208
  %v287 = vpack.c.b16 %v211, %v210
  %v288 = vpack.c.b16 %v213, %v212
  %v289 = vpack.c.b16 %v215, %v214
  %v290 = vpack.c.b16 %v217, %v216
  %v291 = vpack.c.b16 %v219, %v218
  %v292 = vpack.c.b16 %v221, %v220
  %v293 = vpack.c.b16 %v223, %v222
  %v294 = vpack.c.b16 %v225, %v224
  %v295 = vpack.c.b16 %v227, %v226
  %v296 = vpack.c.b16 %v229, %v228
  %v297 = vpack.c.b16 %v231, %v230
  %v298 = vpack.c.b16 %v233, %v232
  %v299 = vpack.c.b16 %v235, %v234
  %v300 = vpack.c.b16 %v237, %v236
  %v301 = vpack.c.b16 %v239, %v238
  %v302 = vpack.c.b16 %v241, %v240
  %v303 = vpack.c.b16 %v243, %v242
  %v304 = vpack.c.b16 %v245, %v244
  %v305 = vpack.c.b16 %v247, %v246
  %v306 = vpack.c.b16 %v249, %v248
  %v307 = vpack.c.b16 %v251, %v250
  %v308 = vpack.c.b16 %v253, %v252
  %v309 = vpack.c.b16 %v255, %v254
  %v310 = vpack.c.b16 %v257, %v256
  %v311 = vpack.c.b16 %v259, %v258
  %v312 = vpack.c.b16 %v261, %v260
  %v313 = vpack.c.b16 %v263, %v262
  %v314 = vpack.c.b16 %v265, %v264
  %v315 = vpack.c.b16 %v267, %v266
  %v316 = vpack.c.b16 %v269, %v268
  %v317 = vpack.c.b16 %v271, %v270
  %v318 = vpack.c.b16 %v273, %v272
  %v319 = vpack.c.b16 %v275, %v274
  %v320 = vpack.c.b16 %v277, %v276
  %v321 = vpack.c.b16 %v279, %v278
  %v380 = vunpack.c.l.b16 %v96
  %v381 = vunpack.c.l.b16 %v97
  %v382 = vunpack.c.l.b16 %v98
  %v383 = vunpack.c.l.b16 %v99
  %v384 = vunpack.c.l.b16 %v100
  %v385 = vunpack.c.l.b16 %v101
  %v386 = vunpack.c.l.b16 %v102
  %v387 = vunpack.c.l.b16 %v103
  %v388 = vunpack.c.l.b16 %v104
  %v389 = vunpack.c.l.b16 %v105
  %v390 = vunpack.c.l.b16 %v106
  %v391 = vunpack.c.l.b16 %v107
  %v392 = vunpack.c.l.b16 %v108
  %v393 = vunpack.c.l.b16 %v109
  %v394 = vunpack.c.l.b16 %v110
  %v395 = vunpack.c.l.b16 %v111
  %v396 = vpack.c.b16 %v381, %v380
  %v397 = vpack.c.b16 %v383, %v382
  %v398 = vpack.c.b16 %v385, %v384
  %v399 = vpack.c.b16 %v387, %v386
  %v400 = vpack.c.b16 %v389, %v388
  %v401 = vpack.c.b16 %v391, %v390
  %v402 = vpack.c.b16 %v393, %v392
  %v403 = vpack.c.b16 %v395, %v394
  %412 = vmatprep.subr.bf16.mxu0 0
  %413 = vmatpush1.bf16.msra.mxu0 %v396
  %414 = vmatprep.subr.bf16.mxu0 0
  %415 = vmatpush1.bf16.msra.mxu0 %v397
  %416 = vmatprep.subr.bf16.mxu0 0
  %417 = vmatpush1.bf16.msra.mxu0 %v398
  %418 = vmatprep.subr.bf16.mxu0 0
  %419 = vmatpush1.bf16.msra.mxu0 %v399
  %420 = vmatprep.subr.bf16.mxu0 0
  %421 = vmatpush1.bf16.msra.mxu0 %v400
  %422 = vmatprep.subr.bf16.mxu0 0
  %423 = vmatpush1.bf16.msra.mxu0 %v401
  %424 = vmatprep.subr.bf16.mxu0 0
  %425 = vmatpush1.bf16.msra.mxu0 %v402
  %426 = vmatprep.subr.bf16.mxu0 0
  %427 = vmatpush1.bf16.msra.mxu0 %v403
  %428 = vmatprep.subr.bf16.mxu0 0
  %429 = vmatpush1.bf16.msra.mxu0 0
  %430 = vmatprep.subr.bf16.mxu0 0
  %431 = vmatpush1.bf16.msra.mxu0 0
  %432 = vmatprep.subr.bf16.mxu0 0
  %433 = vmatpush1.bf16.msra.mxu0 0
  %434 = vmatprep.subr.bf16.mxu0 0
  %435 = vmatpush1.bf16.msra.mxu0 0
  %436 = vmatprep.subr.bf16.mxu0 0
  %437 = vmatpush1.bf16.msra.mxu0 0
  %438 = vmatprep.subr.bf16.mxu0 0
  %439 = vmatpush1.bf16.msra.mxu0 0
  %440 = vmatprep.subr.bf16.mxu0 0
  %441 = vmatpush1.bf16.msra.mxu0 0
  %442 = vmatprep.subr.bf16.mxu0 0
  %443 = vmatpush1.bf16.msra.mxu0 0
  %444 = vmatprep.mubr.bf16.mxu0 0
  %445 = vmatmul.mubr.bf16.gmra.mrb[0].mxu0 %v280
  %v446 = vpop.f32.mrb[0].mxu0
  %v447 = vadd.f32 0.0, %v446
  %v448 = vpop.f32.mrb[0].mxu0
  %v449 = vpop.f32.mrb[0].mxu0
  %v450 = vadd.f32 0.0, %v449
  %v451 = vpop.f32.mrb[0].mxu0
  %452 = vmatprep.mubr.bf16.mxu0 0
  %453 = vmatmul.mubr.bf16.gmra.mrb[0].mxu0 %v281
  %v454 = vpop.f32.mrb[0].mxu0
  %v455 = vadd.f32 0.0, %v454
  %v456 = vpop.f32.mrb[0].mxu0
  %v457 = vpop.f32.mrb[0].mxu0
  %v458 = vadd.f32 0.0, %v457
  %v459 = vpop.f32.mrb[0].mxu0
  %460 = vmatprep.mubr.bf16.mxu0 0
  %461 = vmatmul.mubr.bf16.gmra.mrb[0].mxu0 %v282
  %v462 = vpop.f32.mrb[0].mxu0
  %v463 = vadd.f32 0.0, %v462
  %v464 = vpop.f32.mrb[0].mxu0
  %v465 = vpop.f32.mrb[0].mxu0
  %v466 = vadd.f32 0.0, %v465
  %v467 = vpop.f32.mrb[0].mxu0
  %468 = vmatprep.mubr.bf16.mxu0 0
  %469 = vmatmul.mubr.bf16.gmra.mrb[0].mxu0 %v283
  %v470 = vpop.f32.mrb[0].mxu0
  %v471 = vadd.f32 0.0, %v470
  %v472 = vpop.f32.mrb[0].mxu0
  %v473 = vpop.f32.mrb[0].mxu0
  %v474 = vadd.f32 0.0, %v473
  %v475 = vpop.f32.mrb[0].mxu0
  %476 = vmatprep.mubr.bf16.mxu0 0
  %477 = vmatmul.mubr.bf16.gmra.mrb[0].mxu0 %v284
  %v478 = vpop.f32.mrb[0].mxu0
  %v479 = vadd.f32 0.0, %v478
  %v480 = vpop.f32.mrb[0].mxu0
  %v481 = vpop.f32.mrb[0].mxu0
  %v482 = vadd.f32 0.0, %v481
  %v483 = vpop.f32.mrb[0].mxu0
  %484 = vmatprep.mubr.bf16.mxu0 0
  %485 = vmatmul.mubr.bf16.gmra.mrb[0].mxu0 %v285
  %v486 = vpop.f32.mrb[0].mxu0
  %v487 = vadd.f32 0.0, %v486
  %v488 = vpop.f32.mrb[0].mxu0
  %v489 = vpop.f32.mrb[0].mxu0
  %v490 = vadd.f32 0.0, %v489
  %v491 = vpop.f32.mrb[0].mxu0
  %492 = vmatprep.mubr.bf16.mxu0 0
  %493 = vmatmul.mubr.bf16.gmra.mrb[0].mxu0 %v286
  %v494 = vpop.f32.mrb[0].mxu0
  %v495 = vadd.f32 0.0, %v494
  %v496 = vpop.f32.mrb[0].mxu0
  %v497 = vpop.f32.mrb[0].mxu0
  %v498 = vadd.f32 0.0, %v497
  %v499 = vpop.f32.mrb[0].mxu0
  %500 = vmatprep.mubr.bf16.mxu0 0
  %501 = vmatmul.mubr.bf16.gmra.mrb[0].mxu0 %v287
  %v502 = vpop.f32.mrb[0].mxu0
  %v503 = vadd.f32 0.0, %v502
  %v504 = vpop.f32.mrb[0].mxu0
  %v505 = vpop.f32.mrb[0].mxu0
  %v506 = vadd.f32 0.0, %v505
  %v507 = vpop.f32.mrb[0].mxu0
  %508 = vmatprep.mubr.bf16.mxu0 0
  %509 = vmatmul.mubr.bf16.gmra.mrb[0].mxu0 %v288
  %v510 = vpop.f32.mrb[0].mxu0
  %v511 = vadd.f32 0.0, %v510
  %v512 = vpop.f32.mrb[0].mxu0
  %v513 = vpop.f32.mrb[0].mxu0
  %v514 = vadd.f32 0.0, %v513
  %v515 = vpop.f32.mrb[0].mxu0
  %516 = vmatprep.mubr.bf16.mxu0 0
  %517 = vmatmul.mubr.bf16.gmra.mrb[0].mxu0 %v289
  %v518 = vpop.f32.mrb[0].mxu0
  %v519 = vadd.f32 0.0, %v518
  %v520 = vpop.f32.mrb[0].mxu0
  %v521 = vpop.f32.mrb[0].mxu0
  %v522 = vadd.f32 0.0, %v521
  %v523 = vpop.f32.mrb[0].mxu0
  %524 = vmatprep.mubr.bf16.mxu0 0
  %525 = vmatmul.mubr.bf16.gmra.mrb[0].mxu0 %v290
  %v526 = vpop.f32.mrb[0].mxu0
  %v527 = vadd.f32 0.0, %v526
  %v528 = vpop.f32.mrb[0].mxu0
  %v529 = vpop.f32.mrb[0].mxu0
  %v530 = vadd.f32 0.0, %v529
  %v531 = vpop.f32.mrb[0].mxu0
  %532 = vmatprep.mubr.bf16.mxu0 0
  %533 = vmatmul.mubr.bf16.gmra.mrb[0].mxu0 %v291
  %v534 = vpop.f32.mrb[0].mxu0
  %v535 = vadd.f32 0.0, %v534
  %v536 = vpop.f32.mrb[0].mxu0
  %v537 = vpop.f32.mrb[0].mxu0
  %v538 = vadd.f32 0.0, %v537
  %v539 = vpop.f32.mrb[0].mxu0
  %540 = vmatprep.mubr.bf16.mxu0 0
  %541 = vmatmul.mubr.bf16.gmra.mrb[0].mxu0 %v292
  %v542 = vpop.f32.mrb[0].mxu0
  %v543 = vadd.f32 0.0, %v542
  %v544 = vpop.f32.mrb[0].mxu0
  %v545 = vpop.f32.mrb[0].mxu0
  %v546 = vadd.f32 0.0, %v545
  %v547 = vpop.f32.mrb[0].mxu0
  %548 = vmatprep.mubr.bf16.mxu0 0
  %549 = vmatmul.mubr.bf16.gmra.mrb[0].mxu0 %v293
  %v550 = vpop.f32.mrb[0].mxu0
  %v551 = vadd.f32 0.0, %v550
  %v552 = vpop.f32.mrb[0].mxu0
  %v553 = vpop.f32.mrb[0].mxu0
  %v554 = vadd.f32 0.0, %v553
  %v555 = vpop.f32.mrb[0].mxu0
  %556 = vmatprep.mubr.bf16.mxu0 0
  %557 = vmatmul.mubr.bf16.gmra.mrb[0].mxu0 %v294
  %v558 = vpop.f32.mrb[0].mxu0
  %v559 = vadd.f32 0.0, %v558
  %v560 = vpop.f32.mrb[0].mxu0
  %v561 = vpop.f32.mrb[0].mxu0
  %v562 = vadd.f32 0.0, %v561
  %v563 = vpop.f32.mrb[0].mxu0
  %564 = vmatprep.mubr.bf16.mxu0 0
  %565 = vmatmul.mubr.bf16.gmra.mrb[0].mxu0 %v295
  %v566 = vpop.f32.mrb[0].mxu0
  %v567 = vadd.f32 0.0, %v566
  %v568 = vpop.f32.mrb[0].mxu0
  %v569 = vpop.f32.mrb[0].mxu0
  %v570 = vadd.f32 0.0, %v569
  %v571 = vpop.f32.mrb[0].mxu0
  %572 = vmatprep.mubr.bf16.mxu0 0
  %573 = vmatmul.mubr.bf16.gmra.mrb[0].mxu0 %v296
  %v574 = vpop.f32.mrb[0].mxu0
  %v575 = vadd.f32 0.0, %v574
  %v576 = vpop.f32.mrb[0].mxu0
  %v577 = vpop.f32.mrb[0].mxu0
  %v578 = vadd.f32 0.0, %v577
  %v579 = vpop.f32.mrb[0].mxu0
  %580 = vmatprep.mubr.bf16.mxu0 0
  %581 = vmatmul.mubr.bf16.gmra.mrb[0].mxu0 %v297
  %v582 = vpop.f32.mrb[0].mxu0
  %v583 = vadd.f32 0.0, %v582
  %v584 = vpop.f32.mrb[0].mxu0
  %v585 = vpop.f32.mrb[0].mxu0
  %v586 = vadd.f32 0.0, %v585
  %v587 = vpop.f32.mrb[0].mxu0
  %588 = vmatprep.mubr.bf16.mxu0 0
  %589 = vmatmul.mubr.bf16.gmra.mrb[0].mxu0 %v298
  %v590 = vpop.f32.mrb[0].mxu0
  %v591 = vadd.f32 0.0, %v590
  %v592 = vpop.f32.mrb[0].mxu0
  %v593 = vpop.f32.mrb[0].mxu0
  %v594 = vadd.f32 0.0, %v593
  %v595 = vpop.f32.mrb[0].mxu0
  %596 = vmatprep.mubr.bf16.mxu0 0
  %597 = vmatmul.mubr.bf16.gmra.mrb[0].mxu0 %v299
  %v598 = vpop.f32.mrb[0].mxu0
  %v599 = vadd.f32 0.0, %v598
  %v600 = vpop.f32.mrb[0].mxu0
  %v601 = vpop.f32.mrb[0].mxu0
  %v602 = vadd.f32 0.0, %v601
  %v603 = vpop.f32.mrb[0].mxu0
  %604 = vmatprep.mubr.bf16.mxu0 0
  %605 = vmatmul.mubr.bf16.gmra.mrb[0].mxu0 %v300
  %v606 = vpop.f32.mrb[0].mxu0
  %v607 = vadd.f32 0.0, %v606
  %v608 = vpop.f32.mrb[0].mxu0
  %v609 = vpop.f32.mrb[0].mxu0
  %v610 = vadd.f32 0.0, %v609
  %v611 = vpop.f32.mrb[0].mxu0
  %612 = vmatprep.mubr.bf16.mxu0 0
  %613 = vmatmul.mubr.bf16.gmra.mrb[0].mxu0 %v301
  %v614 = vpop.f32.mrb[0].mxu0
  %v615 = vadd.f32 0.0, %v614
  %v616 = vpop.f32.mrb[0].mxu0
  %v617 = vpop.f32.mrb[0].mxu0
  %v618 = vadd.f32 0.0, %v617
  %v619 = vpop.f32.mrb[0].mxu0
  %620 = vmatprep.mubr.bf16.mxu0 0
  %621 = vmatmul.mubr.bf16.gmra.mrb[0].mxu0 %v302
  %v622 = vpop.f32.mrb[0].mxu0
  %v623 = vadd.f32 0.0, %v622
  %v624 = vpop.f32.mrb[0].mxu0
  %v625 = vpop.f32.mrb[0].mxu0
  %v626 = vadd.f32 0.0, %v625
  %v627 = vpop.f32.mrb[0].mxu0
  %628 = vmatprep.mubr.bf16.mxu0 0
  %629 = vmatmul.mubr.bf16.gmra.mrb[0].mxu0 %v303
  %v630 = vpop.f32.mrb[0].mxu0
  %v631 = vadd.f32 0.0, %v630
  %v632 = vpop.f32.mrb[0].mxu0
  %v633 = vpop.f32.mrb[0].mxu0
  %v634 = vadd.f32 0.0, %v633
  %v635 = vpop.f32.mrb[0].mxu0
  %636 = vmatprep.mubr.bf16.mxu0 0
  %637 = vmatmul.mubr.bf16.gmra.mrb[0].mxu0 %v304
  %v638 = vpop.f32.mrb[0].mxu0
  %v639 = vadd.f32 0.0, %v638
  %v640 = vpop.f32.mrb[0].mxu0
  %v641 = vpop.f32.mrb[0].mxu0
  %v642 = vadd.f32 0.0, %v641
  %v643 = vpop.f32.mrb[0].mxu0
  %644 = vmatprep.mubr.bf16.mxu0 0
  %645 = vmatmul.mubr.bf16.gmra.mrb[0].mxu0 %v305
  %v646 = vpop.f32.mrb[0].mxu0
  %v647 = vadd.f32 0.0, %v646
  %v648 = vpop.f32.mrb[0].mxu0
  %v649 = vpop.f32.mrb[0].mxu0
  %v650 = vadd.f32 0.0, %v649
  %v651 = vpop.f32.mrb[0].mxu0
  %652 = vmatprep.mubr.bf16.mxu0 0
  %653 = vmatmul.mubr.bf16.gmra.mrb[0].mxu0 %v306
  %v654 = vpop.f32.mrb[0].mxu0
  %v655 = vadd.f32 0.0, %v654
  %v656 = vpop.f32.mrb[0].mxu0
  %v657 = vpop.f32.mrb[0].mxu0
  %v658 = vadd.f32 0.0, %v657
  %v659 = vpop.f32.mrb[0].mxu0
  %660 = vmatprep.mubr.bf16.mxu0 0
  %661 = vmatmul.mubr.bf16.gmra.mrb[0].mxu0 %v307
  %v662 = vpop.f32.mrb[0].mxu0
  %v663 = vadd.f32 0.0, %v662
  %v664 = vpop.f32.mrb[0].mxu0
  %v665 = vpop.f32.mrb[0].mxu0
  %v666 = vadd.f32 0.0, %v665
  %v667 = vpop.f32.mrb[0].mxu0
  %668 = vmatprep.mubr.bf16.mxu0 0
  %669 = vmatmul.mubr.bf16.gmra.mrb[0].mxu0 %v308
  %v670 = vpop.f32.mrb[0].mxu0
  %v671 = vadd.f32 0.0, %v670
  %v672 = vpop.f32.mrb[0].mxu0
  %v673 = vpop.f32.mrb[0].mxu0
  %v674 = vadd.f32 0.0, %v673
  %v675 = vpop.f32.mrb[0].mxu0
  %676 = vmatprep.mubr.bf16.mxu0 0
  %677 = vmatmul.mubr.bf16.gmra.mrb[0].mxu0 %v309
  %v678 = vpop.f32.mrb[0].mxu0
  %v679 = vadd.f32 0.0, %v678
  %v680 = vpop.f32.mrb[0].mxu0
  %v681 = vpop.f32.mrb[0].mxu0
  %v682 = vadd.f32 0.0, %v681
  %v683 = vpop.f32.mrb[0].mxu0
  %684 = vmatprep.mubr.bf16.mxu0 0
  %685 = vmatmul.mubr.bf16.gmra.mrb[0].mxu0 %v310
  %v686 = vpop.f32.mrb[0].mxu0
  %v687 = vadd.f32 0.0, %v686
  %v688 = vpop.f32.mrb[0].mxu0
  %v689 = vpop.f32.mrb[0].mxu0
  %v690 = vadd.f32 0.0, %v689
  %v691 = vpop.f32.mrb[0].mxu0
  %692 = vmatprep.mubr.bf16.mxu0 0
  %693 = vmatmul.mubr.bf16.gmra.mrb[0].mxu0 %v311
  %v694 = vpop.f32.mrb[0].mxu0
  %v695 = vadd.f32 0.0, %v694
  %v696 = vpop.f32.mrb[0].mxu0
  %v697 = vpop.f32.mrb[0].mxu0
  %v698 = vadd.f32 0.0, %v697
  %v699 = vpop.f32.mrb[0].mxu0
  %700 = vmatprep.mubr.bf16.mxu0 0
  %701 = vmatmul.mubr.bf16.gmra.mrb[0].mxu0 %v312
  %v702 = vpop.f32.mrb[0].mxu0
  %v703 = vadd.f32 0.0, %v702
  %v704 = vpop.f32.mrb[0].mxu0
  %v705 = vpop.f32.mrb[0].mxu0
  %v706 = vadd.f32 0.0, %v705
  %v707 = vpop.f32.mrb[0].mxu0
  %708 = vmatprep.mubr.bf16.mxu0 0
  %709 = vmatmul.mubr.bf16.gmra.mrb[0].mxu0 %v313
  %v710 = vpop.f32.mrb[0].mxu0
  %v711 = vadd.f32 0.0, %v710
  %v712 = vpop.f32.mrb[0].mxu0
  %v713 = vpop.f32.mrb[0].mxu0
  %v714 = vadd.f32 0.0, %v713
  %v715 = vpop.f32.mrb[0].mxu0
  %716 = vmatprep.mubr.bf16.mxu0 0
  %717 = vmatmul.mubr.bf16.gmra.mrb[0].mxu0 %v314
  %v718 = vpop.f32.mrb[0].mxu0
  %v719 = vadd.f32 0.0, %v718
  %v720 = vpop.f32.mrb[0].mxu0
  %v721 = vpop.f32.mrb[0].mxu0
  %v722 = vadd.f32 0.0, %v721
  %v723 = vpop.f32.mrb[0].mxu0
  %724 = vmatprep.mubr.bf16.mxu0 0
  %725 = vmatmul.mubr.bf16.gmra.mrb[0].mxu0 %v315
  %v726 = vpop.f32.mrb[0].mxu0
  %v727 = vadd.f32 0.0, %v726
  %v728 = vpop.f32.mrb[0].mxu0
  %v729 = vpop.f32.mrb[0].mxu0
  %v730 = vadd.f32 0.0, %v729
  %v731 = vpop.f32.mrb[0].mxu0
  %732 = vmatprep.mubr.bf16.mxu0 0
  %733 = vmatmul.mubr.bf16.gmra.mrb[0].mxu0 %v316
  %v734 = vpop.f32.mrb[0].mxu0
  %v735 = vadd.f32 0.0, %v734
  %v736 = vpop.f32.mrb[0].mxu0
  %v737 = vpop.f32.mrb[0].mxu0
  %v738 = vadd.f32 0.0, %v737
  %v739 = vpop.f32.mrb[0].mxu0
  %740 = vmatprep.mubr.bf16.mxu0 0
  %741 = vmatmul.mubr.bf16.gmra.mrb[0].mxu0 %v317
  %v742 = vpop.f32.mrb[0].mxu0
  %v743 = vadd.f32 0.0, %v742
  %v744 = vpop.f32.mrb[0].mxu0
  %v745 = vpop.f32.mrb[0].mxu0
  %v746 = vadd.f32 0.0, %v745
  %v747 = vpop.f32.mrb[0].mxu0
  %748 = vmatprep.mubr.bf16.mxu0 0
  %749 = vmatmul.mubr.bf16.gmra.mrb[0].mxu0 %v318
  %v750 = vpop.f32.mrb[0].mxu0
  %v751 = vadd.f32 0.0, %v750
  %v752 = vpop.f32.mrb[0].mxu0
  %v753 = vpop.f32.mrb[0].mxu0
  %v754 = vadd.f32 0.0, %v753
  %v755 = vpop.f32.mrb[0].mxu0
  %756 = vmatprep.mubr.bf16.mxu0 0
  %757 = vmatmul.mubr.bf16.gmra.mrb[0].mxu0 %v319
  %v758 = vpop.f32.mrb[0].mxu0
  %v759 = vadd.f32 0.0, %v758
  %v760 = vpop.f32.mrb[0].mxu0
  %v761 = vpop.f32.mrb[0].mxu0
  %v762 = vadd.f32 0.0, %v761
  %v763 = vpop.f32.mrb[0].mxu0
  %764 = vmatprep.mubr.bf16.mxu0 0
  %765 = vmatmul.mubr.bf16.gmra.mrb[0].mxu0 %v320
  %v766 = vpop.f32.mrb[0].mxu0
  %v767 = vadd.f32 0.0, %v766
  %v768 = vpop.f32.mrb[0].mxu0
  %v769 = vpop.f32.mrb[0].mxu0
  %v770 = vadd.f32 0.0, %v769
  %v771 = vpop.f32.mrb[0].mxu0
  %772 = vmatprep.mubr.bf16.mxu0 0
  %773 = vmatmul.mubr.bf16.gmra.mrb[0].mxu0 %v321
  %v774 = vpop.f32.mrb[0].mxu0
  %v775 = vadd.f32 0.0, %v774
  %v776 = vpop.f32.mrb[0].mxu0
  %v777 = vpop.f32.mrb[0].mxu0
  %v778 = vadd.f32 0.0, %v777
  %v779 = vpop.f32.mrb[0].mxu0
  %780 = vdwg.mxu0
  %v781 = vadd.f32 %v447, %v450
  %v782 = vadd.f32 %v781, %v455
  %v783 = vadd.f32 %v782, %v458
  %v784 = vadd.f32 %v783, %v463
  %v785 = vadd.f32 %v784, %v466
  %v786 = vadd.f32 %v785, %v471
  %v787 = vadd.f32 %v786, %v474
  %v788 = vadd.f32 %v787, %v479
  %v789 = vadd.f32 %v788, %v482
  %v790 = vadd.f32 %v789, %v487
  %v791 = vadd.f32 %v790, %v490
  %v792 = vadd.f32 %v791, %v495
  %v793 = vadd.f32 %v792, %v498
  %v794 = vadd.f32 %v793, %v503
  %v795 = vadd.f32 %v794, %v506
  %v796 = vadd.f32 %v795, %v511
  %v797 = vadd.f32 %v796, %v514
  %v798 = vadd.f32 %v797, %v519
  %v799 = vadd.f32 %v798, %v522
  %v800 = vadd.f32 %v799, %v527
  %v801 = vadd.f32 %v800, %v530
  %v802 = vadd.f32 %v801, %v535
  %v803 = vadd.f32 %v802, %v538
  %v804 = vadd.f32 %v803, %v543
  %v805 = vadd.f32 %v804, %v546
  %v806 = vadd.f32 %v805, %v551
  %v807 = vadd.f32 %v806, %v554
  %v808 = vadd.f32 %v807, %v559
  %v809 = vadd.f32 %v808, %v562
  %v810 = vadd.f32 %v809, %v567
  %v811 = vadd.f32 %v810, %v570
  %v812 = vadd.f32 %v811, %v575
  %v813 = vadd.f32 %v812, %v578
  %v814 = vadd.f32 %v813, %v583
  %v815 = vadd.f32 %v814, %v586
  %v816 = vadd.f32 %v815, %v591
  %v817 = vadd.f32 %v816, %v594
  %v818 = vadd.f32 %v817, %v599
  %v819 = vadd.f32 %v818, %v602
  %v820 = vadd.f32 %v819, %v607
  %v821 = vadd.f32 %v820, %v610
  %v822 = vadd.f32 %v821, %v615
  %v823 = vadd.f32 %v822, %v618
  %v824 = vadd.f32 %v823, %v623
  %v825 = vadd.f32 %v824, %v626
  %v826 = vadd.f32 %v825, %v631
  %v827 = vadd.f32 %v826, %v634
  %v828 = vadd.f32 %v827, %v639
  %v829 = vadd.f32 %v828, %v642
  %v830 = vadd.f32 %v829, %v647
  %v831 = vadd.f32 %v830, %v650
  %v832 = vadd.f32 %v831, %v655
  %v833 = vadd.f32 %v832, %v658
  %v834 = vadd.f32 %v833, %v663
  %v835 = vadd.f32 %v834, %v666
  %v836 = vadd.f32 %v835, %v671
  %v837 = vadd.f32 %v836, %v674
  %v838 = vadd.f32 %v837, %v679
  %v839 = vadd.f32 %v838, %v682
  %v840 = vadd.f32 %v839, %v687
  %v841 = vadd.f32 %v840, %v690
  %v842 = vadd.f32 %v841, %v695
  %v843 = vadd.f32 %v842, %v698
  %v844 = vrot.slane %v843, 4
  %v845 = vadd.f32 %v843, %v844
  %v846 = vrot.slane %v845, 2
  %v847 = vadd.f32 %v845, %v846
  %v848 = vrot.slane %v847, 1
  %v849 = vadd.f32 %v847, %v848
  %v850 = vmul.f32 %v849, 0.001953125
  %v851 = vmul.f32 %v447, %v447
  %v852 = vmul.f32 %v450, %v450
  %v853 = vmul.f32 %v455, %v455
  %v854 = vmul.f32 %v458, %v458
  %v855 = vmul.f32 %v463, %v463
  %v856 = vmul.f32 %v466, %v466
  %v857 = vmul.f32 %v471, %v471
  %v858 = vmul.f32 %v474, %v474
  %v859 = vmul.f32 %v479, %v479
  %v860 = vmul.f32 %v482, %v482
  %v861 = vmul.f32 %v487, %v487
  %v862 = vmul.f32 %v490, %v490
  %v863 = vmul.f32 %v495, %v495
  %v864 = vmul.f32 %v498, %v498
  %v865 = vmul.f32 %v503, %v503
  %v866 = vmul.f32 %v506, %v506
  %v867 = vmul.f32 %v511, %v511
  %v868 = vmul.f32 %v514, %v514
  %v869 = vmul.f32 %v519, %v519
  %v870 = vmul.f32 %v522, %v522
  %v871 = vmul.f32 %v527, %v527
  %v872 = vmul.f32 %v530, %v530
  %v873 = vmul.f32 %v535, %v535
  %v874 = vmul.f32 %v538, %v538
  %v875 = vmul.f32 %v543, %v543
  %v876 = vmul.f32 %v546, %v546
  %v877 = vmul.f32 %v551, %v551
  %v878 = vmul.f32 %v554, %v554
  %v879 = vmul.f32 %v559, %v559
  %v880 = vmul.f32 %v562, %v562
  %v881 = vmul.f32 %v567, %v567
  %v882 = vmul.f32 %v570, %v570
  %v883 = vmul.f32 %v575, %v575
  %v884 = vmul.f32 %v578, %v578
  %v885 = vmul.f32 %v583, %v583
  %v886 = vmul.f32 %v586, %v586
  %v887 = vmul.f32 %v591, %v591
  %v888 = vmul.f32 %v594, %v594
  %v889 = vmul.f32 %v599, %v599
  %v890 = vmul.f32 %v602, %v602
  %v891 = vmul.f32 %v607, %v607
  %v892 = vmul.f32 %v610, %v610
  %v893 = vmul.f32 %v615, %v615
  %v894 = vmul.f32 %v618, %v618
  %v895 = vmul.f32 %v623, %v623
  %v896 = vmul.f32 %v626, %v626
  %v897 = vmul.f32 %v631, %v631
  %v898 = vmul.f32 %v634, %v634
  %v899 = vmul.f32 %v639, %v639
  %v900 = vmul.f32 %v642, %v642
  %v901 = vmul.f32 %v647, %v647
  %v902 = vmul.f32 %v650, %v650
  %v903 = vmul.f32 %v655, %v655
  %v904 = vmul.f32 %v658, %v658
  %v905 = vmul.f32 %v663, %v663
  %v906 = vmul.f32 %v666, %v666
  %v907 = vmul.f32 %v671, %v671
  %v908 = vmul.f32 %v674, %v674
  %v909 = vmul.f32 %v679, %v679
  %v910 = vmul.f32 %v682, %v682
  %v911 = vmul.f32 %v687, %v687
  %v912 = vmul.f32 %v690, %v690
  %v913 = vmul.f32 %v695, %v695
  %v914 = vmul.f32 %v698, %v698
  %v915 = vadd.f32 %v851, %v852
  %v916 = vadd.f32 %v915, %v853
  %v917 = vadd.f32 %v916, %v854
  %v918 = vadd.f32 %v917, %v855
  %v919 = vadd.f32 %v918, %v856
  %v920 = vadd.f32 %v919, %v857
  %v921 = vadd.f32 %v920, %v858
  %v922 = vadd.f32 %v921, %v859
  %v923 = vadd.f32 %v922, %v860
  %v924 = vadd.f32 %v923, %v861
  %v925 = vadd.f32 %v924, %v862
  %v926 = vadd.f32 %v925, %v863
  %v927 = vadd.f32 %v926, %v864
  %v928 = vadd.f32 %v927, %v865
  %v929 = vadd.f32 %v928, %v866
  %v930 = vadd.f32 %v929, %v867
  %v931 = vadd.f32 %v930, %v868
  %v932 = vadd.f32 %v931, %v869
  %v933 = vadd.f32 %v932, %v870
  %v934 = vadd.f32 %v933, %v871
  %v935 = vadd.f32 %v934, %v872
  %v936 = vadd.f32 %v935, %v873
  %v937 = vadd.f32 %v936, %v874
  %v938 = vadd.f32 %v937, %v875
  %v939 = vadd.f32 %v938, %v876
  %v940 = vadd.f32 %v939, %v877
  %v941 = vadd.f32 %v940, %v878
  %v942 = vadd.f32 %v941, %v879
  %v943 = vadd.f32 %v942, %v880
  %v944 = vadd.f32 %v943, %v881
  %v945 = vadd.f32 %v944, %v882
  %v946 = vadd.f32 %v945, %v883
  %v947 = vadd.f32 %v946, %v884
  %v948 = vadd.f32 %v947, %v885
  %v949 = vadd.f32 %v948, %v886
  %v950 = vadd.f32 %v949, %v887
  %v951 = vadd.f32 %v950, %v888
  %v952 = vadd.f32 %v951, %v889
  %v953 = vadd.f32 %v952, %v890
  %v954 = vadd.f32 %v953, %v891
  %v955 = vadd.f32 %v954, %v892
  %v956 = vadd.f32 %v955, %v893
  %v957 = vadd.f32 %v956, %v894
  %v958 = vadd.f32 %v957, %v895
  %v959 = vadd.f32 %v958, %v896
  %v960 = vadd.f32 %v959, %v897
  %v961 = vadd.f32 %v960, %v898
  %v962 = vadd.f32 %v961, %v899
  %v963 = vadd.f32 %v962, %v900
  %v964 = vadd.f32 %v963, %v901
  %v965 = vadd.f32 %v964, %v902
  %v966 = vadd.f32 %v965, %v903
  %v967 = vadd.f32 %v966, %v904
  %v968 = vadd.f32 %v967, %v905
  %v969 = vadd.f32 %v968, %v906
  %v970 = vadd.f32 %v969, %v907
  %v971 = vadd.f32 %v970, %v908
  %v972 = vadd.f32 %v971, %v909
  %v973 = vadd.f32 %v972, %v910
  %v974 = vadd.f32 %v973, %v911
  %v975 = vadd.f32 %v974, %v912
  %v976 = vadd.f32 %v975, %v913
  %v977 = vadd.f32 %v976, %v914
  %v978 = vrot.slane %v977, 4
  %v979 = vadd.f32 %v977, %v978
  %v980 = vrot.slane %v979, 2
  %v981 = vadd.f32 %v979, %v980
  %v982 = vrot.slane %v981, 1
  %v983 = vadd.f32 %v981, %v982
  %v984 = vmul.f32 %v983, 0.001953125
  %v985 = vmul.f32 %v850, %v850
  %v986 = vsub.f32 %v984, %v985
  %v987 = vmax.f32 %v986, 0.0
  %v988 = vadd.f32 %v987, 1e-05
  %v989 = vrsqrt.pop %v988
  %v990 = vsub.f32 %v447, %v850
  %v991 = vsub.f32 %v450, %v850
  %v992 = vsub.f32 %v455, %v850
  %v993 = vsub.f32 %v458, %v850
  %v994 = vsub.f32 %v463, %v850
  %v995 = vsub.f32 %v466, %v850
  %v996 = vsub.f32 %v471, %v850
  %v997 = vsub.f32 %v474, %v850
  %v998 = vsub.f32 %v479, %v850
  %v999 = vsub.f32 %v482, %v850
  %v1000 = vsub.f32 %v487, %v850
  %v1001 = vsub.f32 %v490, %v850
  %v1002 = vsub.f32 %v495, %v850
  %v1003 = vsub.f32 %v498, %v850
  %v1004 = vsub.f32 %v503, %v850
  %v1005 = vsub.f32 %v506, %v850
  %v1006 = vsub.f32 %v511, %v850
  %v1007 = vsub.f32 %v514, %v850
  %v1008 = vsub.f32 %v519, %v850
  %v1009 = vsub.f32 %v522, %v850
  %v1010 = vsub.f32 %v527, %v850
  %v1011 = vsub.f32 %v530, %v850
  %v1012 = vsub.f32 %v535, %v850
  %v1013 = vsub.f32 %v538, %v850
  %v1014 = vsub.f32 %v543, %v850
  %v1015 = vsub.f32 %v546, %v850
  %v1016 = vsub.f32 %v551, %v850
  %v1017 = vsub.f32 %v554, %v850
  %v1018 = vsub.f32 %v559, %v850
  %v1019 = vsub.f32 %v562, %v850
  %v1020 = vsub.f32 %v567, %v850
  %v1021 = vsub.f32 %v570, %v850
  %v1022 = vsub.f32 %v575, %v850
  %v1023 = vsub.f32 %v578, %v850
  %v1024 = vsub.f32 %v583, %v850
  %v1025 = vsub.f32 %v586, %v850
  %v1026 = vsub.f32 %v591, %v850
  %v1027 = vsub.f32 %v594, %v850
  %v1028 = vsub.f32 %v599, %v850
  %v1029 = vsub.f32 %v602, %v850
  %v1030 = vsub.f32 %v607, %v850
  %v1031 = vsub.f32 %v610, %v850
  %v1032 = vsub.f32 %v615, %v850
  %v1033 = vsub.f32 %v618, %v850
  %v1034 = vsub.f32 %v623, %v850
  %v1035 = vsub.f32 %v626, %v850
  %v1036 = vsub.f32 %v631, %v850
  %v1037 = vsub.f32 %v634, %v850
  %v1038 = vsub.f32 %v639, %v850
  %v1039 = vsub.f32 %v642, %v850
  %v1040 = vsub.f32 %v647, %v850
  %v1041 = vsub.f32 %v650, %v850
  %v1042 = vsub.f32 %v655, %v850
  %v1043 = vsub.f32 %v658, %v850
  %v1044 = vsub.f32 %v663, %v850
  %v1045 = vsub.f32 %v666, %v850
  %v1046 = vsub.f32 %v671, %v850
  %v1047 = vsub.f32 %v674, %v850
  %v1048 = vsub.f32 %v679, %v850
  %v1049 = vsub.f32 %v682, %v850
  %v1050 = vsub.f32 %v687, %v850
  %v1051 = vsub.f32 %v690, %v850
  %v1052 = vsub.f32 %v695, %v850
  %v1053 = vsub.f32 %v698, %v850
  %v1054 = vmul.f32 %v990, %v989
  %v1055 = vmul.f32 %v991, %v989
  %v1056 = vmul.f32 %v992, %v989
  %v1057 = vmul.f32 %v993, %v989
  %v1058 = vmul.f32 %v994, %v989
  %v1059 = vmul.f32 %v995, %v989
  %v1060 = vmul.f32 %v996, %v989
  %v1061 = vmul.f32 %v997, %v989
  %v1062 = vmul.f32 %v998, %v989
  %v1063 = vmul.f32 %v999, %v989
  %v1064 = vmul.f32 %v1000, %v989
  %v1065 = vmul.f32 %v1001, %v989
  %v1066 = vmul.f32 %v1002, %v989
  %v1067 = vmul.f32 %v1003, %v989
  %v1068 = vmul.f32 %v1004, %v989
  %v1069 = vmul.f32 %v1005, %v989
  %v1070 = vmul.f32 %v1006, %v989
  %v1071 = vmul.f32 %v1007, %v989
  %v1072 = vmul.f32 %v1008, %v989
  %v1073 = vmul.f32 %v1009, %v989
  %v1074 = vmul.f32 %v1010, %v989
  %v1075 = vmul.f32 %v1011, %v989
  %v1076 = vmul.f32 %v1012, %v989
  %v1077 = vmul.f32 %v1013, %v989
  %v1078 = vmul.f32 %v1014, %v989
  %v1079 = vmul.f32 %v1015, %v989
  %v1080 = vmul.f32 %v1016, %v989
  %v1081 = vmul.f32 %v1017, %v989
  %v1082 = vmul.f32 %v1018, %v989
  %v1083 = vmul.f32 %v1019, %v989
  %v1084 = vmul.f32 %v1020, %v989
  %v1085 = vmul.f32 %v1021, %v989
  %v1086 = vmul.f32 %v1022, %v989
  %v1087 = vmul.f32 %v1023, %v989
  %v1088 = vmul.f32 %v1024, %v989
  %v1089 = vmul.f32 %v1025, %v989
  %v1090 = vmul.f32 %v1026, %v989
  %v1091 = vmul.f32 %v1027, %v989
  %v1092 = vmul.f32 %v1028, %v989
  %v1093 = vmul.f32 %v1029, %v989
  %v1094 = vmul.f32 %v1030, %v989
  %v1095 = vmul.f32 %v1031, %v989
  %v1096 = vmul.f32 %v1032, %v989
  %v1097 = vmul.f32 %v1033, %v989
  %v1098 = vmul.f32 %v1034, %v989
  %v1099 = vmul.f32 %v1035, %v989
  %v1100 = vmul.f32 %v1036, %v989
  %v1101 = vmul.f32 %v1037, %v989
  %v1102 = vmul.f32 %v1038, %v989
  %v1103 = vmul.f32 %v1039, %v989
  %v1104 = vmul.f32 %v1040, %v989
  %v1105 = vmul.f32 %v1041, %v989
  %v1106 = vmul.f32 %v1042, %v989
  %v1107 = vmul.f32 %v1043, %v989
  %v1108 = vmul.f32 %v1044, %v989
  %v1109 = vmul.f32 %v1045, %v989
  %v1110 = vmul.f32 %v1046, %v989
  %v1111 = vmul.f32 %v1047, %v989
  %v1112 = vmul.f32 %v1048, %v989
  %v1113 = vmul.f32 %v1049, %v989
  %v1114 = vmul.f32 %v1050, %v989
  %v1115 = vmul.f32 %v1051, %v989
  %v1116 = vmul.f32 %v1052, %v989
  %v1117 = vmul.f32 %v1053, %v989
  %v1118 = vmax.f32 %v1054, 0.0
  %v1119 = vmax.f32 %v1055, 0.0
  %v1120 = vmax.f32 %v1056, 0.0
  %v1121 = vmax.f32 %v1057, 0.0
  %v1122 = vmax.f32 %v1058, 0.0
  %v1123 = vmax.f32 %v1059, 0.0
  %v1124 = vmax.f32 %v1060, 0.0
  %v1125 = vmax.f32 %v1061, 0.0
  %v1126 = vmax.f32 %v1062, 0.0
  %v1127 = vmax.f32 %v1063, 0.0
  %v1128 = vmax.f32 %v1064, 0.0
  %v1129 = vmax.f32 %v1065, 0.0
  %v1130 = vmax.f32 %v1066, 0.0
  %v1131 = vmax.f32 %v1067, 0.0
  %v1132 = vmax.f32 %v1068, 0.0
  %v1133 = vmax.f32 %v1069, 0.0
  %v1134 = vmax.f32 %v1070, 0.0
  %v1135 = vmax.f32 %v1071, 0.0
  %v1136 = vmax.f32 %v1072, 0.0
  %v1137 = vmax.f32 %v1073, 0.0
  %v1138 = vmax.f32 %v1074, 0.0
  %v1139 = vmax.f32 %v1075, 0.0
  %v1140 = vmax.f32 %v1076, 0.0
  %v1141 = vmax.f32 %v1077, 0.0
  %v1142 = vmax.f32 %v1078, 0.0
  %v1143 = vmax.f32 %v1079, 0.0
  %v1144 = vmax.f32 %v1080, 0.0
  %v1145 = vmax.f32 %v1081, 0.0
  %v1146 = vmax.f32 %v1082, 0.0
  %v1147 = vmax.f32 %v1083, 0.0
  %v1148 = vmax.f32 %v1084, 0.0
  %v1149 = vmax.f32 %v1085, 0.0
  %v1150 = vmax.f32 %v1086, 0.0
  %v1151 = vmax.f32 %v1087, 0.0
  %v1152 = vmax.f32 %v1088, 0.0
  %v1153 = vmax.f32 %v1089, 0.0
  %v1154 = vmax.f32 %v1090, 0.0
  %v1155 = vmax.f32 %v1091, 0.0
  %v1156 = vmax.f32 %v1092, 0.0
  %v1157 = vmax.f32 %v1093, 0.0
  %v1158 = vmax.f32 %v1094, 0.0
  %v1159 = vmax.f32 %v1095, 0.0
  %v1160 = vmax.f32 %v1096, 0.0
  %v1161 = vmax.f32 %v1097, 0.0
  %v1162 = vmax.f32 %v1098, 0.0
  %v1163 = vmax.f32 %v1099, 0.0
  %v1164 = vmax.f32 %v1100, 0.0
  %v1165 = vmax.f32 %v1101, 0.0
  %v1166 = vmax.f32 %v1102, 0.0
  %v1167 = vmax.f32 %v1103, 0.0
  %v1168 = vmax.f32 %v1104, 0.0
  %v1169 = vmax.f32 %v1105, 0.0
  %v1170 = vmax.f32 %v1106, 0.0
  %v1171 = vmax.f32 %v1107, 0.0
  %v1172 = vmax.f32 %v1108, 0.0
  %v1173 = vmax.f32 %v1109, 0.0
  %v1174 = vmax.f32 %v1110, 0.0
  %v1175 = vmax.f32 %v1111, 0.0
  %v1176 = vmax.f32 %v1112, 0.0
  %v1177 = vmax.f32 %v1113, 0.0
  %v1178 = vmax.f32 %v1114, 0.0
  %v1179 = vmax.f32 %v1115, 0.0
  %v1180 = vmax.f32 %v1116, 0.0
  %v1181 = vmax.f32 %v1117, 0.0
  %v1182 = vpack.c.bf16 %v1119, %v1118
  %v1183 = vpack.c.bf16 %v1121, %v1120
  %v1184 = vpack.c.bf16 %v1123, %v1122
  %v1185 = vpack.c.bf16 %v1125, %v1124
  %v1186 = vpack.c.bf16 %v1127, %v1126
  %v1187 = vpack.c.bf16 %v1129, %v1128
  %v1188 = vpack.c.bf16 %v1131, %v1130
  %v1189 = vpack.c.bf16 %v1133, %v1132
  %v1190 = vpack.c.bf16 %v1135, %v1134
  %v1191 = vpack.c.bf16 %v1137, %v1136
  %v1192 = vpack.c.bf16 %v1139, %v1138
  %v1193 = vpack.c.bf16 %v1141, %v1140
  %v1194 = vpack.c.bf16 %v1143, %v1142
  %v1195 = vpack.c.bf16 %v1145, %v1144
  %v1196 = vpack.c.bf16 %v1147, %v1146
  %v1197 = vpack.c.bf16 %v1149, %v1148
  %v1198 = vpack.c.bf16 %v1151, %v1150
  %v1199 = vpack.c.bf16 %v1153, %v1152
  %v1200 = vpack.c.bf16 %v1155, %v1154
  %v1201 = vpack.c.bf16 %v1157, %v1156
  %v1202 = vpack.c.bf16 %v1159, %v1158
  %v1203 = vpack.c.bf16 %v1161, %v1160
  %v1204 = vpack.c.bf16 %v1163, %v1162
  %v1205 = vpack.c.bf16 %v1165, %v1164
  %v1206 = vpack.c.bf16 %v1167, %v1166
  %v1207 = vpack.c.bf16 %v1169, %v1168
  %v1208 = vpack.c.bf16 %v1171, %v1170
  %v1209 = vpack.c.bf16 %v1173, %v1172
  %v1210 = vpack.c.bf16 %v1175, %v1174
  %v1211 = vpack.c.bf16 %v1177, %v1176
  %v1212 = vpack.c.bf16 %v1179, %v1178
  %v1213 = vpack.c.bf16 %v1181, %v1180
  %v1246 = vunpack.c.l.b16 %v1182
  %v1247 = vunpack.c.h.b16 %v1182
  %v1248 = vunpack.c.l.b16 %v1183
  %v1249 = vunpack.c.h.b16 %v1183
  %v1250 = vunpack.c.l.b16 %v1184
  %v1251 = vunpack.c.h.b16 %v1184
  %v1252 = vunpack.c.l.b16 %v1185
  %v1253 = vunpack.c.h.b16 %v1185
  %v1254 = vunpack.c.l.b16 %v1186
  %v1255 = vunpack.c.h.b16 %v1186
  %v1256 = vunpack.c.l.b16 %v1187
  %v1257 = vunpack.c.h.b16 %v1187
  %v1258 = vunpack.c.l.b16 %v1188
  %v1259 = vunpack.c.h.b16 %v1188
  %v1260 = vunpack.c.l.b16 %v1189
  %v1261 = vunpack.c.h.b16 %v1189
  %v1262 = vunpack.c.l.b16 %v1190
  %v1263 = vunpack.c.h.b16 %v1190
  %v1264 = vunpack.c.l.b16 %v1191
  %v1265 = vunpack.c.h.b16 %v1191
  %v1266 = vunpack.c.l.b16 %v1192
  %v1267 = vunpack.c.h.b16 %v1192
  %v1268 = vunpack.c.l.b16 %v1193
  %v1269 = vunpack.c.h.b16 %v1193
  %v1270 = vunpack.c.l.b16 %v1194
  %v1271 = vunpack.c.h.b16 %v1194
  %v1272 = vunpack.c.l.b16 %v1195
  %v1273 = vunpack.c.h.b16 %v1195
  %v1274 = vunpack.c.l.b16 %v1196
  %v1275 = vunpack.c.h.b16 %v1196
  %v1276 = vunpack.c.l.b16 %v1197
  %v1277 = vunpack.c.h.b16 %v1197
  %v1278 = vunpack.c.l.b16 %v1198
  %v1279 = vunpack.c.h.b16 %v1198
  %v1280 = vunpack.c.l.b16 %v1199
  %v1281 = vunpack.c.h.b16 %v1199
  %v1282 = vunpack.c.l.b16 %v1200
  %v1283 = vunpack.c.h.b16 %v1200
  %v1284 = vunpack.c.l.b16 %v1201
  %v1285 = vunpack.c.h.b16 %v1201
  %v1286 = vunpack.c.l.b16 %v1202
  %v1287 = vunpack.c.h.b16 %v1202
  %v1288 = vunpack.c.l.b16 %v1203
  %v1289 = vunpack.c.h.b16 %v1203
  %v1290 = vunpack.c.l.b16 %v1204
  %v1291 = vunpack.c.h.b16 %v1204
  %v1292 = vunpack.c.l.b16 %v1205
  %v1293 = vunpack.c.h.b16 %v1205
  %v1294 = vunpack.c.l.b16 %v1206
  %v1295 = vunpack.c.h.b16 %v1206
  %v1296 = vunpack.c.l.b16 %v1207
  %v1297 = vunpack.c.h.b16 %v1207
  %v1298 = vunpack.c.l.b16 %v1208
  %v1299 = vunpack.c.h.b16 %v1208
  %v1300 = vunpack.c.l.b16 %v1209
  %v1301 = vunpack.c.h.b16 %v1209
  %v1302 = vunpack.c.l.b16 %v1210
  %v1303 = vunpack.c.h.b16 %v1210
  %v1304 = vunpack.c.l.b16 %v1211
  %v1305 = vunpack.c.h.b16 %v1211
  %v1306 = vunpack.c.l.b16 %v1212
  %v1307 = vunpack.c.h.b16 %v1212
  %v1308 = vunpack.c.l.b16 %v1213
  %v1309 = vunpack.c.h.b16 %v1213
  %v1310 = vpack.c.b16 %v1246, %v1246
  %v1311 = vpack.c.b16 %v1247, %v1247
  %v1312 = vpack.c.b16 %v1248, %v1248
  %v1313 = vpack.c.b16 %v1249, %v1249
  %v1314 = vpack.c.b16 %v1250, %v1250
  %v1315 = vpack.c.b16 %v1251, %v1251
  %v1316 = vpack.c.b16 %v1252, %v1252
  %v1317 = vpack.c.b16 %v1253, %v1253
  %v1318 = vpack.c.b16 %v1254, %v1254
  %v1319 = vpack.c.b16 %v1255, %v1255
  %v1320 = vpack.c.b16 %v1256, %v1256
  %v1321 = vpack.c.b16 %v1257, %v1257
  %v1322 = vpack.c.b16 %v1258, %v1258
  %v1323 = vpack.c.b16 %v1259, %v1259
  %v1324 = vpack.c.b16 %v1260, %v1260
  %v1325 = vpack.c.b16 %v1261, %v1261
  %v1326 = vpack.c.b16 %v1262, %v1262
  %v1327 = vpack.c.b16 %v1263, %v1263
  %v1328 = vpack.c.b16 %v1264, %v1264
  %v1329 = vpack.c.b16 %v1265, %v1265
  %v1330 = vpack.c.b16 %v1266, %v1266
  %v1331 = vpack.c.b16 %v1267, %v1267
  %v1332 = vpack.c.b16 %v1268, %v1268
  %v1333 = vpack.c.b16 %v1269, %v1269
  %v1334 = vpack.c.b16 %v1270, %v1270
  %v1335 = vpack.c.b16 %v1271, %v1271
  %v1336 = vpack.c.b16 %v1272, %v1272
  %v1337 = vpack.c.b16 %v1273, %v1273
  %v1338 = vpack.c.b16 %v1274, %v1274
  %v1339 = vpack.c.b16 %v1275, %v1275
  %v1340 = vpack.c.b16 %v1276, %v1276
  %v1341 = vpack.c.b16 %v1277, %v1277
  %v1342 = vpack.c.b16 %v1278, %v1278
  %v1343 = vpack.c.b16 %v1279, %v1279
  %v1344 = vpack.c.b16 %v1280, %v1280
  %v1345 = vpack.c.b16 %v1281, %v1281
  %v1346 = vpack.c.b16 %v1282, %v1282
  %v1347 = vpack.c.b16 %v1283, %v1283
  %v1348 = vpack.c.b16 %v1284, %v1284
  %v1349 = vpack.c.b16 %v1285, %v1285
  %v1350 = vpack.c.b16 %v1286, %v1286
  %v1351 = vpack.c.b16 %v1287, %v1287
  %v1352 = vpack.c.b16 %v1288, %v1288
  %v1353 = vpack.c.b16 %v1289, %v1289
  %v1354 = vpack.c.b16 %v1290, %v1290
  %v1355 = vpack.c.b16 %v1291, %v1291
  %v1356 = vpack.c.b16 %v1292, %v1292
  %v1357 = vpack.c.b16 %v1293, %v1293
  %v1358 = vpack.c.b16 %v1294, %v1294
  %v1359 = vpack.c.b16 %v1295, %v1295
  %v1360 = vpack.c.b16 %v1296, %v1296
  %v1361 = vpack.c.b16 %v1297, %v1297
  %v1362 = vpack.c.b16 %v1298, %v1298
  %v1363 = vpack.c.b16 %v1299, %v1299
  %v1364 = vpack.c.b16 %v1300, %v1300
  %v1365 = vpack.c.b16 %v1301, %v1301
  %v1366 = vpack.c.b16 %v1302, %v1302
  %v1367 = vpack.c.b16 %v1303, %v1303
  %v1368 = vpack.c.b16 %v1304, %v1304
  %v1369 = vpack.c.b16 %v1305, %v1305
  %v1370 = vpack.c.b16 %v1306, %v1306
  %v1371 = vpack.c.b16 %v1307, %v1307
  %v1372 = vpack.c.b16 %v1308, %v1308
  %v1373 = vpack.c.b16 %v1309, %v1309
  %1438 = vst [vmem:[%s2] sm:$0xf] %v1310
  %1439 = vst [vmem:[%s2 + $0x4] sm:$0xf] %v1311
  %1440 = vst [vmem:[%s2 + $0x8] sm:$0xf] %v1312
  %1441 = vst [vmem:[%s2 + $0xc] sm:$0xf] %v1313
  %1442 = vst [vmem:[%s2 + $0x10] sm:$0xf] %v1314
  %1443 = vst [vmem:[%s2 + $0x14] sm:$0xf] %v1315
  %1444 = vst [vmem:[%s2 + $0x18] sm:$0xf] %v1316
  %1445 = vst [vmem:[%s2 + $0x1c] sm:$0xf] %v1317
  %1446 = vst [vmem:[%s2 + $0x20] sm:$0xf] %v1318
  %1447 = vst [vmem:[%s2 + $0x24] sm:$0xf] %v1319
  %1448 = vst [vmem:[%s2 + $0x28] sm:$0xf] %v1320
  %1449 = vst [vmem:[%s2 + $0x2c] sm:$0xf] %v1321
  %1450 = vst [vmem:[%s2 + $0x30] sm:$0xf] %v1322
  %1451 = vst [vmem:[%s2 + $0x34] sm:$0xf] %v1323
  %1452 = vst [vmem:[%s2 + $0x38] sm:$0xf] %v1324
  %1453 = vst [vmem:[%s2 + $0x3c] sm:$0xf] %v1325
  %1454 = vst [vmem:[%s2 + $0x40] sm:$0xf] %v1326
  %1455 = vst [vmem:[%s2 + $0x44] sm:$0xf] %v1327
  %1456 = vst [vmem:[%s2 + $0x48] sm:$0xf] %v1328
  %1457 = vst [vmem:[%s2 + $0x4c] sm:$0xf] %v1329
  %1458 = vst [vmem:[%s2 + $0x50] sm:$0xf] %v1330
  %1459 = vst [vmem:[%s2 + $0x54] sm:$0xf] %v1331
  %1460 = vst [vmem:[%s2 + $0x58] sm:$0xf] %v1332
  %1461 = vst [vmem:[%s2 + $0x5c] sm:$0xf] %v1333
  %1462 = vst [vmem:[%s2 + $0x60] sm:$0xf] %v1334
  %1463 = vst [vmem:[%s2 + $0x64] sm:$0xf] %v1335
  %1464 = vst [vmem:[%s2 + $0x68] sm:$0xf] %v1336
  %1465 = vst [vmem:[%s2 + $0x6c] sm:$0xf] %v1337
  %1466 = vst [vmem:[%s2 + $0x70] sm:$0xf] %v1338
  %1467 = vst [vmem:[%s2 + $0x74] sm:$0xf] %v1339
  %1468 = vst [vmem:[%s2 + $0x78] sm:$0xf] %v1340
  %1469 = vst [vmem:[%s2 + $0x7c] sm:$0xf] %v1341
  %1470 = vst [vmem:[%s2 + $0x80] sm:$0xf] %v1342
  %1471 = vst [vmem:[%s2 + $0x84] sm:$0xf] %v1343
  %1472 = vst [vmem:[%s2 + $0x88] sm:$0xf] %v1344
  %1473 = vst [vmem:[%s2 + $0x8c] sm:$0xf] %v1345
  %1474 = vst [vmem:[%s2 + $0x90] sm:$0xf] %v1346
  %1475 = vst [vmem:[%s2 + $0x94] sm:$0xf] %v1347
  %1476 = vst [vmem:[%s2 + $0x98] sm:$0xf] %v1348
  %1477 = vst [vmem:[%s2 + $0x9c] sm:$0xf] %v1349
  %1478 = vst [vmem:[%s2 + $0xa0] sm:$0xf] %v1350
  %1479 = vst [vmem:[%s2 + $0xa4] sm:$0xf] %v1351
  %1480 = vst [vmem:[%s2 + $0xa8] sm:$0xf] %v1352
  %1481 = vst [vmem:[%s2 + $0xac] sm:$0xf] %v1353
  %1482 = vst [vmem:[%s2 + $0xb0] sm:$0xf] %v1354
  %1483 = vst [vmem:[%s2 + $0xb4] sm:$0xf] %v1355
  %1484 = vst [vmem:[%s2 + $0xb8] sm:$0xf] %v1356
  %1485 = vst [vmem:[%s2 + $0xbc] sm:$0xf] %v1357
  %1486 = vst [vmem:[%s2 + $0xc0] sm:$0xf] %v1358
  %1487 = vst [vmem:[%s2 + $0xc4] sm:$0xf] %v1359
  %1488 = vst [vmem:[%s2 + $0xc8] sm:$0xf] %v1360
  %1489 = vst [vmem:[%s2 + $0xcc] sm:$0xf] %v1361
  %1490 = vst [vmem:[%s2 + $0xd0] sm:$0xf] %v1362
  %1491 = vst [vmem:[%s2 + $0xd4] sm:$0xf] %v1363
  %1492 = vst [vmem:[%s2 + $0xd8] sm:$0xf] %v1364
  %1493 = vst [vmem:[%s2 + $0xdc] sm:$0xf] %v1365
  %1494 = vst [vmem:[%s2 + $0xe0] sm:$0xf] %v1366
  %1495 = vst [vmem:[%s2 + $0xe4] sm:$0xf] %v1367
  %1496 = vst [vmem:[%s2 + $0xe8] sm:$0xf] %v1368
  %1497 = vst [vmem:[%s2 + $0xec] sm:$0xf] %v1369
  %1498 = vst [vmem:[%s2 + $0xf0] sm:$0xf] %v1370
  %1499 = vst [vmem:[%s2 + $0xf4] sm:$0xf] %v1371
  %1500 = vst [vmem:[%s2 + $0xf8] sm:$0xf] %v1372
  %1501 = vst [vmem:[%s2 + $0xfc] sm:$0xf] %v1373
  %v1502 = vadd.f32 %v703, %v706
  %v1503 = vadd.f32 %v1502, %v711
  %v1504 = vadd.f32 %v1503, %v714
  %v1505 = vadd.f32 %v1504, %v719
  %v1506 = vadd.f32 %v1505, %v722
  %v1507 = vadd.f32 %v1506, %v727
  %v1508 = vadd.f32 %v1507, %v730
  %v1509 = vadd.f32 %v1508, %v735
  %v1510 = vadd.f32 %v1509, %v738
  %v1511 = vadd.f32 %v1510, %v743
  %v1512 = vadd.f32 %v1511, %v746
  %v1513 = vadd.f32 %v1512, %v751
  %v1514 = vadd.f32 %v1513, %v754
  %v1515 = vadd.f32 %v1514, %v759
  %v1516 = vadd.f32 %v1515, %v762
  %v1517 = vrot.slane %v1516, 4
  %v1518 = vadd.f32 %v1516, %v1517
  %v1519 = vrot.slane %v1518, 2
  %v1520 = vadd.f32 %v1518, %v1519
  %v1521 = vrot.slane %v1520, 1
  %v1522 = vadd.f32 %v1520, %v1521
  %v1523 = vmul.f32 %v1522, 0.0078125
  %v1524 = vmul.f32 %v703, %v703
  %v1525 = vmul.f32 %v706, %v706
  %v1526 = vmul.f32 %v711, %v711
  %v1527 = vmul.f32 %v714, %v714
  %v1528 = vmul.f32 %v719, %v719
  %v1529 = vmul.f32 %v722, %v722
  %v1530 = vmul.f32 %v727, %v727
  %v1531 = vmul.f32 %v730, %v730
  %v1532 = vmul.f32 %v735, %v735
  %v1533 = vmul.f32 %v738, %v738
  %v1534 = vmul.f32 %v743, %v743
  %v1535 = vmul.f32 %v746, %v746
  %v1536 = vmul.f32 %v751, %v751
  %v1537 = vmul.f32 %v754, %v754
  %v1538 = vmul.f32 %v759, %v759
  %v1539 = vmul.f32 %v762, %v762
  %v1540 = vadd.f32 %v1524, %v1525
  %v1541 = vadd.f32 %v1540, %v1526
  %v1542 = vadd.f32 %v1541, %v1527
  %v1543 = vadd.f32 %v1542, %v1528
  %v1544 = vadd.f32 %v1543, %v1529
  %v1545 = vadd.f32 %v1544, %v1530
  %v1546 = vadd.f32 %v1545, %v1531
  %v1547 = vadd.f32 %v1546, %v1532
  %v1548 = vadd.f32 %v1547, %v1533
  %v1549 = vadd.f32 %v1548, %v1534
  %v1550 = vadd.f32 %v1549, %v1535
  %v1551 = vadd.f32 %v1550, %v1536
  %v1552 = vadd.f32 %v1551, %v1537
  %v1553 = vadd.f32 %v1552, %v1538
  %v1554 = vadd.f32 %v1553, %v1539
  %v1555 = vrot.slane %v1554, 4
  %v1556 = vadd.f32 %v1554, %v1555
  %v1557 = vrot.slane %v1556, 2
  %v1558 = vadd.f32 %v1556, %v1557
  %v1559 = vrot.slane %v1558, 1
  %v1560 = vadd.f32 %v1558, %v1559
  %v1561 = vmul.f32 %v1560, 0.0078125
  %v1562 = vmul.f32 %v1523, %v1523
  %v1563 = vsub.f32 %v1561, %v1562
  %v1564 = vmax.f32 %v1563, 0.0
  %v1565 = vadd.f32 %v1564, 1e-05
  %v1566 = vrsqrt.pop %v1565
  %v1567 = vsub.f32 %v703, %v1523
  %v1568 = vsub.f32 %v706, %v1523
  %v1569 = vsub.f32 %v711, %v1523
  %v1570 = vsub.f32 %v714, %v1523
  %v1571 = vsub.f32 %v719, %v1523
  %v1572 = vsub.f32 %v722, %v1523
  %v1573 = vsub.f32 %v727, %v1523
  %v1574 = vsub.f32 %v730, %v1523
  %v1575 = vsub.f32 %v735, %v1523
  %v1576 = vsub.f32 %v738, %v1523
  %v1577 = vsub.f32 %v743, %v1523
  %v1578 = vsub.f32 %v746, %v1523
  %v1579 = vsub.f32 %v751, %v1523
  %v1580 = vsub.f32 %v754, %v1523
  %v1581 = vsub.f32 %v759, %v1523
  %v1582 = vsub.f32 %v762, %v1523
  %v1583 = vmul.f32 %v1567, %v1566
  %v1584 = vmul.f32 %v1568, %v1566
  %v1585 = vmul.f32 %v1569, %v1566
  %v1586 = vmul.f32 %v1570, %v1566
  %v1587 = vmul.f32 %v1571, %v1566
  %v1588 = vmul.f32 %v1572, %v1566
  %v1589 = vmul.f32 %v1573, %v1566
  %v1590 = vmul.f32 %v1574, %v1566
  %v1591 = vmul.f32 %v1575, %v1566
  %v1592 = vmul.f32 %v1576, %v1566
  %v1593 = vmul.f32 %v1577, %v1566
  %v1594 = vmul.f32 %v1578, %v1566
  %v1595 = vmul.f32 %v1579, %v1566
  %v1596 = vmul.f32 %v1580, %v1566
  %v1597 = vmul.f32 %v1581, %v1566
  %v1598 = vmul.f32 %v1582, %v1566
  %v1599 = vmax.f32 %v1583, 0.0
  %v1600 = vmax.f32 %v1584, 0.0
  %v1601 = vmax.f32 %v1585, 0.0
  %v1602 = vmax.f32 %v1586, 0.0
  %v1603 = vmax.f32 %v1587, 0.0
  %v1604 = vmax.f32 %v1588, 0.0
  %v1605 = vmax.f32 %v1589, 0.0
  %v1606 = vmax.f32 %v1590, 0.0
  %v1607 = vmax.f32 %v1591, 0.0
  %v1608 = vmax.f32 %v1592, 0.0
  %v1609 = vmax.f32 %v1593, 0.0
  %v1610 = vmax.f32 %v1594, 0.0
  %v1611 = vmax.f32 %v1595, 0.0
  %v1612 = vmax.f32 %v1596, 0.0
  %v1613 = vmax.f32 %v1597, 0.0
  %v1614 = vmax.f32 %v1598, 0.0
  %v1615 = vpack.c.bf16 %v1600, %v1599
  %v1616 = vpack.c.bf16 %v1602, %v1601
  %v1617 = vpack.c.bf16 %v1604, %v1603
  %v1618 = vpack.c.bf16 %v1606, %v1605
  %v1619 = vpack.c.bf16 %v1608, %v1607
  %v1620 = vpack.c.bf16 %v1610, %v1609
  %v1621 = vpack.c.bf16 %v1612, %v1611
  %v1622 = vpack.c.bf16 %v1614, %v1613
  %v1631 = vunpack.c.l.b16 %v1615
  %v1632 = vunpack.c.h.b16 %v1615
  %v1633 = vunpack.c.l.b16 %v1616
  %v1634 = vunpack.c.h.b16 %v1616
  %v1635 = vunpack.c.l.b16 %v1617
  %v1636 = vunpack.c.h.b16 %v1617
  %v1637 = vunpack.c.l.b16 %v1618
  %v1638 = vunpack.c.h.b16 %v1618
  %v1639 = vunpack.c.l.b16 %v1619
  %v1640 = vunpack.c.h.b16 %v1619
  %v1641 = vunpack.c.l.b16 %v1620
  %v1642 = vunpack.c.h.b16 %v1620
  %v1643 = vunpack.c.l.b16 %v1621
  %v1644 = vunpack.c.h.b16 %v1621
  %v1645 = vunpack.c.l.b16 %v1622
  %v1646 = vunpack.c.h.b16 %v1622
  %v1647 = vpack.c.b16 %v1631, %v1631
  %v1648 = vpack.c.b16 %v1632, %v1632
  %v1649 = vpack.c.b16 %v1633, %v1633
  %v1650 = vpack.c.b16 %v1634, %v1634
  %v1651 = vpack.c.b16 %v1635, %v1635
  %v1652 = vpack.c.b16 %v1636, %v1636
  %v1653 = vpack.c.b16 %v1637, %v1637
  %v1654 = vpack.c.b16 %v1638, %v1638
  %v1655 = vpack.c.b16 %v1639, %v1639
  %v1656 = vpack.c.b16 %v1640, %v1640
  %v1657 = vpack.c.b16 %v1641, %v1641
  %v1658 = vpack.c.b16 %v1642, %v1642
  %v1659 = vpack.c.b16 %v1643, %v1643
  %v1660 = vpack.c.b16 %v1644, %v1644
  %v1661 = vpack.c.b16 %v1645, %v1645
  %v1662 = vpack.c.b16 %v1646, %v1646
  %1679 = vst [vmem:[%s2 + $0x100] sm:$0xf] %v1647
  %1680 = vst [vmem:[%s2 + $0x104] sm:$0xf] %v1648
  %1681 = vst [vmem:[%s2 + $0x108] sm:$0xf] %v1649
  %1682 = vst [vmem:[%s2 + $0x10c] sm:$0xf] %v1650
  %1683 = vst [vmem:[%s2 + $0x110] sm:$0xf] %v1651
  %1684 = vst [vmem:[%s2 + $0x114] sm:$0xf] %v1652
  %1685 = vst [vmem:[%s2 + $0x118] sm:$0xf] %v1653
  %1686 = vst [vmem:[%s2 + $0x11c] sm:$0xf] %v1654
  %1687 = vst [vmem:[%s2 + $0x120] sm:$0xf] %v1655
  %1688 = vst [vmem:[%s2 + $0x124] sm:$0xf] %v1656
  %1689 = vst [vmem:[%s2 + $0x128] sm:$0xf] %v1657
  %1690 = vst [vmem:[%s2 + $0x12c] sm:$0xf] %v1658
  %1691 = vst [vmem:[%s2 + $0x130] sm:$0xf] %v1659
  %1692 = vst [vmem:[%s2 + $0x134] sm:$0xf] %v1660
  %1693 = vst [vmem:[%s2 + $0x138] sm:$0xf] %v1661
  %1694 = vst [vmem:[%s2 + $0x13c] sm:$0xf] %v1662
  %v1695 = vadd.f32 %v767, %v770
  %v1696 = vadd.f32 %v1695, %v775
  %v1697 = vadd.f32 %v1696, %v778
  %v1698 = vrot.slane %v1697, 4
  %v1699 = vadd.f32 %v1697, %v1698
  %v1700 = vrot.slane %v1699, 2
  %v1701 = vadd.f32 %v1699, %v1700
  %v1702 = vrot.slane %v1701, 1
  %v1703 = vadd.f32 %v1701, %v1702
  %v1704 = vmul.f32 %v1703, 0.03125
  %v1705 = vmul.f32 %v767, %v767
  %v1706 = vmul.f32 %v770, %v770
  %v1707 = vmul.f32 %v775, %v775
  %v1708 = vmul.f32 %v778, %v778
  %v1709 = vadd.f32 %v1705, %v1706
  %v1710 = vadd.f32 %v1709, %v1707
  %v1711 = vadd.f32 %v1710, %v1708
  %v1712 = vrot.slane %v1711, 4
  %v1713 = vadd.f32 %v1711, %v1712
  %v1714 = vrot.slane %v1713, 2
  %v1715 = vadd.f32 %v1713, %v1714
  %v1716 = vrot.slane %v1715, 1
  %v1717 = vadd.f32 %v1715, %v1716
  %v1718 = vmul.f32 %v1717, 0.03125
  %v1719 = vmul.f32 %v1704, %v1704
  %v1720 = vsub.f32 %v1718, %v1719
  %v1721 = vmax.f32 %v1720, 0.0
  %v1722 = vadd.f32 %v1721, 1e-05
  %v1723 = vrsqrt.pop %v1722
  %v1724 = vsub.f32 %v767, %v1704
  %v1725 = vsub.f32 %v770, %v1704
  %v1726 = vsub.f32 %v775, %v1704
  %v1727 = vsub.f32 %v778, %v1704
  %v1728 = vmul.f32 %v1724, %v1723
  %v1729 = vmul.f32 %v1725, %v1723
  %v1730 = vmul.f32 %v1726, %v1723
  %v1731 = vmul.f32 %v1727, %v1723
  %v1732 = vmax.f32 %v1728, 0.0
  %v1733 = vmax.f32 %v1729, 0.0
  %v1734 = vmax.f32 %v1730, 0.0
  %v1735 = vmax.f32 %v1731, 0.0
  %v1736 = vpack.c.bf16 %v1733, %v1732
  %v1737 = vpack.c.bf16 %v1735, %v1734
  %v1740 = vunpack.c.l.b16 %v1736
  %v1741 = vunpack.c.h.b16 %v1736
  %v1742 = vunpack.c.l.b16 %v1737
  %v1743 = vunpack.c.h.b16 %v1737
  %v1744 = vpack.c.b16 %v1740, %v1740
  %v1745 = vpack.c.b16 %v1741, %v1741
  %v1746 = vpack.c.b16 %v1742, %v1742
  %v1747 = vpack.c.b16 %v1743, %v1743
  %1752 = vst [vmem:[%s2 + $0x140] sm:$0xf] %v1744
  %1753 = vst [vmem:[%s2 + $0x144] sm:$0xf] %v1745
  %1754 = vst [vmem:[%s2 + $0x148] sm:$0xf] %v1746
  %1755 = vst [vmem:[%s2 + $0x14c] sm:$0xf] %v1747
  // Predicated region
  $region10: #{mscdae_forward.6} parent=0 // pred_check
    _
  $region11: #{mscdae_forward.6} parent=0 // pred_check_branch
    %1757 = sbr.rel (0) target = $region13
  $region12: #{mscdae_forward.6} parent=0 // pred_region
    _
  $region13: #{mscdae_forward.6} parent=0 // pred_fallthru
    _
  // Predicated region
  $region14: #{mscdae_forward.6} parent=0 // pred_check
    _
  $region15: #{mscdae_forward.6} parent=0 // pred_check_branch
    %1759 = sbr.rel (0) target = $region17
  $region16: #{mscdae_forward.6} parent=0 // pred_region
    _
  $region17: #{mscdae_forward.6} parent=0 // pred_fallthru
    _

// kernel: mscdae_forward.8
$region0: #{mscdae_forward.8}
  #allocation0 [shape = 'u32[]', space=smem, size = 0x4, offset = 0x4, fixed_abs, tag = 'smem constant byte address 0x4 - core index']
  #allocation1 [shape = 'u32[144,128]{1,0:T(1,128)}', space=vmem, size = 0x12000, scoped, tag = 'internal scratch']
  %s0 = inlined_call_operand.vmem [shape: bf16[32,1152], index: 0, kind: input, shape index: {}]
  %s1 = inlined_call_operand.vmem [shape: bf16[1152,128], index: 1, kind: input, shape index: {}]
  %s2 = inlined_call_operand.vmem [shape: f32[1,128], index: 2, kind: input, shape index: {}]
  %s3 = inlined_call_operand.vmem [shape: bf16[32,128], index: 3, kind: output, shape index: {}]
  %s4 = sld [smem:[#allocation0]]
  $region22: #{mscdae_forward.8} parent=0
    _
  %s6 = ssub.s32 1, %s4
  %s7 = scalar_select 0, %s6, %s4
  // Predicated region
  $region2: #{mscdae_forward.8} parent=0 // pred_check
    _
  $region3: #{mscdae_forward.8} parent=0 // pred_check_branch
    %9 = sbr.rel (0) target = $region5
  $region4: #{mscdae_forward.8} parent=0 // pred_region
    _
  $region5: #{mscdae_forward.8} parent=0 // pred_fallthru
    _
  // Predicated region
  $region6: #{mscdae_forward.8} parent=0 // pred_check
    _
  $region7: #{mscdae_forward.8} parent=0 // pred_check_branch
    %11 = sbr.rel (0) target = $region9
  $region8: #{mscdae_forward.8} parent=0 // pred_region
    _
  $region9: #{mscdae_forward.8} parent=0 // pred_fallthru
    _
  // Predicated region
  $region10: #{mscdae_forward.8} parent=0 // pred_check
    _
  $region11: #{mscdae_forward.8} parent=0 // pred_check_branch
    %13 = sbr.rel (0) target = $region13
  $region12: #{mscdae_forward.8} parent=0 // pred_region
    _
  $region13: #{mscdae_forward.8} parent=0 // pred_fallthru
    _
  %v15 = vld [vmem:[%s0] sm:$0xff]
  %v16 = vld [vmem:[%s0 + $0x8] sm:$0xff]
  %v17 = vld [vmem:[%s0 + $0x10] sm:$0xff]
  %v18 = vld [vmem:[%s0 + $0x18] sm:$0xff]
  %v19 = vld [vmem:[%s0 + $0x20] sm:$0xf]
  %v20 = vld [vmem:[%s0 + $0x24] sm:$0xff]
  %v21 = vld [vmem:[%s0 + $0x2c] sm:$0xff]
  %v22 = vld [vmem:[%s0 + $0x34] sm:$0xff]
  %v23 = vld [vmem:[%s0 + $0x3c] sm:$0xff]
  %v24 = vld [vmem:[%s0 + $0x44] sm:$0xf]
  %v25 = vld [vmem:[%s0 + $0x48] sm:$0xff]
  %v26 = vld [vmem:[%s0 + $0x50] sm:$0xff]
  %v27 = vld [vmem:[%s0 + $0x58] sm:$0xff]
  %v28 = vld [vmem:[%s0 + $0x60] sm:$0xff]
  %v29 = vld [vmem:[%s0 + $0x68] sm:$0xf]
  %v30 = vld [vmem:[%s0 + $0x6c] sm:$0xff]
  %v31 = vld [vmem:[%s0 + $0x74] sm:$0xff]
  %v32 = vld [vmem:[%s0 + $0x7c] sm:$0xff]
  %v33 = vld [vmem:[%s0 + $0x84] sm:$0xff]
  %v34 = vld [vmem:[%s0 + $0x8c] sm:$0xf]
  %v35 = vld [vmem:[%s1] sm:$0xf]
  %v36 = vld [vmem:[%s1 + $0x4] sm:$0xf]
  %v37 = vld [vmem:[%s1 + $0x8] sm:$0xf]
  %v38 = vld [vmem:[%s1 + $0xc] sm:$0xf]
  %v39 = vld [vmem:[%s1 + $0x10] sm:$0xf]
  %v40 = vld [vmem:[%s1 + $0x14] sm:$0xf]
  %v41 = vld [vmem:[%s1 + $0x18] sm:$0xf]
  %v42 = vld [vmem:[%s1 + $0x1c] sm:$0xf]
  %v43 = vld [vmem:[%s1 + $0x20] sm:$0xf]
  %v44 = vld [vmem:[%s1 + $0x24] sm:$0xf]
  %v45 = vld [vmem:[%s1 + $0x28] sm:$0xf]
  %v46 = vld [vmem:[%s1 + $0x2c] sm:$0xf]
  %v47 = vld [vmem:[%s1 + $0x30] sm:$0xf]
  %v48 = vld [vmem:[%s1 + $0x34] sm:$0xf]
  %v49 = vld [vmem:[%s1 + $0x38] sm:$0xf]
  %v50 = vld [vmem:[%s1 + $0x3c] sm:$0xf]
  %v51 = vld [vmem:[%s1 + $0x40] sm:$0xf]
  %v52 = vld [vmem:[%s1 + $0x44] sm:$0xf]
  %v53 = vld [vmem:[%s1 + $0x48] sm:$0xf]
  %v54 = vld [vmem:[%s1 + $0x4c] sm:$0xf]
  %v55 = vld [vmem:[%s1 + $0x50] sm:$0xf]
  %v56 = vld [vmem:[%s1 + $0x54] sm:$0xf]
  %v57 = vld [vmem:[%s1 + $0x58] sm:$0xf]
  %v58 = vld [vmem:[%s1 + $0x5c] sm:$0xf]
  %v59 = vld [vmem:[%s1 + $0x60] sm:$0xf]
  %v60 = vld [vmem:[%s1 + $0x64] sm:$0xf]
  %v61 = vld [vmem:[%s1 + $0x68] sm:$0xf]
  %v62 = vld [vmem:[%s1 + $0x6c] sm:$0xf]
  %v63 = vld [vmem:[%s1 + $0x70] sm:$0xf]
  %v64 = vld [vmem:[%s1 + $0x74] sm:$0xf]
  %v65 = vld [vmem:[%s1 + $0x78] sm:$0xf]
  %v66 = vld [vmem:[%s1 + $0x7c] sm:$0xf]
  %v67 = vld [vmem:[%s1 + $0x80] sm:$0xf]
  %v68 = vld [vmem:[%s1 + $0x84] sm:$0xf]
  %v69 = vld [vmem:[%s1 + $0x88] sm:$0xf]
  %v70 = vld [vmem:[%s1 + $0x8c] sm:$0xf]
  %v71 = vld [vmem:[%s1 + $0x90] sm:$0xf]
  %v72 = vld [vmem:[%s1 + $0x94] sm:$0xf]
  %v73 = vld [vmem:[%s1 + $0x98] sm:$0xf]
  %v74 = vld [vmem:[%s1 + $0x9c] sm:$0xf]
  %v75 = vld [vmem:[%s1 + $0xa0] sm:$0xf]
  %v76 = vld [vmem:[%s1 + $0xa4] sm:$0xf]
  %v77 = vld [vmem:[%s1 + $0xa8] sm:$0xf]
  %v78 = vld [vmem:[%s1 + $0xac] sm:$0xf]
  %v79 = vld [vmem:[%s1 + $0xb0] sm:$0xf]
  %v80 = vld [vmem:[%s1 + $0xb4] sm:$0xf]
  %v81 = vld [vmem:[%s1 + $0xb8] sm:$0xf]
  %v82 = vld [vmem:[%s1 + $0xbc] sm:$0xf]
  %v83 = vld [vmem:[%s1 + $0xc0] sm:$0xf]
  %v84 = vld [vmem:[%s1 + $0xc4] sm:$0xf]
  %v85 = vld [vmem:[%s1 + $0xc8] sm:$0xf]
  %v86 = vld [vmem:[%s1 + $0xcc] sm:$0xf]
  %v87 = vld [vmem:[%s1 + $0xd0] sm:$0xf]
  %v88 = vld [vmem:[%s1 + $0xd4] sm:$0xf]
  %v89 = vld [vmem:[%s1 + $0xd8] sm:$0xf]
  %v90 = vld [vmem:[%s1 + $0xdc] sm:$0xf]
  %v91 = vld [vmem:[%s1 + $0xe0] sm:$0xf]
  %v92 = vld [vmem:[%s1 + $0xe4] sm:$0xf]
  %v93 = vld [vmem:[%s1 + $0xe8] sm:$0xf]
  %v94 = vld [vmem:[%s1 + $0xec] sm:$0xf]
  %v95 = vld [vmem:[%s1 + $0xf0] sm:$0xf]
  %v96 = vld [vmem:[%s1 + $0xf4] sm:$0xf]
  %v97 = vld [vmem:[%s1 + $0xf8] sm:$0xf]
  %v98 = vld [vmem:[%s1 + $0xfc] sm:$0xf]
  %v99 = vld [vmem:[%s1 + $0x100] sm:$0xf]
  %v100 = vld [vmem:[%s1 + $0x104] sm:$0xf]
  %v101 = vld [vmem:[%s1 + $0x108] sm:$0xf]
  %v102 = vld [vmem:[%s1 + $0x10c] sm:$0xf]
  %v103 = vld [vmem:[%s1 + $0x110] sm:$0xf]
  %v104 = vld [vmem:[%s1 + $0x114] sm:$0xf]
  %v105 = vld [vmem:[%s1 + $0x118] sm:$0xf]
  %v106 = vld [vmem:[%s1 + $0x11c] sm:$0xf]
  %v107 = vld [vmem:[%s1 + $0x120] sm:$0xf]
  %v108 = vld [vmem:[%s1 + $0x124] sm:$0xf]
  %v109 = vld [vmem:[%s1 + $0x128] sm:$0xf]
  %v110 = vld [vmem:[%s1 + $0x12c] sm:$0xf]
  %v111 = vld [vmem:[%s1 + $0x130] sm:$0xf]
  %v112 = vld [vmem:[%s1 + $0x134] sm:$0xf]
  %v113 = vld [vmem:[%s1 + $0x138] sm:$0xf]
  %v114 = vld [vmem:[%s1 + $0x13c] sm:$0xf]
  %v115 = vld [vmem:[%s1 + $0x140] sm:$0xf]
  %v116 = vld [vmem:[%s1 + $0x144] sm:$0xf]
  %v117 = vld [vmem:[%s1 + $0x148] sm:$0xf]
  %v118 = vld [vmem:[%s1 + $0x14c] sm:$0xf]
  %v119 = vld [vmem:[%s1 + $0x150] sm:$0xf]
  %v120 = vld [vmem:[%s1 + $0x154] sm:$0xf]
  %v121 = vld [vmem:[%s1 + $0x158] sm:$0xf]
  %v122 = vld [vmem:[%s1 + $0x15c] sm:$0xf]
  %v123 = vld [vmem:[%s1 + $0x160] sm:$0xf]
  %v124 = vld [vmem:[%s1 + $0x164] sm:$0xf]
  %v125 = vld [vmem:[%s1 + $0x168] sm:$0xf]
  %v126 = vld [vmem:[%s1 + $0x16c] sm:$0xf]
  %v127 = vld [vmem:[%s1 + $0x170] sm:$0xf]
  %v128 = vld [vmem:[%s1 + $0x174] sm:$0xf]
  %v129 = vld [vmem:[%s1 + $0x178] sm:$0xf]
  %v130 = vld [vmem:[%s1 + $0x17c] sm:$0xf]
  %v131 = vld [vmem:[%s1 + $0x180] sm:$0xf]
  %v132 = vld [vmem:[%s1 + $0x184] sm:$0xf]
  %v133 = vld [vmem:[%s1 + $0x188] sm:$0xf]
  %v134 = vld [vmem:[%s1 + $0x18c] sm:$0xf]
  %v135 = vld [vmem:[%s1 + $0x190] sm:$0xf]
  %v136 = vld [vmem:[%s1 + $0x194] sm:$0xf]
  %v137 = vld [vmem:[%s1 + $0x198] sm:$0xf]
  %v138 = vld [vmem:[%s1 + $0x19c] sm:$0xf]
  %v139 = vld [vmem:[%s1 + $0x1a0] sm:$0xf]
  %v140 = vld [vmem:[%s1 + $0x1a4] sm:$0xf]
  %v141 = vld [vmem:[%s1 + $0x1a8] sm:$0xf]
  %v142 = vld [vmem:[%s1 + $0x1ac] sm:$0xf]
  %v143 = vld [vmem:[%s1 + $0x1b0] sm:$0xf]
  %v144 = vld [vmem:[%s1 + $0x1b4] sm:$0xf]
  %v145 = vld [vmem:[%s1 + $0x1b8] sm:$0xf]
  %v146 = vld [vmem:[%s1 + $0x1bc] sm:$0xf]
  %v147 = vld [vmem:[%s1 + $0x1c0] sm:$0xf]
  %v148 = vld [vmem:[%s1 + $0x1c4] sm:$0xf]
  %v149 = vld [vmem:[%s1 + $0x1c8] sm:$0xf]
  %v150 = vld [vmem:[%s1 + $0x1cc] sm:$0xf]
  %v151 = vld [vmem:[%s1 + $0x1d0] sm:$0xf]
  %v152 = vld [vmem:[%s1 + $0x1d4] sm:$0xf]
  %v153 = vld [vmem:[%s1 + $0x1d8] sm:$0xf]
  %v154 = vld [vmem:[%s1 + $0x1dc] sm:$0xf]
  %v155 = vld [vmem:[%s1 + $0x1e0] sm:$0xf]
  %v156 = vld [vmem:[%s1 + $0x1e4] sm:$0xf]
  %v157 = vld [vmem:[%s1 + $0x1e8] sm:$0xf]
  %v158 = vld [vmem:[%s1 + $0x1ec] sm:$0xf]
  %v159 = vld [vmem:[%s1 + $0x1f0] sm:$0xf]
  %v160 = vld [vmem:[%s1 + $0x1f4] sm:$0xf]
  %v161 = vld [vmem:[%s1 + $0x1f8] sm:$0xf]
  %v162 = vld [vmem:[%s1 + $0x1fc] sm:$0xf]
  %v163 = vld [vmem:[%s1 + $0x200] sm:$0xf]
  %v164 = vld [vmem:[%s1 + $0x204] sm:$0xf]
  %v165 = vld [vmem:[%s1 + $0x208] sm:$0xf]
  %v166 = vld [vmem:[%s1 + $0x20c] sm:$0xf]
  %v167 = vld [vmem:[%s1 + $0x210] sm:$0xf]
  %v168 = vld [vmem:[%s1 + $0x214] sm:$0xf]
  %v169 = vld [vmem:[%s1 + $0x218] sm:$0xf]
  %v170 = vld [vmem:[%s1 + $0x21c] sm:$0xf]
  %v171 = vld [vmem:[%s1 + $0x220] sm:$0xf]
  %v172 = vld [vmem:[%s1 + $0x224] sm:$0xf]
  %v173 = vld [vmem:[%s1 + $0x228] sm:$0xf]
  %v174 = vld [vmem:[%s1 + $0x22c] sm:$0xf]
  %v175 = vld [vmem:[%s1 + $0x230] sm:$0xf]
  %v176 = vld [vmem:[%s1 + $0x234] sm:$0xf]
  %v177 = vld [vmem:[%s1 + $0x238] sm:$0xf]
  %v178 = vld [vmem:[%s1 + $0x23c] sm:$0xf]
  %v179 = vld [vmem:[%s2] sm:$0x1]
  %v181 = vlaneseq
  %v182 = vshrl.u32 %v181, 7
  %v183 = vsub.s32 0, %v182
  %v184 = vrot.slane %v179, %v183
  %v206 = vunpack.c.l.b16 %v15
  %v207 = vunpack.c.h.b16 %v15
  %v208 = vunpack.c.l.b16 %v16
  %v209 = vunpack.c.h.b16 %v16
  %v210 = vunpack.c.l.b16 %v17
  %v211 = vunpack.c.h.b16 %v17
  %v212 = vunpack.c.l.b16 %v18
  %v213 = vunpack.c.h.b16 %v18
  %v214 = vunpack.c.l.b16 %v19
  %v215 = vunpack.c.l.b16 %v20
  %v216 = vunpack.c.h.b16 %v20
  %v217 = vunpack.c.l.b16 %v21
  %v218 = vunpack.c.h.b16 %v21
  %v219 = vunpack.c.l.b16 %v22
  %v220 = vunpack.c.h.b16 %v22
  %v221 = vunpack.c.l.b16 %v23
  %v222 = vunpack.c.h.b16 %v23
  %v223 = vunpack.c.l.b16 %v24
  %v224 = vunpack.c.l.b16 %v25
  %v225 = vunpack.c.h.b16 %v25
  %v226 = vunpack.c.l.b16 %v26
  %v227 = vunpack.c.h.b16 %v26
  %v228 = vunpack.c.l.b16 %v27
  %v229 = vunpack.c.h.b16 %v27
  %v230 = vunpack.c.l.b16 %v28
  %v231 = vunpack.c.h.b16 %v28
  %v232 = vunpack.c.l.b16 %v29
  %v233 = vunpack.c.l.b16 %v30
  %v234 = vunpack.c.h.b16 %v30
  %v235 = vunpack.c.l.b16 %v31
  %v236 = vunpack.c.h.b16 %v31
  %v237 = vunpack.c.l.b16 %v32
  %v238 = vunpack.c.h.b16 %v32
  %v239 = vunpack.c.l.b16 %v33
  %v240 = vunpack.c.h.b16 %v33
  %v241 = vunpack.c.l.b16 %v34
  %v242 = vpack.c.b16 %v215, %v206
  %v243 = vpack.c.b16 %v216, %v207
  %v244 = vpack.c.b16 %v217, %v208
  %v245 = vpack.c.b16 %v218, %v209
  %v246 = vpack.c.b16 %v219, %v210
  %v247 = vpack.c.b16 %v220, %v211
  %v248 = vpack.c.b16 %v221, %v212
  %v249 = vpack.c.b16 %v222, %v213
  %v250 = vpack.c.b16 %v223, %v214
  %v251 = vpack.c.b16 %v233, %v224
  %v252 = vpack.c.b16 %v234, %v225
  %v253 = vpack.c.b16 %v235, %v226
  %v254 = vpack.c.b16 %v236, %v227
  %v255 = vpack.c.b16 %v237, %v228
  %v256 = vpack.c.b16 %v238, %v229
  %v257 = vpack.c.b16 %v239, %v230
  %v258 = vpack.c.b16 %v240, %v231
  %v259 = vpack.c.b16 %v241, %v232
  %v422 = vunpack.c.l.b16 %v35
  %v423 = vunpack.c.l.b16 %v36
  %v424 = vunpack.c.l.b16 %v37
  %v425 = vunpack.c.l.b16 %v38
  %v426 = vunpack.c.l.b16 %v39
  %v427 = vunpack.c.l.b16 %v40
  %v428 = vunpack.c.l.b16 %v41
  %v429 = vunpack.c.l.b16 %v42
  %v430 = vunpack.c.l.b16 %v43
  %v431 = vunpack.c.l.b16 %v44
  %v432 = vunpack.c.l.b16 %v45
  %v433 = vunpack.c.l.b16 %v46
  %v434 = vunpack.c.l.b16 %v47
  %v435 = vunpack.c.l.b16 %v48
  %v436 = vunpack.c.l.b16 %v49
  %v437 = vunpack.c.l.b16 %v50
  %v438 = vunpack.c.l.b16 %v51
  %v439 = vunpack.c.l.b16 %v52
  %v440 = vunpack.c.l.b16 %v53
  %v441 = vunpack.c.l.b16 %v54
  %v442 = vunpack.c.l.b16 %v55
  %v443 = vunpack.c.l.b16 %v56
  %v444 = vunpack.c.l.b16 %v57
  %v445 = vunpack.c.l.b16 %v58
  %v446 = vunpack.c.l.b16 %v59
  %v447 = vunpack.c.l.b16 %v60
  %v448 = vunpack.c.l.b16 %v61
  %v449 = vunpack.c.l.b16 %v62
  %v450 = vunpack.c.l.b16 %v63
  %v451 = vunpack.c.l.b16 %v64
  %v452 = vunpack.c.l.b16 %v65
  %v453 = vunpack.c.l.b16 %v66
  %v454 = vunpack.c.l.b16 %v67
  %v455 = vunpack.c.l.b16 %v68
  %v456 = vunpack.c.l.b16 %v69
  %v457 = vunpack.c.l.b16 %v70
  %v458 = vunpack.c.l.b16 %v71
  %v459 = vunpack.c.l.b16 %v72
  %v460 = vunpack.c.l.b16 %v73
  %v461 = vunpack.c.l.b16 %v74
  %v462 = vunpack.c.l.b16 %v75
  %v463 = vunpack.c.l.b16 %v76
  %v464 = vunpack.c.l.b16 %v77
  %v465 = vunpack.c.l.b16 %v78
  %v466 = vunpack.c.l.b16 %v79
  %v467 = vunpack.c.l.b16 %v80
  %v468 = vunpack.c.l.b16 %v81
  %v469 = vunpack.c.l.b16 %v82
  %v470 = vunpack.c.l.b16 %v83
  %v471 = vunpack.c.l.b16 %v84
  %v472 = vunpack.c.l.b16 %v85
  %v473 = vunpack.c.l.b16 %v86
  %v474 = vunpack.c.l.b16 %v87
  %v475 = vunpack.c.l.b16 %v88
  %v476 = vunpack.c.l.b16 %v89
  %v477 = vunpack.c.l.b16 %v90
  %v478 = vunpack.c.l.b16 %v91
  %v479 = vunpack.c.l.b16 %v92
  %v480 = vunpack.c.l.b16 %v93
  %v481 = vunpack.c.l.b16 %v94
  %v482 = vunpack.c.l.b16 %v95
  %v483 = vunpack.c.l.b16 %v96
  %v484 = vunpack.c.l.b16 %v97
  %v485 = vunpack.c.l.b16 %v98
  %v486 = vunpack.c.l.b16 %v99
  %v487 = vunpack.c.l.b16 %v100
  %v488 = vunpack.c.l.b16 %v101
  %v489 = vunpack.c.l.b16 %v102
  %v490 = vunpack.c.l.b16 %v103
  %v491 = vunpack.c.l.b16 %v104
  %v492 = vunpack.c.l.b16 %v105
  %v493 = vunpack.c.l.b16 %v106
  %v494 = vunpack.c.l.b16 %v107
  %v495 = vunpack.c.l.b16 %v108
  %v496 = vunpack.c.l.b16 %v109
  %v497 = vunpack.c.l.b16 %v110
  %v498 = vunpack.c.l.b16 %v111
  %v499 = vunpack.c.l.b16 %v112
  %v500 = vunpack.c.l.b16 %v113
  %v501 = vunpack.c.l.b16 %v114
  %v502 = vunpack.c.l.b16 %v115
  %v503 = vunpack.c.l.b16 %v116
  %v504 = vunpack.c.l.b16 %v117
  %v505 = vunpack.c.l.b16 %v118
  %v506 = vunpack.c.l.b16 %v119
  %v507 = vunpack.c.l.b16 %v120
  %v508 = vunpack.c.l.b16 %v121
  %v509 = vunpack.c.l.b16 %v122
  %v510 = vunpack.c.l.b16 %v123
  %v511 = vunpack.c.l.b16 %v124
  %v512 = vunpack.c.l.b16 %v125
  %v513 = vunpack.c.l.b16 %v126
  %v514 = vunpack.c.l.b16 %v127
  %v515 = vunpack.c.l.b16 %v128
  %v516 = vunpack.c.l.b16 %v129
  %v517 = vunpack.c.l.b16 %v130
  %v518 = vunpack.c.l.b16 %v131
  %v519 = vunpack.c.l.b16 %v132
  %v520 = vunpack.c.l.b16 %v133
  %v521 = vunpack.c.l.b16 %v134
  %v522 = vunpack.c.l.b16 %v135
  %v523 = vunpack.c.l.b16 %v136
  %v524 = vunpack.c.l.b16 %v137
  %v525 = vunpack.c.l.b16 %v138
  %v526 = vunpack.c.l.b16 %v139
  %v527 = vunpack.c.l.b16 %v140
  %v528 = vunpack.c.l.b16 %v141
  %v529 = vunpack.c.l.b16 %v142
  %v530 = vunpack.c.l.b16 %v143
  %v531 = vunpack.c.l.b16 %v144
  %v532 = vunpack.c.l.b16 %v145
  %v533 = vunpack.c.l.b16 %v146
  %v534 = vunpack.c.l.b16 %v147
  %v535 = vunpack.c.l.b16 %v148
  %v536 = vunpack.c.l.b16 %v149
  %v537 = vunpack.c.l.b16 %v150
  %v538 = vunpack.c.l.b16 %v151
  %v539 = vunpack.c.l.b16 %v152
  %v540 = vunpack.c.l.b16 %v153
  %v541 = vunpack.c.l.b16 %v154
  %v542 = vunpack.c.l.b16 %v155
  %v543 = vunpack.c.l.b16 %v156
  %v544 = vunpack.c.l.b16 %v157
  %v545 = vunpack.c.l.b16 %v158
  %v546 = vunpack.c.l.b16 %v159
  %v547 = vunpack.c.l.b16 %v160
  %v548 = vunpack.c.l.b16 %v161
  %v549 = vunpack.c.l.b16 %v162
  %v550 = vunpack.c.l.b16 %v163
  %v551 = vunpack.c.l.b16 %v164
  %v552 = vunpack.c.l.b16 %v165
  %v553 = vunpack.c.l.b16 %v166
  %v554 = vunpack.c.l.b16 %v167
  %v555 = vunpack.c.l.b16 %v168
  %v556 = vunpack.c.l.b16 %v169
  %v557 = vunpack.c.l.b16 %v170
  %v558 = vunpack.c.l.b16 %v171
  %v559 = vunpack.c.l.b16 %v172
  %v560 = vunpack.c.l.b16 %v173
  %v561 = vunpack.c.l.b16 %v174
  %v562 = vunpack.c.l.b16 %v175
  %v563 = vunpack.c.l.b16 %v176
  %v564 = vunpack.c.l.b16 %v177
  %v565 = vunpack.c.l.b16 %v178
  %v566 = vpack.c.b16 %v423, %v422
  %v567 = vpack.c.b16 %v425, %v424
  %v568 = vpack.c.b16 %v427, %v426
  %v569 = vpack.c.b16 %v429, %v428
  %v570 = vpack.c.b16 %v431, %v430
  %v571 = vpack.c.b16 %v433, %v432
  %v572 = vpack.c.b16 %v435, %v434
  %v573 = vpack.c.b16 %v437, %v436
  %v574 = vpack.c.b16 %v439, %v438
  %v575 = vpack.c.b16 %v441, %v440
  %v576 = vpack.c.b16 %v443, %v442
  %v577 = vpack.c.b16 %v445, %v444
  %v578 = vpack.c.b16 %v447, %v446
  %v579 = vpack.c.b16 %v449, %v448
  %v580 = vpack.c.b16 %v451, %v450
  %v581 = vpack.c.b16 %v453, %v452
  %v582 = vpack.c.b16 %v455, %v454
  %v583 = vpack.c.b16 %v457, %v456
  %v584 = vpack.c.b16 %v459, %v458
  %v585 = vpack.c.b16 %v461, %v460
  %v586 = vpack.c.b16 %v463, %v462
  %v587 = vpack.c.b16 %v465, %v464
  %v588 = vpack.c.b16 %v467, %v466
  %v589 = vpack.c.b16 %v469, %v468
  %v590 = vpack.c.b16 %v471, %v470
  %v591 = vpack.c.b16 %v473, %v472
  %v592 = vpack.c.b16 %v475, %v474
  %v593 = vpack.c.b16 %v477, %v476
  %v594 = vpack.c.b16 %v479, %v478
  %v595 = vpack.c.b16 %v481, %v480
  %v596 = vpack.c.b16 %v483, %v482
  %v597 = vpack.c.b16 %v485, %v484
  %v598 = vpack.c.b16 %v487, %v486
  %v599 = vpack.c.b16 %v489, %v488
  %v600 = vpack.c.b16 %v491, %v490
  %v601 = vpack.c.b16 %v493, %v492
  %v602 = vpack.c.b16 %v495, %v494
  %v603 = vpack.c.b16 %v497, %v496
  %v604 = vpack.c.b16 %v499, %v498
  %v605 = vpack.c.b16 %v501, %v500
  %v606 = vpack.c.b16 %v503, %v502
  %v607 = vpack.c.b16 %v505, %v504
  %v608 = vpack.c.b16 %v507, %v506
  %v609 = vpack.c.b16 %v509, %v508
  %v610 = vpack.c.b16 %v511, %v510
  %v611 = vpack.c.b16 %v513, %v512
  %v612 = vpack.c.b16 %v515, %v514
  %v613 = vpack.c.b16 %v517, %v516
  %v614 = vpack.c.b16 %v519, %v518
  %v615 = vpack.c.b16 %v521, %v520
  %v616 = vpack.c.b16 %v523, %v522
  %v617 = vpack.c.b16 %v525, %v524
  %v618 = vpack.c.b16 %v527, %v526
  %v619 = vpack.c.b16 %v529, %v528
  %v620 = vpack.c.b16 %v531, %v530
  %v621 = vpack.c.b16 %v533, %v532
  %v622 = vpack.c.b16 %v535, %v534
  %v623 = vpack.c.b16 %v537, %v536
  %v624 = vpack.c.b16 %v539, %v538
  %v625 = vpack.c.b16 %v541, %v540
  %v626 = vpack.c.b16 %v543, %v542
  %v627 = vpack.c.b16 %v545, %v544
  %v628 = vpack.c.b16 %v547, %v546
  %v629 = vpack.c.b16 %v549, %v548
  %v630 = vpack.c.b16 %v551, %v550
  %v631 = vpack.c.b16 %v553, %v552
  %v632 = vpack.c.b16 %v555, %v554
  %v633 = vpack.c.b16 %v557, %v556
  %v634 = vpack.c.b16 %v559, %v558
  %v635 = vpack.c.b16 %v561, %v560
  %v636 = vpack.c.b16 %v563, %v562
  %v637 = vpack.c.b16 %v565, %v564
  %710 = vmatprep.subr.bf16.mxu0 0
  %711 = vmatpush1.bf16.msra.mxu0 %v566
  %712 = vmatprep.subr.bf16.mxu0 0
  %713 = vmatpush1.bf16.msra.mxu0 %v567
  %714 = vmatprep.subr.bf16.mxu0 0
  %715 = vmatpush1.bf16.msra.mxu0 %v568
  %716 = vmatprep.subr.bf16.mxu0 0
  %717 = vmatpush1.bf16.msra.mxu0 %v569
  %718 = vmatprep.subr.bf16.mxu0 0
  %719 = vmatpush1.bf16.msra.mxu0 %v570
  %720 = vmatprep.subr.bf16.mxu0 0
  %721 = vmatpush1.bf16.msra.mxu0 %v571
  %722 = vmatprep.subr.bf16.mxu0 0
  %723 = vmatpush1.bf16.msra.mxu0 %v572
  %724 = vmatprep.subr.bf16.mxu0 0
  %725 = vmatpush1.bf16.msra.mxu0 %v573
  %726 = vmatprep.subr.bf16.mxu0 0
  %727 = vmatpush1.bf16.msra.mxu0 %v574
  %728 = vmatprep.subr.bf16.mxu0 0
  %729 = vmatpush1.bf16.msra.mxu0 %v575
  %730 = vmatprep.subr.bf16.mxu0 0
  %731 = vmatpush1.bf16.msra.mxu0 %v576
  %732 = vmatprep.subr.bf16.mxu0 0
  %733 = vmatpush1.bf16.msra.mxu0 %v577
  %734 = vmatprep.subr.bf16.mxu0 0
  %735 = vmatpush1.bf16.msra.mxu0 %v578
  %736 = vmatprep.subr.bf16.mxu0 0
  %737 = vmatpush1.bf16.msra.mxu0 %v579
  %738 = vmatprep.subr.bf16.mxu0 0
  %739 = vmatpush1.bf16.msra.mxu0 %v580
  %740 = vmatprep.subr.bf16.mxu0 0
  %741 = vmatpush1.bf16.msra.mxu0 %v581
  %742 = vmatprep.mubr.bf16.mxu0 %v243
  %743 = vmatmul.mubr.bf16.gmra.mrb[0].mxu0 %v242
  %v744 = vpop.f32.mrb[0].mxu0
  %v745 = vadd.f32 %v184, %v744
  %v746 = vpop.f32.mrb[0].mxu0
  %v747 = vpop.f32.mrb[0].mxu0
  %v748 = vadd.f32 %v184, %v747
  %v749 = vpop.f32.mrb[0].mxu0
  %750 = vmatprep.mubr.bf16.mxu0 %v252
  %751 = vmatmul.mubr.bf16.gmra.mrb[0].mxu0 %v251
  %v752 = vpop.f32.mrb[0].mxu0
  %v753 = vadd.f32 %v184, %v752
  %v754 = vpop.f32.mrb[0].mxu0
  %v755 = vpop.f32.mrb[0].mxu0
  %v756 = vadd.f32 %v184, %v755
  %v757 = vpop.f32.mrb[0].mxu0
  %758 = vdwg.mxu0
  %759 = vmatprep.subr.bf16.mxu0 0
  %760 = vmatpush1.bf16.msra.mxu0 %v582
  %761 = vmatprep.subr.bf16.mxu0 0
  %762 = vmatpush1.bf16.msra.mxu0 %v583
  %763 = vmatprep.subr.bf16.mxu0 0
  %764 = vmatpush1.bf16.msra.mxu0 %v584
  %765 = vmatprep.subr.bf16.mxu0 0
  %766 = vmatpush1.bf16.msra.mxu0 %v585
  %767 = vmatprep.subr.bf16.mxu0 0
  %768 = vmatpush1.bf16.msra.mxu0 %v586
  %769 = vmatprep.subr.bf16.mxu0 0
  %770 = vmatpush1.bf16.msra.mxu0 %v587
  %771 = vmatprep.subr.bf16.mxu0 0
  %772 = vmatpush1.bf16.msra.mxu0 %v588
  %773 = vmatprep.subr.bf16.mxu0 0
  %774 = vmatpush1.bf16.msra.mxu0 %v589
  %775 = vmatprep.subr.bf16.mxu0 0
  %776 = vmatpush1.bf16.msra.mxu0 %v590
  %777 = vmatprep.subr.bf16.mxu0 0
  %778 = vmatpush1.bf16.msra.mxu0 %v591
  %779 = vmatprep.subr.bf16.mxu0 0
  %780 = vmatpush1.bf16.msra.mxu0 %v592
  %781 = vmatprep.subr.bf16.mxu0 0
  %782 = vmatpush1.bf16.msra.mxu0 %v593
  %783 = vmatprep.subr.bf16.mxu0 0
  %784 = vmatpush1.bf16.msra.mxu0 %v594
  %785 = vmatprep.subr.bf16.mxu0 0
  %786 = vmatpush1.bf16.msra.mxu0 %v595
  %787 = vmatprep.subr.bf16.mxu0 0
  %788 = vmatpush1.bf16.msra.mxu0 %v596
  %789 = vmatprep.subr.bf16.mxu0 0
  %790 = vmatpush1.bf16.msra.mxu0 %v597
  %791 = vmatprep.mubr.bf16.mxu0 %v245
  %792 = vmatmul.mubr.bf16.gmra.mrb[0].mxu0 %v244
  %v793 = vpop.f32.mrb[0].mxu0
  %v794 = vadd.f32 %v745, %v793
  %v795 = vpop.f32.mrb[0].mxu0
  %v796 = vpop.f32.mrb[0].mxu0
  %v797 = vadd.f32 %v748, %v796
  %v798 = vpop.f32.mrb[0].mxu0
  %799 = vmatprep.mubr.bf16.mxu0 %v254
  %800 = vmatmul.mubr.bf16.gmra.mrb[0].mxu0 %v253
  %v801 = vpop.f32.mrb[0].mxu0
  %v802 = vadd.f32 %v753, %v801
  %v803 = vpop.f32.mrb[0].mxu0
  %v804 = vpop.f32.mrb[0].mxu0
  %v805 = vadd.f32 %v756, %v804
  %v806 = vpop.f32.mrb[0].mxu0
  %807 = vdwg.mxu0
  %808 = vmatprep.subr.bf16.mxu0 0
  %809 = vmatpush1.bf16.msra.mxu0 %v598
  %810 = vmatprep.subr.bf16.mxu0 0
  %811 = vmatpush1.bf16.msra.mxu0 %v599
  %812 = vmatprep.subr.bf16.mxu0 0
  %813 = vmatpush1.bf16.msra.mxu0 %v600
  %814 = vmatprep.subr.bf16.mxu0 0
  %815 = vmatpush1.bf16.msra.mxu0 %v601
  %816 = vmatprep.subr.bf16.mxu0 0
  %817 = vmatpush1.bf16.msra.mxu0 %v602
  %818 = vmatprep.subr.bf16.mxu0 0
  %819 = vmatpush1.bf16.msra.mxu0 %v603
  %820 = vmatprep.subr.bf16.mxu0 0
  %821 = vmatpush1.bf16.msra.mxu0 %v604
  %822 = vmatprep.subr.bf16.mxu0 0
  %823 = vmatpush1.bf16.msra.mxu0 %v605
  %824 = vmatprep.subr.bf16.mxu0 0
  %825 = vmatpush1.bf16.msra.mxu0 %v606
  %826 = vmatprep.subr.bf16.mxu0 0
  %827 = vmatpush1.bf16.msra.mxu0 %v607
  %828 = vmatprep.subr.bf16.mxu0 0
  %829 = vmatpush1.bf16.msra.mxu0 %v608
  %830 = vmatprep.subr.bf16.mxu0 0
  %831 = vmatpush1.bf16.msra.mxu0 %v609
  %832 = vmatprep.subr.bf16.mxu0 0
  %833 = vmatpush1.bf16.msra.mxu0 %v610
  %834 = vmatprep.subr.bf16.mxu0 0
  %835 = vmatpush1.bf16.msra.mxu0 %v611
  %836 = vmatprep.subr.bf16.mxu0 0
  %837 = vmatpush1.bf16.msra.mxu0 %v612
  %838 = vmatprep.subr.bf16.mxu0 0
  %839 = vmatpush1.bf16.msra.mxu0 %v613
  %840 = vmatprep.mubr.bf16.mxu0 %v247
  %841 = vmatmul.mubr.bf16.gmra.mrb[0].mxu0 %v246
  %v842 = vpop.f32.mrb[0].mxu0
  %v843 = vadd.f32 %v794, %v842
  %v844 = vpop.f32.mrb[0].mxu0
  %v845 = vpop.f32.mrb[0].mxu0
  %v846 = vadd.f32 %v797, %v845
  %v847 = vpop.f32.mrb[0].mxu0
  %848 = vmatprep.mubr.bf16.mxu0 %v256
  %849 = vmatmul.mubr.bf16.gmra.mrb[0].mxu0 %v255
  %v850 = vpop.f32.mrb[0].mxu0
  %v851 = vadd.f32 %v802, %v850
  %v852 = vpop.f32.mrb[0].mxu0
  %v853 = vpop.f32.mrb[0].mxu0
  %v854 = vadd.f32 %v805, %v853
  %v855 = vpop.f32.mrb[0].mxu0
  %856 = vdwg.mxu0
  %857 = vmatprep.subr.bf16.mxu0 0
  %858 = vmatpush1.bf16.msra.mxu0 %v614
  %859 = vmatprep.subr.bf16.mxu0 0
  %860 = vmatpush1.bf16.msra.mxu0 %v615
  %861 = vmatprep.subr.bf16.mxu0 0
  %862 = vmatpush1.bf16.msra.mxu0 %v616
  %863 = vmatprep.subr.bf16.mxu0 0
  %864 = vmatpush1.bf16.msra.mxu0 %v617
  %865 = vmatprep.subr.bf16.mxu0 0
  %866 = vmatpush1.bf16.msra.mxu0 %v618
  %867 = vmatprep.subr.bf16.mxu0 0
  %868 = vmatpush1.bf16.msra.mxu0 %v619
  %869 = vmatprep.subr.bf16.mxu0 0
  %870 = vmatpush1.bf16.msra.mxu0 %v620
  %871 = vmatprep.subr.bf16.mxu0 0
  %872 = vmatpush1.bf16.msra.mxu0 %v621
  %873 = vmatprep.subr.bf16.mxu0 0
  %874 = vmatpush1.bf16.msra.mxu0 %v622
  %875 = vmatprep.subr.bf16.mxu0 0
  %876 = vmatpush1.bf16.msra.mxu0 %v623
  %877 = vmatprep.subr.bf16.mxu0 0
  %878 = vmatpush1.bf16.msra.mxu0 %v624
  %879 = vmatprep.subr.bf16.mxu0 0
  %880 = vmatpush1.bf16.msra.mxu0 %v625
  %881 = vmatprep.subr.bf16.mxu0 0
  %882 = vmatpush1.bf16.msra.mxu0 %v626
  %883 = vmatprep.subr.bf16.mxu0 0
  %884 = vmatpush1.bf16.msra.mxu0 %v627
  %885 = vmatprep.subr.bf16.mxu0 0
  %886 = vmatpush1.bf16.msra.mxu0 %v628
  %887 = vmatprep.subr.bf16.mxu0 0
  %888 = vmatpush1.bf16.msra.mxu0 %v629
  %889 = vmatprep.mubr.bf16.mxu0 %v249
  %890 = vmatmul.mubr.bf16.gmra.mrb[0].mxu0 %v248
  %v891 = vpop.f32.mrb[0].mxu0
  %v892 = vadd.f32 %v843, %v891
  %v893 = vpop.f32.mrb[0].mxu0
  %v894 = vpop.f32.mrb[0].mxu0
  %v895 = vadd.f32 %v846, %v894
  %v896 = vpop.f32.mrb[0].mxu0
  %897 = vmatprep.mubr.bf16.mxu0 %v258
  %898 = vmatmul.mubr.bf16.gmra.mrb[0].mxu0 %v257
  %v899 = vpop.f32.mrb[0].mxu0
  %v900 = vadd.f32 %v851, %v899
  %v901 = vpop.f32.mrb[0].mxu0
  %v902 = vpop.f32.mrb[0].mxu0
  %v903 = vadd.f32 %v854, %v902
  %v904 = vpop.f32.mrb[0].mxu0
  %905 = vdwg.mxu0
  %906 = vmatprep.subr.bf16.mxu0 0
  %907 = vmatpush1.bf16.msra.mxu0 %v630
  %908 = vmatprep.subr.bf16.mxu0 0
  %909 = vmatpush1.bf16.msra.mxu0 %v631
  %910 = vmatprep.subr.bf16.mxu0 0
  %911 = vmatpush1.bf16.msra.mxu0 %v632
  %912 = vmatprep.subr.bf16.mxu0 0
  %913 = vmatpush1.bf16.msra.mxu0 %v633
  %914 = vmatprep.subr.bf16.mxu0 0
  %915 = vmatpush1.bf16.msra.mxu0 %v634
  %916 = vmatprep.subr.bf16.mxu0 0
  %917 = vmatpush1.bf16.msra.mxu0 %v635
  %918 = vmatprep.subr.bf16.mxu0 0
  %919 = vmatpush1.bf16.msra.mxu0 %v636
  %920 = vmatprep.subr.bf16.mxu0 0
  %921 = vmatpush1.bf16.msra.mxu0 %v637
  %922 = vmatprep.subr.bf16.mxu0 0
  %923 = vmatpush1.bf16.msra.mxu0 0
  %924 = vmatprep.subr.bf16.mxu0 0
  %925 = vmatpush1.bf16.msra.mxu0 0
  %926 = vmatprep.subr.bf16.mxu0 0
  %927 = vmatpush1.bf16.msra.mxu0 0
  %928 = vmatprep.subr.bf16.mxu0 0
  %929 = vmatpush1.bf16.msra.mxu0 0
  %930 = vmatprep.subr.bf16.mxu0 0
  %931 = vmatpush1.bf16.msra.mxu0 0
  %932 = vmatprep.subr.bf16.mxu0 0
  %933 = vmatpush1.bf16.msra.mxu0 0
  %934 = vmatprep.subr.bf16.mxu0 0
  %935 = vmatpush1.bf16.msra.mxu0 0
  %936 = vmatprep.subr.bf16.mxu0 0
  %937 = vmatpush1.bf16.msra.mxu0 0
  %938 = vmatprep.mubr.bf16.mxu0 0
  %939 = vmatmul.mubr.bf16.gmra.mrb[0].mxu0 %v250
  %v940 = vpop.f32.mrb[0].mxu0
  %v941 = vadd.f32 %v892, %v940
  %v942 = vpop.f32.mrb[0].mxu0
  %v943 = vpop.f32.mrb[0].mxu0
  %v944 = vadd.f32 %v895, %v943
  %v945 = vpop.f32.mrb[0].mxu0
  %946 = vmatprep.mubr.bf16.mxu0 0
  %947 = vmatmul.mubr.bf16.gmra.mrb[0].mxu0 %v259
  %v948 = vpop.f32.mrb[0].mxu0
  %v949 = vadd.f32 %v900, %v948
  %v950 = vpop.f32.mrb[0].mxu0
  %v951 = vpop.f32.mrb[0].mxu0
  %v952 = vadd.f32 %v903, %v951
  %v953 = vpop.f32.mrb[0].mxu0
  %954 = vdwg.mxu0
  %v955 = vpack.c.bf16 %v944, %v941
  %v956 = vpack.c.bf16 %v952, %v949
  %v959 = vunpack.c.l.b16 %v955
  %v960 = vunpack.c.h.b16 %v955
  %v961 = vunpack.c.l.b16 %v956
  %v962 = vunpack.c.h.b16 %v956
  %v963 = vpack.c.b16 %v959, %v959
  %v964 = vpack.c.b16 %v960, %v960
  %v965 = vpack.c.b16 %v961, %v961
  %v966 = vpack.c.b16 %v962, %v962
  %971 = vst [vmem:[%s3] sm:$0xf] %v963
  %972 = vst [vmem:[%s3 + $0x4] sm:$0xf] %v964
  %973 = vst [vmem:[%s3 + $0x8] sm:$0xf] %v965
  %974 = vst [vmem:[%s3 + $0xc] sm:$0xf] %v966
  // Predicated region
  $region14: #{mscdae_forward.8} parent=0 // pred_check
    _
  $region15: #{mscdae_forward.8} parent=0 // pred_check_branch
    %976 = sbr.rel (0) target = $region17
  $region16: #{mscdae_forward.8} parent=0 // pred_region
    _
  $region17: #{mscdae_forward.8} parent=0 // pred_fallthru
    _
  // Predicated region
  $region18: #{mscdae_forward.8} parent=0 // pred_check
    _
  $region19: #{mscdae_forward.8} parent=0 // pred_check_branch
    %978 = sbr.rel (0) target = $region21
  $region20: #{mscdae_forward.8} parent=0 // pred_region
    _
  $region21: #{mscdae_forward.8} parent=0 // pred_fallthru
    _

// kernel: mscdae_forward.7
$region0: #{mscdae_forward.7}
  #allocation0 [shape = 'u32[]', space=smem, size = 0x4, offset = 0x4, fixed_abs, tag = 'smem constant byte address 0x4 - core index']
  #allocation1 [shape = 'u32[144,128]{1,0:T(1,128)}', space=vmem, size = 0x12000, scoped, tag = 'internal scratch']
  %s0 = inlined_call_operand.vmem [shape: bf16[168,3712], index: 0, kind: input, shape index: {}]
  %s1 = inlined_call_operand.vmem [shape: bf16[3712,128], index: 1, kind: input, shape index: {}]
  %s2 = inlined_call_operand.vmem [shape: bf16[168,128], index: 2, kind: output, shape index: {}]
  %s3 = sld [smem:[#allocation0]]
  $region18: #{mscdae_forward.7} parent=0
    _
  %s5 = ssub.s32 1, %s3
  %s6 = scalar_select 0, %s5, %s3
  // Predicated region
  $region2: #{mscdae_forward.7} parent=0 // pred_check
    _
  $region3: #{mscdae_forward.7} parent=0 // pred_check_branch
    %8 = sbr.rel (0) target = $region5
  $region4: #{mscdae_forward.7} parent=0 // pred_region
    _
  $region5: #{mscdae_forward.7} parent=0 // pred_fallthru
    _
  // Predicated region
  $region6: #{mscdae_forward.7} parent=0 // pred_check
    _
  $region7: #{mscdae_forward.7} parent=0 // pred_check_branch
    %10 = sbr.rel (0) target = $region9
  $region8: #{mscdae_forward.7} parent=0 // pred_region
    _
  $region9: #{mscdae_forward.7} parent=0 // pred_fallthru
    _
  %v12 = vld [vmem:[%s0] sm:$0xff]
  %v13 = vld [vmem:[%s0 + $0x8] sm:$0xff]
  %v14 = vld [vmem:[%s0 + $0x10] sm:$0xff]
  %v15 = vld [vmem:[%s0 + $0x18] sm:$0xff]
  %v16 = vld [vmem:[%s0 + $0x20] sm:$0xff]
  %v17 = vld [vmem:[%s0 + $0x28] sm:$0xff]
  %v18 = vld [vmem:[%s0 + $0x30] sm:$0xff]
  %v19 = vld [vmem:[%s0 + $0x38] sm:$0xff]
  %v20 = vld [vmem:[%s0 + $0x40] sm:$0xff]
  %v21 = vld [vmem:[%s0 + $0x48] sm:$0xff]
  %v22 = vld [vmem:[%s0 + $0x50] sm:$0xff]
  %v23 = vld [vmem:[%s0 + $0x58] sm:$0xff]
  %v24 = vld [vmem:[%s0 + $0x60] sm:$0xff]
  %v25 = vld [vmem:[%s0 + $0x68] sm:$0xff]
  %v26 = vld [vmem:[%s0 + $0x70] sm:$0xf]
  %v27 = vld [vmem:[%s0 + $0x74] sm:$0xff]
  %v28 = vld [vmem:[%s0 + $0x7c] sm:$0xff]
  %v29 = vld [vmem:[%s0 + $0x84] sm:$0xff]
  %v30 = vld [vmem:[%s0 + $0x8c] sm:$0xff]
  %v31 = vld [vmem:[%s0 + $0x94] sm:$0xff]
  %v32 = vld [vmem:[%s0 + $0x9c] sm:$0xff]
  %v33 = vld [vmem:[%s0 + $0xa4] sm:$0xff]
  %v34 = vld [vmem:[%s0 + $0xac] sm:$0xff]
  %v35 = vld [vmem:[%s0 + $0xb4] sm:$0xff]
  %v36 = vld [vmem:[%s0 + $0xbc] sm:$0xff]
  %v37 = vld [vmem:[%s0 + $0xc4] sm:$0xff]
  %v38 = vld [vmem:[%s0 + $0xcc] sm:$0xff]
  %v39 = vld [vmem:[%s0 + $0xd4] sm:$0xff]
  %v40 = vld [vmem:[%s0 + $0xdc] sm:$0xff]
  %v41 = vld [vmem:[%s0 + $0xe4] sm:$0xf]
  %v42 = vld [vmem:[%s0 + $0xe8] sm:$0xff]
  %v43 = vld [vmem:[%s0 + $0xf0] sm:$0xff]
  %v44 = vld [vmem:[%s0 + $0xf8] sm:$0xff]
  %v45 = vld [vmem:[%s0 + $0x100] sm:$0xff]
  %v46 = vld [vmem:[%s0 + $0x108] sm:$0xff]
  %v47 = vld [vmem:[%s0 + $0x110] sm:$0xff]
  %v48 = vld [vmem:[%s0 + $0x118] sm:$0xff]
  %v49 = vld [vmem:[%s0 + $0x120] sm:$0xff]
  %v50 = vld [vmem:[%s0 + $0x128] sm:$0xff]
  %v51 = vld [vmem:[%s0 + $0x130] sm:$0xff]
  %v52 = vld [vmem:[%s0 + $0x138] sm:$0xff]
  %v53 = vld [vmem:[%s0 + $0x140] sm:$0xff]
  %v54 = vld [vmem:[%s0 + $0x148] sm:$0xff]
  %v55 = vld [vmem:[%s0 + $0x150] sm:$0xff]
  %v56 = vld [vmem:[%s0 + $0x158] sm:$0xf]
  %v57 = vld [vmem:[%s0 + $0x15c] sm:$0xff]
  %v58 = vld [vmem:[%s0 + $0x164] sm:$0xff]
  %v59 = vld [vmem:[%s0 + $0x16c] sm:$0xff]
  %v60 = vld [vmem:[%s0 + $0x174] sm:$0xff]
  %v61 = vld [vmem:[%s0 + $0x17c] sm:$0xff]
  %v62 = vld [vmem:[%s0 + $0x184] sm:$0xff]
  %v63 = vld [vmem:[%s0 + $0x18c] sm:$0xff]
  %v64 = vld [vmem:[%s0 + $0x194] sm:$0xff]
  %v65 = vld [vmem:[%s0 + $0x19c] sm:$0xff]
  %v66 = vld [vmem:[%s0 + $0x1a4] sm:$0xff]
  %v67 = vld [vmem:[%s0 + $0x1ac] sm:$0xff]
  %v68 = vld [vmem:[%s0 + $0x1b4] sm:$0xff]
  %v69 = vld [vmem:[%s0 + $0x1bc] sm:$0xff]
  %v70 = vld [vmem:[%s0 + $0x1c4] sm:$0xff]
  %v71 = vld [vmem:[%s0 + $0x1cc] sm:$0xf]
  %v72 = vld [vmem:[%s0 + $0x1d0] sm:$0xff]
  %v73 = vld [vmem:[%s0 + $0x1d8] sm:$0xff]
  %v74 = vld [vmem:[%s0 + $0x1e0] sm:$0xff]
  %v75 = vld [vmem:[%s0 + $0x1e8] sm:$0xff]
  %v76 = vld [vmem:[%s0 + $0x1f0] sm:$0xff]
  %v77 = vld [vmem:[%s0 + $0x1f8] sm:$0xff]
  %v78 = vld [vmem:[%s0 + $0x200] sm:$0xff]
  %v79 = vld [vmem:[%s0 + $0x208] sm:$0xff]
  %v80 = vld [vmem:[%s0 + $0x210] sm:$0xff]
  %v81 = vld [vmem:[%s0 + $0x218] sm:$0xff]
  %v82 = vld [vmem:[%s0 + $0x220] sm:$0xff]
  %v83 = vld [vmem:[%s0 + $0x228] sm:$0xff]
  %v84 = vld [vmem:[%s0 + $0x230] sm:$0xff]
  %v85 = vld [vmem:[%s0 + $0x238] sm:$0xff]
  %v86 = vld [vmem:[%s0 + $0x240] sm:$0xf]
  %v87 = vld [vmem:[%s0 + $0x244] sm:$0xff]
  %v88 = vld [vmem:[%s0 + $0x24c] sm:$0xff]
  %v89 = vld [vmem:[%s0 + $0x254] sm:$0xff]
  %v90 = vld [vmem:[%s0 + $0x25c] sm:$0xff]
  %v91 = vld [vmem:[%s0 + $0x264] sm:$0xff]
  %v92 = vld [vmem:[%s0 + $0x26c] sm:$0xff]
  %v93 = vld [vmem:[%s0 + $0x274] sm:$0xff]
  %v94 = vld [vmem:[%s0 + $0x27c] sm:$0xff]
  %v95 = vld [vmem:[%s0 + $0x284] sm:$0xff]
  %v96 = vld [vmem:[%s0 + $0x28c] sm:$0xff]
  %v97 = vld [vmem:[%s0 + $0x294] sm:$0xff]
  %v98 = vld [vmem:[%s0 + $0x29c] sm:$0xff]
  %v99 = vld [vmem:[%s0 + $0x2a4] sm:$0xff]
  %v100 = vld [vmem:[%s0 + $0x2ac] sm:$0xff]
  %v101 = vld [vmem:[%s0 + $0x2b4] sm:$0xf]
  %v102 = vld [vmem:[%s0 + $0x2b8] sm:$0xff]
  %v103 = vld [vmem:[%s0 + $0x2c0] sm:$0xff]
  %v104 = vld [vmem:[%s0 + $0x2c8] sm:$0xff]
  %v105 = vld [vmem:[%s0 + $0x2d0] sm:$0xff]
  %v106 = vld [vmem:[%s0 + $0x2d8] sm:$0xff]
  %v107 = vld [vmem:[%s0 + $0x2e0] sm:$0xff]
  %v108 = vld [vmem:[%s0 + $0x2e8] sm:$0xff]
  %v109 = vld [vmem:[%s0 + $0x2f0] sm:$0xff]
  %v110 = vld [vmem:[%s0 + $0x2f8] sm:$0xff]
  %v111 = vld [vmem:[%s0 + $0x300] sm:$0xff]
  %v112 = vld [vmem:[%s0 + $0x308] sm:$0xff]
  %v113 = vld [vmem:[%s0 + $0x310] sm:$0xff]
  %v114 = vld [vmem:[%s0 + $0x318] sm:$0xff]
  %v115 = vld [vmem:[%s0 + $0x320] sm:$0xff]
  %v116 = vld [vmem:[%s0 + $0x328] sm:$0xf]
  %v117 = vld [vmem:[%s0 + $0x32c] sm:$0xff]
  %v118 = vld [vmem:[%s0 + $0x334] sm:$0xff]
  %v119 = vld [vmem:[%s0 + $0x33c] sm:$0xff]
  %v120 = vld [vmem:[%s0 + $0x344] sm:$0xff]
  %v121 = vld [vmem:[%s0 + $0x34c] sm:$0xff]
  %v122 = vld [vmem:[%s0 + $0x354] sm:$0xff]
  %v123 = vld [vmem:[%s0 + $0x35c] sm:$0xff]
  %v124 = vld [vmem:[%s0 + $0x364] sm:$0xff]
  %v125 = vld [vmem:[%s0 + $0x36c] sm:$0xff]
  %v126 = vld [vmem:[%s0 + $0x374] sm:$0xff]
  %v127 = vld [vmem:[%s0 + $0x37c] sm:$0xff]
  %v128 = vld [vmem:[%s0 + $0x384] sm:$0xff]
  %v129 = vld [vmem:[%s0 + $0x38c] sm:$0xff]
  %v130 = vld [vmem:[%s0 + $0x394] sm:$0xff]
  %v131 = vld [vmem:[%s0 + $0x39c] sm:$0xf]
  %v132 = vld [vmem:[%s0 + $0x3a0] sm:$0xff]
  %v133 = vld [vmem:[%s0 + $0x3a8] sm:$0xff]
  %v134 = vld [vmem:[%s0 + $0x3b0] sm:$0xff]
  %v135 = vld [vmem:[%s0 + $0x3b8] sm:$0xff]
  %v136 = vld [vmem:[%s0 + $0x3c0] sm:$0xff]
  %v137 = vld [vmem:[%s0 + $0x3c8] sm:$0xff]
  %v138 = vld [vmem:[%s0 + $0x3d0] sm:$0xff]
  %v139 = vld [vmem:[%s0 + $0x3d8] sm:$0xff]
  %v140 = vld [vmem:[%s0 + $0x3e0] sm:$0xff]
  %v141 = vld [vmem:[%s0 + $0x3e8] sm:$0xff]
  %v142 = vld [vmem:[%s0 + $0x3f0] sm:$0xff]
  %v143 = vld [vmem:[%s0 + $0x3f8] sm:$0xff]
  %v144 = vld [vmem:[%s0 + $0x400] sm:$0xff]
  %v145 = vld [vmem:[%s0 + $0x408] sm:$0xff]
  %v146 = vld [vmem:[%s0 + $0x410] sm:$0xf]
  %v147 = vld [vmem:[%s0 + $0x414] sm:$0xff]
  %v148 = vld [vmem:[%s0 + $0x41c] sm:$0xff]
  %v149 = vld [vmem:[%s0 + $0x424] sm:$0xff]
  %v150 = vld [vmem:[%s0 + $0x42c] sm:$0xff]
  %v151 = vld [vmem:[%s0 + $0x434] sm:$0xff]
  %v152 = vld [vmem:[%s0 + $0x43c] sm:$0xff]
  %v153 = vld [vmem:[%s0 + $0x444] sm:$0xff]
  %v154 = vld [vmem:[%s0 + $0x44c] sm:$0xff]
  %v155 = vld [vmem:[%s0 + $0x454] sm:$0xff]
  %v156 = vld [vmem:[%s0 + $0x45c] sm:$0xff]
  %v157 = vld [vmem:[%s0 + $0x464] sm:$0xff]
  %v158 = vld [vmem:[%s0 + $0x46c] sm:$0xff]
  %v159 = vld [vmem:[%s0 + $0x474] sm:$0xff]
  %v160 = vld [vmem:[%s0 + $0x47c] sm:$0xff]
  %v161 = vld [vmem:[%s0 + $0x484] sm:$0xf]
  %v162 = vld [vmem:[%s0 + $0x488] sm:$0xff]
  %v163 = vld [vmem:[%s0 + $0x490] sm:$0xff]
  %v164 = vld [vmem:[%s0 + $0x498] sm:$0xff]
  %v165 = vld [vmem:[%s0 + $0x4a0] sm:$0xff]
  %v166 = vld [vmem:[%s0 + $0x4a8] sm:$0xff]
  %v167 = vld [vmem:[%s0 + $0x4b0] sm:$0xff]
  %v168 = vld [vmem:[%s0 + $0x4b8] sm:$0xff]
  %v169 = vld [vmem:[%s0 + $0x4c0] sm:$0xff]
  %v170 = vld [vmem:[%s0 + $0x4c8] sm:$0xff]
  %v171 = vld [vmem:[%s0 + $0x4d0] sm:$0xff]
  %v172 = vld [vmem:[%s0 + $0x4d8] sm:$0xff]
  %v173 = vld [vmem:[%s0 + $0x4e0] sm:$0xff]
  %v174 = vld [vmem:[%s0 + $0x4e8] sm:$0xff]
  %v175 = vld [vmem:[%s0 + $0x4f0] sm:$0xff]
  %v176 = vld [vmem:[%s0 + $0x4f8] sm:$0xf]
  %v177 = vld [vmem:[%s0 + $0x4fc] sm:$0xff]
  %v178 = vld [vmem:[%s0 + $0x504] sm:$0xff]
  %v179 = vld [vmem:[%s0 + $0x50c] sm:$0xff]
  %v180 = vld [vmem:[%s0 + $0x514] sm:$0xff]
  %v181 = vld [vmem:[%s0 + $0x51c] sm:$0xff]
  %v182 = vld [vmem:[%s0 + $0x524] sm:$0xff]
  %v183 = vld [vmem:[%s0 + $0x52c] sm:$0xff]
  %v184 = vld [vmem:[%s0 + $0x534] sm:$0xff]
  %v185 = vld [vmem:[%s0 + $0x53c] sm:$0xff]
  %v186 = vld [vmem:[%s0 + $0x544] sm:$0xff]
  %v187 = vld [vmem:[%s0 + $0x54c] sm:$0xff]
  %v188 = vld [vmem:[%s0 + $0x554] sm:$0xff]
  %v189 = vld [vmem:[%s0 + $0x55c] sm:$0xff]
  %v190 = vld [vmem:[%s0 + $0x564] sm:$0xff]
  %v191 = vld [vmem:[%s0 + $0x56c] sm:$0xf]
  %v192 = vld [vmem:[%s0 + $0x570] sm:$0xff]
  %v193 = vld [vmem:[%s0 + $0x578] sm:$0xff]
  %v194 = vld [vmem:[%s0 + $0x580] sm:$0xff]
  %v195 = vld [vmem:[%s0 + $0x588] sm:$0xff]
  %v196 = vld [vmem:[%s0 + $0x590] sm:$0xff]
  %v197 = vld [vmem:[%s0 + $0x598] sm:$0xff]
  %v198 = vld [vmem:[%s0 + $0x5a0] sm:$0xff]
  %v199 = vld [vmem:[%s0 + $0x5a8] sm:$0xff]
  %v200 = vld [vmem:[%s0 + $0x5b0] sm:$0xff]
  %v201 = vld [vmem:[%s0 + $0x5b8] sm:$0xff]
  %v202 = vld [vmem:[%s0 + $0x5c0] sm:$0xff]
  %v203 = vld [vmem:[%s0 + $0x5c8] sm:$0xff]
  %v204 = vld [vmem:[%s0 + $0x5d0] sm:$0xff]
  %v205 = vld [vmem:[%s0 + $0x5d8] sm:$0xff]
  %v206 = vld [vmem:[%s0 + $0x5e0] sm:$0xf]
  %v207 = vld [vmem:[%s0 + $0x5e4] sm:$0xff]
  %v208 = vld [vmem:[%s0 + $0x5ec] sm:$0xff]
  %v209 = vld [vmem:[%s0 + $0x5f4] sm:$0xff]
  %v210 = vld [vmem:[%s0 + $0x5fc] sm:$0xff]
  %v211 = vld [vmem:[%s0 + $0x604] sm:$0xff]
  %v212 = vld [vmem:[%s0 + $0x60c] sm:$0xff]
  %v213 = vld [vmem:[%s0 + $0x614] sm:$0xff]
  %v214 = vld [vmem:[%s0 + $0x61c] sm:$0xff]
  %v215 = vld [vmem:[%s0 + $0x624] sm:$0xff]
  %v216 = vld [vmem:[%s0 + $0x62c] sm:$0xff]
  %v217 = vld [vmem:[%s0 + $0x634] sm:$0xff]
  %v218 = vld [vmem:[%s0 + $0x63c] sm:$0xff]
  %v219 = vld [vmem:[%s0 + $0x644] sm:$0xff]
  %v220 = vld [vmem:[%s0 + $0x64c] sm:$0xff]
  %v221 = vld [vmem:[%s0 + $0x654] sm:$0xf]
  %v222 = vld [vmem:[%s0 + $0x658] sm:$0xff]
  %v223 = vld [vmem:[%s0 + $0x660] sm:$0xff]
  %v224 = vld [vmem:[%s0 + $0x668] sm:$0xff]
  %v225 = vld [vmem:[%s0 + $0x670] sm:$0xff]
  %v226 = vld [vmem:[%s0 + $0x678] sm:$0xff]
  %v227 = vld [vmem:[%s0 + $0x680] sm:$0xff]
  %v228 = vld [vmem:[%s0 + $0x688] sm:$0xff]
  %v229 = vld [vmem:[%s0 + $0x690] sm:$0xff]
  %v230 = vld [vmem:[%s0 + $0x698] sm:$0xff]
  %v231 = vld [vmem:[%s0 + $0x6a0] sm:$0xff]
  %v232 = vld [vmem:[%s0 + $0x6a8] sm:$0xff]
  %v233 = vld [vmem:[%s0 + $0x6b0] sm:$0xff]
  %v234 = vld [vmem:[%s0 + $0x6b8] sm:$0xff]
  %v235 = vld [vmem:[%s0 + $0x6c0] sm:$0xff]
  %v236 = vld [vmem:[%s0 + $0x6c8] sm:$0xf]
  %v237 = vld [vmem:[%s0 + $0x6cc] sm:$0xff]
  %v238 = vld [vmem:[%s0 + $0x6d4] sm:$0xff]
  %v239 = vld [vmem:[%s0 + $0x6dc] sm:$0xff]
  %v240 = vld [vmem:[%s0 + $0x6e4] sm:$0xff]
  %v241 = vld [vmem:[%s0 + $0x6ec] sm:$0xff]
  %v242 = vld [vmem:[%s0 + $0x6f4] sm:$0xff]
  %v243 = vld [vmem:[%s0 + $0x6fc] sm:$0xff]
  %v244 = vld [vmem:[%s0 + $0x704] sm:$0xff]
  %v245 = vld [vmem:[%s0 + $0x70c] sm:$0xff]
  %v246 = vld [vmem:[%s0 + $0x714] sm:$0xff]
  %v247 = vld [vmem:[%s0 + $0x71c] sm:$0xff]
  %v248 = vld [vmem:[%s0 + $0x724] sm:$0xff]
  %v249 = vld [vmem:[%s0 + $0x72c] sm:$0xff]
  %v250 = vld [vmem:[%s0 + $0x734] sm:$0xff]
  %v251 = vld [vmem:[%s0 + $0x73c] sm:$0xf]
  %v252 = vld [vmem:[%s0 + $0x740] sm:$0xff]
  %v253 = vld [vmem:[%s0 + $0x748] sm:$0xff]
  %v254 = vld [vmem:[%s0 + $0x750] sm:$0xff]
  %v255 = vld [vmem:[%s0 + $0x758] sm:$0xff]
  %v256 = vld [vmem:[%s0 + $0x760] sm:$0xff]
  %v257 = vld [vmem:[%s0 + $0x768] sm:$0xff]
  %v258 = vld [vmem:[%s0 + $0x770] sm:$0xff]
  %v259 = vld [vmem:[%s0 + $0x778] sm:$0xff]
  %v260 = vld [vmem:[%s0 + $0x780] sm:$0xff]
  %v261 = vld [vmem:[%s0 + $0x788] sm:$0xff]
  %v262 = vld [vmem:[%s0 + $0x790] sm:$0xff]
  %v263 = vld [vmem:[%s0 + $0x798] sm:$0xff]
  %v264 = vld [vmem:[%s0 + $0x7a0] sm:$0xff]
  %v265 = vld [vmem:[%s0 + $0x7a8] sm:$0xff]
  %v266 = vld [vmem:[%s0 + $0x7b0] sm:$0xf]
  %v267 = vld [vmem:[%s0 + $0x7b4] sm:$0xff]
  %v268 = vld [vmem:[%s0 + $0x7bc] sm:$0xff]
  %v269 = vld [vmem:[%s0 + $0x7c4] sm:$0xff]
  %v270 = vld [vmem:[%s0 + $0x7cc] sm:$0xff]
  %v271 = vld [vmem:[%s0 + $0x7d4] sm:$0xff]
  %v272 = vld [vmem:[%s0 + $0x7dc] sm:$0xff]
  %v273 = vld [vmem:[%s0 + $0x7e4] sm:$0xff]
  %v274 = vld [vmem:[%s0 + $0x7ec] sm:$0xff]
  %v275 = vld [vmem:[%s0 + $0x7f4] sm:$0xff]
  %v276 = vld [vmem:[%s0 + $0x7fc] sm:$0xff]
  %v277 = vld [vmem:[%s0 + $0x804] sm:$0xff]
  %v278 = vld [vmem:[%s0 + $0x80c] sm:$0xff]
  %v279 = vld [vmem:[%s0 + $0x814] sm:$0xff]
  %v280 = vld [vmem:[%s0 + $0x81c] sm:$0xff]
  %v281 = vld [vmem:[%s0 + $0x824] sm:$0xf]
  %v282 = vld [vmem:[%s0 + $0x828] sm:$0xff]
  %v283 = vld [vmem:[%s0 + $0x830] sm:$0xff]
  %v284 = vld [vmem:[%s0 + $0x838] sm:$0xff]
  %v285 = vld [vmem:[%s0 + $0x840] sm:$0xff]
  %v286 = vld [vmem:[%s0 + $0x848] sm:$0xff]
  %v287 = vld [vmem:[%s0 + $0x850] sm:$0xff]
  %v288 = vld [vmem:[%s0 + $0x858] sm:$0xff]
  %v289 = vld [vmem:[%s0 + $0x860] sm:$0xff]
  %v290 = vld [vmem:[%s0 + $0x868] sm:$0xff]
  %v291 = vld [vmem:[%s0 + $0x870] sm:$0xff]
  %v292 = vld [vmem:[%s0 + $0x878] sm:$0xff]
  %v293 = vld [vmem:[%s0 + $0x880] sm:$0xff]
  %v294 = vld [vmem:[%s0 + $0x888] sm:$0xff]
  %v295 = vld [vmem:[%s0 + $0x890] sm:$0xff]
  %v296 = vld [vmem:[%s0 + $0x898] sm:$0xf]
  %v297 = vld [vmem:[%s0 + $0x89c] sm:$0xff]
  %v298 = vld [vmem:[%s0 + $0x8a4] sm:$0xff]
  %v299 = vld [vmem:[%s0 + $0x8ac] sm:$0xff]
  %v300 = vld [vmem:[%s0 + $0x8b4] sm:$0xff]
  %v301 = vld [vmem:[%s0 + $0x8bc] sm:$0xff]
  %v302 = vld [vmem:[%s0 + $0x8c4] sm:$0xff]
  %v303 = vld [vmem:[%s0 + $0x8cc] sm:$0xff]
  %v304 = vld [vmem:[%s0 + $0x8d4] sm:$0xff]
  %v305 = vld [vmem:[%s0 + $0x8dc] sm:$0xff]
  %v306 = vld [vmem:[%s0 + $0x8e4] sm:$0xff]
  %v307 = vld [vmem:[%s0 + $0x8ec] sm:$0xff]
  %v308 = vld [vmem:[%s0 + $0x8f4] sm:$0xff]
  %v309 = vld [vmem:[%s0 + $0x8fc] sm:$0xff]
  %v310 = vld [vmem:[%s0 + $0x904] sm:$0xff]
  %v311 = vld [vmem:[%s0 + $0x90c] sm:$0xf]
  %v312 = vld [vmem:[%s0 + $0x910] sm:$0xff]
  %v313 = vld [vmem:[%s0 + $0x918] sm:$0xff]
  %v314 = vld [vmem:[%s0 + $0x920] sm:$0xff]
  %v315 = vld [vmem:[%s0 + $0x928] sm:$0xff]
  %v316 = vld [vmem:[%s0 + $0x930] sm:$0xff]
  %v317 = vld [vmem:[%s0 + $0x938] sm:$0xff]
  %v318 = vld [vmem:[%s0 + $0x940] sm:$0xff]
  %v319 = vld [vmem:[%s0 + $0x948] sm:$0xff]
  %v320 = vld [vmem:[%s0 + $0x950] sm:$0xff]
  %v321 = vld [vmem:[%s0 + $0x958] sm:$0xff]
  %v322 = vld [vmem:[%s0 + $0x960] sm:$0xff]
  %v323 = vld [vmem:[%s0 + $0x968] sm:$0xff]
  %v324 = vld [vmem:[%s0 + $0x970] sm:$0xff]
  %v325 = vld [vmem:[%s0 + $0x978] sm:$0xff]
  %v326 = vld [vmem:[%s0 + $0x980] sm:$0xf]
  %v327 = vld [vmem:[%s1] sm:$0xf]
  %v328 = vld [vmem:[%s1 + $0x4] sm:$0xf]
  %v329 = vld [vmem:[%s1 + $0x8] sm:$0xf]
  %v330 = vld [vmem:[%s1 + $0xc] sm:$0xf]
  %v331 = vld [vmem:[%s1 + $0x10] sm:$0xf]
  %v332 = vld [vmem:[%s1 + $0x14] sm:$0xf]
  %v333 = vld [vmem:[%s1 + $0x18] sm:$0xf]
  %v334 = vld [vmem:[%s1 + $0x1c] sm:$0xf]
  %v335 = vld [vmem:[%s1 + $0x20] sm:$0xf]
  %v336 = vld [vmem:[%s1 + $0x24] sm:$0xf]
  %v337 = vld [vmem:[%s1 + $0x28] sm:$0xf]
  %v338 = vld [vmem:[%s1 + $0x2c] sm:$0xf]
  %v339 = vld [vmem:[%s1 + $0x30] sm:$0xf]
  %v340 = vld [vmem:[%s1 + $0x34] sm:$0xf]
  %v341 = vld [vmem:[%s1 + $0x38] sm:$0xf]
  %v342 = vld [vmem:[%s1 + $0x3c] sm:$0xf]
  %v343 = vld [vmem:[%s1 + $0x40] sm:$0xf]
  %v344 = vld [vmem:[%s1 + $0x44] sm:$0xf]
  %v345 = vld [vmem:[%s1 + $0x48] sm:$0xf]
  %v346 = vld [vmem:[%s1 + $0x4c] sm:$0xf]
  %v347 = vld [vmem:[%s1 + $0x50] sm:$0xf]
  %v348 = vld [vmem:[%s1 + $0x54] sm:$0xf]
  %v349 = vld [vmem:[%s1 + $0x58] sm:$0xf]
  %v350 = vld [vmem:[%s1 + $0x5c] sm:$0xf]
  %v351 = vld [vmem:[%s1 + $0x60] sm:$0xf]
  %v352 = vld [vmem:[%s1 + $0x64] sm:$0xf]
  %v353 = vld [vmem:[%s1 + $0x68] sm:$0xf]
  %v354 = vld [vmem:[%s1 + $0x6c] sm:$0xf]
  %v355 = vld [vmem:[%s1 + $0x70] sm:$0xf]
  %v356 = vld [vmem:[%s1 + $0x74] sm:$0xf]
  %v357 = vld [vmem:[%s1 + $0x78] sm:$0xf]
  %v358 = vld [vmem:[%s1 + $0x7c] sm:$0xf]
  %v359 = vld [vmem:[%s1 + $0x80] sm:$0xf]
  %v360 = vld [vmem:[%s1 + $0x84] sm:$0xf]
  %v361 = vld [vmem:[%s1 + $0x88] sm:$0xf]
  %v362 = vld [vmem:[%s1 + $0x8c] sm:$0xf]
  %v363 = vld [vmem:[%s1 + $0x90] sm:$0xf]
  %v364 = vld [vmem:[%s1 + $0x94] sm:$0xf]
  %v365 = vld [vmem:[%s1 + $0x98] sm:$0xf]
  %v366 = vld [vmem:[%s1 + $0x9c] sm:$0xf]
  %v367 = vld [vmem:[%s1 + $0xa0] sm:$0xf]
  %v368 = vld [vmem:[%s1 + $0xa4] sm:$0xf]
  %v369 = vld [vmem:[%s1 + $0xa8] sm:$0xf]
  %v370 = vld [vmem:[%s1 + $0xac] sm:$0xf]
  %v371 = vld [vmem:[%s1 + $0xb0] sm:$0xf]
  %v372 = vld [vmem:[%s1 + $0xb4] sm:$0xf]
  %v373 = vld [vmem:[%s1 + $0xb8] sm:$0xf]
  %v374 = vld [vmem:[%s1 + $0xbc] sm:$0xf]
  %v375 = vld [vmem:[%s1 + $0xc0] sm:$0xf]
  %v376 = vld [vmem:[%s1 + $0xc4] sm:$0xf]
  %v377 = vld [vmem:[%s1 + $0xc8] sm:$0xf]
  %v378 = vld [vmem:[%s1 + $0xcc] sm:$0xf]
  %v379 = vld [vmem:[%s1 + $0xd0] sm:$0xf]
  %v380 = vld [vmem:[%s1 + $0xd4] sm:$0xf]
  %v381 = vld [vmem:[%s1 + $0xd8] sm:$0xf]
  %v382 = vld [vmem:[%s1 + $0xdc] sm:$0xf]
  %v383 = vld [vmem:[%s1 + $0xe0] sm:$0xf]
  %v384 = vld [vmem:[%s1 + $0xe4] sm:$0xf]
  %v385 = vld [vmem:[%s1 + $0xe8] sm:$0xf]
  %v386 = vld [vmem:[%s1 + $0xec] sm:$0xf]
  %v387 = vld [vmem:[%s1 + $0xf0] sm:$0xf]
  %v388 = vld [vmem:[%s1 + $0xf4] sm:$0xf]
  %v389 = vld [vmem:[%s1 + $0xf8] sm:$0xf]
  %v390 = vld [vmem:[%s1 + $0xfc] sm:$0xf]
  %v391 = vld [vmem:[%s1 + $0x100] sm:$0xf]
  %v392 = vld [vmem:[%s1 + $0x104] sm:$0xf]
  %v393 = vld [vmem:[%s1 + $0x108] sm:$0xf]
  %v394 = vld [vmem:[%s1 + $0x10c] sm:$0xf]
  %v395 = vld [vmem:[%s1 + $0x110] sm:$0xf]
  %v396 = vld [vmem:[%s1 + $0x114] sm:$0xf]
  %v397 = vld [vmem:[%s1 + $0x118] sm:$0xf]
  %v398 = vld [vmem:[%s1 + $0x11c] sm:$0xf]
  %v399 = vld [vmem:[%s1 + $0x120] sm:$0xf]
  %v400 = vld [vmem:[%s1 + $0x124] sm:$0xf]
  %v401 = vld [vmem:[%s1 + $0x128] sm:$0xf]
  %v402 = vld [vmem:[%s1 + $0x12c] sm:$0xf]
  %v403 = vld [vmem:[%s1 + $0x130] sm:$0xf]
  %v404 = vld [vmem:[%s1 + $0x134] sm:$0xf]
  %v405 = vld [vmem:[%s1 + $0x138] sm:$0xf]
  %v406 = vld [vmem:[%s1 + $0x13c] sm:$0xf]
  %v407 = vld [vmem:[%s1 + $0x140] sm:$0xf]
  %v408 = vld [vmem:[%s1 + $0x144] sm:$0xf]
  %v409 = vld [vmem:[%s1 + $0x148] sm:$0xf]
  %v410 = vld [vmem:[%s1 + $0x14c] sm:$0xf]
  %v411 = vld [vmem:[%s1 + $0x150] sm:$0xf]
  %v412 = vld [vmem:[%s1 + $0x154] sm:$0xf]
  %v413 = vld [vmem:[%s1 + $0x158] sm:$0xf]
  %v414 = vld [vmem:[%s1 + $0x15c] sm:$0xf]
  %v415 = vld [vmem:[%s1 + $0x160] sm:$0xf]
  %v416 = vld [vmem:[%s1 + $0x164] sm:$0xf]
  %v417 = vld [vmem:[%s1 + $0x168] sm:$0xf]
  %v418 = vld [vmem:[%s1 + $0x16c] sm:$0xf]
  %v419 = vld [vmem:[%s1 + $0x170] sm:$0xf]
  %v420 = vld [vmem:[%s1 + $0x174] sm:$0xf]
  %v421 = vld [vmem:[%s1 + $0x178] sm:$0xf]
  %v422 = vld [vmem:[%s1 + $0x17c] sm:$0xf]
  %v423 = vld [vmem:[%s1 + $0x180] sm:$0xf]
  %v424 = vld [vmem:[%s1 + $0x184] sm:$0xf]
  %v425 = vld [vmem:[%s1 + $0x188] sm:$0xf]
  %v426 = vld [vmem:[%s1 + $0x18c] sm:$0xf]
  %v427 = vld [vmem:[%s1 + $0x190] sm:$0xf]
  %v428 = vld [vmem:[%s1 + $0x194] sm:$0xf]
  %v429 = vld [vmem:[%s1 + $0x198] sm:$0xf]
  %v430 = vld [vmem:[%s1 + $0x19c] sm:$0xf]
  %v431 = vld [vmem:[%s1 + $0x1a0] sm:$0xf]
  %v432 = vld [vmem:[%s1 + $0x1a4] sm:$0xf]
  %v433 = vld [vmem:[%s1 + $0x1a8] sm:$0xf]
  %v434 = vld [vmem:[%s1 + $0x1ac] sm:$0xf]
  %v435 = vld [vmem:[%s1 + $0x1b0] sm:$0xf]
  %v436 = vld [vmem:[%s1 + $0x1b4] sm:$0xf]
  %v437 = vld [vmem:[%s1 + $0x1b8] sm:$0xf]
  %v438 = vld [vmem:[%s1 + $0x1bc] sm:$0xf]
  %v439 = vld [vmem:[%s1 + $0x1c0] sm:$0xf]
  %v440 = vld [vmem:[%s1 + $0x1c4] sm:$0xf]
  %v441 = vld [vmem:[%s1 + $0x1c8] sm:$0xf]
  %v442 = vld [vmem:[%s1 + $0x1cc] sm:$0xf]
  %v443 = vld [vmem:[%s1 + $0x1d0] sm:$0xf]
  %v444 = vld [vmem:[%s1 + $0x1d4] sm:$0xf]
  %v445 = vld [vmem:[%s1 + $0x1d8] sm:$0xf]
  %v446 = vld [vmem:[%s1 + $0x1dc] sm:$0xf]
  %v447 = vld [vmem:[%s1 + $0x1e0] sm:$0xf]
  %v448 = vld [vmem:[%s1 + $0x1e4] sm:$0xf]
  %v449 = vld [vmem:[%s1 + $0x1e8] sm:$0xf]
  %v450 = vld [vmem:[%s1 + $0x1ec] sm:$0xf]
  %v451 = vld [vmem:[%s1 + $0x1f0] sm:$0xf]
  %v452 = vld [vmem:[%s1 + $0x1f4] sm:$0xf]
  %v453 = vld [vmem:[%s1 + $0x1f8] sm:$0xf]
  %v454 = vld [vmem:[%s1 + $0x1fc] sm:$0xf]
  %v455 = vld [vmem:[%s1 + $0x200] sm:$0xf]
  %v456 = vld [vmem:[%s1 + $0x204] sm:$0xf]
  %v457 = vld [vmem:[%s1 + $0x208] sm:$0xf]
  %v458 = vld [vmem:[%s1 + $0x20c] sm:$0xf]
  %v459 = vld [vmem:[%s1 + $0x210] sm:$0xf]
  %v460 = vld [vmem:[%s1 + $0x214] sm:$0xf]
  %v461 = vld [vmem:[%s1 + $0x218] sm:$0xf]
  %v462 = vld [vmem:[%s1 + $0x21c] sm:$0xf]
  %v463 = vld [vmem:[%s1 + $0x220] sm:$0xf]
  %v464 = vld [vmem:[%s1 + $0x224] sm:$0xf]
  %v465 = vld [vmem:[%s1 + $0x228] sm:$0xf]
  %v466 = vld [vmem:[%s1 + $0x22c] sm:$0xf]
  %v467 = vld [vmem:[%s1 + $0x230] sm:$0xf]
  %v468 = vld [vmem:[%s1 + $0x234] sm:$0xf]
  %v469 = vld [vmem:[%s1 + $0x238] sm:$0xf]
  %v470 = vld [vmem:[%s1 + $0x23c] sm:$0xf]
  %v471 = vld [vmem:[%s1 + $0x240] sm:$0xf]
  %v472 = vld [vmem:[%s1 + $0x244] sm:$0xf]
  %v473 = vld [vmem:[%s1 + $0x248] sm:$0xf]
  %v474 = vld [vmem:[%s1 + $0x24c] sm:$0xf]
  %v475 = vld [vmem:[%s1 + $0x250] sm:$0xf]
  %v476 = vld [vmem:[%s1 + $0x254] sm:$0xf]
  %v477 = vld [vmem:[%s1 + $0x258] sm:$0xf]
  %v478 = vld [vmem:[%s1 + $0x25c] sm:$0xf]
  %v479 = vld [vmem:[%s1 + $0x260] sm:$0xf]
  %v480 = vld [vmem:[%s1 + $0x264] sm:$0xf]
  %v481 = vld [vmem:[%s1 + $0x268] sm:$0xf]
  %v482 = vld [vmem:[%s1 + $0x26c] sm:$0xf]
  %v483 = vld [vmem:[%s1 + $0x270] sm:$0xf]
  %v484 = vld [vmem:[%s1 + $0x274] sm:$0xf]
  %v485 = vld [vmem:[%s1 + $0x278] sm:$0xf]
  %v486 = vld [vmem:[%s1 + $0x27c] sm:$0xf]
  %v487 = vld [vmem:[%s1 + $0x280] sm:$0xf]
  %v488 = vld [vmem:[%s1 + $0x284] sm:$0xf]
  %v489 = vld [vmem:[%s1 + $0x288] sm:$0xf]
  %v490 = vld [vmem:[%s1 + $0x28c] sm:$0xf]
  %v491 = vld [vmem:[%s1 + $0x290] sm:$0xf]
  %v492 = vld [vmem:[%s1 + $0x294] sm:$0xf]
  %v493 = vld [vmem:[%s1 + $0x298] sm:$0xf]
  %v494 = vld [vmem:[%s1 + $0x29c] sm:$0xf]
  %v495 = vld [vmem:[%s1 + $0x2a0] sm:$0xf]
  %v496 = vld [vmem:[%s1 + $0x2a4] sm:$0xf]
  %v497 = vld [vmem:[%s1 + $0x2a8] sm:$0xf]
  %v498 = vld [vmem:[%s1 + $0x2ac] sm:$0xf]
  %v499 = vld [vmem:[%s1 + $0x2b0] sm:$0xf]
  %v500 = vld [vmem:[%s1 + $0x2b4] sm:$0xf]
  %v501 = vld [vmem:[%s1 + $0x2b8] sm:$0xf]
  %v502 = vld [vmem:[%s1 + $0x2bc] sm:$0xf]
  %v503 = vld [vmem:[%s1 + $0x2c0] sm:$0xf]
  %v504 = vld [vmem:[%s1 + $0x2c4] sm:$0xf]
  %v505 = vld [vmem:[%s1 + $0x2c8] sm:$0xf]
  %v506 = vld [vmem:[%s1 + $0x2cc] sm:$0xf]
  %v507 = vld [vmem:[%s1 + $0x2d0] sm:$0xf]
  %v508 = vld [vmem:[%s1 + $0x2d4] sm:$0xf]
  %v509 = vld [vmem:[%s1 + $0x2d8] sm:$0xf]
  %v510 = vld [vmem:[%s1 + $0x2dc] sm:$0xf]
  %v511 = vld [vmem:[%s1 + $0x2e0] sm:$0xf]
  %v512 = vld [vmem:[%s1 + $0x2e4] sm:$0xf]
  %v513 = vld [vmem:[%s1 + $0x2e8] sm:$0xf]
  %v514 = vld [vmem:[%s1 + $0x2ec] sm:$0xf]
  %v515 = vld [vmem:[%s1 + $0x2f0] sm:$0xf]
  %v516 = vld [vmem:[%s1 + $0x2f4] sm:$0xf]
  %v517 = vld [vmem:[%s1 + $0x2f8] sm:$0xf]
  %v518 = vld [vmem:[%s1 + $0x2fc] sm:$0xf]
  %v519 = vld [vmem:[%s1 + $0x300] sm:$0xf]
  %v520 = vld [vmem:[%s1 + $0x304] sm:$0xf]
  %v521 = vld [vmem:[%s1 + $0x308] sm:$0xf]
  %v522 = vld [vmem:[%s1 + $0x30c] sm:$0xf]
  %v523 = vld [vmem:[%s1 + $0x310] sm:$0xf]
  %v524 = vld [vmem:[%s1 + $0x314] sm:$0xf]
  %v525 = vld [vmem:[%s1 + $0x318] sm:$0xf]
  %v526 = vld [vmem:[%s1 + $0x31c] sm:$0xf]
  %v527 = vld [vmem:[%s1 + $0x320] sm:$0xf]
  %v528 = vld [vmem:[%s1 + $0x324] sm:$0xf]
  %v529 = vld [vmem:[%s1 + $0x328] sm:$0xf]
  %v530 = vld [vmem:[%s1 + $0x32c] sm:$0xf]
  %v531 = vld [vmem:[%s1 + $0x330] sm:$0xf]
  %v532 = vld [vmem:[%s1 + $0x334] sm:$0xf]
  %v533 = vld [vmem:[%s1 + $0x338] sm:$0xf]
  %v534 = vld [vmem:[%s1 + $0x33c] sm:$0xf]
  %v535 = vld [vmem:[%s1 + $0x340] sm:$0xf]
  %v536 = vld [vmem:[%s1 + $0x344] sm:$0xf]
  %v537 = vld [vmem:[%s1 + $0x348] sm:$0xf]
  %v538 = vld [vmem:[%s1 + $0x34c] sm:$0xf]
  %v539 = vld [vmem:[%s1 + $0x350] sm:$0xf]
  %v540 = vld [vmem:[%s1 + $0x354] sm:$0xf]
  %v541 = vld [vmem:[%s1 + $0x358] sm:$0xf]
  %v542 = vld [vmem:[%s1 + $0x35c] sm:$0xf]
  %v543 = vld [vmem:[%s1 + $0x360] sm:$0xf]
  %v544 = vld [vmem:[%s1 + $0x364] sm:$0xf]
  %v545 = vld [vmem:[%s1 + $0x368] sm:$0xf]
  %v546 = vld [vmem:[%s1 + $0x36c] sm:$0xf]
  %v547 = vld [vmem:[%s1 + $0x370] sm:$0xf]
  %v548 = vld [vmem:[%s1 + $0x374] sm:$0xf]
  %v549 = vld [vmem:[%s1 + $0x378] sm:$0xf]
  %v550 = vld [vmem:[%s1 + $0x37c] sm:$0xf]
  %v551 = vld [vmem:[%s1 + $0x380] sm:$0xf]
  %v552 = vld [vmem:[%s1 + $0x384] sm:$0xf]
  %v553 = vld [vmem:[%s1 + $0x388] sm:$0xf]
  %v554 = vld [vmem:[%s1 + $0x38c] sm:$0xf]
  %v555 = vld [vmem:[%s1 + $0x390] sm:$0xf]
  %v556 = vld [vmem:[%s1 + $0x394] sm:$0xf]
  %v557 = vld [vmem:[%s1 + $0x398] sm:$0xf]
  %v558 = vld [vmem:[%s1 + $0x39c] sm:$0xf]
  %v559 = vld [vmem:[%s1 + $0x3a0] sm:$0xf]
  %v560 = vld [vmem:[%s1 + $0x3a4] sm:$0xf]
  %v561 = vld [vmem:[%s1 + $0x3a8] sm:$0xf]
  %v562 = vld [vmem:[%s1 + $0x3ac] sm:$0xf]
  %v563 = vld [vmem:[%s1 + $0x3b0] sm:$0xf]
  %v564 = vld [vmem:[%s1 + $0x3b4] sm:$0xf]
  %v565 = vld [vmem:[%s1 + $0x3b8] sm:$0xf]
  %v566 = vld [vmem:[%s1 + $0x3bc] sm:$0xf]
  %v567 = vld [vmem:[%s1 + $0x3c0] sm:$0xf]
  %v568 = vld [vmem:[%s1 + $0x3c4] sm:$0xf]
  %v569 = vld [vmem:[%s1 + $0x3c8] sm:$0xf]
  %v570 = vld [vmem:[%s1 + $0x3cc] sm:$0xf]
  %v571 = vld [vmem:[%s1 + $0x3d0] sm:$0xf]
  %v572 = vld [vmem:[%s1 + $0x3d4] sm:$0xf]
  %v573 = vld [vmem:[%s1 + $0x3d8] sm:$0xf]
  %v574 = vld [vmem:[%s1 + $0x3dc] sm:$0xf]
  %v575 = vld [vmem:[%s1 + $0x3e0] sm:$0xf]
  %v576 = vld [vmem:[%s1 + $0x3e4] sm:$0xf]
  %v577 = vld [vmem:[%s1 + $0x3e8] sm:$0xf]
  %v578 = vld [vmem:[%s1 + $0x3ec] sm:$0xf]
  %v579 = vld [vmem:[%s1 + $0x3f0] sm:$0xf]
  %v580 = vld [vmem:[%s1 + $0x3f4] sm:$0xf]
  %v581 = vld [vmem:[%s1 + $0x3f8] sm:$0xf]
  %v582 = vld [vmem:[%s1 + $0x3fc] sm:$0xf]
  %v583 = vld [vmem:[%s1 + $0x400] sm:$0xf]
  %v584 = vld [vmem:[%s1 + $0x404] sm:$0xf]
  %v585 = vld [vmem:[%s1 + $0x408] sm:$0xf]
  %v586 = vld [vmem:[%s1 + $0x40c] sm:$0xf]
  %v587 = vld [vmem:[%s1 + $0x410] sm:$0xf]
  %v588 = vld [vmem:[%s1 + $0x414] sm:$0xf]
  %v589 = vld [vmem:[%s1 + $0x418] sm:$0xf]
  %v590 = vld [vmem:[%s1 + $0x41c] sm:$0xf]
  %v591 = vld [vmem:[%s1 + $0x420] sm:$0xf]
  %v592 = vld [vmem:[%s1 + $0x424] sm:$0xf]
  %v593 = vld [vmem:[%s1 + $0x428] sm:$0xf]
  %v594 = vld [vmem:[%s1 + $0x42c] sm:$0xf]
  %v595 = vld [vmem:[%s1 + $0x430] sm:$0xf]
  %v596 = vld [vmem:[%s1 + $0x434] sm:$0xf]
  %v597 = vld [vmem:[%s1 + $0x438] sm:$0xf]
  %v598 = vld [vmem:[%s1 + $0x43c] sm:$0xf]
  %v599 = vld [vmem:[%s1 + $0x440] sm:$0xf]
  %v600 = vld [vmem:[%s1 + $0x444] sm:$0xf]
  %v601 = vld [vmem:[%s1 + $0x448] sm:$0xf]
  %v602 = vld [vmem:[%s1 + $0x44c] sm:$0xf]
  %v603 = vld [vmem:[%s1 + $0x450] sm:$0xf]
  %v604 = vld [vmem:[%s1 + $0x454] sm:$0xf]
  %v605 = vld [vmem:[%s1 + $0x458] sm:$0xf]
  %v606 = vld [vmem:[%s1 + $0x45c] sm:$0xf]
  %v607 = vld [vmem:[%s1 + $0x460] sm:$0xf]
  %v608 = vld [vmem:[%s1 + $0x464] sm:$0xf]
  %v609 = vld [vmem:[%s1 + $0x468] sm:$0xf]
  %v610 = vld [vmem:[%s1 + $0x46c] sm:$0xf]
  %v611 = vld [vmem:[%s1 + $0x470] sm:$0xf]
  %v612 = vld [vmem:[%s1 + $0x474] sm:$0xf]
  %v613 = vld [vmem:[%s1 + $0x478] sm:$0xf]
  %v614 = vld [vmem:[%s1 + $0x47c] sm:$0xf]
  %v615 = vld [vmem:[%s1 + $0x480] sm:$0xf]
  %v616 = vld [vmem:[%s1 + $0x484] sm:$0xf]
  %v617 = vld [vmem:[%s1 + $0x488] sm:$0xf]
  %v618 = vld [vmem:[%s1 + $0x48c] sm:$0xf]
  %v619 = vld [vmem:[%s1 + $0x490] sm:$0xf]
  %v620 = vld [vmem:[%s1 + $0x494] sm:$0xf]
  %v621 = vld [vmem:[%s1 + $0x498] sm:$0xf]
  %v622 = vld [vmem:[%s1 + $0x49c] sm:$0xf]
  %v623 = vld [vmem:[%s1 + $0x4a0] sm:$0xf]
  %v624 = vld [vmem:[%s1 + $0x4a4] sm:$0xf]
  %v625 = vld [vmem:[%s1 + $0x4a8] sm:$0xf]
  %v626 = vld [vmem:[%s1 + $0x4ac] sm:$0xf]
  %v627 = vld [vmem:[%s1 + $0x4b0] sm:$0xf]
  %v628 = vld [vmem:[%s1 + $0x4b4] sm:$0xf]
  %v629 = vld [vmem:[%s1 + $0x4b8] sm:$0xf]
  %v630 = vld [vmem:[%s1 + $0x4bc] sm:$0xf]
  %v631 = vld [vmem:[%s1 + $0x4c0] sm:$0xf]
  %v632 = vld [vmem:[%s1 + $0x4c4] sm:$0xf]
  %v633 = vld [vmem:[%s1 + $0x4c8] sm:$0xf]
  %v634 = vld [vmem:[%s1 + $0x4cc] sm:$0xf]
  %v635 = vld [vmem:[%s1 + $0x4d0] sm:$0xf]
  %v636 = vld [vmem:[%s1 + $0x4d4] sm:$0xf]
  %v637 = vld [vmem:[%s1 + $0x4d8] sm:$0xf]
  %v638 = vld [vmem:[%s1 + $0x4dc] sm:$0xf]
  %v639 = vld [vmem:[%s1 + $0x4e0] sm:$0xf]
  %v640 = vld [vmem:[%s1 + $0x4e4] sm:$0xf]
  %v641 = vld [vmem:[%s1 + $0x4e8] sm:$0xf]
  %v642 = vld [vmem:[%s1 + $0x4ec] sm:$0xf]
  %v643 = vld [vmem:[%s1 + $0x4f0] sm:$0xf]
  %v644 = vld [vmem:[%s1 + $0x4f4] sm:$0xf]
  %v645 = vld [vmem:[%s1 + $0x4f8] sm:$0xf]
  %v646 = vld [vmem:[%s1 + $0x4fc] sm:$0xf]
  %v647 = vld [vmem:[%s1 + $0x500] sm:$0xf]
  %v648 = vld [vmem:[%s1 + $0x504] sm:$0xf]
  %v649 = vld [vmem:[%s1 + $0x508] sm:$0xf]
  %v650 = vld [vmem:[%s1 + $0x50c] sm:$0xf]
  %v651 = vld [vmem:[%s1 + $0x510] sm:$0xf]
  %v652 = vld [vmem:[%s1 + $0x514] sm:$0xf]
  %v653 = vld [vmem:[%s1 + $0x518] sm:$0xf]
  %v654 = vld [vmem:[%s1 + $0x51c] sm:$0xf]
  %v655 = vld [vmem:[%s1 + $0x520] sm:$0xf]
  %v656 = vld [vmem:[%s1 + $0x524] sm:$0xf]
  %v657 = vld [vmem:[%s1 + $0x528] sm:$0xf]
  %v658 = vld [vmem:[%s1 + $0x52c] sm:$0xf]
  %v659 = vld [vmem:[%s1 + $0x530] sm:$0xf]
  %v660 = vld [vmem:[%s1 + $0x534] sm:$0xf]
  %v661 = vld [vmem:[%s1 + $0x538] sm:$0xf]
  %v662 = vld [vmem:[%s1 + $0x53c] sm:$0xf]
  %v663 = vld [vmem:[%s1 + $0x540] sm:$0xf]
  %v664 = vld [vmem:[%s1 + $0x544] sm:$0xf]
  %v665 = vld [vmem:[%s1 + $0x548] sm:$0xf]
  %v666 = vld [vmem:[%s1 + $0x54c] sm:$0xf]
  %v667 = vld [vmem:[%s1 + $0x550] sm:$0xf]
  %v668 = vld [vmem:[%s1 + $0x554] sm:$0xf]
  %v669 = vld [vmem:[%s1 + $0x558] sm:$0xf]
  %v670 = vld [vmem:[%s1 + $0x55c] sm:$0xf]
  %v671 = vld [vmem:[%s1 + $0x560] sm:$0xf]
  %v672 = vld [vmem:[%s1 + $0x564] sm:$0xf]
  %v673 = vld [vmem:[%s1 + $0x568] sm:$0xf]
  %v674 = vld [vmem:[%s1 + $0x56c] sm:$0xf]
  %v675 = vld [vmem:[%s1 + $0x570] sm:$0xf]
  %v676 = vld [vmem:[%s1 + $0x574] sm:$0xf]
  %v677 = vld [vmem:[%s1 + $0x578] sm:$0xf]
  %v678 = vld [vmem:[%s1 + $0x57c] sm:$0xf]
  %v679 = vld [vmem:[%s1 + $0x580] sm:$0xf]
  %v680 = vld [vmem:[%s1 + $0x584] sm:$0xf]
  %v681 = vld [vmem:[%s1 + $0x588] sm:$0xf]
  %v682 = vld [vmem:[%s1 + $0x58c] sm:$0xf]
  %v683 = vld [vmem:[%s1 + $0x590] sm:$0xf]
  %v684 = vld [vmem:[%s1 + $0x594] sm:$0xf]
  %v685 = vld [vmem:[%s1 + $0x598] sm:$0xf]
  %v686 = vld [vmem:[%s1 + $0x59c] sm:$0xf]
  %v687 = vld [vmem:[%s1 + $0x5a0] sm:$0xf]
  %v688 = vld [vmem:[%s1 + $0x5a4] sm:$0xf]
  %v689 = vld [vmem:[%s1 + $0x5a8] sm:$0xf]
  %v690 = vld [vmem:[%s1 + $0x5ac] sm:$0xf]
  %v691 = vld [vmem:[%s1 + $0x5b0] sm:$0xf]
  %v692 = vld [vmem:[%s1 + $0x5b4] sm:$0xf]
  %v693 = vld [vmem:[%s1 + $0x5b8] sm:$0xf]
  %v694 = vld [vmem:[%s1 + $0x5bc] sm:$0xf]
  %v695 = vld [vmem:[%s1 + $0x5c0] sm:$0xf]
  %v696 = vld [vmem:[%s1 + $0x5c4] sm:$0xf]
  %v697 = vld [vmem:[%s1 + $0x5c8] sm:$0xf]
  %v698 = vld [vmem:[%s1 + $0x5cc] sm:$0xf]
  %v699 = vld [vmem:[%s1 + $0x5d0] sm:$0xf]
  %v700 = vld [vmem:[%s1 + $0x5d4] sm:$0xf]
  %v701 = vld [vmem:[%s1 + $0x5d8] sm:$0xf]
  %v702 = vld [vmem:[%s1 + $0x5dc] sm:$0xf]
  %v703 = vld [vmem:[%s1 + $0x5e0] sm:$0xf]
  %v704 = vld [vmem:[%s1 + $0x5e4] sm:$0xf]
  %v705 = vld [vmem:[%s1 + $0x5e8] sm:$0xf]
  %v706 = vld [vmem:[%s1 + $0x5ec] sm:$0xf]
  %v707 = vld [vmem:[%s1 + $0x5f0] sm:$0xf]
  %v708 = vld [vmem:[%s1 + $0x5f4] sm:$0xf]
  %v709 = vld [vmem:[%s1 + $0x5f8] sm:$0xf]
  %v710 = vld [vmem:[%s1 + $0x5fc] sm:$0xf]
  %v711 = vld [vmem:[%s1 + $0x600] sm:$0xf]
  %v712 = vld [vmem:[%s1 + $0x604] sm:$0xf]
  %v713 = vld [vmem:[%s1 + $0x608] sm:$0xf]
  %v714 = vld [vmem:[%s1 + $0x60c] sm:$0xf]
  %v715 = vld [vmem:[%s1 + $0x610] sm:$0xf]
  %v716 = vld [vmem:[%s1 + $0x614] sm:$0xf]
  %v717 = vld [vmem:[%s1 + $0x618] sm:$0xf]
  %v718 = vld [vmem:[%s1 + $0x61c] sm:$0xf]
  %v719 = vld [vmem:[%s1 + $0x620] sm:$0xf]
  %v720 = vld [vmem:[%s1 + $0x624] sm:$0xf]
  %v721 = vld [vmem:[%s1 + $0x628] sm:$0xf]
  %v722 = vld [vmem:[%s1 + $0x62c] sm:$0xf]
  %v723 = vld [vmem:[%s1 + $0x630] sm:$0xf]
  %v724 = vld [vmem:[%s1 + $0x634] sm:$0xf]
  %v725 = vld [vmem:[%s1 + $0x638] sm:$0xf]
  %v726 = vld [vmem:[%s1 + $0x63c] sm:$0xf]
  %v727 = vld [vmem:[%s1 + $0x640] sm:$0xf]
  %v728 = vld [vmem:[%s1 + $0x644] sm:$0xf]
  %v729 = vld [vmem:[%s1 + $0x648] sm:$0xf]
  %v730 = vld [vmem:[%s1 + $0x64c] sm:$0xf]
  %v731 = vld [vmem:[%s1 + $0x650] sm:$0xf]
  %v732 = vld [vmem:[%s1 + $0x654] sm:$0xf]
  %v733 = vld [vmem:[%s1 + $0x658] sm:$0xf]
  %v734 = vld [vmem:[%s1 + $0x65c] sm:$0xf]
  %v735 = vld [vmem:[%s1 + $0x660] sm:$0xf]
  %v736 = vld [vmem:[%s1 + $0x664] sm:$0xf]
  %v737 = vld [vmem:[%s1 + $0x668] sm:$0xf]
  %v738 = vld [vmem:[%s1 + $0x66c] sm:$0xf]
  %v739 = vld [vmem:[%s1 + $0x670] sm:$0xf]
  %v740 = vld [vmem:[%s1 + $0x674] sm:$0xf]
  %v741 = vld [vmem:[%s1 + $0x678] sm:$0xf]
  %v742 = vld [vmem:[%s1 + $0x67c] sm:$0xf]
  %v743 = vld [vmem:[%s1 + $0x680] sm:$0xf]
  %v744 = vld [vmem:[%s1 + $0x684] sm:$0xf]
  %v745 = vld [vmem:[%s1 + $0x688] sm:$0xf]
  %v746 = vld [vmem:[%s1 + $0x68c] sm:$0xf]
  %v747 = vld [vmem:[%s1 + $0x690] sm:$0xf]
  %v748 = vld [vmem:[%s1 + $0x694] sm:$0xf]
  %v749 = vld [vmem:[%s1 + $0x698] sm:$0xf]
  %v750 = vld [vmem:[%s1 + $0x69c] sm:$0xf]
  %v751 = vld [vmem:[%s1 + $0x6a0] sm:$0xf]
  %v752 = vld [vmem:[%s1 + $0x6a4] sm:$0xf]
  %v753 = vld [vmem:[%s1 + $0x6a8] sm:$0xf]
  %v754 = vld [vmem:[%s1 + $0x6ac] sm:$0xf]
  %v755 = vld [vmem:[%s1 + $0x6b0] sm:$0xf]
  %v756 = vld [vmem:[%s1 + $0x6b4] sm:$0xf]
  %v757 = vld [vmem:[%s1 + $0x6b8] sm:$0xf]
  %v758 = vld [vmem:[%s1 + $0x6bc] sm:$0xf]
  %v759 = vld [vmem:[%s1 + $0x6c0] sm:$0xf]
  %v760 = vld [vmem:[%s1 + $0x6c4] sm:$0xf]
  %v761 = vld [vmem:[%s1 + $0x6c8] sm:$0xf]
  %v762 = vld [vmem:[%s1 + $0x6cc] sm:$0xf]
  %v763 = vld [vmem:[%s1 + $0x6d0] sm:$0xf]
  %v764 = vld [vmem:[%s1 + $0x6d4] sm:$0xf]
  %v765 = vld [vmem:[%s1 + $0x6d8] sm:$0xf]
  %v766 = vld [vmem:[%s1 + $0x6dc] sm:$0xf]
  %v767 = vld [vmem:[%s1 + $0x6e0] sm:$0xf]
  %v768 = vld [vmem:[%s1 + $0x6e4] sm:$0xf]
  %v769 = vld [vmem:[%s1 + $0x6e8] sm:$0xf]
  %v770 = vld [vmem:[%s1 + $0x6ec] sm:$0xf]
  %v771 = vld [vmem:[%s1 + $0x6f0] sm:$0xf]
  %v772 = vld [vmem:[%s1 + $0x6f4] sm:$0xf]
  %v773 = vld [vmem:[%s1 + $0x6f8] sm:$0xf]
  %v774 = vld [vmem:[%s1 + $0x6fc] sm:$0xf]
  %v775 = vld [vmem:[%s1 + $0x700] sm:$0xf]
  %v776 = vld [vmem:[%s1 + $0x704] sm:$0xf]
  %v777 = vld [vmem:[%s1 + $0x708] sm:$0xf]
  %v778 = vld [vmem:[%s1 + $0x70c] sm:$0xf]
  %v779 = vld [vmem:[%s1 + $0x710] sm:$0xf]
  %v780 = vld [vmem:[%s1 + $0x714] sm:$0xf]
  %v781 = vld [vmem:[%s1 + $0x718] sm:$0xf]
  %v782 = vld [vmem:[%s1 + $0x71c] sm:$0xf]
  %v783 = vld [vmem:[%s1 + $0x720] sm:$0xf]
  %v784 = vld [vmem:[%s1 + $0x724] sm:$0xf]
  %v785 = vld [vmem:[%s1 + $0x728] sm:$0xf]
  %v786 = vld [vmem:[%s1 + $0x72c] sm:$0xf]
  %v787 = vld [vmem:[%s1 + $0x730] sm:$0xf]
  %v788 = vld [vmem:[%s1 + $0x734] sm:$0xf]
  %v789 = vld [vmem:[%s1 + $0x738] sm:$0xf]
  %v790 = vld [vmem:[%s1 + $0x73c] sm:$0xf]
  %v1106 = vunpack.c.l.b16 %v12
  %v1107 = vunpack.c.h.b16 %v12
  %v1108 = vunpack.c.l.b16 %v13
  %v1109 = vunpack.c.h.b16 %v13
  %v1110 = vunpack.c.l.b16 %v14
  %v1111 = vunpack.c.h.b16 %v14
  %v1112 = vunpack.c.l.b16 %v15
  %v1113 = vunpack.c.h.b16 %v15
  %v1114 = vunpack.c.l.b16 %v16
  %v1115 = vunpack.c.h.b16 %v16
  %v1116 = vunpack.c.l.b16 %v17
  %v1117 = vunpack.c.h.b16 %v17
  %v1118 = vunpack.c.l.b16 %v18
  %v1119 = vunpack.c.h.b16 %v18
  %v1120 = vunpack.c.l.b16 %v19
  %v1121 = vunpack.c.h.b16 %v19
  %v1122 = vunpack.c.l.b16 %v20
  %v1123 = vunpack.c.h.b16 %v20
  %v1124 = vunpack.c.l.b16 %v21
  %v1125 = vunpack.c.h.b16 %v21
  %v1126 = vunpack.c.l.b16 %v22
  %v1127 = vunpack.c.h.b16 %v22
  %v1128 = vunpack.c.l.b16 %v23
  %v1129 = vunpack.c.h.b16 %v23
  %v1130 = vunpack.c.l.b16 %v24
  %v1131 = vunpack.c.h.b16 %v24
  %v1132 = vunpack.c.l.b16 %v25
  %v1133 = vunpack.c.h.b16 %v25
  %v1134 = vunpack.c.l.b16 %v26
  %v1135 = vunpack.c.l.b16 %v27
  %v1136 = vunpack.c.h.b16 %v27
  %v1137 = vunpack.c.l.b16 %v28
  %v1138 = vunpack.c.h.b16 %v28
  %v1139 = vunpack.c.l.b16 %v29
  %v1140 = vunpack.c.h.b16 %v29
  %v1141 = vunpack.c.l.b16 %v30
  %v1142 = vunpack.c.h.b16 %v30
  %v1143 = vunpack.c.l.b16 %v31
  %v1144 = vunpack.c.h.b16 %v31
  %v1145 = vunpack.c.l.b16 %v32
  %v1146 = vunpack.c.h.b16 %v32
  %v1147 = vunpack.c.l.b16 %v33
  %v1148 = vunpack.c.h.b16 %v33
  %v1149 = vunpack.c.l.b16 %v34
  %v1150 = vunpack.c.h.b16 %v34
  %v1151 = vunpack.c.l.b16 %v35
  %v1152 = vunpack.c.h.b16 %v35
  %v1153 = vunpack.c.l.b16 %v36
  %v1154 = vunpack.c.h.b16 %v36
  %v1155 = vunpack.c.l.b16 %v37
  %v1156 = vunpack.c.h.b16 %v37
  %v1157 = vunpack.c.l.b16 %v38
  %v1158 = vunpack.c.h.b16 %v38
  %v1159 = vunpack.c.l.b16 %v39
  %v1160 = vunpack.c.h.b16 %v39
  %v1161 = vunpack.c.l.b16 %v40
  %v1162 = vunpack.c.h.b16 %v40
  %v1163 = vunpack.c.l.b16 %v41
  %v1164 = vunpack.c.l.b16 %v42
  %v1165 = vunpack.c.h.b16 %v42
  %v1166 = vunpack.c.l.b16 %v43
  %v1167 = vunpack.c.h.b16 %v43
  %v1168 = vunpack.c.l.b16 %v44
  %v1169 = vunpack.c.h.b16 %v44
  %v1170 = vunpack.c.l.b16 %v45
  %v1171 = vunpack.c.h.b16 %v45
  %v1172 = vunpack.c.l.b16 %v46
  %v1173 = vunpack.c.h.b16 %v46
  %v1174 = vunpack.c.l.b16 %v47
  %v1175 = vunpack.c.h.b16 %v47
  %v1176 = vunpack.c.l.b16 %v48
  %v1177 = vunpack.c.h.b16 %v48
  %v1178 = vunpack.c.l.b16 %v49
  %v1179 = vunpack.c.h.b16 %v49
  %v1180 = vunpack.c.l.b16 %v50
  %v1181 = vunpack.c.h.b16 %v50
  %v1182 = vunpack.c.l.b16 %v51
  %v1183 = vunpack.c.h.b16 %v51
  %v1184 = vunpack.c.l.b16 %v52
  %v1185 = vunpack.c.h.b16 %v52
  %v1186 = vunpack.c.l.b16 %v53
  %v1187 = vunpack.c.h.b16 %v53
  %v1188 = vunpack.c.l.b16 %v54
  %v1189 = vunpack.c.h.b16 %v54
  %v1190 = vunpack.c.l.b16 %v55
  %v1191 = vunpack.c.h.b16 %v55
  %v1192 = vunpack.c.l.b16 %v56
  %v1193 = vunpack.c.l.b16 %v57
  %v1194 = vunpack.c.h.b16 %v57
  %v1195 = vunpack.c.l.b16 %v58
  %v1196 = vunpack.c.h.b16 %v58
  %v1197 = vunpack.c.l.b16 %v59
  %v1198 = vunpack.c.h.b16 %v59
  %v1199 = vunpack.c.l.b16 %v60
  %v1200 = vunpack.c.h.b16 %v60
  %v1201 = vunpack.c.l.b16 %v61
  %v1202 = vunpack.c.h.b16 %v61
  %v1203 = vunpack.c.l.b16 %v62
  %v1204 = vunpack.c.h.b16 %v62
  %v1205 = vunpack.c.l.b16 %v63
  %v1206 = vunpack.c.h.b16 %v63
  %v1207 = vunpack.c.l.b16 %v64
  %v1208 = vunpack.c.h.b16 %v64
  %v1209 = vunpack.c.l.b16 %v65
  %v1210 = vunpack.c.h.b16 %v65
  %v1211 = vunpack.c.l.b16 %v66
  %v1212 = vunpack.c.h.b16 %v66
  %v1213 = vunpack.c.l.b16 %v67
  %v1214 = vunpack.c.h.b16 %v67
  %v1215 = vunpack.c.l.b16 %v68
  %v1216 = vunpack.c.h.b16 %v68
  %v1217 = vunpack.c.l.b16 %v69
  %v1218 = vunpack.c.h.b16 %v69
  %v1219 = vunpack.c.l.b16 %v70
  %v1220 = vunpack.c.h.b16 %v70
  %v1221 = vunpack.c.l.b16 %v71
  %v1222 = vunpack.c.l.b16 %v72
  %v1223 = vunpack.c.h.b16 %v72
  %v1224 = vunpack.c.l.b16 %v73
  %v1225 = vunpack.c.h.b16 %v73
  %v1226 = vunpack.c.l.b16 %v74
  %v1227 = vunpack.c.h.b16 %v74
  %v1228 = vunpack.c.l.b16 %v75
  %v1229 = vunpack.c.h.b16 %v75
  %v1230 = vunpack.c.l.b16 %v76
  %v1231 = vunpack.c.h.b16 %v76
  %v1232 = vunpack.c.l.b16 %v77
  %v1233 = vunpack.c.h.b16 %v77
  %v1234 = vunpack.c.l.b16 %v78
  %v1235 = vunpack.c.h.b16 %v78
  %v1236 = vunpack.c.l.b16 %v79
  %v1237 = vunpack.c.h.b16 %v79
  %v1238 = vunpack.c.l.b16 %v80
  %v1239 = vunpack.c.h.b16 %v80
  %v1240 = vunpack.c.l.b16 %v81
  %v1241 = vunpack.c.h.b16 %v81
  %v1242 = vunpack.c.l.b16 %v82
  %v1243 = vunpack.c.h.b16 %v82
  %v1244 = vunpack.c.l.b16 %v83
  %v1245 = vunpack.c.h.b16 %v83
  %v1246 = vunpack.c.l.b16 %v84
  %v1247 = vunpack.c.h.b16 %v84
  %v1248 = vunpack.c.l.b16 %v85
  %v1249 = vunpack.c.h.b16 %v85
  %v1250 = vunpack.c.l.b16 %v86
  %v1251 = vunpack.c.l.b16 %v87
  %v1252 = vunpack.c.h.b16 %v87
  %v1253 = vunpack.c.l.b16 %v88
  %v1254 = vunpack.c.h.b16 %v88
  %v1255 = vunpack.c.l.b16 %v89
  %v1256 = vunpack.c.h.b16 %v89
  %v1257 = vunpack.c.l.b16 %v90
  %v1258 = vunpack.c.h.b16 %v90
  %v1259 = vunpack.c.l.b16 %v91
  %v1260 = vunpack.c.h.b16 %v91
  %v1261 = vunpack.c.l.b16 %v92
  %v1262 = vunpack.c.h.b16 %v92
  %v1263 = vunpack.c.l.b16 %v93
  %v1264 = vunpack.c.h.b16 %v93
  %v1265 = vunpack.c.l.b16 %v94
  %v1266 = vunpack.c.h.b16 %v94
  %v1267 = vunpack.c.l.b16 %v95
  %v1268 = vunpack.c.h.b16 %v95
  %v1269 = vunpack.c.l.b16 %v96
  %v1270 = vunpack.c.h.b16 %v96
  %v1271 = vunpack.c.l.b16 %v97
  %v1272 = vunpack.c.h.b16 %v97
  %v1273 = vunpack.c.l.b16 %v98
  %v1274 = vunpack.c.h.b16 %v98
  %v1275 = vunpack.c.l.b16 %v99
  %v1276 = vunpack.c.h.b16 %v99
  %v1277 = vunpack.c.l.b16 %v100
  %v1278 = vunpack.c.h.b16 %v100
  %v1279 = vunpack.c.l.b16 %v101
  %v1280 = vunpack.c.l.b16 %v102
  %v1281 = vunpack.c.h.b16 %v102
  %v1282 = vunpack.c.l.b16 %v103
  %v1283 = vunpack.c.h.b16 %v103
  %v1284 = vunpack.c.l.b16 %v104
  %v1285 = vunpack.c.h.b16 %v104
  %v1286 = vunpack.c.l.b16 %v105
  %v1287 = vunpack.c.h.b16 %v105
  %v1288 = vunpack.c.l.b16 %v106
  %v1289 = vunpack.c.h.b16 %v106
  %v1290 = vunpack.c.l.b16 %v107
  %v1291 = vunpack.c.h.b16 %v107
  %v1292 = vunpack.c.l.b16 %v108
  %v1293 = vunpack.c.h.b16 %v108
  %v1294 = vunpack.c.l.b16 %v109
  %v1295 = vunpack.c.h.b16 %v109
  %v1296 = vunpack.c.l.b16 %v110
  %v1297 = vunpack.c.h.b16 %v110
  %v1298 = vunpack.c.l.b16 %v111
  %v1299 = vunpack.c.h.b16 %v111
  %v1300 = vunpack.c.l.b16 %v112
  %v1301 = vunpack.c.h.b16 %v112
  %v1302 = vunpack.c.l.b16 %v113
  %v1303 = vunpack.c.h.b16 %v113
  %v1304 = vunpack.c.l.b16 %v114
  %v1305 = vunpack.c.h.b16 %v114
  %v1306 = vunpack.c.l.b16 %v115
  %v1307 = vunpack.c.h.b16 %v115
  %v1308 = vunpack.c.l.b16 %v116
  %v1309 = vunpack.c.l.b16 %v117
  %v1310 = vunpack.c.h.b16 %v117
  %v1311 = vunpack.c.l.b16 %v118
  %v1312 = vunpack.c.h.b16 %v118
  %v1313 = vunpack.c.l.b16 %v119
  %v1314 = vunpack.c.h.b16 %v119
  %v1315 = vunpack.c.l.b16 %v120
  %v1316 = vunpack.c.h.b16 %v120
  %v1317 = vunpack.c.l.b16 %v121
  %v1318 = vunpack.c.h.b16 %v121
  %v1319 = vunpack.c.l.b16 %v122
  %v1320 = vunpack.c.h.b16 %v122
  %v1321 = vunpack.c.l.b16 %v123
  %v1322 = vunpack.c.h.b16 %v123
  %v1323 = vunpack.c.l.b16 %v124
  %v1324 = vunpack.c.h.b16 %v124
  %v1325 = vunpack.c.l.b16 %v125
  %v1326 = vunpack.c.h.b16 %v125
  %v1327 = vunpack.c.l.b16 %v126
  %v1328 = vunpack.c.h.b16 %v126
  %v1329 = vunpack.c.l.b16 %v127
  %v1330 = vunpack.c.h.b16 %v127
  %v1331 = vunpack.c.l.b16 %v128
  %v1332 = vunpack.c.h.b16 %v128
  %v1333 = vunpack.c.l.b16 %v129
  %v1334 = vunpack.c.h.b16 %v129
  %v1335 = vunpack.c.l.b16 %v130
  %v1336 = vunpack.c.h.b16 %v130
  %v1337 = vunpack.c.l.b16 %v131
  %v1338 = vunpack.c.l.b16 %v132
  %v1339 = vunpack.c.h.b16 %v132
  %v1340 = vunpack.c.l.b16 %v133
  %v1341 = vunpack.c.h.b16 %v133
  %v1342 = vunpack.c.l.b16 %v134
  %v1343 = vunpack.c.h.b16 %v134
  %v1344 = vunpack.c.l.b16 %v135
  %v1345 = vunpack.c.h.b16 %v135
  %v1346 = vunpack.c.l.b16 %v136
  %v1347 = vunpack.c.h.b16 %v136
  %v1348 = vunpack.c.l.b16 %v137
  %v1349 = vunpack.c.h.b16 %v137
  %v1350 = vunpack.c.l.b16 %v138
  %v1351 = vunpack.c.h.b16 %v138
  %v1352 = vunpack.c.l.b16 %v139
  %v1353 = vunpack.c.h.b16 %v139
  %v1354 = vunpack.c.l.b16 %v140
  %v1355 = vunpack.c.h.b16 %v140
  %v1356 = vunpack.c.l.b16 %v141
  %v1357 = vunpack.c.h.b16 %v141
  %v1358 = vunpack.c.l.b16 %v142
  %v1359 = vunpack.c.h.b16 %v142
  %v1360 = vunpack.c.l.b16 %v143
  %v1361 = vunpack.c.h.b16 %v143
  %v1362 = vunpack.c.l.b16 %v144
  %v1363 = vunpack.c.h.b16 %v144
  %v1364 = vunpack.c.l.b16 %v145
  %v1365 = vunpack.c.h.b16 %v145
  %v1366 = vunpack.c.l.b16 %v146
  %v1367 = vunpack.c.l.b16 %v147
  %v1368 = vunpack.c.h.b16 %v147
  %v1369 = vunpack.c.l.b16 %v148
  %v1370 = vunpack.c.h.b16 %v148
  %v1371 = vunpack.c.l.b16 %v149
  %v1372 = vunpack.c.h.b16 %v149
  %v1373 = vunpack.c.l.b16 %v150
  %v1374 = vunpack.c.h.b16 %v150
  %v1375 = vunpack.c.l.b16 %v151
  %v1376 = vunpack.c.h.b16 %v151
  %v1377 = vunpack.c.l.b16 %v152
  %v1378 = vunpack.c.h.b16 %v152
  %v1379 = vunpack.c.l.b16 %v153
  %v1380 = vunpack.c.h.b16 %v153
  %v1381 = vunpack.c.l.b16 %v154
  %v1382 = vunpack.c.h.b16 %v154
  %v1383 = vunpack.c.l.b16 %v155
  %v1384 = vunpack.c.h.b16 %v155
  %v1385 = vunpack.c.l.b16 %v156
  %v1386 = vunpack.c.h.b16 %v156
  %v1387 = vunpack.c.l.b16 %v157
  %v1388 = vunpack.c.h.b16 %v157
  %v1389 = vunpack.c.l.b16 %v158
  %v1390 = vunpack.c.h.b16 %v158
  %v1391 = vunpack.c.l.b16 %v159
  %v1392 = vunpack.c.h.b16 %v159
  %v1393 = vunpack.c.l.b16 %v160
  %v1394 = vunpack.c.h.b16 %v160
  %v1395 = vunpack.c.l.b16 %v161
  %v1396 = vunpack.c.l.b16 %v162
  %v1397 = vunpack.c.h.b16 %v162
  %v1398 = vunpack.c.l.b16 %v163
  %v1399 = vunpack.c.h.b16 %v163
  %v1400 = vunpack.c.l.b16 %v164
  %v1401 = vunpack.c.h.b16 %v164
  %v1402 = vunpack.c.l.b16 %v165
  %v1403 = vunpack.c.h.b16 %v165
  %v1404 = vunpack.c.l.b16 %v166
  %v1405 = vunpack.c.h.b16 %v166
  %v1406 = vunpack.c.l.b16 %v167
  %v1407 = vunpack.c.h.b16 %v167
  %v1408 = vunpack.c.l.b16 %v168
  %v1409 = vunpack.c.h.b16 %v168
  %v1410 = vunpack.c.l.b16 %v169
  %v1411 = vunpack.c.h.b16 %v169
  %v1412 = vunpack.c.l.b16 %v170
  %v1413 = vunpack.c.h.b16 %v170
  %v1414 = vunpack.c.l.b16 %v171
  %v1415 = vunpack.c.h.b16 %v171
  %v1416 = vunpack.c.l.b16 %v172
  %v1417 = vunpack.c.h.b16 %v172
  %v1418 = vunpack.c.l.b16 %v173
  %v1419 = vunpack.c.h.b16 %v173
  %v1420 = vunpack.c.l.b16 %v174
  %v1421 = vunpack.c.h.b16 %v174
  %v1422 = vunpack.c.l.b16 %v175
  %v1423 = vunpack.c.h.b16 %v175
  %v1424 = vunpack.c.l.b16 %v176
  %v1425 = vunpack.c.l.b16 %v177
  %v1426 = vunpack.c.h.b16 %v177
  %v1427 = vunpack.c.l.b16 %v178
  %v1428 = vunpack.c.h.b16 %v178
  %v1429 = vunpack.c.l.b16 %v179
  %v1430 = vunpack.c.h.b16 %v179
  %v1431 = vunpack.c.l.b16 %v180
  %v1432 = vunpack.c.h.b16 %v180
  %v1433 = vunpack.c.l.b16 %v181
  %v1434 = vunpack.c.h.b16 %v181
  %v1435 = vunpack.c.l.b16 %v182
  %v1436 = vunpack.c.h.b16 %v182
  %v1437 = vunpack.c.l.b16 %v183
  %v1438 = vunpack.c.h.b16 %v183
  %v1439 = vunpack.c.l.b16 %v184
  %v1440 = vunpack.c.h.b16 %v184
  %v1441 = vunpack.c.l.b16 %v185
  %v1442 = vunpack.c.h.b16 %v185
  %v1443 = vunpack.c.l.b16 %v186
  %v1444 = vunpack.c.h.b16 %v186
  %v1445 = vunpack.c.l.b16 %v187
  %v1446 = vunpack.c.h.b16 %v187
  %v1447 = vunpack.c.l.b16 %v188
  %v1448 = vunpack.c.h.b16 %v188
  %v1449 = vunpack.c.l.b16 %v189
  %v1450 = vunpack.c.h.b16 %v189
  %v1451 = vunpack.c.l.b16 %v190
  %v1452 = vunpack.c.h.b16 %v190
  %v1453 = vunpack.c.l.b16 %v191
  %v1454 = vunpack.c.l.b16 %v192
  %v1455 = vunpack.c.h.b16 %v192
  %v1456 = vunpack.c.l.b16 %v193
  %v1457 = vunpack.c.h.b16 %v193
  %v1458 = vunpack.c.l.b16 %v194
  %v1459 = vunpack.c.h.b16 %v194
  %v1460 = vunpack.c.l.b16 %v195
  %v1461 = vunpack.c.h.b16 %v195
  %v1462 = vunpack.c.l.b16 %v196
  %v1463 = vunpack.c.h.b16 %v196
  %v1464 = vunpack.c.l.b16 %v197
  %v1465 = vunpack.c.h.b16 %v197
  %v1466 = vunpack.c.l.b16 %v198
  %v1467 = vunpack.c.h.b16 %v198
  %v1468 = vunpack.c.l.b16 %v199
  %v1469 = vunpack.c.h.b16 %v199
  %v1470 = vunpack.c.l.b16 %v200
  %v1471 = vunpack.c.h.b16 %v200
  %v1472 = vunpack.c.l.b16 %v201
  %v1473 = vunpack.c.h.b16 %v201
  %v1474 = vunpack.c.l.b16 %v202
  %v1475 = vunpack.c.h.b16 %v202
  %v1476 = vunpack.c.l.b16 %v203
  %v1477 = vunpack.c.h.b16 %v203
  %v1478 = vunpack.c.l.b16 %v204
  %v1479 = vunpack.c.h.b16 %v204
  %v1480 = vunpack.c.l.b16 %v205
  %v1481 = vunpack.c.h.b16 %v205
  %v1482 = vunpack.c.l.b16 %v206
  %v1483 = vunpack.c.l.b16 %v207
  %v1484 = vunpack.c.h.b16 %v207
  %v1485 = vunpack.c.l.b16 %v208
  %v1486 = vunpack.c.h.b16 %v208
  %v1487 = vunpack.c.l.b16 %v209
  %v1488 = vunpack.c.h.b16 %v209
  %v1489 = vunpack.c.l.b16 %v210
  %v1490 = vunpack.c.h.b16 %v210
  %v1491 = vunpack.c.l.b16 %v211
  %v1492 = vunpack.c.h.b16 %v211
  %v1493 = vunpack.c.l.b16 %v212
  %v1494 = vunpack.c.h.b16 %v212
  %v1495 = vunpack.c.l.b16 %v213
  %v1496 = vunpack.c.h.b16 %v213
  %v1497 = vunpack.c.l.b16 %v214
  %v1498 = vunpack.c.h.b16 %v214
  %v1499 = vunpack.c.l.b16 %v215
  %v1500 = vunpack.c.h.b16 %v215
  %v1501 = vunpack.c.l.b16 %v216
  %v1502 = vunpack.c.h.b16 %v216
  %v1503 = vunpack.c.l.b16 %v217
  %v1504 = vunpack.c.h.b16 %v217
  %v1505 = vunpack.c.l.b16 %v218
  %v1506 = vunpack.c.h.b16 %v218
  %v1507 = vunpack.c.l.b16 %v219
  %v1508 = vunpack.c.h.b16 %v219
  %v1509 = vunpack.c.l.b16 %v220
  %v1510 = vunpack.c.h.b16 %v220
  %v1511 = vunpack.c.l.b16 %v221
  %v1512 = vunpack.c.l.b16 %v222
  %v1513 = vunpack.c.h.b16 %v222
  %v1514 = vunpack.c.l.b16 %v223
  %v1515 = vunpack.c.h.b16 %v223
  %v1516 = vunpack.c.l.b16 %v224
  %v1517 = vunpack.c.h.b16 %v224
  %v1518 = vunpack.c.l.b16 %v225
  %v1519 = vunpack.c.h.b16 %v225
  %v1520 = vunpack.c.l.b16 %v226
  %v1521 = vunpack.c.h.b16 %v226
  %v1522 = vunpack.c.l.b16 %v227
  %v1523 = vunpack.c.h.b16 %v227
  %v1524 = vunpack.c.l.b16 %v228
  %v1525 = vunpack.c.h.b16 %v228
  %v1526 = vunpack.c.l.b16 %v229
  %v1527 = vunpack.c.h.b16 %v229
  %v1528 = vunpack.c.l.b16 %v230
  %v1529 = vunpack.c.h.b16 %v230
  %v1530 = vunpack.c.l.b16 %v231
  %v1531 = vunpack.c.h.b16 %v231
  %v1532 = vunpack.c.l.b16 %v232
  %v1533 = vunpack.c.h.b16 %v232
  %v1534 = vunpack.c.l.b16 %v233
  %v1535 = vunpack.c.h.b16 %v233
  %v1536 = vunpack.c.l.b16 %v234
  %v1537 = vunpack.c.h.b16 %v234
  %v1538 = vunpack.c.l.b16 %v235
  %v1539 = vunpack.c.h.b16 %v235
  %v1540 = vunpack.c.l.b16 %v236
  %v1541 = vunpack.c.l.b16 %v237
  %v1542 = vunpack.c.h.b16 %v237
  %v1543 = vunpack.c.l.b16 %v238
  %v1544 = vunpack.c.h.b16 %v238
  %v1545 = vunpack.c.l.b16 %v239
  %v1546 = vunpack.c.h.b16 %v239
  %v1547 = vunpack.c.l.b16 %v240
  %v1548 = vunpack.c.h.b16 %v240
  %v1549 = vunpack.c.l.b16 %v241
  %v1550 = vunpack.c.h.b16 %v241
  %v1551 = vunpack.c.l.b16 %v242
  %v1552 = vunpack.c.h.b16 %v242
  %v1553 = vunpack.c.l.b16 %v243
  %v1554 = vunpack.c.h.b16 %v243
  %v1555 = vunpack.c.l.b16 %v244
  %v1556 = vunpack.c.h.b16 %v244
  %v1557 = vunpack.c.l.b16 %v245
  %v1558 = vunpack.c.h.b16 %v245
  %v1559 = vunpack.c.l.b16 %v246
  %v1560 = vunpack.c.h.b16 %v246
  %v1561 = vunpack.c.l.b16 %v247
  %v1562 = vunpack.c.h.b16 %v247
  %v1563 = vunpack.c.l.b16 %v248
  %v1564 = vunpack.c.h.b16 %v248
  %v1565 = vunpack.c.l.b16 %v249
  %v1566 = vunpack.c.h.b16 %v249
  %v1567 = vunpack.c.l.b16 %v250
  %v1568 = vunpack.c.h.b16 %v250
  %v1569 = vunpack.c.l.b16 %v251
  %v1570 = vunpack.c.l.b16 %v252
  %v1571 = vunpack.c.h.b16 %v252
  %v1572 = vunpack.c.l.b16 %v253
  %v1573 = vunpack.c.h.b16 %v253
  %v1574 = vunpack.c.l.b16 %v254
  %v1575 = vunpack.c.h.b16 %v254
  %v1576 = vunpack.c.l.b16 %v255
  %v1577 = vunpack.c.h.b16 %v255
  %v1578 = vunpack.c.l.b16 %v256
  %v1579 = vunpack.c.h.b16 %v256
  %v1580 = vunpack.c.l.b16 %v257
  %v1581 = vunpack.c.h.b16 %v257
  %v1582 = vunpack.c.l.b16 %v258
  %v1583 = vunpack.c.h.b16 %v258
  %v1584 = vunpack.c.l.b16 %v259
  %v1585 = vunpack.c.h.b16 %v259
  %v1586 = vunpack.c.l.b16 %v260
  %v1587 = vunpack.c.h.b16 %v260
  %v1588 = vunpack.c.l.b16 %v261
  %v1589 = vunpack.c.h.b16 %v261
  %v1590 = vunpack.c.l.b16 %v262
  %v1591 = vunpack.c.h.b16 %v262
  %v1592 = vunpack.c.l.b16 %v263
  %v1593 = vunpack.c.h.b16 %v263
  %v1594 = vunpack.c.l.b16 %v264
  %v1595 = vunpack.c.h.b16 %v264
  %v1596 = vunpack.c.l.b16 %v265
  %v1597 = vunpack.c.h.b16 %v265
  %v1598 = vunpack.c.l.b16 %v266
  %v1599 = vunpack.c.l.b16 %v267
  %v1600 = vunpack.c.h.b16 %v267
  %v1601 = vunpack.c.l.b16 %v268
  %v1602 = vunpack.c.h.b16 %v268
  %v1603 = vunpack.c.l.b16 %v269
  %v1604 = vunpack.c.h.b16 %v269
  %v1605 = vunpack.c.l.b16 %v270
  %v1606 = vunpack.c.h.b16 %v270
  %v1607 = vunpack.c.l.b16 %v271
  %v1608 = vunpack.c.h.b16 %v271
  %v1609 = vunpack.c.l.b16 %v272
  %v1610 = vunpack.c.h.b16 %v272
  %v1611 = vunpack.c.l.b16 %v273
  %v1612 = vunpack.c.h.b16 %v273
  %v1613 = vunpack.c.l.b16 %v274
  %v1614 = vunpack.c.h.b16 %v274
  %v1615 = vunpack.c.l.b16 %v275
  %v1616 = vunpack.c.h.b16 %v275
  %v1617 = vunpack.c.l.b16 %v276
  %v1618 = vunpack.c.h.b16 %v276
  %v1619 = vunpack.c.l.b16 %v277
  %v1620 = vunpack.c.h.b16 %v277
  %v1621 = vunpack.c.l.b16 %v278
  %v1622 = vunpack.c.h.b16 %v278
  %v1623 = vunpack.c.l.b16 %v279
  %v1624 = vunpack.c.h.b16 %v279
  %v1625 = vunpack.c.l.b16 %v280
  %v1626 = vunpack.c.h.b16 %v280
  %v1627 = vunpack.c.l.b16 %v281
  %v1628 = vunpack.c.l.b16 %v282
  %v1629 = vunpack.c.h.b16 %v282
  %v1630 = vunpack.c.l.b16 %v283
  %v1631 = vunpack.c.h.b16 %v283
  %v1632 = vunpack.c.l.b16 %v284
  %v1633 = vunpack.c.h.b16 %v284
  %v1634 = vunpack.c.l.b16 %v285
  %v1635 = vunpack.c.h.b16 %v285
  %v1636 = vunpack.c.l.b16 %v286
  %v1637 = vunpack.c.h.b16 %v286
  %v1638 = vunpack.c.l.b16 %v287
  %v1639 = vunpack.c.h.b16 %v287
  %v1640 = vunpack.c.l.b16 %v288
  %v1641 = vunpack.c.h.b16 %v288
  %v1642 = vunpack.c.l.b16 %v289
  %v1643 = vunpack.c.h.b16 %v289
  %v1644 = vunpack.c.l.b16 %v290
  %v1645 = vunpack.c.h.b16 %v290
  %v1646 = vunpack.c.l.b16 %v291
  %v1647 = vunpack.c.h.b16 %v291
  %v1648 = vunpack.c.l.b16 %v292
  %v1649 = vunpack.c.h.b16 %v292
  %v1650 = vunpack.c.l.b16 %v293
  %v1651 = vunpack.c.h.b16 %v293
  %v1652 = vunpack.c.l.b16 %v294
  %v1653 = vunpack.c.h.b16 %v294
  %v1654 = vunpack.c.l.b16 %v295
  %v1655 = vunpack.c.h.b16 %v295
  %v1656 = vunpack.c.l.b16 %v296
  %v1657 = vunpack.c.l.b16 %v297
  %v1658 = vunpack.c.h.b16 %v297
  %v1659 = vunpack.c.l.b16 %v298
  %v1660 = vunpack.c.h.b16 %v298
  %v1661 = vunpack.c.l.b16 %v299
  %v1662 = vunpack.c.h.b16 %v299
  %v1663 = vunpack.c.l.b16 %v300
  %v1664 = vunpack.c.h.b16 %v300
  %v1665 = vunpack.c.l.b16 %v301
  %v1666 = vunpack.c.h.b16 %v301
  %v1667 = vunpack.c.l.b16 %v302
  %v1668 = vunpack.c.h.b16 %v302
  %v1669 = vunpack.c.l.b16 %v303
  %v1670 = vunpack.c.h.b16 %v303
  %v1671 = vunpack.c.l.b16 %v304
  %v1672 = vunpack.c.h.b16 %v304
  %v1673 = vunpack.c.l.b16 %v305
  %v1674 = vunpack.c.h.b16 %v305
  %v1675 = vunpack.c.l.b16 %v306
  %v1676 = vunpack.c.h.b16 %v306
  %v1677 = vunpack.c.l.b16 %v307
  %v1678 = vunpack.c.h.b16 %v307
  %v1679 = vunpack.c.l.b16 %v308
  %v1680 = vunpack.c.h.b16 %v308
  %v1681 = vunpack.c.l.b16 %v309
  %v1682 = vunpack.c.h.b16 %v309
  %v1683 = vunpack.c.l.b16 %v310
  %v1684 = vunpack.c.h.b16 %v310
  %v1685 = vunpack.c.l.b16 %v311
  %v1686 = vunpack.c.l.b16 %v312
  %v1687 = vunpack.c.h.b16 %v312
  %v1688 = vunpack.c.l.b16 %v313
  %v1689 = vunpack.c.h.b16 %v313
  %v1690 = vunpack.c.l.b16 %v314
  %v1691 = vunpack.c.h.b16 %v314
  %v1692 = vunpack.c.l.b16 %v315
  %v1693 = vunpack.c.h.b16 %v315
  %v1694 = vunpack.c.l.b16 %v316
  %v1695 = vunpack.c.h.b16 %v316
  %v1696 = vunpack.c.l.b16 %v317
  %v1697 = vunpack.c.h.b16 %v317
  %v1698 = vunpack.c.l.b16 %v318
  %v1699 = vunpack.c.h.b16 %v318
  %v1700 = vunpack.c.l.b16 %v319
  %v1701 = vunpack.c.h.b16 %v319
  %v1702 = vunpack.c.l.b16 %v320
  %v1703 = vunpack.c.h.b16 %v320
  %v1704 = vunpack.c.l.b16 %v321
  %v1705 = vunpack.c.h.b16 %v321
  %v1706 = vunpack.c.l.b16 %v322
  %v1707 = vunpack.c.h.b16 %v322
  %v1708 = vunpack.c.l.b16 %v323
  %v1709 = vunpack.c.h.b16 %v323
  %v1710 = vunpack.c.l.b16 %v324
  %v1711 = vunpack.c.h.b16 %v324
  %v1712 = vunpack.c.l.b16 %v325
  %v1713 = vunpack.c.h.b16 %v325
  %v1714 = vunpack.c.l.b16 %v326
  %v1715 = vpack.c.b16 %v1135, %v1106
  %v1716 = vpack.c.b16 %v1136, %v1107
  %v1717 = vpack.c.b16 %v1137, %v1108
  %v1718 = vpack.c.b16 %v1138, %v1109
  %v1719 = vpack.c.b16 %v1139, %v1110
  %v1720 = vpack.c.b16 %v1140, %v1111
  %v1721 = vpack.c.b16 %v1141, %v1112
  %v1722 = vpack.c.b16 %v1142, %v1113
  %v1723 = vpack.c.b16 %v1143, %v1114
  %v1724 = vpack.c.b16 %v1144, %v1115
  %v1725 = vpack.c.b16 %v1145, %v1116
  %v1726 = vpack.c.b16 %v1146, %v1117
  %v1727 = vpack.c.b16 %v1147, %v1118
  %v1728 = vpack.c.b16 %v1148, %v1119
  %v1729 = vpack.c.b16 %v1149, %v1120
  %v1730 = vpack.c.b16 %v1150, %v1121
  %v1731 = vpack.c.b16 %v1151, %v1122
  %v1732 = vpack.c.b16 %v1152, %v1123
  %v1733 = vpack.c.b16 %v1153, %v1124
  %v1734 = vpack.c.b16 %v1154, %v1125
  %v1735 = vpack.c.b16 %v1155, %v1126
  %v1736 = vpack.c.b16 %v1156, %v1127
  %v1737 = vpack.c.b16 %v1157, %v1128
  %v1738 = vpack.c.b16 %v1158, %v1129
  %v1739 = vpack.c.b16 %v1159, %v1130
  %v1740 = vpack.c.b16 %v1160, %v1131
  %v1741 = vpack.c.b16 %v1161, %v1132
  %v1742 = vpack.c.b16 %v1162, %v1133
  %v1743 = vpack.c.b16 %v1163, %v1134
  %v1744 = vpack.c.b16 %v1193, %v1164
  %v1745 = vpack.c.b16 %v1194, %v1165
  %v1746 = vpack.c.b16 %v1195, %v1166
  %v1747 = vpack.c.b16 %v1196, %v1167
  %v1748 = vpack.c.b16 %v1197, %v1168
  %v1749 = vpack.c.b16 %v1198, %v1169
  %v1750 = vpack.c.b16 %v1199, %v1170
  %v1751 = vpack.c.b16 %v1200, %v1171
  %v1752 = vpack.c.b16 %v1201, %v1172
  %v1753 = vpack.c.b16 %v1202, %v1173
  %v1754 = vpack.c.b16 %v1203, %v1174
  %v1755 = vpack.c.b16 %v1204, %v1175
  %v1756 = vpack.c.b16 %v1205, %v1176
  %v1757 = vpack.c.b16 %v1206, %v1177
  %v1758 = vpack.c.b16 %v1207, %v1178
  %v1759 = vpack.c.b16 %v1208, %v1179
  %v1760 = vpack.c.b16 %v1209, %v1180
  %v1761 = vpack.c.b16 %v1210, %v1181
  %v1762 = vpack.c.b16 %v1211, %v1182
  %v1763 = vpack.c.b16 %v1212, %v1183
  %v1764 = vpack.c.b16 %v1213, %v1184
  %v1765 = vpack.c.b16 %v1214, %v1185
  %v1766 = vpack.c.b16 %v1215, %v1186
  %v1767 = vpack.c.b16 %v1216, %v1187
  %v1768 = vpack.c.b16 %v1217, %v1188
  %v1769 = vpack.c.b16 %v1218, %v1189
  %v1770 = vpack.c.b16 %v1219, %v1190
  %v1771 = vpack.c.b16 %v1220, %v1191
  %v1772 = vpack.c.b16 %v1221, %v1192
  %v1773 = vpack.c.b16 %v1251, %v1222
  %v1774 = vpack.c.b16 %v1252, %v1223
  %v1775 = vpack.c.b16 %v1253, %v1224
  %v1776 = vpack.c.b16 %v1254, %v1225
  %v1777 = vpack.c.b16 %v1255, %v1226
  %v1778 = vpack.c.b16 %v1256, %v1227
  %v1779 = vpack.c.b16 %v1257, %v1228
  %v1780 = vpack.c.b16 %v1258, %v1229
  %v1781 = vpack.c.b16 %v1259, %v1230
  %v1782 = vpack.c.b16 %v1260, %v1231
  %v1783 = vpack.c.b16 %v1261, %v1232
  %v1784 = vpack.c.b16 %v1262, %v1233
  %v1785 = vpack.c.b16 %v1263, %v1234
  %v1786 = vpack.c.b16 %v1264, %v1235
  %v1787 = vpack.c.b16 %v1265, %v1236
  %v1788 = vpack.c.b16 %v1266, %v1237
  %v1789 = vpack.c.b16 %v1267, %v1238
  %v1790 = vpack.c.b16 %v1268, %v1239
  %v1791 = vpack.c.b16 %v1269, %v1240
  %v1792 = vpack.c.b16 %v1270, %v1241
  %v1793 = vpack.c.b16 %v1271, %v1242
  %v1794 = vpack.c.b16 %v1272, %v1243
  %v1795 = vpack.c.b16 %v1273, %v1244
  %v1796 = vpack.c.b16 %v1274, %v1245
  %v1797 = vpack.c.b16 %v1275, %v1246
  %v1798 = vpack.c.b16 %v1276, %v1247
  %v1799 = vpack.c.b16 %v1277, %v1248
  %v1800 = vpack.c.b16 %v1278, %v1249
  %v1801 = vpack.c.b16 %v1279, %v1250
  %v1802 = vpack.c.b16 %v1309, %v1280
  %v1803 = vpack.c.b16 %v1310, %v1281
  %v1804 = vpack.c.b16 %v1311, %v1282
  %v1805 = vpack.c.b16 %v1312, %v1283
  %v1806 = vpack.c.b16 %v1313, %v1284
  %v1807 = vpack.c.b16 %v1314, %v1285
  %v1808 = vpack.c.b16 %v1315, %v1286
  %v1809 = vpack.c.b16 %v1316, %v1287
  %v1810 = vpack.c.b16 %v1317, %v1288
  %v1811 = vpack.c.b16 %v1318, %v1289
  %v1812 = vpack.c.b16 %v1319, %v1290
  %v1813 = vpack.c.b16 %v1320, %v1291
  %v1814 = vpack.c.b16 %v1321, %v1292
  %v1815 = vpack.c.b16 %v1322, %v1293
  %v1816 = vpack.c.b16 %v1323, %v1294
  %v1817 = vpack.c.b16 %v1324, %v1295
  %v1818 = vpack.c.b16 %v1325, %v1296
  %v1819 = vpack.c.b16 %v1326, %v1297
  %v1820 = vpack.c.b16 %v1327, %v1298
  %v1821 = vpack.c.b16 %v1328, %v1299
  %v1822 = vpack.c.b16 %v1329, %v1300
  %v1823 = vpack.c.b16 %v1330, %v1301
  %v1824 = vpack.c.b16 %v1331, %v1302
  %v1825 = vpack.c.b16 %v1332, %v1303
  %v1826 = vpack.c.b16 %v1333, %v1304
  %v1827 = vpack.c.b16 %v1334, %v1305
  %v1828 = vpack.c.b16 %v1335, %v1306
  %v1829 = vpack.c.b16 %v1336, %v1307
  %v1830 = vpack.c.b16 %v1337, %v1308
  %v1831 = vpack.c.b16 %v1367, %v1338
  %v1832 = vpack.c.b16 %v1368, %v1339
  %v1833 = vpack.c.b16 %v1369, %v1340
  %v1834 = vpack.c.b16 %v1370, %v1341
  %v1835 = vpack.c.b16 %v1371, %v1342
  %v1836 = vpack.c.b16 %v1372, %v1343
  %v1837 = vpack.c.b16 %v1373, %v1344
  %v1838 = vpack.c.b16 %v1374, %v1345
  %v1839 = vpack.c.b16 %v1375, %v1346
  %v1840 = vpack.c.b16 %v1376, %v1347
  %v1841 = vpack.c.b16 %v1377, %v1348
  %v1842 = vpack.c.b16 %v1378, %v1349
  %v1843 = vpack.c.b16 %v1379, %v1350
  %v1844 = vpack.c.b16 %v1380, %v1351
  %v1845 = vpack.c.b16 %v1381, %v1352
  %v1846 = vpack.c.b16 %v1382, %v1353
  %v1847 = vpack.c.b16 %v1383, %v1354
  %v1848 = vpack.c.b16 %v1384, %v1355
  %v1849 = vpack.c.b16 %v1385, %v1356
  %v1850 = vpack.c.b16 %v1386, %v1357
  %v1851 = vpack.c.b16 %v1387, %v1358
  %v1852 = vpack.c.b16 %v1388, %v1359
  %v1853 = vpack.c.b16 %v1389, %v1360
  %v1854 = vpack.c.b16 %v1390, %v1361
  %v1855 = vpack.c.b16 %v1391, %v1362
  %v1856 = vpack.c.b16 %v1392, %v1363
  %v1857 = vpack.c.b16 %v1393, %v1364
  %v1858 = vpack.c.b16 %v1394, %v1365
  %v1859 = vpack.c.b16 %v1395, %v1366
  %v1860 = vpack.c.b16 %v1425, %v1396
  %v1861 = vpack.c.b16 %v1426, %v1397
  %v1862 = vpack.c.b16 %v1427, %v1398
  %v1863 = vpack.c.b16 %v1428, %v1399
  %v1864 = vpack.c.b16 %v1429, %v1400
  %v1865 = vpack.c.b16 %v1430, %v1401
  %v1866 = vpack.c.b16 %v1431, %v1402
  %v1867 = vpack.c.b16 %v1432, %v1403
  %v1868 = vpack.c.b16 %v1433, %v1404
  %v1869 = vpack.c.b16 %v1434, %v1405
  %v1870 = vpack.c.b16 %v1435, %v1406
  %v1871 = vpack.c.b16 %v1436, %v1407
  %v1872 = vpack.c.b16 %v1437, %v1408
  %v1873 = vpack.c.b16 %v1438, %v1409
  %v1874 = vpack.c.b16 %v1439, %v1410
  %v1875 = vpack.c.b16 %v1440, %v1411
  %v1876 = vpack.c.b16 %v1441, %v1412
  %v1877 = vpack.c.b16 %v1442, %v1413
  %v1878 = vpack.c.b16 %v1443, %v1414
  %v1879 = vpack.c.b16 %v1444, %v1415
  %v1880 = vpack.c.b16 %v1445, %v1416
  %v1881 = vpack.c.b16 %v1446, %v1417
  %v1882 = vpack.c.b16 %v1447, %v1418
  %v1883 = vpack.c.b16 %v1448, %v1419
  %v1884 = vpack.c.b16 %v1449, %v1420
  %v1885 = vpack.c.b16 %v1450, %v1421
  %v1886 = vpack.c.b16 %v1451, %v1422
  %v1887 = vpack.c.b16 %v1452, %v1423
  %v1888 = vpack.c.b16 %v1453, %v1424
  %v1889 = vpack.c.b16 %v1483, %v1454
  %v1890 = vpack.c.b16 %v1484, %v1455
  %v1891 = vpack.c.b16 %v1485, %v1456
  %v1892 = vpack.c.b16 %v1486, %v1457
  %v1893 = vpack.c.b16 %v1487, %v1458
  %v1894 = vpack.c.b16 %v1488, %v1459
  %v1895 = vpack.c.b16 %v1489, %v1460
  %v1896 = vpack.c.b16 %v1490, %v1461
  %v1897 = vpack.c.b16 %v1491, %v1462
  %v1898 = vpack.c.b16 %v1492, %v1463
  %v1899 = vpack.c.b16 %v1493, %v1464
  %v1900 = vpack.c.b16 %v1494, %v1465
  %v1901 = vpack.c.b16 %v1495, %v1466
  %v1902 = vpack.c.b16 %v1496, %v1467
  %v1903 = vpack.c.b16 %v1497, %v1468
  %v1904 = vpack.c.b16 %v1498, %v1469
  %v1905 = vpack.c.b16 %v1499, %v1470
  %v1906 = vpack.c.b16 %v1500, %v1471
  %v1907 = vpack.c.b16 %v1501, %v1472
  %v1908 = vpack.c.b16 %v1502, %v1473
  %v1909 = vpack.c.b16 %v1503, %v1474
  %v1910 = vpack.c.b16 %v1504, %v1475
  %v1911 = vpack.c.b16 %v1505, %v1476
  %v1912 = vpack.c.b16 %v1506, %v1477
  %v1913 = vpack.c.b16 %v1507, %v1478
  %v1914 = vpack.c.b16 %v1508, %v1479
  %v1915 = vpack.c.b16 %v1509, %v1480
  %v1916 = vpack.c.b16 %v1510, %v1481
  %v1917 = vpack.c.b16 %v1511, %v1482
  %v1918 = vpack.c.b16 %v1541, %v1512
  %v1919 = vpack.c.b16 %v1542, %v1513
  %v1920 = vpack.c.b16 %v1543, %v1514
  %v1921 = vpack.c.b16 %v1544, %v1515
  %v1922 = vpack.c.b16 %v1545, %v1516
  %v1923 = vpack.c.b16 %v1546, %v1517
  %v1924 = vpack.c.b16 %v1547, %v1518
  %v1925 = vpack.c.b16 %v1548, %v1519
  %v1926 = vpack.c.b16 %v1549, %v1520
  %v1927 = vpack.c.b16 %v1550, %v1521
  %v1928 = vpack.c.b16 %v1551, %v1522
  %v1929 = vpack.c.b16 %v1552, %v1523
  %v1930 = vpack.c.b16 %v1553, %v1524
  %v1931 = vpack.c.b16 %v1554, %v1525
  %v1932 = vpack.c.b16 %v1555, %v1526
  %v1933 = vpack.c.b16 %v1556, %v1527
  %v1934 = vpack.c.b16 %v1557, %v1528
  %v1935 = vpack.c.b16 %v1558, %v1529
  %v1936 = vpack.c.b16 %v1559, %v1530
  %v1937 = vpack.c.b16 %v1560, %v1531
  %v1938 = vpack.c.b16 %v1561, %v1532
  %v1939 = vpack.c.b16 %v1562, %v1533
  %v1940 = vpack.c.b16 %v1563, %v1534
  %v1941 = vpack.c.b16 %v1564, %v1535
  %v1942 = vpack.c.b16 %v1565, %v1536
  %v1943 = vpack.c.b16 %v1566, %v1537
  %v1944 = vpack.c.b16 %v1567, %v1538
  %v1945 = vpack.c.b16 %v1568, %v1539
  %v1946 = vpack.c.b16 %v1569, %v1540
  %v1947 = vpack.c.b16 %v1599, %v1570
  %v1948 = vpack.c.b16 %v1600, %v1571
  %v1949 = vpack.c.b16 %v1601, %v1572
  %v1950 = vpack.c.b16 %v1602, %v1573
  %v1951 = vpack.c.b16 %v1603, %v1574
  %v1952 = vpack.c.b16 %v1604, %v1575
  %v1953 = vpack.c.b16 %v1605, %v1576
  %v1954 = vpack.c.b16 %v1606, %v1577
  %v1955 = vpack.c.b16 %v1607, %v1578
  %v1956 = vpack.c.b16 %v1608, %v1579
  %v1957 = vpack.c.b16 %v1609, %v1580
  %v1958 = vpack.c.b16 %v1610, %v1581
  %v1959 = vpack.c.b16 %v1611, %v1582
  %v1960 = vpack.c.b16 %v1612, %v1583
  %v1961 = vpack.c.b16 %v1613, %v1584
  %v1962 = vpack.c.b16 %v1614, %v1585
  %v1963 = vpack.c.b16 %v1615, %v1586
  %v1964 = vpack.c.b16 %v1616, %v1587
  %v1965 = vpack.c.b16 %v1617, %v1588
  %v1966 = vpack.c.b16 %v1618, %v1589
  %v1967 = vpack.c.b16 %v1619, %v1590
  %v1968 = vpack.c.b16 %v1620, %v1591
  %v1969 = vpack.c.b16 %v1621, %v1592
  %v1970 = vpack.c.b16 %v1622, %v1593
  %v1971 = vpack.c.b16 %v1623, %v1594
  %v1972 = vpack.c.b16 %v1624, %v1595
  %v1973 = vpack.c.b16 %v1625, %v1596
  %v1974 = vpack.c.b16 %v1626, %v1597
  %v1975 = vpack.c.b16 %v1627, %v1598
  %v1976 = vpack.c.b16 %v1657, %v1628
  %v1977 = vpack.c.b16 %v1658, %v1629
  %v1978 = vpack.c.b16 %v1659, %v1630
  %v1979 = vpack.c.b16 %v1660, %v1631
  %v1980 = vpack.c.b16 %v1661, %v1632
  %v1981 = vpack.c.b16 %v1662, %v1633
  %v1982 = vpack.c.b16 %v1663, %v1634
  %v1983 = vpack.c.b16 %v1664, %v1635
  %v1984 = vpack.c.b16 %v1665, %v1636
  %v1985 = vpack.c.b16 %v1666, %v1637
  %v1986 = vpack.c.b16 %v1667, %v1638
  %v1987 = vpack.c.b16 %v1668, %v1639
  %v1988 = vpack.c.b16 %v1669, %v1640
  %v1989 = vpack.c.b16 %v1670, %v1641
  %v1990 = vpack.c.b16 %v1671, %v1642
  %v1991 = vpack.c.b16 %v1672, %v1643
  %v1992 = vpack.c.b16 %v1673, %v1644
  %v1993 = vpack.c.b16 %v1674, %v1645
  %v1994 = vpack.c.b16 %v1675, %v1646
  %v1995 = vpack.c.b16 %v1676, %v1647
  %v1996 = vpack.c.b16 %v1677, %v1648
  %v1997 = vpack.c.b16 %v1678, %v1649
  %v1998 = vpack.c.b16 %v1679, %v1650
  %v1999 = vpack.c.b16 %v1680, %v1651
  %v2000 = vpack.c.b16 %v1681, %v1652
  %v2001 = vpack.c.b16 %v1682, %v1653
  %v2002 = vpack.c.b16 %v1683, %v1654
  %v2003 = vpack.c.b16 %v1684, %v1655
  %v2004 = vpack.c.b16 %v1685, %v1656
  %v2005 = vpack.c.b16 %v1686, %v1686
  %v2006 = vpack.c.b16 %v1687, %v1687
  %v2007 = vpack.c.b16 %v1688, %v1688
  %v2008 = vpack.c.b16 %v1689, %v1689
  %v2009 = vpack.c.b16 %v1690, %v1690
  %v2010 = vpack.c.b16 %v1691, %v1691
  %v2011 = vpack.c.b16 %v1692, %v1692
  %v2012 = vpack.c.b16 %v1693, %v1693
  %v2013 = vpack.c.b16 %v1694, %v1694
  %v2014 = vpack.c.b16 %v1695, %v1695
  %v2015 = vpack.c.b16 %v1696, %v1696
  %v2016 = vpack.c.b16 %v1697, %v1697
  %v2017 = vpack.c.b16 %v1698, %v1698
  %v2018 = vpack.c.b16 %v1699, %v1699
  %v2019 = vpack.c.b16 %v1700, %v1700
  %v2020 = vpack.c.b16 %v1701, %v1701
  %v2021 = vpack.c.b16 %v1702, %v1702
  %v2022 = vpack.c.b16 %v1703, %v1703
  %v2023 = vpack.c.b16 %v1704, %v1704
  %v2024 = vpack.c.b16 %v1705, %v1705
  %v2025 = vpack.c.b16 %v1706, %v1706
  %v2026 = vpack.c.b16 %v1707, %v1707
  %v2027 = vpack.c.b16 %v1708, %v1708
  %v2028 = vpack.c.b16 %v1709, %v1709
  %v2029 = vpack.c.b16 %v1710, %v1710
  %v2030 = vpack.c.b16 %v1711, %v1711
  %v2031 = vpack.c.b16 %v1712, %v1712
  %v2032 = vpack.c.b16 %v1713, %v1713
  %v2033 = vpack.c.b16 %v1714, %v1714
  %v2817 = vunpack.c.l.b16 %v327
  %v2818 = vunpack.c.l.b16 %v328
  %v2819 = vunpack.c.l.b16 %v329
  %v2820 = vunpack.c.l.b16 %v330
  %v2821 = vunpack.c.l.b16 %v331
  %v2822 = vunpack.c.l.b16 %v332
  %v2823 = vunpack.c.l.b16 %v333
  %v2824 = vunpack.c.l.b16 %v334
  %v2825 = vunpack.c.l.b16 %v335
  %v2826 = vunpack.c.l.b16 %v336
  %v2827 = vunpack.c.l.b16 %v337
  %v2828 = vunpack.c.l.b16 %v338
  %v2829 = vunpack.c.l.b16 %v339
  %v2830 = vunpack.c.l.b16 %v340
  %v2831 = vunpack.c.l.b16 %v341
  %v2832 = vunpack.c.l.b16 %v342
  %v2833 = vunpack.c.l.b16 %v343
  %v2834 = vunpack.c.l.b16 %v344
  %v2835 = vunpack.c.l.b16 %v345
  %v2836 = vunpack.c.l.b16 %v346
  %v2837 = vunpack.c.l.b16 %v347
  %v2838 = vunpack.c.l.b16 %v348
  %v2839 = vunpack.c.l.b16 %v349
  %v2840 = vunpack.c.l.b16 %v350
  %v2841 = vunpack.c.l.b16 %v351
  %v2842 = vunpack.c.l.b16 %v352
  %v2843 = vunpack.c.l.b16 %v353
  %v2844 = vunpack.c.l.b16 %v354
  %v2845 = vunpack.c.l.b16 %v355
  %v2846 = vunpack.c.l.b16 %v356
  %v2847 = vunpack.c.l.b16 %v357
  %v2848 = vunpack.c.l.b16 %v358
  %v2849 = vunpack.c.l.b16 %v359
  %v2850 = vunpack.c.l.b16 %v360
  %v2851 = vunpack.c.l.b16 %v361
  %v2852 = vunpack.c.l.b16 %v362
  %v2853 = vunpack.c.l.b16 %v363
  %v2854 = vunpack.c.l.b16 %v364
  %v2855 = vunpack.c.l.b16 %v365
  %v2856 = vunpack.c.l.b16 %v366
  %v2857 = vunpack.c.l.b16 %v367
  %v2858 = vunpack.c.l.b16 %v368
  %v2859 = vunpack.c.l.b16 %v369
  %v2860 = vunpack.c.l.b16 %v370
  %v2861 = vunpack.c.l.b16 %v371
  %v2862 = vunpack.c.l.b16 %v372
  %v2863 = vunpack.c.l.b16 %v373
  %v2864 = vunpack.c.l.b16 %v374
  %v2865 = vunpack.c.l.b16 %v375
  %v2866 = vunpack.c.l.b16 %v376
  %v2867 = vunpack.c.l.b16 %v377
  %v2868 = vunpack.c.l.b16 %v378
  %v2869 = vunpack.c.l.b16 %v379
  %v2870 = vunpack.c.l.b16 %v380
  %v2871 = vunpack.c.l.b16 %v381
  %v2872 = vunpack.c.l.b16 %v382
  %v2873 = vunpack.c.l.b16 %v383
  %v2874 = vunpack.c.l.b16 %v384
  %v2875 = vunpack.c.l.b16 %v385
  %v2876 = vunpack.c.l.b16 %v386
  %v2877 = vunpack.c.l.b16 %v387
  %v2878 = vunpack.c.l.b16 %v388
  %v2879 = vunpack.c.l.b16 %v389
  %v2880 = vunpack.c.l.b16 %v390
  %v2881 = vunpack.c.l.b16 %v391
  %v2882 = vunpack.c.l.b16 %v392
  %v2883 = vunpack.c.l.b16 %v393
  %v2884 = vunpack.c.l.b16 %v394
  %v2885 = vunpack.c.l.b16 %v395
  %v2886 = vunpack.c.l.b16 %v396
  %v2887 = vunpack.c.l.b16 %v397
  %v2888 = vunpack.c.l.b16 %v398
  %v2889 = vunpack.c.l.b16 %v399
  %v2890 = vunpack.c.l.b16 %v400
  %v2891 = vunpack.c.l.b16 %v401
  %v2892 = vunpack.c.l.b16 %v402
  %v2893 = vunpack.c.l.b16 %v403
  %v2894 = vunpack.c.l.b16 %v404
  %v2895 = vunpack.c.l.b16 %v405
  %v2896 = vunpack.c.l.b16 %v406
  %v2897 = vunpack.c.l.b16 %v407
  %v2898 = vunpack.c.l.b16 %v408
  %v2899 = vunpack.c.l.b16 %v409
  %v2900 = vunpack.c.l.b16 %v410
  %v2901 = vunpack.c.l.b16 %v411
  %v2902 = vunpack.c.l.b16 %v412
  %v2903 = vunpack.c.l.b16 %v413
  %v2904 = vunpack.c.l.b16 %v414
  %v2905 = vunpack.c.l.b16 %v415
  %v2906 = vunpack.c.l.b16 %v416
  %v2907 = vunpack.c.l.b16 %v417
  %v2908 = vunpack.c.l.b16 %v418
  %v2909 = vunpack.c.l.b16 %v419
  %v2910 = vunpack.c.l.b16 %v420
  %v2911 = vunpack.c.l.b16 %v421
  %v2912 = vunpack.c.l.b16 %v422
  %v2913 = vunpack.c.l.b16 %v423
  %v2914 = vunpack.c.l.b16 %v424
  %v2915 = vunpack.c.l.b16 %v425
  %v2916 = vunpack.c.l.b16 %v426
  %v2917 = vunpack.c.l.b16 %v427
  %v2918 = vunpack.c.l.b16 %v428
  %v2919 = vunpack.c.l.b16 %v429
  %v2920 = vunpack.c.l.b16 %v430
  %v2921 = vunpack.c.l.b16 %v431
  %v2922 = vunpack.c.l.b16 %v432
  %v2923 = vunpack.c.l.b16 %v433
  %v2924 = vunpack.c.l.b16 %v434
  %v2925 = vunpack.c.l.b16 %v435
  %v2926 = vunpack.c.l.b16 %v436
  %v2927 = vunpack.c.l.b16 %v437
  %v2928 = vunpack.c.l.b16 %v438
  %v2929 = vunpack.c.l.b16 %v439
  %v2930 = vunpack.c.l.b16 %v440
  %v2931 = vunpack.c.l.b16 %v441
  %v2932 = vunpack.c.l.b16 %v442
  %v2933 = vunpack.c.l.b16 %v443
  %v2934 = vunpack.c.l.b16 %v444
  %v2935 = vunpack.c.l.b16 %v445
  %v2936 = vunpack.c.l.b16 %v446
  %v2937 = vunpack.c.l.b16 %v447
  %v2938 = vunpack.c.l.b16 %v448
  %v2939 = vunpack.c.l.b16 %v449
  %v2940 = vunpack.c.l.b16 %v450
  %v2941 = vunpack.c.l.b16 %v451
  %v2942 = vunpack.c.l.b16 %v452
  %v2943 = vunpack.c.l.b16 %v453
  %v2944 = vunpack.c.l.b16 %v454
  %v2945 = vunpack.c.l.b16 %v455
  %v2946 = vunpack.c.l.b16 %v456
  %v2947 = vunpack.c.l.b16 %v457
  %v2948 = vunpack.c.l.b16 %v458
  %v2949 = vunpack.c.l.b16 %v459
  %v2950 = vunpack.c.l.b16 %v460
  %v2951 = vunpack.c.l.b16 %v461
  %v2952 = vunpack.c.l.b16 %v462
  %v2953 = vunpack.c.l.b16 %v463
  %v2954 = vunpack.c.l.b16 %v464
  %v2955 = vunpack.c.l.b16 %v465
  %v2956 = vunpack.c.l.b16 %v466
  %v2957 = vunpack.c.l.b16 %v467
  %v2958 = vunpack.c.l.b16 %v468
  %v2959 = vunpack.c.l.b16 %v469
  %v2960 = vunpack.c.l.b16 %v470
  %v2961 = vunpack.c.l.b16 %v471
  %v2962 = vunpack.c.l.b16 %v472
  %v2963 = vunpack.c.l.b16 %v473
  %v2964 = vunpack.c.l.b16 %v474
  %v2965 = vunpack.c.l.b16 %v475
  %v2966 = vunpack.c.l.b16 %v476
  %v2967 = vunpack.c.l.b16 %v477
  %v2968 = vunpack.c.l.b16 %v478
  %v2969 = vunpack.c.l.b16 %v479
  %v2970 = vunpack.c.l.b16 %v480
  %v2971 = vunpack.c.l.b16 %v481
  %v2972 = vunpack.c.l.b16 %v482
  %v2973 = vunpack.c.l.b16 %v483
  %v2974 = vunpack.c.l.b16 %v484
  %v2975 = vunpack.c.l.b16 %v485
  %v2976 = vunpack.c.l.b16 %v486
  %v2977 = vunpack.c.l.b16 %v487
  %v2978 = vunpack.c.l.b16 %v488
  %v2979 = vunpack.c.l.b16 %v489
  %v2980 = vunpack.c.l.b16 %v490
  %v2981 = vunpack.c.l.b16 %v491
  %v2982 = vunpack.c.l.b16 %v492
  %v2983 = vunpack.c.l.b16 %v493
  %v2984 = vunpack.c.l.b16 %v494
  %v2985 = vunpack.c.l.b16 %v495
  %v2986 = vunpack.c.l.b16 %v496
  %v2987 = vunpack.c.l.b16 %v497
  %v2988 = vunpack.c.l.b16 %v498
  %v2989 = vunpack.c.l.b16 %v499
  %v2990 = vunpack.c.l.b16 %v500
  %v2991 = vunpack.c.l.b16 %v501
  %v2992 = vunpack.c.l.b16 %v502
  %v2993 = vunpack.c.l.b16 %v503
  %v2994 = vunpack.c.l.b16 %v504
  %v2995 = vunpack.c.l.b16 %v505
  %v2996 = vunpack.c.l.b16 %v506
  %v2997 = vunpack.c.l.b16 %v507
  %v2998 = vunpack.c.l.b16 %v508
  %v2999 = vunpack.c.l.b16 %v509
  %v3000 = vunpack.c.l.b16 %v510
  %v3001 = vunpack.c.l.b16 %v511
  %v3002 = vunpack.c.l.b16 %v512
  %v3003 = vunpack.c.l.b16 %v513
  %v3004 = vunpack.c.l.b16 %v514
  %v3005 = vunpack.c.l.b16 %v515
  %v3006 = vunpack.c.l.b16 %v516
  %v3007 = vunpack.c.l.b16 %v517
  %v3008 = vunpack.c.l.b16 %v518
  %v3009 = vunpack.c.l.b16 %v519
  %v3010 = vunpack.c.l.b16 %v520
  %v3011 = vunpack.c.l.b16 %v521
  %v3012 = vunpack.c.l.b16 %v522
  %v3013 = vunpack.c.l.b16 %v523
  %v3014 = vunpack.c.l.b16 %v524
  %v3015 = vunpack.c.l.b16 %v525
  %v3016 = vunpack.c.l.b16 %v526
  %v3017 = vunpack.c.l.b16 %v527
  %v3018 = vunpack.c.l.b16 %v528
  %v3019 = vunpack.c.l.b16 %v529
  %v3020 = vunpack.c.l.b16 %v530
  %v3021 = vunpack.c.l.b16 %v531
  %v3022 = vunpack.c.l.b16 %v532
  %v3023 = vunpack.c.l.b16 %v533
  %v3024 = vunpack.c.l.b16 %v534
  %v3025 = vunpack.c.l.b16 %v535
  %v3026 = vunpack.c.l.b16 %v536
  %v3027 = vunpack.c.l.b16 %v537
  %v3028 = vunpack.c.l.b16 %v538
  %v3029 = vunpack.c.l.b16 %v539
  %v3030 = vunpack.c.l.b16 %v540
  %v3031 = vunpack.c.l.b16 %v541
  %v3032 = vunpack.c.l.b16 %v542
  %v3033 = vunpack.c.l.b16 %v543
  %v3034 = vunpack.c.l.b16 %v544
  %v3035 = vunpack.c.l.b16 %v545
  %v3036 = vunpack.c.l.b16 %v546
  %v3037 = vunpack.c.l.b16 %v547
  %v3038 = vunpack.c.l.b16 %v548
  %v3039 = vunpack.c.l.b16 %v549
  %v3040 = vunpack.c.l.b16 %v550
  %v3041 = vunpack.c.l.b16 %v551
  %v3042 = vunpack.c.l.b16 %v552
  %v3043 = vunpack.c.l.b16 %v553
  %v3044 = vunpack.c.l.b16 %v554
  %v3045 = vunpack.c.l.b16 %v555
  %v3046 = vunpack.c.l.b16 %v556
  %v3047 = vunpack.c.l.b16 %v557
  %v3048 = vunpack.c.l.b16 %v558
  %v3049 = vunpack.c.l.b16 %v559
  %v3050 = vunpack.c.l.b16 %v560
  %v3051 = vunpack.c.l.b16 %v561
  %v3052 = vunpack.c.l.b16 %v562
  %v3053 = vunpack.c.l.b16 %v563
  %v3054 = vunpack.c.l.b16 %v564
  %v3055 = vunpack.c.l.b16 %v565
  %v3056 = vunpack.c.l.b16 %v566
  %v3057 = vunpack.c.l.b16 %v567
  %v3058 = vunpack.c.l.b16 %v568
  %v3059 = vunpack.c.l.b16 %v569
  %v3060 = vunpack.c.l.b16 %v570
  %v3061 = vunpack.c.l.b16 %v571
  %v3062 = vunpack.c.l.b16 %v572
  %v3063 = vunpack.c.l.b16 %v573
  %v3064 = vunpack.c.l.b16 %v574
  %v3065 = vunpack.c.l.b16 %v575
  %v3066 = vunpack.c.l.b16 %v576
  %v3067 = vunpack.c.l.b16 %v577
  %v3068 = vunpack.c.l.b16 %v578
  %v3069 = vunpack.c.l.b16 %v579
  %v3070 = vunpack.c.l.b16 %v580
  %v3071 = vunpack.c.l.b16 %v581
  %v3072 = vunpack.c.l.b16 %v582
  %v3073 = vunpack.c.l.b16 %v583
  %v3074 = vunpack.c.l.b16 %v584
  %v3075 = vunpack.c.l.b16 %v585
  %v3076 = vunpack.c.l.b16 %v586
  %v3077 = vunpack.c.l.b16 %v587
  %v3078 = vunpack.c.l.b16 %v588
  %v3079 = vunpack.c.l.b16 %v589
  %v3080 = vunpack.c.l.b16 %v590
  %v3081 = vunpack.c.l.b16 %v591
  %v3082 = vunpack.c.l.b16 %v592
  %v3083 = vunpack.c.l.b16 %v593
  %v3084 = vunpack.c.l.b16 %v594
  %v3085 = vunpack.c.l.b16 %v595
  %v3086 = vunpack.c.l.b16 %v596
  %v3087 = vunpack.c.l.b16 %v597
  %v3088 = vunpack.c.l.b16 %v598
  %v3089 = vunpack.c.l.b16 %v599
  %v3090 = vunpack.c.l.b16 %v600
  %v3091 = vunpack.c.l.b16 %v601
  %v3092 = vunpack.c.l.b16 %v602
  %v3093 = vunpack.c.l.b16 %v603
  %v3094 = vunpack.c.l.b16 %v604
  %v3095 = vunpack.c.l.b16 %v605
  %v3096 = vunpack.c.l.b16 %v606
  %v3097 = vunpack.c.l.b16 %v607
  %v3098 = vunpack.c.l.b16 %v608
  %v3099 = vunpack.c.l.b16 %v609
  %v3100 = vunpack.c.l.b16 %v610
  %v3101 = vunpack.c.l.b16 %v611
  %v3102 = vunpack.c.l.b16 %v612
  %v3103 = vunpack.c.l.b16 %v613
  %v3104 = vunpack.c.l.b16 %v614
  %v3105 = vunpack.c.l.b16 %v615
  %v3106 = vunpack.c.l.b16 %v616
  %v3107 = vunpack.c.l.b16 %v617
  %v3108 = vunpack.c.l.b16 %v618
  %v3109 = vunpack.c.l.b16 %v619
  %v3110 = vunpack.c.l.b16 %v620
  %v3111 = vunpack.c.l.b16 %v621
  %v3112 = vunpack.c.l.b16 %v622
  %v3113 = vunpack.c.l.b16 %v623
  %v3114 = vunpack.c.l.b16 %v624
  %v3115 = vunpack.c.l.b16 %v625
  %v3116 = vunpack.c.l.b16 %v626
  %v3117 = vunpack.c.l.b16 %v627
  %v3118 = vunpack.c.l.b16 %v628
  %v3119 = vunpack.c.l.b16 %v629
  %v3120 = vunpack.c.l.b16 %v630
  %v3121 = vunpack.c.l.b16 %v631
  %v3122 = vunpack.c.l.b16 %v632
  %v3123 = vunpack.c.l.b16 %v633
  %v3124 = vunpack.c.l.b16 %v634
  %v3125 = vunpack.c.l.b16 %v635
  %v3126 = vunpack.c.l.b16 %v636
  %v3127 = vunpack.c.l.b16 %v637
  %v3128 = vunpack.c.l.b16 %v638
  %v3129 = vunpack.c.l.b16 %v639
  %v3130 = vunpack.c.l.b16 %v640
  %v3131 = vunpack.c.l.b16 %v641
  %v3132 = vunpack.c.l.b16 %v642
  %v3133 = vunpack.c.l.b16 %v643
  %v3134 = vunpack.c.l.b16 %v644
  %v3135 = vunpack.c.l.b16 %v645
  %v3136 = vunpack.c.l.b16 %v646
  %v3137 = vunpack.c.l.b16 %v647
  %v3138 = vunpack.c.l.b16 %v648
  %v3139 = vunpack.c.l.b16 %v649
  %v3140 = vunpack.c.l.b16 %v650
  %v3141 = vunpack.c.l.b16 %v651
  %v3142 = vunpack.c.l.b16 %v652
  %v3143 = vunpack.c.l.b16 %v653
  %v3144 = vunpack.c.l.b16 %v654
  %v3145 = vunpack.c.l.b16 %v655
  %v3146 = vunpack.c.l.b16 %v656
  %v3147 = vunpack.c.l.b16 %v657
  %v3148 = vunpack.c.l.b16 %v658
  %v3149 = vunpack.c.l.b16 %v659
  %v3150 = vunpack.c.l.b16 %v660
  %v3151 = vunpack.c.l.b16 %v661
  %v3152 = vunpack.c.l.b16 %v662
  %v3153 = vunpack.c.l.b16 %v663
  %v3154 = vunpack.c.l.b16 %v664
  %v3155 = vunpack.c.l.b16 %v665
  %v3156 = vunpack.c.l.b16 %v666
  %v3157 = vunpack.c.l.b16 %v667
  %v3158 = vunpack.c.l.b16 %v668
  %v3159 = vunpack.c.l.b16 %v669
  %v3160 = vunpack.c.l.b16 %v670
  %v3161 = vunpack.c.l.b16 %v671
  %v3162 = vunpack.c.l.b16 %v672
  %v3163 = vunpack.c.l.b16 %v673
  %v3164 = vunpack.c.l.b16 %v674
  %v3165 = vunpack.c.l.b16 %v675
  %v3166 = vunpack.c.l.b16 %v676
  %v3167 = vunpack.c.l.b16 %v677
  %v3168 = vunpack.c.l.b16 %v678
  %v3169 = vunpack.c.l.b16 %v679
  %v3170 = vunpack.c.l.b16 %v680
  %v3171 = vunpack.c.l.b16 %v681
  %v3172 = vunpack.c.l.b16 %v682
  %v3173 = vunpack.c.l.b16 %v683
  %v3174 = vunpack.c.l.b16 %v684
  %v3175 = vunpack.c.l.b16 %v685
  %v3176 = vunpack.c.l.b16 %v686
  %v3177 = vunpack.c.l.b16 %v687
  %v3178 = vunpack.c.l.b16 %v688
  %v3179 = vunpack.c.l.b16 %v689
  %v3180 = vunpack.c.l.b16 %v690
  %v3181 = vunpack.c.l.b16 %v691
  %v3182 = vunpack.c.l.b16 %v692
  %v3183 = vunpack.c.l.b16 %v693
  %v3184 = vunpack.c.l.b16 %v694
  %v3185 = vunpack.c.l.b16 %v695
  %v3186 = vunpack.c.l.b16 %v696
  %v3187 = vunpack.c.l.b16 %v697
  %v3188 = vunpack.c.l.b16 %v698
  %v3189 = vunpack.c.l.b16 %v699
  %v3190 = vunpack.c.l.b16 %v700
  %v3191 = vunpack.c.l.b16 %v701
  %v3192 = vunpack.c.l.b16 %v702
  %v3193 = vunpack.c.l.b16 %v703
  %v3194 = vunpack.c.l.b16 %v704
  %v3195 = vunpack.c.l.b16 %v705
  %v3196 = vunpack.c.l.b16 %v706
  %v3197 = vunpack.c.l.b16 %v707
  %v3198 = vunpack.c.l.b16 %v708
  %v3199 = vunpack.c.l.b16 %v709
  %v3200 = vunpack.c.l.b16 %v710
  %v3201 = vunpack.c.l.b16 %v711
  %v3202 = vunpack.c.l.b16 %v712
  %v3203 = vunpack.c.l.b16 %v713
  %v3204 = vunpack.c.l.b16 %v714
  %v3205 = vunpack.c.l.b16 %v715
  %v3206 = vunpack.c.l.b16 %v716
  %v3207 = vunpack.c.l.b16 %v717
  %v3208 = vunpack.c.l.b16 %v718
  %v3209 = vunpack.c.l.b16 %v719
  %v3210 = vunpack.c.l.b16 %v720
  %v3211 = vunpack.c.l.b16 %v721
  %v3212 = vunpack.c.l.b16 %v722
  %v3213 = vunpack.c.l.b16 %v723
  %v3214 = vunpack.c.l.b16 %v724
  %v3215 = vunpack.c.l.b16 %v725
  %v3216 = vunpack.c.l.b16 %v726
  %v3217 = vunpack.c.l.b16 %v727
  %v3218 = vunpack.c.l.b16 %v728
  %v3219 = vunpack.c.l.b16 %v729
  %v3220 = vunpack.c.l.b16 %v730
  %v3221 = vunpack.c.l.b16 %v731
  %v3222 = vunpack.c.l.b16 %v732
  %v3223 = vunpack.c.l.b16 %v733
  %v3224 = vunpack.c.l.b16 %v734
  %v3225 = vunpack.c.l.b16 %v735
  %v3226 = vunpack.c.l.b16 %v736
  %v3227 = vunpack.c.l.b16 %v737
  %v3228 = vunpack.c.l.b16 %v738
  %v3229 = vunpack.c.l.b16 %v739
  %v3230 = vunpack.c.l.b16 %v740
  %v3231 = vunpack.c.l.b16 %v741
  %v3232 = vunpack.c.l.b16 %v742
  %v3233 = vunpack.c.l.b16 %v743
  %v3234 = vunpack.c.l.b16 %v744
  %v3235 = vunpack.c.l.b16 %v745
  %v3236 = vunpack.c.l.b16 %v746
  %v3237 = vunpack.c.l.b16 %v747
  %v3238 = vunpack.c.l.b16 %v748
  %v3239 = vunpack.c.l.b16 %v749
  %v3240 = vunpack.c.l.b16 %v750
  %v3241 = vunpack.c.l.b16 %v751
  %v3242 = vunpack.c.l.b16 %v752
  %v3243 = vunpack.c.l.b16 %v753
  %v3244 = vunpack.c.l.b16 %v754
  %v3245 = vunpack.c.l.b16 %v755
  %v3246 = vunpack.c.l.b16 %v756
  %v3247 = vunpack.c.l.b16 %v757
  %v3248 = vunpack.c.l.b16 %v758
  %v3249 = vunpack.c.l.b16 %v759
  %v3250 = vunpack.c.l.b16 %v760
  %v3251 = vunpack.c.l.b16 %v761
  %v3252 = vunpack.c.l.b16 %v762
  %v3253 = vunpack.c.l.b16 %v763
  %v3254 = vunpack.c.l.b16 %v764
  %v3255 = vunpack.c.l.b16 %v765
  %v3256 = vunpack.c.l.b16 %v766
  %v3257 = vunpack.c.l.b16 %v767
  %v3258 = vunpack.c.l.b16 %v768
  %v3259 = vunpack.c.l.b16 %v769
  %v3260 = vunpack.c.l.b16 %v770
  %v3261 = vunpack.c.l.b16 %v771
  %v3262 = vunpack.c.l.b16 %v772
  %v3263 = vunpack.c.l.b16 %v773
  %v3264 = vunpack.c.l.b16 %v774
  %v3265 = vunpack.c.l.b16 %v775
  %v3266 = vunpack.c.l.b16 %v776
  %v3267 = vunpack.c.l.b16 %v777
  %v3268 = vunpack.c.l.b16 %v778
  %v3269 = vunpack.c.l.b16 %v779
  %v3270 = vunpack.c.l.b16 %v780
  %v3271 = vunpack.c.l.b16 %v781
  %v3272 = vunpack.c.l.b16 %v782
  %v3273 = vunpack.c.l.b16 %v783
  %v3274 = vunpack.c.l.b16 %v784
  %v3275 = vunpack.c.l.b16 %v785
  %v3276 = vunpack.c.l.b16 %v786
  %v3277 = vunpack.c.l.b16 %v787
  %v3278 = vunpack.c.l.b16 %v788
  %v3279 = vunpack.c.l.b16 %v789
  %v3280 = vunpack.c.l.b16 %v790
  %v3281 = vpack.c.b16 %v2818, %v2817
  %v3282 = vpack.c.b16 %v2820, %v2819
  %v3283 = vpack.c.b16 %v2822, %v2821
  %v3284 = vpack.c.b16 %v2824, %v2823
  %v3285 = vpack.c.b16 %v2826, %v2825
  %v3286 = vpack.c.b16 %v2828, %v2827
  %v3287 = vpack.c.b16 %v2830, %v2829
  %v3288 = vpack.c.b16 %v2832, %v2831
  %v3289 = vpack.c.b16 %v2834, %v2833
  %v3290 = vpack.c.b16 %v2836, %v2835
  %v3291 = vpack.c.b16 %v2838, %v2837
  %v3292 = vpack.c.b16 %v2840, %v2839
  %v3293 = vpack.c.b16 %v2842, %v2841
  %v3294 = vpack.c.b16 %v2844, %v2843
  %v3295 = vpack.c.b16 %v2846, %v2845
  %v3296 = vpack.c.b16 %v2848, %v2847
  %v3297 = vpack.c.b16 %v2850, %v2849
  %v3298 = vpack.c.b16 %v2852, %v2851
  %v3299 = vpack.c.b16 %v2854, %v2853
  %v3300 = vpack.c.b16 %v2856, %v2855
  %v3301 = vpack.c.b16 %v2858, %v2857
  %v3302 = vpack.c.b16 %v2860, %v2859
  %v3303 = vpack.c.b16 %v2862, %v2861
  %v3304 = vpack.c.b16 %v2864, %v2863
  %v3305 = vpack.c.b16 %v2866, %v2865
  %v3306 = vpack.c.b16 %v2868, %v2867
  %v3307 = vpack.c.b16 %v2870, %v2869
  %v3308 = vpack.c.b16 %v2872, %v2871
  %v3309 = vpack.c.b16 %v2874, %v2873
  %v3310 = vpack.c.b16 %v2876, %v2875
  %v3311 = vpack.c.b16 %v2878, %v2877
  %v3312 = vpack.c.b16 %v2880, %v2879
  %v3313 = vpack.c.b16 %v2882, %v2881
  %v3314 = vpack.c.b16 %v2884, %v2883
  %v3315 = vpack.c.b16 %v2886, %v2885
  %v3316 = vpack.c.b16 %v2888, %v2887
  %v3317 = vpack.c.b16 %v2890, %v2889
  %v3318 = vpack.c.b16 %v2892, %v2891
  %v3319 = vpack.c.b16 %v2894, %v2893
  %v3320 = vpack.c.b16 %v2896, %v2895
  %v3321 = vpack.c.b16 %v2898, %v2897
  %v3322 = vpack.c.b16 %v2900, %v2899
  %v3323 = vpack.c.b16 %v2902, %v2901
  %v3324 = vpack.c.b16 %v2904, %v2903
  %v3325 = vpack.c.b16 %v2906, %v2905
  %v3326 = vpack.c.b16 %v2908, %v2907
  %v3327 = vpack.c.b16 %v2910, %v2909
  %v3328 = vpack.c.b16 %v2912, %v2911
  %v3329 = vpack.c.b16 %v2914, %v2913
  %v3330 = vpack.c.b16 %v2916, %v2915
  %v3331 = vpack.c.b16 %v2918, %v2917
  %v3332 = vpack.c.b16 %v2920, %v2919
  %v3333 = vpack.c.b16 %v2922, %v2921
  %v3334 = vpack.c.b16 %v2924, %v2923
  %v3335 = vpack.c.b16 %v2926, %v2925
  %v3336 = vpack.c.b16 %v2928, %v2927
  %v3337 = vpack.c.b16 %v2930, %v2929
  %v3338 = vpack.c.b16 %v2932, %v2931
  %v3339 = vpack.c.b16 %v2934, %v2933
  %v3340 = vpack.c.b16 %v2936, %v2935
  %v3341 = vpack.c.b16 %v2938, %v2937
  %v3342 = vpack.c.b16 %v2940, %v2939
  %v3343 = vpack.c.b16 %v2942, %v2941
  %v3344 = vpack.c.b16 %v2944, %v2943
  %v3345 = vpack.c.b16 %v2946, %v2945
  %v3346 = vpack.c.b16 %v2948, %v2947
  %v3347 = vpack.c.b16 %v2950, %v2949
  %v3348 = vpack.c.b16 %v2952, %v2951
  %v3349 = vpack.c.b16 %v2954, %v2953
  %v3350 = vpack.c.b16 %v2956, %v2955
  %v3351 = vpack.c.b16 %v2958, %v2957
  %v3352 = vpack.c.b16 %v2960, %v2959
  %v3353 = vpack.c.b16 %v2962, %v2961
  %v3354 = vpack.c.b16 %v2964, %v2963
  %v3355 = vpack.c.b16 %v2966, %v2965
  %v3356 = vpack.c.b16 %v2968, %v2967
  %v3357 = vpack.c.b16 %v2970, %v2969
  %v3358 = vpack.c.b16 %v2972, %v2971
  %v3359 = vpack.c.b16 %v2974, %v2973
  %v3360 = vpack.c.b16 %v2976, %v2975
  %v3361 = vpack.c.b16 %v2978, %v2977
  %v3362 = vpack.c.b16 %v2980, %v2979
  %v3363 = vpack.c.b16 %v2982, %v2981
  %v3364 = vpack.c.b16 %v2984, %v2983
  %v3365 = vpack.c.b16 %v2986, %v2985
  %v3366 = vpack.c.b16 %v2988, %v2987
  %v3367 = vpack.c.b16 %v2990, %v2989
  %v3368 = vpack.c.b16 %v2992, %v2991
  %v3369 = vpack.c.b16 %v2994, %v2993
  %v3370 = vpack.c.b16 %v2996, %v2995
  %v3371 = vpack.c.b16 %v2998, %v2997
  %v3372 = vpack.c.b16 %v3000, %v2999
  %v3373 = vpack.c.b16 %v3002, %v3001
  %v3374 = vpack.c.b16 %v3004, %v3003
  %v3375 = vpack.c.b16 %v3006, %v3005
  %v3376 = vpack.c.b16 %v3008, %v3007
  %v3377 = vpack.c.b16 %v3010, %v3009
  %v3378 = vpack.c.b16 %v3012, %v3011
  %v3379 = vpack.c.b16 %v3014, %v3013
  %v3380 = vpack.c.b16 %v3016, %v3015
  %v3381 = vpack.c.b16 %v3018, %v3017
  %v3382 = vpack.c.b16 %v3020, %v3019
  %v3383 = vpack.c.b16 %v3022, %v3021
  %v3384 = vpack.c.b16 %v3024, %v3023
  %v3385 = vpack.c.b16 %v3026, %v3025
  %v3386 = vpack.c.b16 %v3028, %v3027
  %v3387 = vpack.c.b16 %v3030, %v3029
  %v3388 = vpack.c.b16 %v3032, %v3031
  %v3389 = vpack.c.b16 %v3034, %v3033
  %v3390 = vpack.c.b16 %v3036, %v3035
  %v3391 = vpack.c.b16 %v3038, %v3037
  %v3392 = vpack.c.b16 %v3040, %v3039
  %v3393 = vpack.c.b16 %v3042, %v3041
  %v3394 = vpack.c.b16 %v3044, %v3043
  %v3395 = vpack.c.b16 %v3046, %v3045
  %v3396 = vpack.c.b16 %v3048, %v3047
  %v3397 = vpack.c.b16 %v3050, %v3049
  %v3398 = vpack.c.b16 %v3052, %v3051
  %v3399 = vpack.c.b16 %v3054, %v3053
  %v3400 = vpack.c.b16 %v3056, %v3055
  %v3401 = vpack.c.b16 %v3058, %v3057
  %v3402 = vpack.c.b16 %v3060, %v3059
  %v3403 = vpack.c.b16 %v3062, %v3061
  %v3404 = vpack.c.b16 %v3064, %v3063
  %v3405 = vpack.c.b16 %v3066, %v3065
  %v3406 = vpack.c.b16 %v3068, %v3067
  %v3407 = vpack.c.b16 %v3070, %v3069
  %v3408 = vpack.c.b16 %v3072, %v3071
  %v3409 = vpack.c.b16 %v3074, %v3073
  %v3410 = vpack.c.b16 %v3076, %v3075
  %v3411 = vpack.c.b16 %v3078, %v3077
  %v3412 = vpack.c.b16 %v3080, %v3079
  %v3413 = vpack.c.b16 %v3082, %v3081
  %v3414 = vpack.c.b16 %v3084, %v3083
  %v3415 = vpack.c.b16 %v3086, %v3085
  %v3416 = vpack.c.b16 %v3088, %v3087
  %v3417 = vpack.c.b16 %v3090, %v3089
  %v3418 = vpack.c.b16 %v3092, %v3091
  %v3419 = vpack.c.b16 %v3094, %v3093
  %v3420 = vpack.c.b16 %v3096, %v3095
  %v3421 = vpack.c.b16 %v3098, %v3097
  %v3422 = vpack.c.b16 %v3100, %v3099
  %v3423 = vpack.c.b16 %v3102, %v3101
  %v3424 = vpack.c.b16 %v3104, %v3103
  %v3425 = vpack.c.b16 %v3106, %v3105
  %v3426 = vpack.c.b16 %v3108, %v3107
  %v3427 = vpack.c.b16 %v3110, %v3109
  %v3428 = vpack.c.b16 %v3112, %v3111
  %v3429 = vpack.c.b16 %v3114, %v3113
  %v3430 = vpack.c.b16 %v3116, %v3115
  %v3431 = vpack.c.b16 %v3118, %v3117
  %v3432 = vpack.c.b16 %v3120, %v3119
  %v3433 = vpack.c.b16 %v3122, %v3121
  %v3434 = vpack.c.b16 %v3124, %v3123
  %v3435 = vpack.c.b16 %v3126, %v3125
  %v3436 = vpack.c.b16 %v3128, %v3127
  %v3437 = vpack.c.b16 %v3130, %v3129
  %v3438 = vpack.c.b16 %v3132, %v3131
  %v3439 = vpack.c.b16 %v3134, %v3133
  %v3440 = vpack.c.b16 %v3136, %v3135
  %v3441 = vpack.c.b16 %v3138, %v3137
  %v3442 = vpack.c.b16 %v3140, %v3139
  %v3443 = vpack.c.b16 %v3142, %v3141
  %v3444 = vpack.c.b16 %v3144, %v3143
  %v3445 = vpack.c.b16 %v3146, %v3145
  %v3446 = vpack.c.b16 %v3148, %v3147
  %v3447 = vpack.c.b16 %v3150, %v3149
  %v3448 = vpack.c.b16 %v3152, %v3151
  %v3449 = vpack.c.b16 %v3154, %v3153
  %v3450 = vpack.c.b16 %v3156, %v3155
  %v3451 = vpack.c.b16 %v3158, %v3157
  %v3452 = vpack.c.b16 %v3160, %v3159
  %v3453 = vpack.c.b16 %v3162, %v3161
  %v3454 = vpack.c.b16 %v3164, %v3163
  %v3455 = vpack.c.b16 %v3166, %v3165
  %v3456 = vpack.c.b16 %v3168, %v3167
  %v3457 = vpack.c.b16 %v3170, %v3169
  %v3458 = vpack.c.b16 %v3172, %v3171
  %v3459 = vpack.c.b16 %v3174, %v3173
  %v3460 = vpack.c.b16 %v3176, %v3175
  %v3461 = vpack.c.b16 %v3178, %v3177
  %v3462 = vpack.c.b16 %v3180, %v3179
  %v3463 = vpack.c.b16 %v3182, %v3181
  %v3464 = vpack.c.b16 %v3184, %v3183
  %v3465 = vpack.c.b16 %v3186, %v3185
  %v3466 = vpack.c.b16 %v3188, %v3187
  %v3467 = vpack.c.b16 %v3190, %v3189
  %v3468 = vpack.c.b16 %v3192, %v3191
  %v3469 = vpack.c.b16 %v3194, %v3193
  %v3470 = vpack.c.b16 %v3196, %v3195
  %v3471 = vpack.c.b16 %v3198, %v3197
  %v3472 = vpack.c.b16 %v3200, %v3199
  %v3473 = vpack.c.b16 %v3202, %v3201
  %v3474 = vpack.c.b16 %v3204, %v3203
  %v3475 = vpack.c.b16 %v3206, %v3205
  %v3476 = vpack.c.b16 %v3208, %v3207
  %v3477 = vpack.c.b16 %v3210, %v3209
  %v3478 = vpack.c.b16 %v3212, %v3211
  %v3479 = vpack.c.b16 %v3214, %v3213
  %v3480 = vpack.c.b16 %v3216, %v3215
  %v3481 = vpack.c.b16 %v3218, %v3217
  %v3482 = vpack.c.b16 %v3220, %v3219
  %v3483 = vpack.c.b16 %v3222, %v3221
  %v3484 = vpack.c.b16 %v3224, %v3223
  %v3485 = vpack.c.b16 %v3226, %v3225
  %v3486 = vpack.c.b16 %v3228, %v3227
  %v3487 = vpack.c.b16 %v3230, %v3229
  %v3488 = vpack.c.b16 %v3232, %v3231
  %v3489 = vpack.c.b16 %v3234, %v3233
  %v3490 = vpack.c.b16 %v3236, %v3235
  %v3491 = vpack.c.b16 %v3238, %v3237
  %v3492 = vpack.c.b16 %v3240, %v3239
  %v3493 = vpack.c.b16 %v3242, %v3241
  %v3494 = vpack.c.b16 %v3244, %v3243
  %v3495 = vpack.c.b16 %v3246, %v3245
  %v3496 = vpack.c.b16 %v3248, %v3247
  %v3497 = vpack.c.b16 %v3250, %v3249
  %v3498 = vpack.c.b16 %v3252, %v3251
  %v3499 = vpack.c.b16 %v3254, %v3253
  %v3500 = vpack.c.b16 %v3256, %v3255
  %v3501 = vpack.c.b16 %v3258, %v3257
  %v3502 = vpack.c.b16 %v3260, %v3259
  %v3503 = vpack.c.b16 %v3262, %v3261
  %v3504 = vpack.c.b16 %v3264, %v3263
  %v3505 = vpack.c.b16 %v3266, %v3265
  %v3506 = vpack.c.b16 %v3268, %v3267
  %v3507 = vpack.c.b16 %v3270, %v3269
  %v3508 = vpack.c.b16 %v3272, %v3271
  %v3509 = vpack.c.b16 %v3274, %v3273
  %v3510 = vpack.c.b16 %v3276, %v3275
  %v3511 = vpack.c.b16 %v3278, %v3277
  %v3512 = vpack.c.b16 %v3280, %v3279
  %3745 = vmatprep.subr.bf16.mxu0 0
  %3746 = vmatpush1.bf16.msra.mxu0 %v3281
  %3747 = vmatprep.subr.bf16.mxu0 0
  %3748 = vmatpush1.bf16.msra.mxu0 %v3282
  %3749 = vmatprep.subr.bf16.mxu0 0
  %3750 = vmatpush1.bf16.msra.mxu0 %v3283
  %3751 = vmatprep.subr.bf16.mxu0 0
  %3752 = vmatpush1.bf16.msra.mxu0 %v3284
  %3753 = vmatprep.subr.bf16.mxu0 0
  %3754 = vmatpush1.bf16.msra.mxu0 %v3285
  %3755 = vmatprep.subr.bf16.mxu0 0
  %3756 = vmatpush1.bf16.msra.mxu0 %v3286
  %3757 = vmatprep.subr.bf16.mxu0 0
  %3758 = vmatpush1.bf16.msra.mxu0 %v3287
  %3759 = vmatprep.subr.bf16.mxu0 0
  %3760 = vmatpush1.bf16.msra.mxu0 %v3288
  %3761 = vmatprep.subr.bf16.mxu0 0
  %3762 = vmatpush1.bf16.msra.mxu0 %v3289
  %3763 = vmatprep.subr.bf16.mxu0 0
  %3764 = vmatpush1.bf16.msra.mxu0 %v3290
  %3765 = vmatprep.subr.bf16.mxu0 0
  %3766 = vmatpush1.bf16.msra.mxu0 %v3291
  %3767 = vmatprep.subr.bf16.mxu0 0
  %3768 = vmatpush1.bf16.msra.mxu0 %v3292
  %3769 = vmatprep.subr.bf16.mxu0 0
  %3770 = vmatpush1.bf16.msra.mxu0 %v3293
  %3771 = vmatprep.subr.bf16.mxu0 0
  %3772 = vmatpush1.bf16.msra.mxu0 %v3294
  %3773 = vmatprep.subr.bf16.mxu0 0
  %3774 = vmatpush1.bf16.msra.mxu0 %v3295
  %3775 = vmatprep.subr.bf16.mxu0 0
  %3776 = vmatpush1.bf16.msra.mxu0 %v3296
  %3777 = vmatprep.mubr.bf16.mxu0 %v1716
  %3778 = vmatmul.mubr.bf16.gmra.mrb[0].mxu0 %v1715
  %v3779 = vpop.f32.mrb[0].mxu0
  %v3780 = vadd.f32 0.0, %v3779
  %v3781 = vpop.f32.mrb[0].mxu0
  %v3782 = vpop.f32.mrb[0].mxu0
  %v3783 = vadd.f32 0.0, %v3782
  %v3784 = vpop.f32.mrb[0].mxu0
  %3785 = vmatprep.mubr.bf16.mxu0 %v1745
  %3786 = vmatmul.mubr.bf16.gmra.mrb[0].mxu0 %v1744
  %v3787 = vpop.f32.mrb[0].mxu0
  %v3788 = vadd.f32 0.0, %v3787
  %v3789 = vpop.f32.mrb[0].mxu0
  %v3790 = vpop.f32.mrb[0].mxu0
  %v3791 = vadd.f32 0.0, %v3790
  %v3792 = vpop.f32.mrb[0].mxu0
  %3793 = vmatprep.mubr.bf16.mxu0 %v1774
  %3794 = vmatmul.mubr.bf16.gmra.mrb[0].mxu0 %v1773
  %v3795 = vpop.f32.mrb[0].mxu0
  %v3796 = vadd.f32 0.0, %v3795
  %v3797 = vpop.f32.mrb[0].mxu0
  %v3798 = vpop.f32.mrb[0].mxu0
  %v3799 = vadd.f32 0.0, %v3798
  %v3800 = vpop.f32.mrb[0].mxu0
  %3801 = vmatprep.mubr.bf16.mxu0 %v1803
  %3802 = vmatmul.mubr.bf16.gmra.mrb[0].mxu0 %v1802
  %v3803 = vpop.f32.mrb[0].mxu0
  %v3804 = vadd.f32 0.0, %v3803
  %v3805 = vpop.f32.mrb[0].mxu0
  %v3806 = vpop.f32.mrb[0].mxu0
  %v3807 = vadd.f32 0.0, %v3806
  %v3808 = vpop.f32.mrb[0].mxu0
  %3809 = vmatprep.mubr.bf16.mxu0 %v1832
  %3810 = vmatmul.mubr.bf16.gmra.mrb[0].mxu0 %v1831
  %v3811 = vpop.f32.mrb[0].mxu0
  %v3812 = vadd.f32 0.0, %v3811
  %v3813 = vpop.f32.mrb[0].mxu0
  %v3814 = vpop.f32.mrb[0].mxu0
  %v3815 = vadd.f32 0.0, %v3814
  %v3816 = vpop.f32.mrb[0].mxu0
  %3817 = vmatprep.mubr.bf16.mxu0 %v1861
  %3818 = vmatmul.mubr.bf16.gmra.mrb[0].mxu0 %v1860
  %v3819 = vpop.f32.mrb[0].mxu0
  %v3820 = vadd.f32 0.0, %v3819
  %v3821 = vpop.f32.mrb[0].mxu0
  %v3822 = vpop.f32.mrb[0].mxu0
  %v3823 = vadd.f32 0.0, %v3822
  %v3824 = vpop.f32.mrb[0].mxu0
  %3825 = vmatprep.mubr.bf16.mxu0 %v1890
  %3826 = vmatmul.mubr.bf16.gmra.mrb[0].mxu0 %v1889
  %v3827 = vpop.f32.mrb[0].mxu0
  %v3828 = vadd.f32 0.0, %v3827
  %v3829 = vpop.f32.mrb[0].mxu0
  %v3830 = vpop.f32.mrb[0].mxu0
  %v3831 = vadd.f32 0.0, %v3830
  %v3832 = vpop.f32.mrb[0].mxu0
  %3833 = vmatprep.mubr.bf16.mxu0 %v1919
  %3834 = vmatmul.mubr.bf16.gmra.mrb[0].mxu0 %v1918
  %v3835 = vpop.f32.mrb[0].mxu0
  %v3836 = vadd.f32 0.0, %v3835
  %v3837 = vpop.f32.mrb[0].mxu0
  %v3838 = vpop.f32.mrb[0].mxu0
  %v3839 = vadd.f32 0.0, %v3838
  %v3840 = vpop.f32.mrb[0].mxu0
  %3841 = vmatprep.mubr.bf16.mxu0 %v1948
  %3842 = vmatmul.mubr.bf16.gmra.mrb[0].mxu0 %v1947
  %v3843 = vpop.f32.mrb[0].mxu0
  %v3844 = vadd.f32 0.0, %v3843
  %v3845 = vpop.f32.mrb[0].mxu0
  %v3846 = vpop.f32.mrb[0].mxu0
  %v3847 = vadd.f32 0.0, %v3846
  %v3848 = vpop.f32.mrb[0].mxu0
  %3849 = vmatprep.mubr.bf16.mxu0 %v1977
  %3850 = vmatmul.mubr.bf16.gmra.mrb[0].mxu0 %v1976
  %v3851 = vpop.f32.mrb[0].mxu0
  %v3852 = vadd.f32 0.0, %v3851
  %v3853 = vpop.f32.mrb[0].mxu0
  %v3854 = vpop.f32.mrb[0].mxu0
  %v3855 = vadd.f32 0.0, %v3854
  %v3856 = vpop.f32.mrb[0].mxu0
  %3857 = vmatprep.mubr.bf16.mxu0 %v2006
  %3858 = vmatmul.mubr.bf16.gmra.mrb[0].mxu0 %v2005
  %v3859 = vpop.f32.mrb[0].mxu0
  %v3860 = vadd.f32 0.0, %v3859
  %v3861 = vpop.f32.mrb[0].mxu0
  %v3862 = vpop.f32.mrb[0].mxu0
  %v3863 = vpop.f32.mrb[0].mxu0
  %3864 = vdwg.mxu0
  %3865 = vmatprep.subr.bf16.mxu0 0
  %3866 = vmatpush1.bf16.msra.mxu0 %v3297
  %3867 = vmatprep.subr.bf16.mxu0 0
  %3868 = vmatpush1.bf16.msra.mxu0 %v3298
  %3869 = vmatprep.subr.bf16.mxu0 0
  %3870 = vmatpush1.bf16.msra.mxu0 %v3299
  %3871 = vmatprep.subr.bf16.mxu0 0
  %3872 = vmatpush1.bf16.msra.mxu0 %v3300
  %3873 = vmatprep.subr.bf16.mxu0 0
  %3874 = vmatpush1.bf16.msra.mxu0 %v3301
  %3875 = vmatprep.subr.bf16.mxu0 0
  %3876 = vmatpush1.bf16.msra.mxu0 %v3302
  %3877 = vmatprep.subr.bf16.mxu0 0
  %3878 = vmatpush1.bf16.msra.mxu0 %v3303
  %3879 = vmatprep.subr.bf16.mxu0 0
  %3880 = vmatpush1.bf16.msra.mxu0 %v3304
  %3881 = vmatprep.subr.bf16.mxu0 0
  %3882 = vmatpush1.bf16.msra.mxu0 %v3305
  %3883 = vmatprep.subr.bf16.mxu0 0
  %3884 = vmatpush1.bf16.msra.mxu0 %v3306
  %3885 = vmatprep.subr.bf16.mxu0 0
  %3886 = vmatpush1.bf16.msra.mxu0 %v3307
  %3887 = vmatprep.subr.bf16.mxu0 0
  %3888 = vmatpush1.bf16.msra.mxu0 %v3308
  %3889 = vmatprep.subr.bf16.mxu0 0
  %3890 = vmatpush1.bf16.msra.mxu0 %v3309
  %3891 = vmatprep.subr.bf16.mxu0 0
  %3892 = vmatpush1.bf16.msra.mxu0 %v3310
  %3893 = vmatprep.subr.bf16.mxu0 0
  %3894 = vmatpush1.bf16.msra.mxu0 %v3311
  %3895 = vmatprep.subr.bf16.mxu0 0
  %3896 = vmatpush1.bf16.msra.mxu0 %v3312
  %3897 = vmatprep.mubr.bf16.mxu0 %v1718
  %3898 = vmatmul.mubr.bf16.gmra.mrb[0].mxu0 %v1717
  %v3899 = vpop.f32.mrb[0].mxu0
  %v3900 = vadd.f32 %v3780, %v3899
  %v3901 = vpop.f32.mrb[0].mxu0
  %v3902 = vpop.f32.mrb[0].mxu0
  %v3903 = vadd.f32 %v3783, %v3902
  %v3904 = vpop.f32.mrb[0].mxu0
  %3905 = vmatprep.mubr.bf16.mxu0 %v1747
  %3906 = vmatmul.mubr.bf16.gmra.mrb[0].mxu0 %v1746
  %v3907 = vpop.f32.mrb[0].mxu0
  %v3908 = vadd.f32 %v3788, %v3907
  %v3909 = vpop.f32.mrb[0].mxu0
  %v3910 = vpop.f32.mrb[0].mxu0
  %v3911 = vadd.f32 %v3791, %v3910
  %v3912 = vpop.f32.mrb[0].mxu0
  %3913 = vmatprep.mubr.bf16.mxu0 %v1776
  %3914 = vmatmul.mubr.bf16.gmra.mrb[0].mxu0 %v1775
  %v3915 = vpop.f32.mrb[0].mxu0
  %v3916 = vadd.f32 %v3796, %v3915
  %v3917 = vpop.f32.mrb[0].mxu0
  %v3918 = vpop.f32.mrb[0].mxu0
  %v3919 = vadd.f32 %v3799, %v3918
  %v3920 = vpop.f32.mrb[0].mxu0
  %3921 = vmatprep.mubr.bf16.mxu0 %v1805
  %3922 = vmatmul.mubr.bf16.gmra.mrb[0].mxu0 %v1804
  %v3923 = vpop.f32.mrb[0].mxu0
  %v3924 = vadd.f32 %v3804, %v3923
  %v3925 = vpop.f32.mrb[0].mxu0
  %v3926 = vpop.f32.mrb[0].mxu0
  %v3927 = vadd.f32 %v3807, %v3926
  %v3928 = vpop.f32.mrb[0].mxu0
  %3929 = vmatprep.mubr.bf16.mxu0 %v1834
  %3930 = vmatmul.mubr.bf16.gmra.mrb[0].mxu0 %v1833
  %v3931 = vpop.f32.mrb[0].mxu0
  %v3932 = vadd.f32 %v3812, %v3931
  %v3933 = vpop.f32.mrb[0].mxu0
  %v3934 = vpop.f32.mrb[0].mxu0
  %v3935 = vadd.f32 %v3815, %v3934
  %v3936 = vpop.f32.mrb[0].mxu0
  %3937 = vmatprep.mubr.bf16.mxu0 %v1863
  %3938 = vmatmul.mubr.bf16.gmra.mrb[0].mxu0 %v1862
  %v3939 = vpop.f32.mrb[0].mxu0
  %v3940 = vadd.f32 %v3820, %v3939
  %v3941 = vpop.f32.mrb[0].mxu0
  %v3942 = vpop.f32.mrb[0].mxu0
  %v3943 = vadd.f32 %v3823, %v3942
  %v3944 = vpop.f32.mrb[0].mxu0
  %3945 = vmatprep.mubr.bf16.mxu0 %v1892
  %3946 = vmatmul.mubr.bf16.gmra.mrb[0].mxu0 %v1891
  %v3947 = vpop.f32.mrb[0].mxu0
  %v3948 = vadd.f32 %v3828, %v3947
  %v3949 = vpop.f32.mrb[0].mxu0
  %v3950 = vpop.f32.mrb[0].mxu0
  %v3951 = vadd.f32 %v3831, %v3950
  %v3952 = vpop.f32.mrb[0].mxu0
  %3953 = vmatprep.mubr.bf16.mxu0 %v1921
  %3954 = vmatmul.mubr.bf16.gmra.mrb[0].mxu0 %v1920
  %v3955 = vpop.f32.mrb[0].mxu0
  %v3956 = vadd.f32 %v3836, %v3955
  %v3957 = vpop.f32.mrb[0].mxu0
  %v3958 = vpop.f32.mrb[0].mxu0
  %v3959 = vadd.f32 %v3839, %v3958
  %v3960 = vpop.f32.mrb[0].mxu0
  %3961 = vmatprep.mubr.bf16.mxu0 %v1950
  %3962 = vmatmul.mubr.bf16.gmra.mrb[0].mxu0 %v1949
  %v3963 = vpop.f32.mrb[0].mxu0
  %v3964 = vadd.f32 %v3844, %v3963
  %v3965 = vpop.f32.mrb[0].mxu0
  %v3966 = vpop.f32.mrb[0].mxu0
  %v3967 = vadd.f32 %v3847, %v3966
  %v3968 = vpop.f32.mrb[0].mxu0
  %3969 = vmatprep.mubr.bf16.mxu0 %v1979
  %3970 = vmatmul.mubr.bf16.gmra.mrb[0].mxu0 %v1978
  %v3971 = vpop.f32.mrb[0].mxu0
  %v3972 = vadd.f32 %v3852, %v3971
  %v3973 = vpop.f32.mrb[0].mxu0
  %v3974 = vpop.f32.mrb[0].mxu0
  %v3975 = vadd.f32 %v3855, %v3974
  %v3976 = vpop.f32.mrb[0].mxu0
  %3977 = vmatprep.mubr.bf16.mxu0 %v2008
  %3978 = vmatmul.mubr.bf16.gmra.mrb[0].mxu0 %v2007
  %v3979 = vpop.f32.mrb[0].mxu0
  %v3980 = vadd.f32 %v3860, %v3979
  %v3981 = vpop.f32.mrb[0].mxu0
  %v3982 = vpop.f32.mrb[0].mxu0
  %v3983 = vpop.f32.mrb[0].mxu0
  %3984 = vdwg.mxu0
  %3985 = vmatprep.subr.bf16.mxu0 0
  %3986 = vmatpush1.bf16.msra.mxu0 %v3313
  %3987 = vmatprep.subr.bf16.mxu0 0
  %3988 = vmatpush1.bf16.msra.mxu0 %v3314
  %3989 = vmatprep.subr.bf16.mxu0 0
  %3990 = vmatpush1.bf16.msra.mxu0 %v3315
  %3991 = vmatprep.subr.bf16.mxu0 0
  %3992 = vmatpush1.bf16.msra.mxu0 %v3316
  %3993 = vmatprep.subr.bf16.mxu0 0
  %3994 = vmatpush1.bf16.msra.mxu0 %v3317
  %3995 = vmatprep.subr.bf16.mxu0 0
  %3996 = vmatpush1.bf16.msra.mxu0 %v3318
  %3997 = vmatprep.subr.bf16.mxu0 0
  %3998 = vmatpush1.bf16.msra.mxu0 %v3319
  %3999 = vmatprep.subr.bf16.mxu0 0
  %4000 = vmatpush1.bf16.msra.mxu0 %v3320
  %4001 = vmatprep.subr.bf16.mxu0 0
  %4002 = vmatpush1.bf16.msra.mxu0 %v3321
  %4003 = vmatprep.subr.bf16.mxu0 0
  %4004 = vmatpush1.bf16.msra.mxu0 %v3322
  %4005 = vmatprep.subr.bf16.mxu0 0
  %4006 = vmatpush1.bf16.msra.mxu0 %v3323
  %4007 = vmatprep.subr.bf16.mxu0 0
  %4008 = vmatpush1.bf16.msra.mxu0 %v3324
  %4009 = vmatprep.subr.bf16.mxu0 0
  %4010 = vmatpush1.bf16.msra.mxu0 %v3325
  %4011 = vmatprep.subr.bf16.mxu0 0
  %4012 = vmatpush1.bf16.msra.mxu0 %v3326
  %4013 = vmatprep.subr.bf16.mxu0 0
  %4014 = vmatpush1.bf16.msra.mxu0 %v3327
  %4015 = vmatprep.subr.bf16.mxu0 0
  %4016 = vmatpush1.bf16.msra.mxu0 %v3328
  %4017 = vmatprep.mubr.bf16.mxu0 %v1720
  %4018 = vmatmul.mubr.bf16.gmra.mrb[0].mxu0 %v1719
  %v4019 = vpop.f32.mrb[0].mxu0
  %v4020 = vadd.f32 %v3900, %v4019
  %v4021 = vpop.f32.mrb[0].mxu0
  %v4022 = vpop.f32.mrb[0].mxu0
  %v4023 = vadd.f32 %v3903, %v4022
  %v4024 = vpop.f32.mrb[0].mxu0
  %4025 = vmatprep.mubr.bf16.mxu0 %v1749
  %4026 = vmatmul.mubr.bf16.gmra.mrb[0].mxu0 %v1748
  %v4027 = vpop.f32.mrb[0].mxu0
  %v4028 = vadd.f32 %v3908, %v4027
  %v4029 = vpop.f32.mrb[0].mxu0
  %v4030 = vpop.f32.mrb[0].mxu0
  %v4031 = vadd.f32 %v3911, %v4030
  %v4032 = vpop.f32.mrb[0].mxu0
  %4033 = vmatprep.mubr.bf16.mxu0 %v1778
  %4034 = vmatmul.mubr.bf16.gmra.mrb[0].mxu0 %v1777
  %v4035 = vpop.f32.mrb[0].mxu0
  %v4036 = vadd.f32 %v3916, %v4035
  %v4037 = vpop.f32.mrb[0].mxu0
  %v4038 = vpop.f32.mrb[0].mxu0
  %v4039 = vadd.f32 %v3919, %v4038
  %v4040 = vpop.f32.mrb[0].mxu0
  %4041 = vmatprep.mubr.bf16.mxu0 %v1807
  %4042 = vmatmul.mubr.bf16.gmra.mrb[0].mxu0 %v1806
  %v4043 = vpop.f32.mrb[0].mxu0
  %v4044 = vadd.f32 %v3924, %v4043
  %v4045 = vpop.f32.mrb[0].mxu0
  %v4046 = vpop.f32.mrb[0].mxu0
  %v4047 = vadd.f32 %v3927, %v4046
  %v4048 = vpop.f32.mrb[0].mxu0
  %4049 = vmatprep.mubr.bf16.mxu0 %v1836
  %4050 = vmatmul.mubr.bf16.gmra.mrb[0].mxu0 %v1835
  %v4051 = vpop.f32.mrb[0].mxu0
  %v4052 = vadd.f32 %v3932, %v4051
  %v4053 = vpop.f32.mrb[0].mxu0
  %v4054 = vpop.f32.mrb[0].mxu0
  %v4055 = vadd.f32 %v3935, %v4054
  %v4056 = vpop.f32.mrb[0].mxu0
  %4057 = vmatprep.mubr.bf16.mxu0 %v1865
  %4058 = vmatmul.mubr.bf16.gmra.mrb[0].mxu0 %v1864
  %v4059 = vpop.f32.mrb[0].mxu0
  %v4060 = vadd.f32 %v3940, %v4059
  %v4061 = vpop.f32.mrb[0].mxu0
  %v4062 = vpop.f32.mrb[0].mxu0
  %v4063 = vadd.f32 %v3943, %v4062
  %v4064 = vpop.f32.mrb[0].mxu0
  %4065 = vmatprep.mubr.bf16.mxu0 %v1894
  %4066 = vmatmul.mubr.bf16.gmra.mrb[0].mxu0 %v1893
  %v4067 = vpop.f32.mrb[0].mxu0
  %v4068 = vadd.f32 %v3948, %v4067
  %v4069 = vpop.f32.mrb[0].mxu0
  %v4070 = vpop.f32.mrb[0].mxu0
  %v4071 = vadd.f32 %v3951, %v4070
  %v4072 = vpop.f32.mrb[0].mxu0
  %4073 = vmatprep.mubr.bf16.mxu0 %v1923
  %4074 = vmatmul.mubr.bf16.gmra.mrb[0].mxu0 %v1922
  %v4075 = vpop.f32.mrb[0].mxu0
  %v4076 = vadd.f32 %v3956, %v4075
  %v4077 = vpop.f32.mrb[0].mxu0
  %v4078 = vpop.f32.mrb[0].mxu0
  %v4079 = vadd.f32 %v3959, %v4078
  %v4080 = vpop.f32.mrb[0].mxu0
  %4081 = vmatprep.mubr.bf16.mxu0 %v1952
  %4082 = vmatmul.mubr.bf16.gmra.mrb[0].mxu0 %v1951
  %v4083 = vpop.f32.mrb[0].mxu0
  %v4084 = vadd.f32 %v3964, %v4083
  %v4085 = vpop.f32.mrb[0].mxu0
  %v4086 = vpop.f32.mrb[0].mxu0
  %v4087 = vadd.f32 %v3967, %v4086
  %v4088 = vpop.f32.mrb[0].mxu0
  %4089 = vmatprep.mubr.bf16.mxu0 %v1981
  %4090 = vmatmul.mubr.bf16.gmra.mrb[0].mxu0 %v1980
  %v4091 = vpop.f32.mrb[0].mxu0
  %v4092 = vadd.f32 %v3972, %v4091
  %v4093 = vpop.f32.mrb[0].mxu0
  %v4094 = vpop.f32.mrb[0].mxu0
  %v4095 = vadd.f32 %v3975, %v4094
  %v4096 = vpop.f32.mrb[0].mxu0
  %4097 = vmatprep.mubr.bf16.mxu0 %v2010
  %4098 = vmatmul.mubr.bf16.gmra.mrb[0].mxu0 %v2009
  %v4099 = vpop.f32.mrb[0].mxu0
  %v4100 = vadd.f32 %v3980, %v4099
  %v4101 = vpop.f32.mrb[0].mxu0
  %v4102 = vpop.f32.mrb[0].mxu0
  %v4103 = vpop.f32.mrb[0].mxu0
  %4104 = vdwg.mxu0
  %4105 = vmatprep.subr.bf16.mxu0 0
  %4106 = vmatpush1.bf16.msra.mxu0 %v3329
  %4107 = vmatprep.subr.bf16.mxu0 0
  %4108 = vmatpush1.bf16.msra.mxu0 %v3330
  %4109 = vmatprep.subr.bf16.mxu0 0
  %4110 = vmatpush1.bf16.msra.mxu0 %v3331
  %4111 = vmatprep.subr.bf16.mxu0 0
  %4112 = vmatpush1.bf16.msra.mxu0 %v3332
  %4113 = vmatprep.subr.bf16.mxu0 0
  %4114 = vmatpush1.bf16.msra.mxu0 %v3333
  %4115 = vmatprep.subr.bf16.mxu0 0
  %4116 = vmatpush1.bf16.msra.mxu0 %v3334
  %4117 = vmatprep.subr.bf16.mxu0 0
  %4118 = vmatpush1.bf16.msra.mxu0 %v3335
  %4119 = vmatprep.subr.bf16.mxu0 0
  %4120 = vmatpush1.bf16.msra.mxu0 %v3336
  %4121 = vmatprep.subr.bf16.mxu0 0
  %4122 = vmatpush1.bf16.msra.mxu0 %v3337
  %4123 = vmatprep.subr.bf16.mxu0 0
  %4124 = vmatpush1.bf16.msra.mxu0 %v3338
  %4125 = vmatprep.subr.bf16.mxu0 0
  %4126 = vmatpush1.bf16.msra.mxu0 %v3339
  %4127 = vmatprep.subr.bf16.mxu0 0
  %4128 = vmatpush1.bf16.msra.mxu0 %v3340
  %4129 = vmatprep.subr.bf16.mxu0 0
  %4130 = vmatpush1.bf16.msra.mxu0 %v3341
  %4131 = vmatprep.subr.bf16.mxu0 0
  %4132 = vmatpush1.bf16.msra.mxu0 %v3342
  %4133 = vmatprep.subr.bf16.mxu0 0
  %4134 = vmatpush1.bf16.msra.mxu0 %v3343
  %4135 = vmatprep.subr.bf16.mxu0 0
  %4136 = vmatpush1.bf16.msra.mxu0 %v3344
  %4137 = vmatprep.mubr.bf16.mxu0 %v1722
  %4138 = vmatmul.mubr.bf16.gmra.mrb[0].mxu0 %v1721
  %v4139 = vpop.f32.mrb[0].mxu0
  %v4140 = vadd.f32 %v4020, %v4139
  %v4141 = vpop.f32.mrb[0].mxu0
  %v4142 = vpop.f32.mrb[0].mxu0
  %v4143 = vadd.f32 %v4023, %v4142
  %v4144 = vpop.f32.mrb[0].mxu0
  %4145 = vmatprep.mubr.bf16.mxu0 %v1751
  %4146 = vmatmul.mubr.bf16.gmra.mrb[0].mxu0 %v1750
  %v4147 = vpop.f32.mrb[0].mxu0
  %v4148 = vadd.f32 %v4028, %v4147
  %v4149 = vpop.f32.mrb[0].mxu0
  %v4150 = vpop.f32.mrb[0].mxu0
  %v4151 = vadd.f32 %v4031, %v4150
  %v4152 = vpop.f32.mrb[0].mxu0
  %4153 = vmatprep.mubr.bf16.mxu0 %v1780
  %4154 = vmatmul.mubr.bf16.gmra.mrb[0].mxu0 %v1779
  %v4155 = vpop.f32.mrb[0].mxu0
  %v4156 = vadd.f32 %v4036, %v4155
  %v4157 = vpop.f32.mrb[0].mxu0
  %v4158 = vpop.f32.mrb[0].mxu0
  %v4159 = vadd.f32 %v4039, %v4158
  %v4160 = vpop.f32.mrb[0].mxu0
  %4161 = vmatprep.mubr.bf16.mxu0 %v1809
  %4162 = vmatmul.mubr.bf16.gmra.mrb[0].mxu0 %v1808
  %v4163 = vpop.f32.mrb[0].mxu0
  %v4164 = vadd.f32 %v4044, %v4163
  %v4165 = vpop.f32.mrb[0].mxu0
  %v4166 = vpop.f32.mrb[0].mxu0
  %v4167 = vadd.f32 %v4047, %v4166
  %v4168 = vpop.f32.mrb[0].mxu0
  %4169 = vmatprep.mubr.bf16.mxu0 %v1838
  %4170 = vmatmul.mubr.bf16.gmra.mrb[0].mxu0 %v1837
  %v4171 = vpop.f32.mrb[0].mxu0
  %v4172 = vadd.f32 %v4052, %v4171
  %v4173 = vpop.f32.mrb[0].mxu0
  %v4174 = vpop.f32.mrb[0].mxu0
  %v4175 = vadd.f32 %v4055, %v4174
  %v4176 = vpop.f32.mrb[0].mxu0
  %4177 = vmatprep.mubr.bf16.mxu0 %v1867
  %4178 = vmatmul.mubr.bf16.gmra.mrb[0].mxu0 %v1866
  %v4179 = vpop.f32.mrb[0].mxu0
  %v4180 = vadd.f32 %v4060, %v4179
  %v4181 = vpop.f32.mrb[0].mxu0
  %v4182 = vpop.f32.mrb[0].mxu0
  %v4183 = vadd.f32 %v4063, %v4182
  %v4184 = vpop.f32.mrb[0].mxu0
  %4185 = vmatprep.mubr.bf16.mxu0 %v1896
  %4186 = vmatmul.mubr.bf16.gmra.mrb[0].mxu0 %v1895
  %v4187 = vpop.f32.mrb[0].mxu0
  %v4188 = vadd.f32 %v4068, %v4187
  %v4189 = vpop.f32.mrb[0].mxu0
  %v4190 = vpop.f32.mrb[0].mxu0
  %v4191 = vadd.f32 %v4071, %v4190
  %v4192 = vpop.f32.mrb[0].mxu0
  %4193 = vmatprep.mubr.bf16.mxu0 %v1925
  %4194 = vmatmul.mubr.bf16.gmra.mrb[0].mxu0 %v1924
  %v4195 = vpop.f32.mrb[0].mxu0
  %v4196 = vadd.f32 %v4076, %v4195
  %v4197 = vpop.f32.mrb[0].mxu0
  %v4198 = vpop.f32.mrb[0].mxu0
  %v4199 = vadd.f32 %v4079, %v4198
  %v4200 = vpop.f32.mrb[0].mxu0
  %4201 = vmatprep.mubr.bf16.mxu0 %v1954
  %4202 = vmatmul.mubr.bf16.gmra.mrb[0].mxu0 %v1953
  %v4203 = vpop.f32.mrb[0].mxu0
  %v4204 = vadd.f32 %v4084, %v4203
  %v4205 = vpop.f32.mrb[0].mxu0
  %v4206 = vpop.f32.mrb[0].mxu0
  %v4207 = vadd.f32 %v4087, %v4206
  %v4208 = vpop.f32.mrb[0].mxu0
  %4209 = vmatprep.mubr.bf16.mxu0 %v1983
  %4210 = vmatmul.mubr.bf16.gmra.mrb[0].mxu0 %v1982
  %v4211 = vpop.f32.mrb[0].mxu0
  %v4212 = vadd.f32 %v4092, %v4211
  %v4213 = vpop.f32.mrb[0].mxu0
  %v4214 = vpop.f32.mrb[0].mxu0
  %v4215 = vadd.f32 %v4095, %v4214
  %v4216 = vpop.f32.mrb[0].mxu0
  %4217 = vmatprep.mubr.bf16.mxu0 %v2012
  %4218 = vmatmul.mubr.bf16.gmra.mrb[0].mxu0 %v2011
  %v4219 = vpop.f32.mrb[0].mxu0
  %v4220 = vadd.f32 %v4100, %v4219
  %v4221 = vpop.f32.mrb[0].mxu0
  %v4222 = vpop.f32.mrb[0].mxu0
  %v4223 = vpop.f32.mrb[0].mxu0
  %4224 = vdwg.mxu0
  %4225 = vmatprep.subr.bf16.mxu0 0
  %4226 = vmatpush1.bf16.msra.mxu0 %v3345
  %4227 = vmatprep.subr.bf16.mxu0 0
  %4228 = vmatpush1.bf16.msra.mxu0 %v3346
  %4229 = vmatprep.subr.bf16.mxu0 0
  %4230 = vmatpush1.bf16.msra.mxu0 %v3347
  %4231 = vmatprep.subr.bf16.mxu0 0
  %4232 = vmatpush1.bf16.msra.mxu0 %v3348
  %4233 = vmatprep.subr.bf16.mxu0 0
  %4234 = vmatpush1.bf16.msra.mxu0 %v3349
  %4235 = vmatprep.subr.bf16.mxu0 0
  %4236 = vmatpush1.bf16.msra.mxu0 %v3350
  %4237 = vmatprep.subr.bf16.mxu0 0
  %4238 = vmatpush1.bf16.msra.mxu0 %v3351
  %4239 = vmatprep.subr.bf16.mxu0 0
  %4240 = vmatpush1.bf16.msra.mxu0 %v3352
  %4241 = vmatprep.subr.bf16.mxu0 0
  %4242 = vmatpush1.bf16.msra.mxu0 %v3353
  %4243 = vmatprep.subr.bf16.mxu0 0
  %4244 = vmatpush1.bf16.msra.mxu0 %v3354
  %4245 = vmatprep.subr.bf16.mxu0 0
  %4246 = vmatpush1.bf16.msra.mxu0 %v3355
  %4247 = vmatprep.subr.bf16.mxu0 0
  %4248 = vmatpush1.bf16.msra.mxu0 %v3356
  %4249 = vmatprep.subr.bf16.mxu0 0
  %4250 = vmatpush1.bf16.msra.mxu0 %v3357
  %4251 = vmatprep.subr.bf16.mxu0 0
  %4252 = vmatpush1.bf16.msra.mxu0 %v3358
  %4253 = vmatprep.subr.bf16.mxu0 0
  %4254 = vmatpush1.bf16.msra.mxu0 %v3359
  %4255 = vmatprep.subr.bf16.mxu0 0
  %4256 = vmatpush1.bf16.msra.mxu0 %v3360
  %4257 = vmatprep.mubr.bf16.mxu0 %v1724
  %4258 = vmatmul.mubr.bf16.gmra.mrb[0].mxu0 %v1723
  %v4259 = vpop.f32.mrb[0].mxu0
  %v4260 = vadd.f32 %v4140, %v4259
  %v4261 = vpop.f32.mrb[0].mxu0
  %v4262 = vpop.f32.mrb[0].mxu0
  %v4263 = vadd.f32 %v4143, %v4262
  %v4264 = vpop.f32.mrb[0].mxu0
  %4265 = vmatprep.mubr.bf16.mxu0 %v1753
  %4266 = vmatmul.mubr.bf16.gmra.mrb[0].mxu0 %v1752
  %v4267 = vpop.f32.mrb[0].mxu0
  %v4268 = vadd.f32 %v4148, %v4267
  %v4269 = vpop.f32.mrb[0].mxu0
  %v4270 = vpop.f32.mrb[0].mxu0
  %v4271 = vadd.f32 %v4151, %v4270
  %v4272 = vpop.f32.mrb[0].mxu0
  %4273 = vmatprep.mubr.bf16.mxu0 %v1782
  %4274 = vmatmul.mubr.bf16.gmra.mrb[0].mxu0 %v1781
  %v4275 = vpop.f32.mrb[0].mxu0
  %v4276 = vadd.f32 %v4156, %v4275
  %v4277 = vpop.f32.mrb[0].mxu0
  %v4278 = vpop.f32.mrb[0].mxu0
  %v4279 = vadd.f32 %v4159, %v4278
  %v4280 = vpop.f32.mrb[0].mxu0
  %4281 = vmatprep.mubr.bf16.mxu0 %v1811
  %4282 = vmatmul.mubr.bf16.gmra.mrb[0].mxu0 %v1810
  %v4283 = vpop.f32.mrb[0].mxu0
  %v4284 = vadd.f32 %v4164, %v4283
  %v4285 = vpop.f32.mrb[0].mxu0
  %v4286 = vpop.f32.mrb[0].mxu0
  %v4287 = vadd.f32 %v4167, %v4286
  %v4288 = vpop.f32.mrb[0].mxu0
  %4289 = vmatprep.mubr.bf16.mxu0 %v1840
  %4290 = vmatmul.mubr.bf16.gmra.mrb[0].mxu0 %v1839
  %v4291 = vpop.f32.mrb[0].mxu0
  %v4292 = vadd.f32 %v4172, %v4291
  %v4293 = vpop.f32.mrb[0].mxu0
  %v4294 = vpop.f32.mrb[0].mxu0
  %v4295 = vadd.f32 %v4175, %v4294
  %v4296 = vpop.f32.mrb[0].mxu0
  %4297 = vmatprep.mubr.bf16.mxu0 %v1869
  %4298 = vmatmul.mubr.bf16.gmra.mrb[0].mxu0 %v1868
  %v4299 = vpop.f32.mrb[0].mxu0
  %v4300 = vadd.f32 %v4180, %v4299
  %v4301 = vpop.f32.mrb[0].mxu0
  %v4302 = vpop.f32.mrb[0].mxu0
  %v4303 = vadd.f32 %v4183, %v4302
  %v4304 = vpop.f32.mrb[0].mxu0
  %4305 = vmatprep.mubr.bf16.mxu0 %v1898
  %4306 = vmatmul.mubr.bf16.gmra.mrb[0].mxu0 %v1897
  %v4307 = vpop.f32.mrb[0].mxu0
  %v4308 = vadd.f32 %v4188, %v4307
  %v4309 = vpop.f32.mrb[0].mxu0
  %v4310 = vpop.f32.mrb[0].mxu0
  %v4311 = vadd.f32 %v4191, %v4310
  %v4312 = vpop.f32.mrb[0].mxu0
  %4313 = vmatprep.mubr.bf16.mxu0 %v1927
  %4314 = vmatmul.mubr.bf16.gmra.mrb[0].mxu0 %v1926
  %v4315 = vpop.f32.mrb[0].mxu0
  %v4316 = vadd.f32 %v4196, %v4315
  %v4317 = vpop.f32.mrb[0].mxu0
  %v4318 = vpop.f32.mrb[0].mxu0
  %v4319 = vadd.f32 %v4199, %v4318
  %v4320 = vpop.f32.mrb[0].mxu0
  %4321 = vmatprep.mubr.bf16.mxu0 %v1956
  %4322 = vmatmul.mubr.bf16.gmra.mrb[0].mxu0 %v1955
  %v4323 = vpop.f32.mrb[0].mxu0
  %v4324 = vadd.f32 %v4204, %v4323
  %v4325 = vpop.f32.mrb[0].mxu0
  %v4326 = vpop.f32.mrb[0].mxu0
  %v4327 = vadd.f32 %v4207, %v4326
  %v4328 = vpop.f32.mrb[0].mxu0
  %4329 = vmatprep.mubr.bf16.mxu0 %v1985
  %4330 = vmatmul.mubr.bf16.gmra.mrb[0].mxu0 %v1984
  %v4331 = vpop.f32.mrb[0].mxu0
  %v4332 = vadd.f32 %v4212, %v4331
  %v4333 = vpop.f32.mrb[0].mxu0
  %v4334 = vpop.f32.mrb[0].mxu0
  %v4335 = vadd.f32 %v4215, %v4334
  %v4336 = vpop.f32.mrb[0].mxu0
  %4337 = vmatprep.mubr.bf16.mxu0 %v2014
  %4338 = vmatmul.mubr.bf16.gmra.mrb[0].mxu0 %v2013
  %v4339 = vpop.f32.mrb[0].mxu0
  %v4340 = vadd.f32 %v4220, %v4339
  %v4341 = vpop.f32.mrb[0].mxu0
  %v4342 = vpop.f32.mrb[0].mxu0
  %v4343 = vpop.f32.mrb[0].mxu0
  %4344 = vdwg.mxu0
  %4345 = vmatprep.subr.bf16.mxu0 0
  %4346 = vmatpush1.bf16.msra.mxu0 %v3361
  %4347 = vmatprep.subr.bf16.mxu0 0
  %4348 = vmatpush1.bf16.msra.mxu0 %v3362
  %4349 = vmatprep.subr.bf16.mxu0 0
  %4350 = vmatpush1.bf16.msra.mxu0 %v3363
  %4351 = vmatprep.subr.bf16.mxu0 0
  %4352 = vmatpush1.bf16.msra.mxu0 %v3364
  %4353 = vmatprep.subr.bf16.mxu0 0
  %4354 = vmatpush1.bf16.msra.mxu0 %v3365
  %4355 = vmatprep.subr.bf16.mxu0 0
  %4356 = vmatpush1.bf16.msra.mxu0 %v3366
  %4357 = vmatprep.subr.bf16.mxu0 0
  %4358 = vmatpush1.bf16.msra.mxu0 %v3367
  %4359 = vmatprep.subr.bf16.mxu0 0
  %4360 = vmatpush1.bf16.msra.mxu0 %v3368
  %4361 = vmatprep.subr.bf16.mxu0 0
  %4362 = vmatpush1.bf16.msra.mxu0 %v3369
  %4363 = vmatprep.subr.bf16.mxu0 0
  %4364 = vmatpush1.bf16.msra.mxu0 %v3370
  %4365 = vmatprep.subr.bf16.mxu0 0
  %4366 = vmatpush1.bf16.msra.mxu0 %v3371
  %4367 = vmatprep.subr.bf16.mxu0 0
  %4368 = vmatpush1.bf16.msra.mxu0 %v3372
  %4369 = vmatprep.subr.bf16.mxu0 0
  %4370 = vmatpush1.bf16.msra.mxu0 %v3373
  %4371 = vmatprep.subr.bf16.mxu0 0
  %4372 = vmatpush1.bf16.msra.mxu0 %v3374
  %4373 = vmatprep.subr.bf16.mxu0 0
  %4374 = vmatpush1.bf16.msra.mxu0 %v3375
  %4375 = vmatprep.subr.bf16.mxu0 0
  %4376 = vmatpush1.bf16.msra.mxu0 %v3376
  %4377 = vmatprep.mubr.bf16.mxu0 %v1726
  %4378 = vmatmul.mubr.bf16.gmra.mrb[0].mxu0 %v1725
  %v4379 = vpop.f32.mrb[0].mxu0
  %v4380 = vadd.f32 %v4260, %v4379
  %v4381 = vpop.f32.mrb[0].mxu0
  %v4382 = vpop.f32.mrb[0].mxu0
  %v4383 = vadd.f32 %v4263, %v4382
  %v4384 = vpop.f32.mrb[0].mxu0
  %4385 = vmatprep.mubr.bf16.mxu0 %v1755
  %4386 = vmatmul.mubr.bf16.gmra.mrb[0].mxu0 %v1754
  %v4387 = vpop.f32.mrb[0].mxu0
  %v4388 = vadd.f32 %v4268, %v4387
  %v4389 = vpop.f32.mrb[0].mxu0
  %v4390 = vpop.f32.mrb[0].mxu0
  %v4391 = vadd.f32 %v4271, %v4390
  %v4392 = vpop.f32.mrb[0].mxu0
  %4393 = vmatprep.mubr.bf16.mxu0 %v1784
  %4394 = vmatmul.mubr.bf16.gmra.mrb[0].mxu0 %v1783
  %v4395 = vpop.f32.mrb[0].mxu0
  %v4396 = vadd.f32 %v4276, %v4395
  %v4397 = vpop.f32.mrb[0].mxu0
  %v4398 = vpop.f32.mrb[0].mxu0
  %v4399 = vadd.f32 %v4279, %v4398
  %v4400 = vpop.f32.mrb[0].mxu0
  %4401 = vmatprep.mubr.bf16.mxu0 %v1813
  %4402 = vmatmul.mubr.bf16.gmra.mrb[0].mxu0 %v1812
  %v4403 = vpop.f32.mrb[0].mxu0
  %v4404 = vadd.f32 %v4284, %v4403
  %v4405 = vpop.f32.mrb[0].mxu0
  %v4406 = vpop.f32.mrb[0].mxu0
  %v4407 = vadd.f32 %v4287, %v4406
  %v4408 = vpop.f32.mrb[0].mxu0
  %4409 = vmatprep.mubr.bf16.mxu0 %v1842
  %4410 = vmatmul.mubr.bf16.gmra.mrb[0].mxu0 %v1841
  %v4411 = vpop.f32.mrb[0].mxu0
  %v4412 = vadd.f32 %v4292, %v4411
  %v4413 = vpop.f32.mrb[0].mxu0
  %v4414 = vpop.f32.mrb[0].mxu0
  %v4415 = vadd.f32 %v4295, %v4414
  %v4416 = vpop.f32.mrb[0].mxu0
  %4417 = vmatprep.mubr.bf16.mxu0 %v1871
  %4418 = vmatmul.mubr.bf16.gmra.mrb[0].mxu0 %v1870
  %v4419 = vpop.f32.mrb[0].mxu0
  %v4420 = vadd.f32 %v4300, %v4419
  %v4421 = vpop.f32.mrb[0].mxu0
  %v4422 = vpop.f32.mrb[0].mxu0
  %v4423 = vadd.f32 %v4303, %v4422
  %v4424 = vpop.f32.mrb[0].mxu0
  %4425 = vmatprep.mubr.bf16.mxu0 %v1900
  %4426 = vmatmul.mubr.bf16.gmra.mrb[0].mxu0 %v1899
  %v4427 = vpop.f32.mrb[0].mxu0
  %v4428 = vadd.f32 %v4308, %v4427
  %v4429 = vpop.f32.mrb[0].mxu0
  %v4430 = vpop.f32.mrb[0].mxu0
  %v4431 = vadd.f32 %v4311, %v4430
  %v4432 = vpop.f32.mrb[0].mxu0
  %4433 = vmatprep.mubr.bf16.mxu0 %v1929
  %4434 = vmatmul.mubr.bf16.gmra.mrb[0].mxu0 %v1928
  %v4435 = vpop.f32.mrb[0].mxu0
  %v4436 = vadd.f32 %v4316, %v4435
  %v4437 = vpop.f32.mrb[0].mxu0
  %v4438 = vpop.f32.mrb[0].mxu0
  %v4439 = vadd.f32 %v4319, %v4438
  %v4440 = vpop.f32.mrb[0].mxu0
  %4441 = vmatprep.mubr.bf16.mxu0 %v1958
  %4442 = vmatmul.mubr.bf16.gmra.mrb[0].mxu0 %v1957
  %v4443 = vpop.f32.mrb[0].mxu0
  %v4444 = vadd.f32 %v4324, %v4443
  %v4445 = vpop.f32.mrb[0].mxu0
  %v4446 = vpop.f32.mrb[0].mxu0
  %v4447 = vadd.f32 %v4327, %v4446
  %v4448 = vpop.f32.mrb[0].mxu0
  %4449 = vmatprep.mubr.bf16.mxu0 %v1987
  %4450 = vmatmul.mubr.bf16.gmra.mrb[0].mxu0 %v1986
  %v4451 = vpop.f32.mrb[0].mxu0
  %v4452 = vadd.f32 %v4332, %v4451
  %v4453 = vpop.f32.mrb[0].mxu0
  %v4454 = vpop.f32.mrb[0].mxu0
  %v4455 = vadd.f32 %v4335, %v4454
  %v4456 = vpop.f32.mrb[0].mxu0
  %4457 = vmatprep.mubr.bf16.mxu0 %v2016
  %4458 = vmatmul.mubr.bf16.gmra.mrb[0].mxu0 %v2015
  %v4459 = vpop.f32.mrb[0].mxu0
  %v4460 = vadd.f32 %v4340, %v4459
  %v4461 = vpop.f32.mrb[0].mxu0
  %v4462 = vpop.f32.mrb[0].mxu0
  %v4463 = vpop.f32.mrb[0].mxu0
  %4464 = vdwg.mxu0
  %4465 = vmatprep.subr.bf16.mxu0 0
  %4466 = vmatpush1.bf16.msra.mxu0 %v3377
  %4467 = vmatprep.subr.bf16.mxu0 0
  %4468 = vmatpush1.bf16.msra.mxu0 %v3378
  %4469 = vmatprep.subr.bf16.mxu0 0
  %4470 = vmatpush1.bf16.msra.mxu0 %v3379
  %4471 = vmatprep.subr.bf16.mxu0 0
  %4472 = vmatpush1.bf16.msra.mxu0 %v3380
  %4473 = vmatprep.subr.bf16.mxu0 0
  %4474 = vmatpush1.bf16.msra.mxu0 %v3381
  %4475 = vmatprep.subr.bf16.mxu0 0
  %4476 = vmatpush1.bf16.msra.mxu0 %v3382
  %4477 = vmatprep.subr.bf16.mxu0 0
  %4478 = vmatpush1.bf16.msra.mxu0 %v3383
  %4479 = vmatprep.subr.bf16.mxu0 0
  %4480 = vmatpush1.bf16.msra.mxu0 %v3384
  %4481 = vmatprep.subr.bf16.mxu0 0
  %4482 = vmatpush1.bf16.msra.mxu0 %v3385
  %4483 = vmatprep.subr.bf16.mxu0 0
  %4484 = vmatpush1.bf16.msra.mxu0 %v3386
  %4485 = vmatprep.subr.bf16.mxu0 0
  %4486 = vmatpush1.bf16.msra.mxu0 %v3387
  %4487 = vmatprep.subr.bf16.mxu0 0
  %4488 = vmatpush1.bf16.msra.mxu0 %v3388
  %4489 = vmatprep.subr.bf16.mxu0 0
  %4490 = vmatpush1.bf16.msra.mxu0 %v3389
  %4491 = vmatprep.subr.bf16.mxu0 0
  %4492 = vmatpush1.bf16.msra.mxu0 %v3390
  %4493 = vmatprep.subr.bf16.mxu0 0
  %4494 = vmatpush1.bf16.msra.mxu0 %v3391
  %4495 = vmatprep.subr.bf16.mxu0 0
  %4496 = vmatpush1.bf16.msra.mxu0 %v3392
  %4497 = vmatprep.mubr.bf16.mxu0 %v1728
  %4498 = vmatmul.mubr.bf16.gmra.mrb[0].mxu0 %v1727
  %v4499 = vpop.f32.mrb[0].mxu0
  %v4500 = vadd.f32 %v4380, %v4499
  %v4501 = vpop.f32.mrb[0].mxu0
  %v4502 = vpop.f32.mrb[0].mxu0
  %v4503 = vadd.f32 %v4383, %v4502
  %v4504 = vpop.f32.mrb[0].mxu0
  %4505 = vmatprep.mubr.bf16.mxu0 %v1757
  %4506 = vmatmul.mubr.bf16.gmra.mrb[0].mxu0 %v1756
  %v4507 = vpop.f32.mrb[0].mxu0
  %v4508 = vadd.f32 %v4388, %v4507
  %v4509 = vpop.f32.mrb[0].mxu0
  %v4510 = vpop.f32.mrb[0].mxu0
  %v4511 = vadd.f32 %v4391, %v4510
  %v4512 = vpop.f32.mrb[0].mxu0
  %4513 = vmatprep.mubr.bf16.mxu0 %v1786
  %4514 = vmatmul.mubr.bf16.gmra.mrb[0].mxu0 %v1785
  %v4515 = vpop.f32.mrb[0].mxu0
  %v4516 = vadd.f32 %v4396, %v4515
  %v4517 = vpop.f32.mrb[0].mxu0
  %v4518 = vpop.f32.mrb[0].mxu0
  %v4519 = vadd.f32 %v4399, %v4518
  %v4520 = vpop.f32.mrb[0].mxu0
  %4521 = vmatprep.mubr.bf16.mxu0 %v1815
  %4522 = vmatmul.mubr.bf16.gmra.mrb[0].mxu0 %v1814
  %v4523 = vpop.f32.mrb[0].mxu0
  %v4524 = vadd.f32 %v4404, %v4523
  %v4525 = vpop.f32.mrb[0].mxu0
  %v4526 = vpop.f32.mrb[0].mxu0
  %v4527 = vadd.f32 %v4407, %v4526
  %v4528 = vpop.f32.mrb[0].mxu0
  %4529 = vmatprep.mubr.bf16.mxu0 %v1844
  %4530 = vmatmul.mubr.bf16.gmra.mrb[0].mxu0 %v1843
  %v4531 = vpop.f32.mrb[0].mxu0
  %v4532 = vadd.f32 %v4412, %v4531
  %v4533 = vpop.f32.mrb[0].mxu0
  %v4534 = vpop.f32.mrb[0].mxu0
  %v4535 = vadd.f32 %v4415, %v4534
  %v4536 = vpop.f32.mrb[0].mxu0
  %4537 = vmatprep.mubr.bf16.mxu0 %v1873
  %4538 = vmatmul.mubr.bf16.gmra.mrb[0].mxu0 %v1872
  %v4539 = vpop.f32.mrb[0].mxu0
  %v4540 = vadd.f32 %v4420, %v4539
  %v4541 = vpop.f32.mrb[0].mxu0
  %v4542 = vpop.f32.mrb[0].mxu0
  %v4543 = vadd.f32 %v4423, %v4542
  %v4544 = vpop.f32.mrb[0].mxu0
  %4545 = vmatprep.mubr.bf16.mxu0 %v1902
  %4546 = vmatmul.mubr.bf16.gmra.mrb[0].mxu0 %v1901
  %v4547 = vpop.f32.mrb[0].mxu0
  %v4548 = vadd.f32 %v4428, %v4547
  %v4549 = vpop.f32.mrb[0].mxu0
  %v4550 = vpop.f32.mrb[0].mxu0
  %v4551 = vadd.f32 %v4431, %v4550
  %v4552 = vpop.f32.mrb[0].mxu0
  %4553 = vmatprep.mubr.bf16.mxu0 %v1931
  %4554 = vmatmul.mubr.bf16.gmra.mrb[0].mxu0 %v1930
  %v4555 = vpop.f32.mrb[0].mxu0
  %v4556 = vadd.f32 %v4436, %v4555
  %v4557 = vpop.f32.mrb[0].mxu0
  %v4558 = vpop.f32.mrb[0].mxu0
  %v4559 = vadd.f32 %v4439, %v4558
  %v4560 = vpop.f32.mrb[0].mxu0
  %4561 = vmatprep.mubr.bf16.mxu0 %v1960
  %4562 = vmatmul.mubr.bf16.gmra.mrb[0].mxu0 %v1959
  %v4563 = vpop.f32.mrb[0].mxu0
  %v4564 = vadd.f32 %v4444, %v4563
  %v4565 = vpop.f32.mrb[0].mxu0
  %v4566 = vpop.f32.mrb[0].mxu0
  %v4567 = vadd.f32 %v4447, %v4566
  %v4568 = vpop.f32.mrb[0].mxu0
  %4569 = vmatprep.mubr.bf16.mxu0 %v1989
  %4570 = vmatmul.mubr.bf16.gmra.mrb[0].mxu0 %v1988
  %v4571 = vpop.f32.mrb[0].mxu0
  %v4572 = vadd.f32 %v4452, %v4571
  %v4573 = vpop.f32.mrb[0].mxu0
  %v4574 = vpop.f32.mrb[0].mxu0
  %v4575 = vadd.f32 %v4455, %v4574
  %v4576 = vpop.f32.mrb[0].mxu0
  %4577 = vmatprep.mubr.bf16.mxu0 %v2018
  %4578 = vmatmul.mubr.bf16.gmra.mrb[0].mxu0 %v2017
  %v4579 = vpop.f32.mrb[0].mxu0
  %v4580 = vadd.f32 %v4460, %v4579
  %v4581 = vpop.f32.mrb[0].mxu0
  %v4582 = vpop.f32.mrb[0].mxu0
  %v4583 = vpop.f32.mrb[0].mxu0
  %4584 = vdwg.mxu0
  %4585 = vmatprep.subr.bf16.mxu0 0
  %4586 = vmatpush1.bf16.msra.mxu0 %v3393
  %4587 = vmatprep.subr.bf16.mxu0 0
  %4588 = vmatpush1.bf16.msra.mxu0 %v3394
  %4589 = vmatprep.subr.bf16.mxu0 0
  %4590 = vmatpush1.bf16.msra.mxu0 %v3395
  %4591 = vmatprep.subr.bf16.mxu0 0
  %4592 = vmatpush1.bf16.msra.mxu0 %v3396
  %4593 = vmatprep.subr.bf16.mxu0 0
  %4594 = vmatpush1.bf16.msra.mxu0 %v3397
  %4595 = vmatprep.subr.bf16.mxu0 0
  %4596 = vmatpush1.bf16.msra.mxu0 %v3398
  %4597 = vmatprep.subr.bf16.mxu0 0
  %4598 = vmatpush1.bf16.msra.mxu0 %v3399
  %4599 = vmatprep.subr.bf16.mxu0 0
  %4600 = vmatpush1.bf16.msra.mxu0 %v3400
  %4601 = vmatprep.subr.bf16.mxu0 0
  %4602 = vmatpush1.bf16.msra.mxu0 %v3401
  %4603 = vmatprep.subr.bf16.mxu0 0
  %4604 = vmatpush1.bf16.msra.mxu0 %v3402
  %4605 = vmatprep.subr.bf16.mxu0 0
  %4606 = vmatpush1.bf16.msra.mxu0 %v3403
  %4607 = vmatprep.subr.bf16.mxu0 0
  %4608 = vmatpush1.bf16.msra.mxu0 %v3404
  %4609 = vmatprep.subr.bf16.mxu0 0
  %4610 = vmatpush1.bf16.msra.mxu0 %v3405
  %4611 = vmatprep.subr.bf16.mxu0 0
  %4612 = vmatpush1.bf16.msra.mxu0 %v3406
  %4613 = vmatprep.subr.bf16.mxu0 0
  %4614 = vmatpush1.bf16.msra.mxu0 %v3407
  %4615 = vmatprep.subr.bf16.mxu0 0
  %4616 = vmatpush1.bf16.msra.mxu0 %v3408
  %4617 = vmatprep.mubr.bf16.mxu0 %v1730
  %4618 = vmatmul.mubr.bf16.gmra.mrb[0].mxu0 %v1729
  %v4619 = vpop.f32.mrb[0].mxu0
  %v4620 = vadd.f32 %v4500, %v4619
  %v4621 = vpop.f32.mrb[0].mxu0
  %v4622 = vpop.f32.mrb[0].mxu0
  %v4623 = vadd.f32 %v4503, %v4622
  %v4624 = vpop.f32.mrb[0].mxu0
  %4625 = vmatprep.mubr.bf16.mxu0 %v1759
  %4626 = vmatmul.mubr.bf16.gmra.mrb[0].mxu0 %v1758
  %v4627 = vpop.f32.mrb[0].mxu0
  %v4628 = vadd.f32 %v4508, %v4627
  %v4629 = vpop.f32.mrb[0].mxu0
  %v4630 = vpop.f32.mrb[0].mxu0
  %v4631 = vadd.f32 %v4511, %v4630
  %v4632 = vpop.f32.mrb[0].mxu0
  %4633 = vmatprep.mubr.bf16.mxu0 %v1788
  %4634 = vmatmul.mubr.bf16.gmra.mrb[0].mxu0 %v1787
  %v4635 = vpop.f32.mrb[0].mxu0
  %v4636 = vadd.f32 %v4516, %v4635
  %v4637 = vpop.f32.mrb[0].mxu0
  %v4638 = vpop.f32.mrb[0].mxu0
  %v4639 = vadd.f32 %v4519, %v4638
  %v4640 = vpop.f32.mrb[0].mxu0
  %4641 = vmatprep.mubr.bf16.mxu0 %v1817
  %4642 = vmatmul.mubr.bf16.gmra.mrb[0].mxu0 %v1816
  %v4643 = vpop.f32.mrb[0].mxu0
  %v4644 = vadd.f32 %v4524, %v4643
  %v4645 = vpop.f32.mrb[0].mxu0
  %v4646 = vpop.f32.mrb[0].mxu0
  %v4647 = vadd.f32 %v4527, %v4646
  %v4648 = vpop.f32.mrb[0].mxu0
  %4649 = vmatprep.mubr.bf16.mxu0 %v1846
  %4650 = vmatmul.mubr.bf16.gmra.mrb[0].mxu0 %v1845
  %v4651 = vpop.f32.mrb[0].mxu0
  %v4652 = vadd.f32 %v4532, %v4651
  %v4653 = vpop.f32.mrb[0].mxu0
  %v4654 = vpop.f32.mrb[0].mxu0
  %v4655 = vadd.f32 %v4535, %v4654
  %v4656 = vpop.f32.mrb[0].mxu0
  %4657 = vmatprep.mubr.bf16.mxu0 %v1875
  %4658 = vmatmul.mubr.bf16.gmra.mrb[0].mxu0 %v1874
  %v4659 = vpop.f32.mrb[0].mxu0
  %v4660 = vadd.f32 %v4540, %v4659
  %v4661 = vpop.f32.mrb[0].mxu0
  %v4662 = vpop.f32.mrb[0].mxu0
  %v4663 = vadd.f32 %v4543, %v4662
  %v4664 = vpop.f32.mrb[0].mxu0
  %4665 = vmatprep.mubr.bf16.mxu0 %v1904
  %4666 = vmatmul.mubr.bf16.gmra.mrb[0].mxu0 %v1903
  %v4667 = vpop.f32.mrb[0].mxu0
  %v4668 = vadd.f32 %v4548, %v4667
  %v4669 = vpop.f32.mrb[0].mxu0
  %v4670 = vpop.f32.mrb[0].mxu0
  %v4671 = vadd.f32 %v4551, %v4670
  %v4672 = vpop.f32.mrb[0].mxu0
  %4673 = vmatprep.mubr.bf16.mxu0 %v1933
  %4674 = vmatmul.mubr.bf16.gmra.mrb[0].mxu0 %v1932
  %v4675 = vpop.f32.mrb[0].mxu0
  %v4676 = vadd.f32 %v4556, %v4675
  %v4677 = vpop.f32.mrb[0].mxu0
  %v4678 = vpop.f32.mrb[0].mxu0
  %v4679 = vadd.f32 %v4559, %v4678
  %v4680 = vpop.f32.mrb[0].mxu0
  %4681 = vmatprep.mubr.bf16.mxu0 %v1962
  %4682 = vmatmul.mubr.bf16.gmra.mrb[0].mxu0 %v1961
  %v4683 = vpop.f32.mrb[0].mxu0
  %v4684 = vadd.f32 %v4564, %v4683
  %v4685 = vpop.f32.mrb[0].mxu0
  %v4686 = vpop.f32.mrb[0].mxu0
  %v4687 = vadd.f32 %v4567, %v4686
  %v4688 = vpop.f32.mrb[0].mxu0
  %4689 = vmatprep.mubr.bf16.mxu0 %v1991
  %4690 = vmatmul.mubr.bf16.gmra.mrb[0].mxu0 %v1990
  %v4691 = vpop.f32.mrb[0].mxu0
  %v4692 = vadd.f32 %v4572, %v4691
  %v4693 = vpop.f32.mrb[0].mxu0
  %v4694 = vpop.f32.mrb[0].mxu0
  %v4695 = vadd.f32 %v4575, %v4694
  %v4696 = vpop.f32.mrb[0].mxu0
  %4697 = vmatprep.mubr.bf16.mxu0 %v2020
  %4698 = vmatmul.mubr.bf16.gmra.mrb[0].mxu0 %v2019
  %v4699 = vpop.f32.mrb[0].mxu0
  %v4700 = vadd.f32 %v4580, %v4699
  %v4701 = vpop.f32.mrb[0].mxu0
  %v4702 = vpop.f32.mrb[0].mxu0
  %v4703 = vpop.f32.mrb[0].mxu0
  %4704 = vdwg.mxu0
  %4705 = vmatprep.subr.bf16.mxu0 0
  %4706 = vmatpush1.bf16.msra.mxu0 %v3409
  %4707 = vmatprep.subr.bf16.mxu0 0
  %4708 = vmatpush1.bf16.msra.mxu0 %v3410
  %4709 = vmatprep.subr.bf16.mxu0 0
  %4710 = vmatpush1.bf16.msra.mxu0 %v3411
  %4711 = vmatprep.subr.bf16.mxu0 0
  %4712 = vmatpush1.bf16.msra.mxu0 %v3412
  %4713 = vmatprep.subr.bf16.mxu0 0
  %4714 = vmatpush1.bf16.msra.mxu0 %v3413
  %4715 = vmatprep.subr.bf16.mxu0 0
  %4716 = vmatpush1.bf16.msra.mxu0 %v3414
  %4717 = vmatprep.subr.bf16.mxu0 0
  %4718 = vmatpush1.bf16.msra.mxu0 %v3415
  %4719 = vmatprep.subr.bf16.mxu0 0
  %4720 = vmatpush1.bf16.msra.mxu0 %v3416
  %4721 = vmatprep.subr.bf16.mxu0 0
  %4722 = vmatpush1.bf16.msra.mxu0 %v3417
  %4723 = vmatprep.subr.bf16.mxu0 0
  %4724 = vmatpush1.bf16.msra.mxu0 %v3418
  %4725 = vmatprep.subr.bf16.mxu0 0
  %4726 = vmatpush1.bf16.msra.mxu0 %v3419
  %4727 = vmatprep.subr.bf16.mxu0 0
  %4728 = vmatpush1.bf16.msra.mxu0 %v3420
  %4729 = vmatprep.subr.bf16.mxu0 0
  %4730 = vmatpush1.bf16.msra.mxu0 %v3421
  %4731 = vmatprep.subr.bf16.mxu0 0
  %4732 = vmatpush1.bf16.msra.mxu0 %v3422
  %4733 = vmatprep.subr.bf16.mxu0 0
  %4734 = vmatpush1.bf16.msra.mxu0 %v3423
  %4735 = vmatprep.subr.bf16.mxu0 0
  %4736 = vmatpush1.bf16.msra.mxu0 %v3424
  %4737 = vmatprep.mubr.bf16.mxu0 %v1732
  %4738 = vmatmul.mubr.bf16.gmra.mrb[0].mxu0 %v1731
  %v4739 = vpop.f32.mrb[0].mxu0
  %v4740 = vadd.f32 %v4620, %v4739
  %v4741 = vpop.f32.mrb[0].mxu0
  %v4742 = vpop.f32.mrb[0].mxu0
  %v4743 = vadd.f32 %v4623, %v4742
  %v4744 = vpop.f32.mrb[0].mxu0
  %4745 = vmatprep.mubr.bf16.mxu0 %v1761
  %4746 = vmatmul.mubr.bf16.gmra.mrb[0].mxu0 %v1760
  %v4747 = vpop.f32.mrb[0].mxu0
  %v4748 = vadd.f32 %v4628, %v4747
  %v4749 = vpop.f32.mrb[0].mxu0
  %v4750 = vpop.f32.mrb[0].mxu0
  %v4751 = vadd.f32 %v4631, %v4750
  %v4752 = vpop.f32.mrb[0].mxu0
  %4753 = vmatprep.mubr.bf16.mxu0 %v1790
  %4754 = vmatmul.mubr.bf16.gmra.mrb[0].mxu0 %v1789
  %v4755 = vpop.f32.mrb[0].mxu0
  %v4756 = vadd.f32 %v4636, %v4755
  %v4757 = vpop.f32.mrb[0].mxu0
  %v4758 = vpop.f32.mrb[0].mxu0
  %v4759 = vadd.f32 %v4639, %v4758
  %v4760 = vpop.f32.mrb[0].mxu0
  %4761 = vmatprep.mubr.bf16.mxu0 %v1819
  %4762 = vmatmul.mubr.bf16.gmra.mrb[0].mxu0 %v1818
  %v4763 = vpop.f32.mrb[0].mxu0
  %v4764 = vadd.f32 %v4644, %v4763
  %v4765 = vpop.f32.mrb[0].mxu0
  %v4766 = vpop.f32.mrb[0].mxu0
  %v4767 = vadd.f32 %v4647, %v4766
  %v4768 = vpop.f32.mrb[0].mxu0
  %4769 = vmatprep.mubr.bf16.mxu0 %v1848
  %4770 = vmatmul.mubr.bf16.gmra.mrb[0].mxu0 %v1847
  %v4771 = vpop.f32.mrb[0].mxu0
  %v4772 = vadd.f32 %v4652, %v4771
  %v4773 = vpop.f32.mrb[0].mxu0
  %v4774 = vpop.f32.mrb[0].mxu0
  %v4775 = vadd.f32 %v4655, %v4774
  %v4776 = vpop.f32.mrb[0].mxu0
  %4777 = vmatprep.mubr.bf16.mxu0 %v1877
  %4778 = vmatmul.mubr.bf16.gmra.mrb[0].mxu0 %v1876
  %v4779 = vpop.f32.mrb[0].mxu0
  %v4780 = vadd.f32 %v4660, %v4779
  %v4781 = vpop.f32.mrb[0].mxu0
  %v4782 = vpop.f32.mrb[0].mxu0
  %v4783 = vadd.f32 %v4663, %v4782
  %v4784 = vpop.f32.mrb[0].mxu0
  %4785 = vmatprep.mubr.bf16.mxu0 %v1906
  %4786 = vmatmul.mubr.bf16.gmra.mrb[0].mxu0 %v1905
  %v4787 = vpop.f32.mrb[0].mxu0
  %v4788 = vadd.f32 %v4668, %v4787
  %v4789 = vpop.f32.mrb[0].mxu0
  %v4790 = vpop.f32.mrb[0].mxu0
  %v4791 = vadd.f32 %v4671, %v4790
  %v4792 = vpop.f32.mrb[0].mxu0
  %4793 = vmatprep.mubr.bf16.mxu0 %v1935
  %4794 = vmatmul.mubr.bf16.gmra.mrb[0].mxu0 %v1934
  %v4795 = vpop.f32.mrb[0].mxu0
  %v4796 = vadd.f32 %v4676, %v4795
  %v4797 = vpop.f32.mrb[0].mxu0
  %v4798 = vpop.f32.mrb[0].mxu0
  %v4799 = vadd.f32 %v4679, %v4798
  %v4800 = vpop.f32.mrb[0].mxu0
  %4801 = vmatprep.mubr.bf16.mxu0 %v1964
  %4802 = vmatmul.mubr.bf16.gmra.mrb[0].mxu0 %v1963
  %v4803 = vpop.f32.mrb[0].mxu0
  %v4804 = vadd.f32 %v4684, %v4803
  %v4805 = vpop.f32.mrb[0].mxu0
  %v4806 = vpop.f32.mrb[0].mxu0
  %v4807 = vadd.f32 %v4687, %v4806
  %v4808 = vpop.f32.mrb[0].mxu0
  %4809 = vmatprep.mubr.bf16.mxu0 %v1993
  %4810 = vmatmul.mubr.bf16.gmra.mrb[0].mxu0 %v1992
  %v4811 = vpop.f32.mrb[0].mxu0
  %v4812 = vadd.f32 %v4692, %v4811
  %v4813 = vpop.f32.mrb[0].mxu0
  %v4814 = vpop.f32.mrb[0].mxu0
  %v4815 = vadd.f32 %v4695, %v4814
  %v4816 = vpop.f32.mrb[0].mxu0
  %4817 = vmatprep.mubr.bf16.mxu0 %v2022
  %4818 = vmatmul.mubr.bf16.gmra.mrb[0].mxu0 %v2021
  %v4819 = vpop.f32.mrb[0].mxu0
  %v4820 = vadd.f32 %v4700, %v4819
  %v4821 = vpop.f32.mrb[0].mxu0
  %v4822 = vpop.f32.mrb[0].mxu0
  %v4823 = vpop.f32.mrb[0].mxu0
  %4824 = vdwg.mxu0
  %4825 = vmatprep.subr.bf16.mxu0 0
  %4826 = vmatpush1.bf16.msra.mxu0 %v3425
  %4827 = vmatprep.subr.bf16.mxu0 0
  %4828 = vmatpush1.bf16.msra.mxu0 %v3426
  %4829 = vmatprep.subr.bf16.mxu0 0
  %4830 = vmatpush1.bf16.msra.mxu0 %v3427
  %4831 = vmatprep.subr.bf16.mxu0 0
  %4832 = vmatpush1.bf16.msra.mxu0 %v3428
  %4833 = vmatprep.subr.bf16.mxu0 0
  %4834 = vmatpush1.bf16.msra.mxu0 %v3429
  %4835 = vmatprep.subr.bf16.mxu0 0
  %4836 = vmatpush1.bf16.msra.mxu0 %v3430
  %4837 = vmatprep.subr.bf16.mxu0 0
  %4838 = vmatpush1.bf16.msra.mxu0 %v3431
  %4839 = vmatprep.subr.bf16.mxu0 0
  %4840 = vmatpush1.bf16.msra.mxu0 %v3432
  %4841 = vmatprep.subr.bf16.mxu0 0
  %4842 = vmatpush1.bf16.msra.mxu0 %v3433
  %4843 = vmatprep.subr.bf16.mxu0 0
  %4844 = vmatpush1.bf16.msra.mxu0 %v3434
  %4845 = vmatprep.subr.bf16.mxu0 0
  %4846 = vmatpush1.bf16.msra.mxu0 %v3435
  %4847 = vmatprep.subr.bf16.mxu0 0
  %4848 = vmatpush1.bf16.msra.mxu0 %v3436
  %4849 = vmatprep.subr.bf16.mxu0 0
  %4850 = vmatpush1.bf16.msra.mxu0 %v3437
  %4851 = vmatprep.subr.bf16.mxu0 0
  %4852 = vmatpush1.bf16.msra.mxu0 %v3438
  %4853 = vmatprep.subr.bf16.mxu0 0
  %4854 = vmatpush1.bf16.msra.mxu0 %v3439
  %4855 = vmatprep.subr.bf16.mxu0 0
  %4856 = vmatpush1.bf16.msra.mxu0 %v3440
  %4857 = vmatprep.mubr.bf16.mxu0 %v1734
  %4858 = vmatmul.mubr.bf16.gmra.mrb[0].mxu0 %v1733
  %v4859 = vpop.f32.mrb[0].mxu0
  %v4860 = vadd.f32 %v4740, %v4859
  %v4861 = vpop.f32.mrb[0].mxu0
  %v4862 = vpop.f32.mrb[0].mxu0
  %v4863 = vadd.f32 %v4743, %v4862
  %v4864 = vpop.f32.mrb[0].mxu0
  %4865 = vmatprep.mubr.bf16.mxu0 %v1763
  %4866 = vmatmul.mubr.bf16.gmra.mrb[0].mxu0 %v1762
  %v4867 = vpop.f32.mrb[0].mxu0
  %v4868 = vadd.f32 %v4748, %v4867
  %v4869 = vpop.f32.mrb[0].mxu0
  %v4870 = vpop.f32.mrb[0].mxu0
  %v4871 = vadd.f32 %v4751, %v4870
  %v4872 = vpop.f32.mrb[0].mxu0
  %4873 = vmatprep.mubr.bf16.mxu0 %v1792
  %4874 = vmatmul.mubr.bf16.gmra.mrb[0].mxu0 %v1791
  %v4875 = vpop.f32.mrb[0].mxu0
  %v4876 = vadd.f32 %v4756, %v4875
  %v4877 = vpop.f32.mrb[0].mxu0
  %v4878 = vpop.f32.mrb[0].mxu0
  %v4879 = vadd.f32 %v4759, %v4878
  %v4880 = vpop.f32.mrb[0].mxu0
  %4881 = vmatprep.mubr.bf16.mxu0 %v1821
  %4882 = vmatmul.mubr.bf16.gmra.mrb[0].mxu0 %v1820
  %v4883 = vpop.f32.mrb[0].mxu0
  %v4884 = vadd.f32 %v4764, %v4883
  %v4885 = vpop.f32.mrb[0].mxu0
  %v4886 = vpop.f32.mrb[0].mxu0
  %v4887 = vadd.f32 %v4767, %v4886
  %v4888 = vpop.f32.mrb[0].mxu0
  %4889 = vmatprep.mubr.bf16.mxu0 %v1850
  %4890 = vmatmul.mubr.bf16.gmra.mrb[0].mxu0 %v1849
  %v4891 = vpop.f32.mrb[0].mxu0
  %v4892 = vadd.f32 %v4772, %v4891
  %v4893 = vpop.f32.mrb[0].mxu0
  %v4894 = vpop.f32.mrb[0].mxu0
  %v4895 = vadd.f32 %v4775, %v4894
  %v4896 = vpop.f32.mrb[0].mxu0
  %4897 = vmatprep.mubr.bf16.mxu0 %v1879
  %4898 = vmatmul.mubr.bf16.gmra.mrb[0].mxu0 %v1878
  %v4899 = vpop.f32.mrb[0].mxu0
  %v4900 = vadd.f32 %v4780, %v4899
  %v4901 = vpop.f32.mrb[0].mxu0
  %v4902 = vpop.f32.mrb[0].mxu0
  %v4903 = vadd.f32 %v4783, %v4902
  %v4904 = vpop.f32.mrb[0].mxu0
  %4905 = vmatprep.mubr.bf16.mxu0 %v1908
  %4906 = vmatmul.mubr.bf16.gmra.mrb[0].mxu0 %v1907
  %v4907 = vpop.f32.mrb[0].mxu0
  %v4908 = vadd.f32 %v4788, %v4907
  %v4909 = vpop.f32.mrb[0].mxu0
  %v4910 = vpop.f32.mrb[0].mxu0
  %v4911 = vadd.f32 %v4791, %v4910
  %v4912 = vpop.f32.mrb[0].mxu0
  %4913 = vmatprep.mubr.bf16.mxu0 %v1937
  %4914 = vmatmul.mubr.bf16.gmra.mrb[0].mxu0 %v1936
  %v4915 = vpop.f32.mrb[0].mxu0
  %v4916 = vadd.f32 %v4796, %v4915
  %v4917 = vpop.f32.mrb[0].mxu0
  %v4918 = vpop.f32.mrb[0].mxu0
  %v4919 = vadd.f32 %v4799, %v4918
  %v4920 = vpop.f32.mrb[0].mxu0
  %4921 = vmatprep.mubr.bf16.mxu0 %v1966
  %4922 = vmatmul.mubr.bf16.gmra.mrb[0].mxu0 %v1965
  %v4923 = vpop.f32.mrb[0].mxu0
  %v4924 = vadd.f32 %v4804, %v4923
  %v4925 = vpop.f32.mrb[0].mxu0
  %v4926 = vpop.f32.mrb[0].mxu0
  %v4927 = vadd.f32 %v4807, %v4926
  %v4928 = vpop.f32.mrb[0].mxu0
  %4929 = vmatprep.mubr.bf16.mxu0 %v1995
  %4930 = vmatmul.mubr.bf16.gmra.mrb[0].mxu0 %v1994
  %v4931 = vpop.f32.mrb[0].mxu0
  %v4932 = vadd.f32 %v4812, %v4931
  %v4933 = vpop.f32.mrb[0].mxu0
  %v4934 = vpop.f32.mrb[0].mxu0
  %v4935 = vadd.f32 %v4815, %v4934
  %v4936 = vpop.f32.mrb[0].mxu0
  %4937 = vmatprep.mubr.bf16.mxu0 %v2024
  %4938 = vmatmul.mubr.bf16.gmra.mrb[0].mxu0 %v2023
  %v4939 = vpop.f32.mrb[0].mxu0
  %v4940 = vadd.f32 %v4820, %v4939
  %v4941 = vpop.f32.mrb[0].mxu0
  %v4942 = vpop.f32.mrb[0].mxu0
  %v4943 = vpop.f32.mrb[0].mxu0
  %4944 = vdwg.mxu0
  %4945 = vmatprep.subr.bf16.mxu0 0
  %4946 = vmatpush1.bf16.msra.mxu0 %v3441
  %4947 = vmatprep.subr.bf16.mxu0 0
  %4948 = vmatpush1.bf16.msra.mxu0 %v3442
  %4949 = vmatprep.subr.bf16.mxu0 0
  %4950 = vmatpush1.bf16.msra.mxu0 %v3443
  %4951 = vmatprep.subr.bf16.mxu0 0
  %4952 = vmatpush1.bf16.msra.mxu0 %v3444
  %4953 = vmatprep.subr.bf16.mxu0 0
  %4954 = vmatpush1.bf16.msra.mxu0 %v3445
  %4955 = vmatprep.subr.bf16.mxu0 0
  %4956 = vmatpush1.bf16.msra.mxu0 %v3446
  %4957 = vmatprep.subr.bf16.mxu0 0
  %4958 = vmatpush1.bf16.msra.mxu0 %v3447
  %4959 = vmatprep.subr.bf16.mxu0 0
  %4960 = vmatpush1.bf16.msra.mxu0 %v3448
  %4961 = vmatprep.subr.bf16.mxu0 0
  %4962 = vmatpush1.bf16.msra.mxu0 %v3449
  %4963 = vmatprep.subr.bf16.mxu0 0
  %4964 = vmatpush1.bf16.msra.mxu0 %v3450
  %4965 = vmatprep.subr.bf16.mxu0 0
  %4966 = vmatpush1.bf16.msra.mxu0 %v3451
  %4967 = vmatprep.subr.bf16.mxu0 0
  %4968 = vmatpush1.bf16.msra.mxu0 %v3452
  %4969 = vmatprep.subr.bf16.mxu0 0
  %4970 = vmatpush1.bf16.msra.mxu0 %v3453
  %4971 = vmatprep.subr.bf16.mxu0 0
  %4972 = vmatpush1.bf16.msra.mxu0 %v3454
  %4973 = vmatprep.subr.bf16.mxu0 0
  %4974 = vmatpush1.bf16.msra.mxu0 %v3455
  %4975 = vmatprep.subr.bf16.mxu0 0
  %4976 = vmatpush1.bf16.msra.mxu0 %v3456
  %4977 = vmatprep.mubr.bf16.mxu0 %v1736
  %4978 = vmatmul.mubr.bf16.gmra.mrb[0].mxu0 %v1735
  %v4979 = vpop.f32.mrb[0].mxu0
  %v4980 = vadd.f32 %v4860, %v4979
  %v4981 = vpop.f32.mrb[0].mxu0
  %v4982 = vpop.f32.mrb[0].mxu0
  %v4983 = vadd.f32 %v4863, %v4982
  %v4984 = vpop.f32.mrb[0].mxu0
  %4985 = vmatprep.mubr.bf16.mxu0 %v1765
  %4986 = vmatmul.mubr.bf16.gmra.mrb[0].mxu0 %v1764
  %v4987 = vpop.f32.mrb[0].mxu0
  %v4988 = vadd.f32 %v4868, %v4987
  %v4989 = vpop.f32.mrb[0].mxu0
  %v4990 = vpop.f32.mrb[0].mxu0
  %v4991 = vadd.f32 %v4871, %v4990
  %v4992 = vpop.f32.mrb[0].mxu0
  %4993 = vmatprep.mubr.bf16.mxu0 %v1794
  %4994 = vmatmul.mubr.bf16.gmra.mrb[0].mxu0 %v1793
  %v4995 = vpop.f32.mrb[0].mxu0
  %v4996 = vadd.f32 %v4876, %v4995
  %v4997 = vpop.f32.mrb[0].mxu0
  %v4998 = vpop.f32.mrb[0].mxu0
  %v4999 = vadd.f32 %v4879, %v4998
  %v5000 = vpop.f32.mrb[0].mxu0
  %5001 = vmatprep.mubr.bf16.mxu0 %v1823
  %5002 = vmatmul.mubr.bf16.gmra.mrb[0].mxu0 %v1822
  %v5003 = vpop.f32.mrb[0].mxu0
  %v5004 = vadd.f32 %v4884, %v5003
  %v5005 = vpop.f32.mrb[0].mxu0
  %v5006 = vpop.f32.mrb[0].mxu0
  %v5007 = vadd.f32 %v4887, %v5006
  %v5008 = vpop.f32.mrb[0].mxu0
  %5009 = vmatprep.mubr.bf16.mxu0 %v1852
  %5010 = vmatmul.mubr.bf16.gmra.mrb[0].mxu0 %v1851
  %v5011 = vpop.f32.mrb[0].mxu0
  %v5012 = vadd.f32 %v4892, %v5011
  %v5013 = vpop.f32.mrb[0].mxu0
  %v5014 = vpop.f32.mrb[0].mxu0
  %v5015 = vadd.f32 %v4895, %v5014
  %v5016 = vpop.f32.mrb[0].mxu0
  %5017 = vmatprep.mubr.bf16.mxu0 %v1881
  %5018 = vmatmul.mubr.bf16.gmra.mrb[0].mxu0 %v1880
  %v5019 = vpop.f32.mrb[0].mxu0
  %v5020 = vadd.f32 %v4900, %v5019
  %v5021 = vpop.f32.mrb[0].mxu0
  %v5022 = vpop.f32.mrb[0].mxu0
  %v5023 = vadd.f32 %v4903, %v5022
  %v5024 = vpop.f32.mrb[0].mxu0
  %5025 = vmatprep.mubr.bf16.mxu0 %v1910
  %5026 = vmatmul.mubr.bf16.gmra.mrb[0].mxu0 %v1909
  %v5027 = vpop.f32.mrb[0].mxu0
  %v5028 = vadd.f32 %v4908, %v5027
  %v5029 = vpop.f32.mrb[0].mxu0
  %v5030 = vpop.f32.mrb[0].mxu0
  %v5031 = vadd.f32 %v4911, %v5030
  %v5032 = vpop.f32.mrb[0].mxu0
  %5033 = vmatprep.mubr.bf16.mxu0 %v1939
  %5034 = vmatmul.mubr.bf16.gmra.mrb[0].mxu0 %v1938
  %v5035 = vpop.f32.mrb[0].mxu0
  %v5036 = vadd.f32 %v4916, %v5035
  %v5037 = vpop.f32.mrb[0].mxu0
  %v5038 = vpop.f32.mrb[0].mxu0
  %v5039 = vadd.f32 %v4919, %v5038
  %v5040 = vpop.f32.mrb[0].mxu0
  %5041 = vmatprep.mubr.bf16.mxu0 %v1968
  %5042 = vmatmul.mubr.bf16.gmra.mrb[0].mxu0 %v1967
  %v5043 = vpop.f32.mrb[0].mxu0
  %v5044 = vadd.f32 %v4924, %v5043
  %v5045 = vpop.f32.mrb[0].mxu0
  %v5046 = vpop.f32.mrb[0].mxu0
  %v5047 = vadd.f32 %v4927, %v5046
  %v5048 = vpop.f32.mrb[0].mxu0
  %5049 = vmatprep.mubr.bf16.mxu0 %v1997
  %5050 = vmatmul.mubr.bf16.gmra.mrb[0].mxu0 %v1996
  %v5051 = vpop.f32.mrb[0].mxu0
  %v5052 = vadd.f32 %v4932, %v5051
  %v5053 = vpop.f32.mrb[0].mxu0
  %v5054 = vpop.f32.mrb[0].mxu0
  %v5055 = vadd.f32 %v4935, %v5054
  %v5056 = vpop.f32.mrb[0].mxu0
  %5057 = vmatprep.mubr.bf16.mxu0 %v2026
  %5058 = vmatmul.mubr.bf16.gmra.mrb[0].mxu0 %v2025
  %v5059 = vpop.f32.mrb[0].mxu0
  %v5060 = vadd.f32 %v4940, %v5059
  %v5061 = vpop.f32.mrb[0].mxu0
  %v5062 = vpop.f32.mrb[0].mxu0
  %v5063 = vpop.f32.mrb[0].mxu0
  %5064 = vdwg.mxu0
  %5065 = vmatprep.subr.bf16.mxu0 0
  %5066 = vmatpush1.bf16.msra.mxu0 %v3457
  %5067 = vmatprep.subr.bf16.mxu0 0
  %5068 = vmatpush1.bf16.msra.mxu0 %v3458
  %5069 = vmatprep.subr.bf16.mxu0 0
  %5070 = vmatpush1.bf16.msra.mxu0 %v3459
  %5071 = vmatprep.subr.bf16.mxu0 0
  %5072 = vmatpush1.bf16.msra.mxu0 %v3460
  %5073 = vmatprep.subr.bf16.mxu0 0
  %5074 = vmatpush1.bf16.msra.mxu0 %v3461
  %5075 = vmatprep.subr.bf16.mxu0 0
  %5076 = vmatpush1.bf16.msra.mxu0 %v3462
  %5077 = vmatprep.subr.bf16.mxu0 0
  %5078 = vmatpush1.bf16.msra.mxu0 %v3463
  %5079 = vmatprep.subr.bf16.mxu0 0
  %5080 = vmatpush1.bf16.msra.mxu0 %v3464
  %5081 = vmatprep.subr.bf16.mxu0 0
  %5082 = vmatpush1.bf16.msra.mxu0 %v3465
  %5083 = vmatprep.subr.bf16.mxu0 0
  %5084 = vmatpush1.bf16.msra.mxu0 %v3466
  %5085 = vmatprep.subr.bf16.mxu0 0
  %5086 = vmatpush1.bf16.msra.mxu0 %v3467
  %5087 = vmatprep.subr.bf16.mxu0 0
  %5088 = vmatpush1.bf16.msra.mxu0 %v3468
  %5089 = vmatprep.subr.bf16.mxu0 0
  %5090 = vmatpush1.bf16.msra.mxu0 %v3469
  %5091 = vmatprep.subr.bf16.mxu0 0
  %5092 = vmatpush1.bf16.msra.mxu0 %v3470
  %5093 = vmatprep.subr.bf16.mxu0 0
  %5094 = vmatpush1.bf16.msra.mxu0 %v3471
  %5095 = vmatprep.subr.bf16.mxu0 0
  %5096 = vmatpush1.bf16.msra.mxu0 %v3472
  %5097 = vmatprep.mubr.bf16.mxu0 %v1738
  %5098 = vmatmul.mubr.bf16.gmra.mrb[0].mxu0 %v1737
  %v5099 = vpop.f32.mrb[0].mxu0
  %v5100 = vadd.f32 %v4980, %v5099
  %v5101 = vpop.f32.mrb[0].mxu0
  %v5102 = vpop.f32.mrb[0].mxu0
  %v5103 = vadd.f32 %v4983, %v5102
  %v5104 = vpop.f32.mrb[0].mxu0
  %5105 = vmatprep.mubr.bf16.mxu0 %v1767
  %5106 = vmatmul.mubr.bf16.gmra.mrb[0].mxu0 %v1766
  %v5107 = vpop.f32.mrb[0].mxu0
  %v5108 = vadd.f32 %v4988, %v5107
  %v5109 = vpop.f32.mrb[0].mxu0
  %v5110 = vpop.f32.mrb[0].mxu0
  %v5111 = vadd.f32 %v4991, %v5110
  %v5112 = vpop.f32.mrb[0].mxu0
  %5113 = vmatprep.mubr.bf16.mxu0 %v1796
  %5114 = vmatmul.mubr.bf16.gmra.mrb[0].mxu0 %v1795
  %v5115 = vpop.f32.mrb[0].mxu0
  %v5116 = vadd.f32 %v4996, %v5115
  %v5117 = vpop.f32.mrb[0].mxu0
  %v5118 = vpop.f32.mrb[0].mxu0
  %v5119 = vadd.f32 %v4999, %v5118
  %v5120 = vpop.f32.mrb[0].mxu0
  %5121 = vmatprep.mubr.bf16.mxu0 %v1825
  %5122 = vmatmul.mubr.bf16.gmra.mrb[0].mxu0 %v1824
  %v5123 = vpop.f32.mrb[0].mxu0
  %v5124 = vadd.f32 %v5004, %v5123
  %v5125 = vpop.f32.mrb[0].mxu0
  %v5126 = vpop.f32.mrb[0].mxu0
  %v5127 = vadd.f32 %v5007, %v5126
  %v5128 = vpop.f32.mrb[0].mxu0
  %5129 = vmatprep.mubr.bf16.mxu0 %v1854
  %5130 = vmatmul.mubr.bf16.gmra.mrb[0].mxu0 %v1853
  %v5131 = vpop.f32.mrb[0].mxu0
  %v5132 = vadd.f32 %v5012, %v5131
  %v5133 = vpop.f32.mrb[0].mxu0
  %v5134 = vpop.f32.mrb[0].mxu0
  %v5135 = vadd.f32 %v5015, %v5134
  %v5136 = vpop.f32.mrb[0].mxu0
  %5137 = vmatprep.mubr.bf16.mxu0 %v1883
  %5138 = vmatmul.mubr.bf16.gmra.mrb[0].mxu0 %v1882
  %v5139 = vpop.f32.mrb[0].mxu0
  %v5140 = vadd.f32 %v5020, %v5139
  %v5141 = vpop.f32.mrb[0].mxu0
  %v5142 = vpop.f32.mrb[0].mxu0
  %v5143 = vadd.f32 %v5023, %v5142
  %v5144 = vpop.f32.mrb[0].mxu0
  %5145 = vmatprep.mubr.bf16.mxu0 %v1912
  %5146 = vmatmul.mubr.bf16.gmra.mrb[0].mxu0 %v1911
  %v5147 = vpop.f32.mrb[0].mxu0
  %v5148 = vadd.f32 %v5028, %v5147
  %v5149 = vpop.f32.mrb[0].mxu0
  %v5150 = vpop.f32.mrb[0].mxu0
  %v5151 = vadd.f32 %v5031, %v5150
  %v5152 = vpop.f32.mrb[0].mxu0
  %5153 = vmatprep.mubr.bf16.mxu0 %v1941
  %5154 = vmatmul.mubr.bf16.gmra.mrb[0].mxu0 %v1940
  %v5155 = vpop.f32.mrb[0].mxu0
  %v5156 = vadd.f32 %v5036, %v5155
  %v5157 = vpop.f32.mrb[0].mxu0
  %v5158 = vpop.f32.mrb[0].mxu0
  %v5159 = vadd.f32 %v5039, %v5158
  %v5160 = vpop.f32.mrb[0].mxu0
  %5161 = vmatprep.mubr.bf16.mxu0 %v1970
  %5162 = vmatmul.mubr.bf16.gmra.mrb[0].mxu0 %v1969
  %v5163 = vpop.f32.mrb[0].mxu0
  %v5164 = vadd.f32 %v5044, %v5163
  %v5165 = vpop.f32.mrb[0].mxu0
  %v5166 = vpop.f32.mrb[0].mxu0
  %v5167 = vadd.f32 %v5047, %v5166
  %v5168 = vpop.f32.mrb[0].mxu0
  %5169 = vmatprep.mubr.bf16.mxu0 %v1999
  %5170 = vmatmul.mubr.bf16.gmra.mrb[0].mxu0 %v1998
  %v5171 = vpop.f32.mrb[0].mxu0
  %v5172 = vadd.f32 %v5052, %v5171
  %v5173 = vpop.f32.mrb[0].mxu0
  %v5174 = vpop.f32.mrb[0].mxu0
  %v5175 = vadd.f32 %v5055, %v5174
  %v5176 = vpop.f32.mrb[0].mxu0
  %5177 = vmatprep.mubr.bf16.mxu0 %v2028
  %5178 = vmatmul.mubr.bf16.gmra.mrb[0].mxu0 %v2027
  %v5179 = vpop.f32.mrb[0].mxu0
  %v5180 = vadd.f32 %v5060, %v5179
  %v5181 = vpop.f32.mrb[0].mxu0
  %v5182 = vpop.f32.mrb[0].mxu0
  %v5183 = vpop.f32.mrb[0].mxu0
  %5184 = vdwg.mxu0
  %5185 = vmatprep.subr.bf16.mxu0 0
  %5186 = vmatpush1.bf16.msra.mxu0 %v3473
  %5187 = vmatprep.subr.bf16.mxu0 0
  %5188 = vmatpush1.bf16.msra.mxu0 %v3474
  %5189 = vmatprep.subr.bf16.mxu0 0
  %5190 = vmatpush1.bf16.msra.mxu0 %v3475
  %5191 = vmatprep.subr.bf16.mxu0 0
  %5192 = vmatpush1.bf16.msra.mxu0 %v3476
  %5193 = vmatprep.subr.bf16.mxu0 0
  %5194 = vmatpush1.bf16.msra.mxu0 %v3477
  %5195 = vmatprep.subr.bf16.mxu0 0
  %5196 = vmatpush1.bf16.msra.mxu0 %v3478
  %5197 = vmatprep.subr.bf16.mxu0 0
  %5198 = vmatpush1.bf16.msra.mxu0 %v3479
  %5199 = vmatprep.subr.bf16.mxu0 0
  %5200 = vmatpush1.bf16.msra.mxu0 %v3480
  %5201 = vmatprep.subr.bf16.mxu0 0
  %5202 = vmatpush1.bf16.msra.mxu0 %v3481
  %5203 = vmatprep.subr.bf16.mxu0 0
  %5204 = vmatpush1.bf16.msra.mxu0 %v3482
  %5205 = vmatprep.subr.bf16.mxu0 0
  %5206 = vmatpush1.bf16.msra.mxu0 %v3483
  %5207 = vmatprep.subr.bf16.mxu0 0
  %5208 = vmatpush1.bf16.msra.mxu0 %v3484
  %5209 = vmatprep.subr.bf16.mxu0 0
  %5210 = vmatpush1.bf16.msra.mxu0 %v3485
  %5211 = vmatprep.subr.bf16.mxu0 0
  %5212 = vmatpush1.bf16.msra.mxu0 %v3486
  %5213 = vmatprep.subr.bf16.mxu0 0
  %5214 = vmatpush1.bf16.msra.mxu0 %v3487
  %5215 = vmatprep.subr.bf16.mxu0 0
  %5216 = vmatpush1.bf16.msra.mxu0 %v3488
  %5217 = vmatprep.mubr.bf16.mxu0 %v1740
  %5218 = vmatmul.mubr.bf16.gmra.mrb[0].mxu0 %v1739
  %v5219 = vpop.f32.mrb[0].mxu0
  %v5220 = vadd.f32 %v5100, %v5219
  %v5221 = vpop.f32.mrb[0].mxu0
  %v5222 = vpop.f32.mrb[0].mxu0
  %v5223 = vadd.f32 %v5103, %v5222
  %v5224 = vpop.f32.mrb[0].mxu0
  %5225 = vmatprep.mubr.bf16.mxu0 %v1769
  %5226 = vmatmul.mubr.bf16.gmra.mrb[0].mxu0 %v1768
  %v5227 = vpop.f32.mrb[0].mxu0
  %v5228 = vadd.f32 %v5108, %v5227
  %v5229 = vpop.f32.mrb[0].mxu0
  %v5230 = vpop.f32.mrb[0].mxu0
  %v5231 = vadd.f32 %v5111, %v5230
  %v5232 = vpop.f32.mrb[0].mxu0
  %5233 = vmatprep.mubr.bf16.mxu0 %v1798
  %5234 = vmatmul.mubr.bf16.gmra.mrb[0].mxu0 %v1797
  %v5235 = vpop.f32.mrb[0].mxu0
  %v5236 = vadd.f32 %v5116, %v5235
  %v5237 = vpop.f32.mrb[0].mxu0
  %v5238 = vpop.f32.mrb[0].mxu0
  %v5239 = vadd.f32 %v5119, %v5238
  %v5240 = vpop.f32.mrb[0].mxu0
  %5241 = vmatprep.mubr.bf16.mxu0 %v1827
  %5242 = vmatmul.mubr.bf16.gmra.mrb[0].mxu0 %v1826
  %v5243 = vpop.f32.mrb[0].mxu0
  %v5244 = vadd.f32 %v5124, %v5243
  %v5245 = vpop.f32.mrb[0].mxu0
  %v5246 = vpop.f32.mrb[0].mxu0
  %v5247 = vadd.f32 %v5127, %v5246
  %v5248 = vpop.f32.mrb[0].mxu0
  %5249 = vmatprep.mubr.bf16.mxu0 %v1856
  %5250 = vmatmul.mubr.bf16.gmra.mrb[0].mxu0 %v1855
  %v5251 = vpop.f32.mrb[0].mxu0
  %v5252 = vadd.f32 %v5132, %v5251
  %v5253 = vpop.f32.mrb[0].mxu0
  %v5254 = vpop.f32.mrb[0].mxu0
  %v5255 = vadd.f32 %v5135, %v5254
  %v5256 = vpop.f32.mrb[0].mxu0
  %5257 = vmatprep.mubr.bf16.mxu0 %v1885
  %5258 = vmatmul.mubr.bf16.gmra.mrb[0].mxu0 %v1884
  %v5259 = vpop.f32.mrb[0].mxu0
  %v5260 = vadd.f32 %v5140, %v5259
  %v5261 = vpop.f32.mrb[0].mxu0
  %v5262 = vpop.f32.mrb[0].mxu0
  %v5263 = vadd.f32 %v5143, %v5262
  %v5264 = vpop.f32.mrb[0].mxu0
  %5265 = vmatprep.mubr.bf16.mxu0 %v1914
  %5266 = vmatmul.mubr.bf16.gmra.mrb[0].mxu0 %v1913
  %v5267 = vpop.f32.mrb[0].mxu0
  %v5268 = vadd.f32 %v5148, %v5267
  %v5269 = vpop.f32.mrb[0].mxu0
  %v5270 = vpop.f32.mrb[0].mxu0
  %v5271 = vadd.f32 %v5151, %v5270
  %v5272 = vpop.f32.mrb[0].mxu0
  %5273 = vmatprep.mubr.bf16.mxu0 %v1943
  %5274 = vmatmul.mubr.bf16.gmra.mrb[0].mxu0 %v1942
  %v5275 = vpop.f32.mrb[0].mxu0
  %v5276 = vadd.f32 %v5156, %v5275
  %v5277 = vpop.f32.mrb[0].mxu0
  %v5278 = vpop.f32.mrb[0].mxu0
  %v5279 = vadd.f32 %v5159, %v5278
  %v5280 = vpop.f32.mrb[0].mxu0
  %5281 = vmatprep.mubr.bf16.mxu0 %v1972
  %5282 = vmatmul.mubr.bf16.gmra.mrb[0].mxu0 %v1971
  %v5283 = vpop.f32.mrb[0].mxu0
  %v5284 = vadd.f32 %v5164, %v5283
  %v5285 = vpop.f32.mrb[0].mxu0
  %v5286 = vpop.f32.mrb[0].mxu0
  %v5287 = vadd.f32 %v5167, %v5286
  %v5288 = vpop.f32.mrb[0].mxu0
  %5289 = vmatprep.mubr.bf16.mxu0 %v2001
  %5290 = vmatmul.mubr.bf16.gmra.mrb[0].mxu0 %v2000
  %v5291 = vpop.f32.mrb[0].mxu0
  %v5292 = vadd.f32 %v5172, %v5291
  %v5293 = vpop.f32.mrb[0].mxu0
  %v5294 = vpop.f32.mrb[0].mxu0
  %v5295 = vadd.f32 %v5175, %v5294
  %v5296 = vpop.f32.mrb[0].mxu0
  %5297 = vmatprep.mubr.bf16.mxu0 %v2030
  %5298 = vmatmul.mubr.bf16.gmra.mrb[0].mxu0 %v2029
  %v5299 = vpop.f32.mrb[0].mxu0
  %v5300 = vadd.f32 %v5180, %v5299
  %v5301 = vpop.f32.mrb[0].mxu0
  %v5302 = vpop.f32.mrb[0].mxu0
  %v5303 = vpop.f32.mrb[0].mxu0
  %5304 = vdwg.mxu0
  %5305 = vmatprep.subr.bf16.mxu0 0
  %5306 = vmatpush1.bf16.msra.mxu0 %v3489
  %5307 = vmatprep.subr.bf16.mxu0 0
  %5308 = vmatpush1.bf16.msra.mxu0 %v3490
  %5309 = vmatprep.subr.bf16.mxu0 0
  %5310 = vmatpush1.bf16.msra.mxu0 %v3491
  %5311 = vmatprep.subr.bf16.mxu0 0
  %5312 = vmatpush1.bf16.msra.mxu0 %v3492
  %5313 = vmatprep.subr.bf16.mxu0 0
  %5314 = vmatpush1.bf16.msra.mxu0 %v3493
  %5315 = vmatprep.subr.bf16.mxu0 0
  %5316 = vmatpush1.bf16.msra.mxu0 %v3494
  %5317 = vmatprep.subr.bf16.mxu0 0
  %5318 = vmatpush1.bf16.msra.mxu0 %v3495
  %5319 = vmatprep.subr.bf16.mxu0 0
  %5320 = vmatpush1.bf16.msra.mxu0 %v3496
  %5321 = vmatprep.subr.bf16.mxu0 0
  %5322 = vmatpush1.bf16.msra.mxu0 %v3497
  %5323 = vmatprep.subr.bf16.mxu0 0
  %5324 = vmatpush1.bf16.msra.mxu0 %v3498
  %5325 = vmatprep.subr.bf16.mxu0 0
  %5326 = vmatpush1.bf16.msra.mxu0 %v3499
  %5327 = vmatprep.subr.bf16.mxu0 0
  %5328 = vmatpush1.bf16.msra.mxu0 %v3500
  %5329 = vmatprep.subr.bf16.mxu0 0
  %5330 = vmatpush1.bf16.msra.mxu0 %v3501
  %5331 = vmatprep.subr.bf16.mxu0 0
  %5332 = vmatpush1.bf16.msra.mxu0 %v3502
  %5333 = vmatprep.subr.bf16.mxu0 0
  %5334 = vmatpush1.bf16.msra.mxu0 %v3503
  %5335 = vmatprep.subr.bf16.mxu0 0
  %5336 = vmatpush1.bf16.msra.mxu0 %v3504
  %5337 = vmatprep.mubr.bf16.mxu0 %v1742
  %5338 = vmatmul.mubr.bf16.gmra.mrb[0].mxu0 %v1741
  %v5339 = vpop.f32.mrb[0].mxu0
  %v5340 = vadd.f32 %v5220, %v5339
  %v5341 = vpop.f32.mrb[0].mxu0
  %v5342 = vpop.f32.mrb[0].mxu0
  %v5343 = vadd.f32 %v5223, %v5342
  %v5344 = vpop.f32.mrb[0].mxu0
  %5345 = vmatprep.mubr.bf16.mxu0 %v1771
  %5346 = vmatmul.mubr.bf16.gmra.mrb[0].mxu0 %v1770
  %v5347 = vpop.f32.mrb[0].mxu0
  %v5348 = vadd.f32 %v5228, %v5347
  %v5349 = vpop.f32.mrb[0].mxu0
  %v5350 = vpop.f32.mrb[0].mxu0
  %v5351 = vadd.f32 %v5231, %v5350
  %v5352 = vpop.f32.mrb[0].mxu0
  %5353 = vmatprep.mubr.bf16.mxu0 %v1800
  %5354 = vmatmul.mubr.bf16.gmra.mrb[0].mxu0 %v1799
  %v5355 = vpop.f32.mrb[0].mxu0
  %v5356 = vadd.f32 %v5236, %v5355
  %v5357 = vpop.f32.mrb[0].mxu0
  %v5358 = vpop.f32.mrb[0].mxu0
  %v5359 = vadd.f32 %v5239, %v5358
  %v5360 = vpop.f32.mrb[0].mxu0
  %5361 = vmatprep.mubr.bf16.mxu0 %v1829
  %5362 = vmatmul.mubr.bf16.gmra.mrb[0].mxu0 %v1828
  %v5363 = vpop.f32.mrb[0].mxu0
  %v5364 = vadd.f32 %v5244, %v5363
  %v5365 = vpop.f32.mrb[0].mxu0
  %v5366 = vpop.f32.mrb[0].mxu0
  %v5367 = vadd.f32 %v5247, %v5366
  %v5368 = vpop.f32.mrb[0].mxu0
  %5369 = vmatprep.mubr.bf16.mxu0 %v1858
  %5370 = vmatmul.mubr.bf16.gmra.mrb[0].mxu0 %v1857
  %v5371 = vpop.f32.mrb[0].mxu0
  %v5372 = vadd.f32 %v5252, %v5371
  %v5373 = vpop.f32.mrb[0].mxu0
  %v5374 = vpop.f32.mrb[0].mxu0
  %v5375 = vadd.f32 %v5255, %v5374
  %v5376 = vpop.f32.mrb[0].mxu0
  %5377 = vmatprep.mubr.bf16.mxu0 %v1887
  %5378 = vmatmul.mubr.bf16.gmra.mrb[0].mxu0 %v1886
  %v5379 = vpop.f32.mrb[0].mxu0
  %v5380 = vadd.f32 %v5260, %v5379
  %v5381 = vpop.f32.mrb[0].mxu0
  %v5382 = vpop.f32.mrb[0].mxu0
  %v5383 = vadd.f32 %v5263, %v5382
  %v5384 = vpop.f32.mrb[0].mxu0
  %5385 = vmatprep.mubr.bf16.mxu0 %v1916
  %5386 = vmatmul.mubr.bf16.gmra.mrb[0].mxu0 %v1915
  %v5387 = vpop.f32.mrb[0].mxu0
  %v5388 = vadd.f32 %v5268, %v5387
  %v5389 = vpop.f32.mrb[0].mxu0
  %v5390 = vpop.f32.mrb[0].mxu0
  %v5391 = vadd.f32 %v5271, %v5390
  %v5392 = vpop.f32.mrb[0].mxu0
  %5393 = vmatprep.mubr.bf16.mxu0 %v1945
  %5394 = vmatmul.mubr.bf16.gmra.mrb[0].mxu0 %v1944
  %v5395 = vpop.f32.mrb[0].mxu0
  %v5396 = vadd.f32 %v5276, %v5395
  %v5397 = vpop.f32.mrb[0].mxu0
  %v5398 = vpop.f32.mrb[0].mxu0
  %v5399 = vadd.f32 %v5279, %v5398
  %v5400 = vpop.f32.mrb[0].mxu0
  %5401 = vmatprep.mubr.bf16.mxu0 %v1974
  %5402 = vmatmul.mubr.bf16.gmra.mrb[0].mxu0 %v1973
  %v5403 = vpop.f32.mrb[0].mxu0
  %v5404 = vadd.f32 %v5284, %v5403
  %v5405 = vpop.f32.mrb[0].mxu0
  %v5406 = vpop.f32.mrb[0].mxu0
  %v5407 = vadd.f32 %v5287, %v5406
  %v5408 = vpop.f32.mrb[0].mxu0
  %5409 = vmatprep.mubr.bf16.mxu0 %v2003
  %5410 = vmatmul.mubr.bf16.gmra.mrb[0].mxu0 %v2002
  %v5411 = vpop.f32.mrb[0].mxu0
  %v5412 = vadd.f32 %v5292, %v5411
  %v5413 = vpop.f32.mrb[0].mxu0
  %v5414 = vpop.f32.mrb[0].mxu0
  %v5415 = vadd.f32 %v5295, %v5414
  %v5416 = vpop.f32.mrb[0].mxu0
  %5417 = vmatprep.mubr.bf16.mxu0 %v2032
  %5418 = vmatmul.mubr.bf16.gmra.mrb[0].mxu0 %v2031
  %v5419 = vpop.f32.mrb[0].mxu0
  %v5420 = vadd.f32 %v5300, %v5419
  %v5421 = vpop.f32.mrb[0].mxu0
  %v5422 = vpop.f32.mrb[0].mxu0
  %v5423 = vpop.f32.mrb[0].mxu0
  %5424 = vdwg.mxu0
  %5425 = vmatprep.subr.bf16.mxu0 0
  %5426 = vmatpush1.bf16.msra.mxu0 %v3505
  %5427 = vmatprep.subr.bf16.mxu0 0
  %5428 = vmatpush1.bf16.msra.mxu0 %v3506
  %5429 = vmatprep.subr.bf16.mxu0 0
  %5430 = vmatpush1.bf16.msra.mxu0 %v3507
  %5431 = vmatprep.subr.bf16.mxu0 0
  %5432 = vmatpush1.bf16.msra.mxu0 %v3508
  %5433 = vmatprep.subr.bf16.mxu0 0
  %5434 = vmatpush1.bf16.msra.mxu0 %v3509
  %5435 = vmatprep.subr.bf16.mxu0 0
  %5436 = vmatpush1.bf16.msra.mxu0 %v3510
  %5437 = vmatprep.subr.bf16.mxu0 0
  %5438 = vmatpush1.bf16.msra.mxu0 %v3511
  %5439 = vmatprep.subr.bf16.mxu0 0
  %5440 = vmatpush1.bf16.msra.mxu0 %v3512
  %5441 = vmatprep.subr.bf16.mxu0 0
  %5442 = vmatpush1.bf16.msra.mxu0 0
  %5443 = vmatprep.subr.bf16.mxu0 0
  %5444 = vmatpush1.bf16.msra.mxu0 0
  %5445 = vmatprep.subr.bf16.mxu0 0
  %5446 = vmatpush1.bf16.msra.mxu0 0
  %5447 = vmatprep.subr.bf16.mxu0 0
  %5448 = vmatpush1.bf16.msra.mxu0 0
  %5449 = vmatprep.subr.bf16.mxu0 0
  %5450 = vmatpush1.bf16.msra.mxu0 0
  %5451 = vmatprep.subr.bf16.mxu0 0
  %5452 = vmatpush1.bf16.msra.mxu0 0
  %5453 = vmatprep.subr.bf16.mxu0 0
  %5454 = vmatpush1.bf16.msra.mxu0 0
  %5455 = vmatprep.subr.bf16.mxu0 0
  %5456 = vmatpush1.bf16.msra.mxu0 0
  %5457 = vmatprep.mubr.bf16.mxu0 0
  %5458 = vmatmul.mubr.bf16.gmra.mrb[0].mxu0 %v1743
  %v5459 = vpop.f32.mrb[0].mxu0
  %v5460 = vadd.f32 %v5340, %v5459
  %v5461 = vpop.f32.mrb[0].mxu0
  %v5462 = vpop.f32.mrb[0].mxu0
  %v5463 = vadd.f32 %v5343, %v5462
  %v5464 = vpop.f32.mrb[0].mxu0
  %5465 = vmatprep.mubr.bf16.mxu0 0
  %5466 = vmatmul.mubr.bf16.gmra.mrb[0].mxu0 %v1772
  %v5467 = vpop.f32.mrb[0].mxu0
  %v5468 = vadd.f32 %v5348, %v5467
  %v5469 = vpop.f32.mrb[0].mxu0
  %v5470 = vpop.f32.mrb[0].mxu0
  %v5471 = vadd.f32 %v5351, %v5470
  %v5472 = vpop.f32.mrb[0].mxu0
  %5473 = vmatprep.mubr.bf16.mxu0 0
  %5474 = vmatmul.mubr.bf16.gmra.mrb[0].mxu0 %v1801
  %v5475 = vpop.f32.mrb[0].mxu0
  %v5476 = vadd.f32 %v5356, %v5475
  %v5477 = vpop.f32.mrb[0].mxu0
  %v5478 = vpop.f32.mrb[0].mxu0
  %v5479 = vadd.f32 %v5359, %v5478
  %v5480 = vpop.f32.mrb[0].mxu0
  %5481 = vmatprep.mubr.bf16.mxu0 0
  %5482 = vmatmul.mubr.bf16.gmra.mrb[0].mxu0 %v1830
  %v5483 = vpop.f32.mrb[0].mxu0
  %v5484 = vadd.f32 %v5364, %v5483
  %v5485 = vpop.f32.mrb[0].mxu0
  %v5486 = vpop.f32.mrb[0].mxu0
  %v5487 = vadd.f32 %v5367, %v5486
  %v5488 = vpop.f32.mrb[0].mxu0
  %5489 = vmatprep.mubr.bf16.mxu0 0
  %5490 = vmatmul.mubr.bf16.gmra.mrb[0].mxu0 %v1859
  %v5491 = vpop.f32.mrb[0].mxu0
  %v5492 = vadd.f32 %v5372, %v5491
  %v5493 = vpop.f32.mrb[0].mxu0
  %v5494 = vpop.f32.mrb[0].mxu0
  %v5495 = vadd.f32 %v5375, %v5494
  %v5496 = vpop.f32.mrb[0].mxu0
  %5497 = vmatprep.mubr.bf16.mxu0 0
  %5498 = vmatmul.mubr.bf16.gmra.mrb[0].mxu0 %v1888
  %v5499 = vpop.f32.mrb[0].mxu0
  %v5500 = vadd.f32 %v5380, %v5499
  %v5501 = vpop.f32.mrb[0].mxu0
  %v5502 = vpop.f32.mrb[0].mxu0
  %v5503 = vadd.f32 %v5383, %v5502
  %v5504 = vpop.f32.mrb[0].mxu0
  %5505 = vmatprep.mubr.bf16.mxu0 0
  %5506 = vmatmul.mubr.bf16.gmra.mrb[0].mxu0 %v1917
  %v5507 = vpop.f32.mrb[0].mxu0
  %v5508 = vadd.f32 %v5388, %v5507
  %v5509 = vpop.f32.mrb[0].mxu0
  %v5510 = vpop.f32.mrb[0].mxu0
  %v5511 = vadd.f32 %v5391, %v5510
  %v5512 = vpop.f32.mrb[0].mxu0
  %5513 = vmatprep.mubr.bf16.mxu0 0
  %5514 = vmatmul.mubr.bf16.gmra.mrb[0].mxu0 %v1946
  %v5515 = vpop.f32.mrb[0].mxu0
  %v5516 = vadd.f32 %v5396, %v5515
  %v5517 = vpop.f32.mrb[0].mxu0
  %v5518 = vpop.f32.mrb[0].mxu0
  %v5519 = vadd.f32 %v5399, %v5518
  %v5520 = vpop.f32.mrb[0].mxu0
  %5521 = vmatprep.mubr.bf16.mxu0 0
  %5522 = vmatmul.mubr.bf16.gmra.mrb[0].mxu0 %v1975
  %v5523 = vpop.f32.mrb[0].mxu0
  %v5524 = vadd.f32 %v5404, %v5523
  %v5525 = vpop.f32.mrb[0].mxu0
  %v5526 = vpop.f32.mrb[0].mxu0
  %v5527 = vadd.f32 %v5407, %v5526
  %v5528 = vpop.f32.mrb[0].mxu0
  %5529 = vmatprep.mubr.bf16.mxu0 0
  %5530 = vmatmul.mubr.bf16.gmra.mrb[0].mxu0 %v2004
  %v5531 = vpop.f32.mrb[0].mxu0
  %v5532 = vadd.f32 %v5412, %v5531
  %v5533 = vpop.f32.mrb[0].mxu0
  %v5534 = vpop.f32.mrb[0].mxu0
  %v5535 = vadd.f32 %v5415, %v5534
  %v5536 = vpop.f32.mrb[0].mxu0
  %5537 = vmatprep.mubr.bf16.mxu0 0
  %5538 = vmatmul.mubr.bf16.gmra.mrb[0].mxu0 %v2033
  %v5539 = vpop.f32.mrb[0].mxu0
  %v5540 = vadd.f32 %v5420, %v5539
  %v5541 = vpop.f32.mrb[0].mxu0
  %v5542 = vpop.f32.mrb[0].mxu0
  %v5543 = vpop.f32.mrb[0].mxu0
  %5544 = vdwg.mxu0
  %v5545 = vadd.f32 %v5460, %v5463
  %v5546 = vadd.f32 %v5545, %v5468
  %v5547 = vadd.f32 %v5546, %v5471
  %v5548 = vadd.f32 %v5547, %v5476
  %v5549 = vadd.f32 %v5548, %v5479
  %v5550 = vadd.f32 %v5549, %v5484
  %v5551 = vadd.f32 %v5550, %v5487
  %v5552 = vadd.f32 %v5551, %v5492
  %v5553 = vadd.f32 %v5552, %v5495
  %v5554 = vadd.f32 %v5553, %v5500
  %v5555 = vadd.f32 %v5554, %v5503
  %v5556 = vadd.f32 %v5555, %v5508
  %v5557 = vadd.f32 %v5556, %v5511
  %v5558 = vadd.f32 %v5557, %v5516
  %v5559 = vadd.f32 %v5558, %v5519
  %v5560 = vrot.slane %v5559, 4
  %v5561 = vadd.f32 %v5559, %v5560
  %v5562 = vrot.slane %v5561, 2
  %v5563 = vadd.f32 %v5561, %v5562
  %v5564 = vrot.slane %v5563, 1
  %v5565 = vadd.f32 %v5563, %v5564
  %v5566 = vmul.f32 %v5565, 0.0078125
  %v5567 = vmul.f32 %v5460, %v5460
  %v5568 = vmul.f32 %v5463, %v5463
  %v5569 = vmul.f32 %v5468, %v5468
  %v5570 = vmul.f32 %v5471, %v5471
  %v5571 = vmul.f32 %v5476, %v5476
  %v5572 = vmul.f32 %v5479, %v5479
  %v5573 = vmul.f32 %v5484, %v5484
  %v5574 = vmul.f32 %v5487, %v5487
  %v5575 = vmul.f32 %v5492, %v5492
  %v5576 = vmul.f32 %v5495, %v5495
  %v5577 = vmul.f32 %v5500, %v5500
  %v5578 = vmul.f32 %v5503, %v5503
  %v5579 = vmul.f32 %v5508, %v5508
  %v5580 = vmul.f32 %v5511, %v5511
  %v5581 = vmul.f32 %v5516, %v5516
  %v5582 = vmul.f32 %v5519, %v5519
  %v5583 = vadd.f32 %v5567, %v5568
  %v5584 = vadd.f32 %v5583, %v5569
  %v5585 = vadd.f32 %v5584, %v5570
  %v5586 = vadd.f32 %v5585, %v5571
  %v5587 = vadd.f32 %v5586, %v5572
  %v5588 = vadd.f32 %v5587, %v5573
  %v5589 = vadd.f32 %v5588, %v5574
  %v5590 = vadd.f32 %v5589, %v5575
  %v5591 = vadd.f32 %v5590, %v5576
  %v5592 = vadd.f32 %v5591, %v5577
  %v5593 = vadd.f32 %v5592, %v5578
  %v5594 = vadd.f32 %v5593, %v5579
  %v5595 = vadd.f32 %v5594, %v5580
  %v5596 = vadd.f32 %v5595, %v5581
  %v5597 = vadd.f32 %v5596, %v5582
  %v5598 = vrot.slane %v5597, 4
  %v5599 = vadd.f32 %v5597, %v5598
  %v5600 = vrot.slane %v5599, 2
  %v5601 = vadd.f32 %v5599, %v5600
  %v5602 = vrot.slane %v5601, 1
  %v5603 = vadd.f32 %v5601, %v5602
  %v5604 = vmul.f32 %v5603, 0.0078125
  %v5605 = vmul.f32 %v5566, %v5566
  %v5606 = vsub.f32 %v5604, %v5605
  %v5607 = vmax.f32 %v5606, 0.0
  %v5608 = vadd.f32 %v5607, 1e-05
  %v5609 = vrsqrt.pop %v5608
  %v5610 = vsub.f32 %v5460, %v5566
  %v5611 = vsub.f32 %v5463, %v5566
  %v5612 = vsub.f32 %v5468, %v5566
  %v5613 = vsub.f32 %v5471, %v5566
  %v5614 = vsub.f32 %v5476, %v5566
  %v5615 = vsub.f32 %v5479, %v5566
  %v5616 = vsub.f32 %v5484, %v5566
  %v5617 = vsub.f32 %v5487, %v5566
  %v5618 = vsub.f32 %v5492, %v5566
  %v5619 = vsub.f32 %v5495, %v5566
  %v5620 = vsub.f32 %v5500, %v5566
  %v5621 = vsub.f32 %v5503, %v5566
  %v5622 = vsub.f32 %v5508, %v5566
  %v5623 = vsub.f32 %v5511, %v5566
  %v5624 = vsub.f32 %v5516, %v5566
  %v5625 = vsub.f32 %v5519, %v5566
  %v5626 = vmul.f32 %v5610, %v5609
  %v5627 = vmul.f32 %v5611, %v5609
  %v5628 = vmul.f32 %v5612, %v5609
  %v5629 = vmul.f32 %v5613, %v5609
  %v5630 = vmul.f32 %v5614, %v5609
  %v5631 = vmul.f32 %v5615, %v5609
  %v5632 = vmul.f32 %v5616, %v5609
  %v5633 = vmul.f32 %v5617, %v5609
  %v5634 = vmul.f32 %v5618, %v5609
  %v5635 = vmul.f32 %v5619, %v5609
  %v5636 = vmul.f32 %v5620, %v5609
  %v5637 = vmul.f32 %v5621, %v5609
  %v5638 = vmul.f32 %v5622, %v5609
  %v5639 = vmul.f32 %v5623, %v5609
  %v5640 = vmul.f32 %v5624, %v5609
  %v5641 = vmul.f32 %v5625, %v5609
  %v5642 = vmax.f32 %v5626, 0.0
  %v5643 = vmax.f32 %v5627, 0.0
  %v5644 = vmax.f32 %v5628, 0.0
  %v5645 = vmax.f32 %v5629, 0.0
  %v5646 = vmax.f32 %v5630, 0.0
  %v5647 = vmax.f32 %v5631, 0.0
  %v5648 = vmax.f32 %v5632, 0.0
  %v5649 = vmax.f32 %v5633, 0.0
  %v5650 = vmax.f32 %v5634, 0.0
  %v5651 = vmax.f32 %v5635, 0.0
  %v5652 = vmax.f32 %v5636, 0.0
  %v5653 = vmax.f32 %v5637, 0.0
  %v5654 = vmax.f32 %v5638, 0.0
  %v5655 = vmax.f32 %v5639, 0.0
  %v5656 = vmax.f32 %v5640, 0.0
  %v5657 = vmax.f32 %v5641, 0.0
  %v5658 = vpack.c.bf16 %v5643, %v5642
  %v5659 = vpack.c.bf16 %v5645, %v5644
  %v5660 = vpack.c.bf16 %v5647, %v5646
  %v5661 = vpack.c.bf16 %v5649, %v5648
  %v5662 = vpack.c.bf16 %v5651, %v5650
  %v5663 = vpack.c.bf16 %v5653, %v5652
  %v5664 = vpack.c.bf16 %v5655, %v5654
  %v5665 = vpack.c.bf16 %v5657, %v5656
  %v5674 = vunpack.c.l.b16 %v5658
  %v5675 = vunpack.c.h.b16 %v5658
  %v5676 = vunpack.c.l.b16 %v5659
  %v5677 = vunpack.c.h.b16 %v5659
  %v5678 = vunpack.c.l.b16 %v5660
  %v5679 = vunpack.c.h.b16 %v5660
  %v5680 = vunpack.c.l.b16 %v5661
  %v5681 = vunpack.c.h.b16 %v5661
  %v5682 = vunpack.c.l.b16 %v5662
  %v5683 = vunpack.c.h.b16 %v5662
  %v5684 = vunpack.c.l.b16 %v5663
  %v5685 = vunpack.c.h.b16 %v5663
  %v5686 = vunpack.c.l.b16 %v5664
  %v5687 = vunpack.c.h.b16 %v5664
  %v5688 = vunpack.c.l.b16 %v5665
  %v5689 = vunpack.c.h.b16 %v5665
  %v5690 = vpack.c.b16 %v5674, %v5674
  %v5691 = vpack.c.b16 %v5675, %v5675
  %v5692 = vpack.c.b16 %v5676, %v5676
  %v5693 = vpack.c.b16 %v5677, %v5677
  %v5694 = vpack.c.b16 %v5678, %v5678
  %v5695 = vpack.c.b16 %v5679, %v5679
  %v5696 = vpack.c.b16 %v5680, %v5680
  %v5697 = vpack.c.b16 %v5681, %v5681
  %v5698 = vpack.c.b16 %v5682, %v5682
  %v5699 = vpack.c.b16 %v5683, %v5683
  %v5700 = vpack.c.b16 %v5684, %v5684
  %v5701 = vpack.c.b16 %v5685, %v5685
  %v5702 = vpack.c.b16 %v5686, %v5686
  %v5703 = vpack.c.b16 %v5687, %v5687
  %v5704 = vpack.c.b16 %v5688, %v5688
  %v5705 = vpack.c.b16 %v5689, %v5689
  %5722 = vst [vmem:[%s2] sm:$0xf] %v5690
  %5723 = vst [vmem:[%s2 + $0x4] sm:$0xf] %v5691
  %5724 = vst [vmem:[%s2 + $0x8] sm:$0xf] %v5692
  %5725 = vst [vmem:[%s2 + $0xc] sm:$0xf] %v5693
  %5726 = vst [vmem:[%s2 + $0x10] sm:$0xf] %v5694
  %5727 = vst [vmem:[%s2 + $0x14] sm:$0xf] %v5695
  %5728 = vst [vmem:[%s2 + $0x18] sm:$0xf] %v5696
  %5729 = vst [vmem:[%s2 + $0x1c] sm:$0xf] %v5697
  %5730 = vst [vmem:[%s2 + $0x20] sm:$0xf] %v5698
  %5731 = vst [vmem:[%s2 + $0x24] sm:$0xf] %v5699
  %5732 = vst [vmem:[%s2 + $0x28] sm:$0xf] %v5700
  %5733 = vst [vmem:[%s2 + $0x2c] sm:$0xf] %v5701
  %5734 = vst [vmem:[%s2 + $0x30] sm:$0xf] %v5702
  %5735 = vst [vmem:[%s2 + $0x34] sm:$0xf] %v5703
  %5736 = vst [vmem:[%s2 + $0x38] sm:$0xf] %v5704
  %5737 = vst [vmem:[%s2 + $0x3c] sm:$0xf] %v5705
  %v5738 = vadd.f32 %v5524, %v5527
  %v5739 = vadd.f32 %v5738, %v5532
  %v5740 = vadd.f32 %v5739, %v5535
  %v5741 = vrot.slane %v5740, 4
  %v5742 = vadd.f32 %v5740, %v5741
  %v5743 = vrot.slane %v5742, 2
  %v5744 = vadd.f32 %v5742, %v5743
  %v5745 = vrot.slane %v5744, 1
  %v5746 = vadd.f32 %v5744, %v5745
  %v5747 = vmul.f32 %v5746, 0.03125
  %v5748 = vmul.f32 %v5524, %v5524
  %v5749 = vmul.f32 %v5527, %v5527
  %v5750 = vmul.f32 %v5532, %v5532
  %v5751 = vmul.f32 %v5535, %v5535
  %v5752 = vadd.f32 %v5748, %v5749
  %v5753 = vadd.f32 %v5752, %v5750
  %v5754 = vadd.f32 %v5753, %v5751
  %v5755 = vrot.slane %v5754, 4
  %v5756 = vadd.f32 %v5754, %v5755
  %v5757 = vrot.slane %v5756, 2
  %v5758 = vadd.f32 %v5756, %v5757
  %v5759 = vrot.slane %v5758, 1
  %v5760 = vadd.f32 %v5758, %v5759
  %v5761 = vmul.f32 %v5760, 0.03125
  %v5762 = vmul.f32 %v5747, %v5747
  %v5763 = vsub.f32 %v5761, %v5762
  %v5764 = vmax.f32 %v5763, 0.0
  %v5765 = vadd.f32 %v5764, 1e-05
  %v5766 = vrsqrt.pop %v5765
  %v5767 = vsub.f32 %v5524, %v5747
  %v5768 = vsub.f32 %v5527, %v5747
  %v5769 = vsub.f32 %v5532, %v5747
  %v5770 = vsub.f32 %v5535, %v5747
  %v5771 = vmul.f32 %v5767, %v5766
  %v5772 = vmul.f32 %v5768, %v5766
  %v5773 = vmul.f32 %v5769, %v5766
  %v5774 = vmul.f32 %v5770, %v5766
  %v5775 = vmax.f32 %v5771, 0.0
  %v5776 = vmax.f32 %v5772, 0.0
  %v5777 = vmax.f32 %v5773, 0.0
  %v5778 = vmax.f32 %v5774, 0.0
  %v5779 = vpack.c.bf16 %v5776, %v5775
  %v5780 = vpack.c.bf16 %v5778, %v5777
  %v5783 = vunpack.c.l.b16 %v5779
  %v5784 = vunpack.c.h.b16 %v5779
  %v5785 = vunpack.c.l.b16 %v5780
  %v5786 = vunpack.c.h.b16 %v5780
  %v5787 = vpack.c.b16 %v5783, %v5783
  %v5788 = vpack.c.b16 %v5784, %v5784
  %v5789 = vpack.c.b16 %v5785, %v5785
  %v5790 = vpack.c.b16 %v5786, %v5786
  %5795 = vst [vmem:[%s2 + $0x40] sm:$0xf] %v5787
  %5796 = vst [vmem:[%s2 + $0x44] sm:$0xf] %v5788
  %5797 = vst [vmem:[%s2 + $0x48] sm:$0xf] %v5789
  %5798 = vst [vmem:[%s2 + $0x4c] sm:$0xf] %v5790
  %v5799 = vrot.slane %v5540, 4
  %v5800 = vadd.f32 %v5540, %v5799
  %v5801 = vrot.slane %v5800, 2
  %v5802 = vadd.f32 %v5800, %v5801
  %v5803 = vrot.slane %v5802, 1
  %v5804 = vadd.f32 %v5802, %v5803
  %v5805 = vmul.f32 %v5804, 0.125
  %v5806 = vmul.f32 %v5540, %v5540
  %v5807 = vrot.slane %v5806, 4
  %v5808 = vadd.f32 %v5806, %v5807
  %v5809 = vrot.slane %v5808, 2
  %v5810 = vadd.f32 %v5808, %v5809
  %v5811 = vrot.slane %v5810, 1
  %v5812 = vadd.f32 %v5810, %v5811
  %v5813 = vmul.f32 %v5812, 0.125
  %v5814 = vmul.f32 %v5805, %v5805
  %v5815 = vsub.f32 %v5813, %v5814
  %v5816 = vmax.f32 %v5815, 0.0
  %v5817 = vadd.f32 %v5816, 1e-05
  %v5818 = vrsqrt.pop %v5817
  %v5819 = vsub.f32 %v5540, %v5805
  %v5820 = vmul.f32 %v5819, %v5818
  %v5821 = vmax.f32 %v5820, 0.0
  %v5822 = vpack.c.bf16 %v5821, %v5821
  %5823 = vst [vmem:[%s2 + $0x50] sm:$0xf] %v5822
  // Predicated region
  $region10: #{mscdae_forward.7} parent=0 // pred_check
    _
  $region11: #{mscdae_forward.7} parent=0 // pred_check_branch
    %5825 = sbr.rel (0) target = $region13
  $region12: #{mscdae_forward.7} parent=0 // pred_region
    _
  $region13: #{mscdae_forward.7} parent=0 // pred_fallthru
    _
  // Predicated region
  $region14: #{mscdae_forward.7} parent=0 // pred_check
    _
  $region15: #{mscdae_forward.7} parent=0 // pred_check_branch
    %5827 = sbr.rel (0) target = $region17
  $region16: #{mscdae_forward.7} parent=0 // pred_region
    _
  $region17: #{mscdae_forward.7} parent=0 // pred_fallthru
    _

// kernel: mscdae_forward.9
$region0: #{mscdae_forward.9}
  #allocation0 [shape = 'u32[]', space=smem, size = 0x4, offset = 0x4, fixed_abs, tag = 'smem constant byte address 0x4 - core index']
  #allocation1 [shape = 'u32[144,128]{1,0:T(1,128)}', space=vmem, size = 0x12000, scoped, tag = 'internal scratch']
  %s0 = inlined_call_operand.vmem [shape: bf16[168,896], index: 0, kind: input, shape index: {}]
  %s1 = inlined_call_operand.vmem [shape: bf16[896,128], index: 1, kind: input, shape index: {}]
  %s2 = inlined_call_operand.vmem [shape: bf16[168,128], index: 2, kind: output, shape index: {}]
  %s3 = sld [smem:[#allocation0]]
  $region18: #{mscdae_forward.9} parent=0
    _
  %s5 = ssub.s32 1, %s3
  %s6 = scalar_select 0, %s5, %s3
  // Predicated region
  $region2: #{mscdae_forward.9} parent=0 // pred_check
    _
  $region3: #{mscdae_forward.9} parent=0 // pred_check_branch
    %8 = sbr.rel (0) target = $region5
  $region4: #{mscdae_forward.9} parent=0 // pred_region
    _
  $region5: #{mscdae_forward.9} parent=0 // pred_fallthru
    _
  // Predicated region
  $region6: #{mscdae_forward.9} parent=0 // pred_check
    _
  $region7: #{mscdae_forward.9} parent=0 // pred_check_branch
    %10 = sbr.rel (0) target = $region9
  $region8: #{mscdae_forward.9} parent=0 // pred_region
    _
  $region9: #{mscdae_forward.9} parent=0 // pred_fallthru
    _
  %v12 = vld [vmem:[%s0] sm:$0xff]
  %v13 = vld [vmem:[%s0 + $0x8] sm:$0xff]
  %v14 = vld [vmem:[%s0 + $0x10] sm:$0xff]
  %v15 = vld [vmem:[%s0 + $0x18] sm:$0xf]
  %v16 = vld [vmem:[%s0 + $0x1c] sm:$0xff]
  %v17 = vld [vmem:[%s0 + $0x24] sm:$0xff]
  %v18 = vld [vmem:[%s0 + $0x2c] sm:$0xff]
  %v19 = vld [vmem:[%s0 + $0x34] sm:$0xf]
  %v20 = vld [vmem:[%s0 + $0x38] sm:$0xff]
  %v21 = vld [vmem:[%s0 + $0x40] sm:$0xff]
  %v22 = vld [vmem:[%s0 + $0x48] sm:$0xff]
  %v23 = vld [vmem:[%s0 + $0x50] sm:$0xf]
  %v24 = vld [vmem:[%s0 + $0x54] sm:$0xff]
  %v25 = vld [vmem:[%s0 + $0x5c] sm:$0xff]
  %v26 = vld [vmem:[%s0 + $0x64] sm:$0xff]
  %v27 = vld [vmem:[%s0 + $0x6c] sm:$0xf]
  %v28 = vld [vmem:[%s0 + $0x70] sm:$0xff]
  %v29 = vld [vmem:[%s0 + $0x78] sm:$0xff]
  %v30 = vld [vmem:[%s0 + $0x80] sm:$0xff]
  %v31 = vld [vmem:[%s0 + $0x88] sm:$0xf]
  %v32 = vld [vmem:[%s0 + $0x8c] sm:$0xff]
  %v33 = vld [vmem:[%s0 + $0x94] sm:$0xff]
  %v34 = vld [vmem:[%s0 + $0x9c] sm:$0xff]
  %v35 = vld [vmem:[%s0 + $0xa4] sm:$0xf]
  %v36 = vld [vmem:[%s0 + $0xa8] sm:$0xff]
  %v37 = vld [vmem:[%s0 + $0xb0] sm:$0xff]
  %v38 = vld [vmem:[%s0 + $0xb8] sm:$0xff]
  %v39 = vld [vmem:[%s0 + $0xc0] sm:$0xf]
  %v40 = vld [vmem:[%s0 + $0xc4] sm:$0xff]
  %v41 = vld [vmem:[%s0 + $0xcc] sm:$0xff]
  %v42 = vld [vmem:[%s0 + $0xd4] sm:$0xff]
  %v43 = vld [vmem:[%s0 + $0xdc] sm:$0xf]
  %v44 = vld [vmem:[%s0 + $0xe0] sm:$0xff]
  %v45 = vld [vmem:[%s0 + $0xe8] sm:$0xff]
  %v46 = vld [vmem:[%s0 + $0xf0] sm:$0xff]
  %v47 = vld [vmem:[%s0 + $0xf8] sm:$0xf]
  %v48 = vld [vmem:[%s0 + $0xfc] sm:$0xff]
  %v49 = vld [vmem:[%s0 + $0x104] sm:$0xff]
  %v50 = vld [vmem:[%s0 + $0x10c] sm:$0xff]
  %v51 = vld [vmem:[%s0 + $0x114] sm:$0xf]
  %v52 = vld [vmem:[%s0 + $0x118] sm:$0xff]
  %v53 = vld [vmem:[%s0 + $0x120] sm:$0xff]
  %v54 = vld [vmem:[%s0 + $0x128] sm:$0xff]
  %v55 = vld [vmem:[%s0 + $0x130] sm:$0xf]
  %v56 = vld [vmem:[%s0 + $0x134] sm:$0xff]
  %v57 = vld [vmem:[%s0 + $0x13c] sm:$0xff]
  %v58 = vld [vmem:[%s0 + $0x144] sm:$0xff]
  %v59 = vld [vmem:[%s0 + $0x14c] sm:$0xf]
  %v60 = vld [vmem:[%s0 + $0x150] sm:$0xff]
  %v61 = vld [vmem:[%s0 + $0x158] sm:$0xff]
  %v62 = vld [vmem:[%s0 + $0x160] sm:$0xff]
  %v63 = vld [vmem:[%s0 + $0x168] sm:$0xf]
  %v64 = vld [vmem:[%s0 + $0x16c] sm:$0xff]
  %v65 = vld [vmem:[%s0 + $0x174] sm:$0xff]
  %v66 = vld [vmem:[%s0 + $0x17c] sm:$0xff]
  %v67 = vld [vmem:[%s0 + $0x184] sm:$0xf]
  %v68 = vld [vmem:[%s0 + $0x188] sm:$0xff]
  %v69 = vld [vmem:[%s0 + $0x190] sm:$0xff]
  %v70 = vld [vmem:[%s0 + $0x198] sm:$0xff]
  %v71 = vld [vmem:[%s0 + $0x1a0] sm:$0xf]
  %v72 = vld [vmem:[%s0 + $0x1a4] sm:$0xff]
  %v73 = vld [vmem:[%s0 + $0x1ac] sm:$0xff]
  %v74 = vld [vmem:[%s0 + $0x1b4] sm:$0xff]
  %v75 = vld [vmem:[%s0 + $0x1bc] sm:$0xf]
  %v76 = vld [vmem:[%s0 + $0x1c0] sm:$0xff]
  %v77 = vld [vmem:[%s0 + $0x1c8] sm:$0xff]
  %v78 = vld [vmem:[%s0 + $0x1d0] sm:$0xff]
  %v79 = vld [vmem:[%s0 + $0x1d8] sm:$0xf]
  %v80 = vld [vmem:[%s0 + $0x1dc] sm:$0xff]
  %v81 = vld [vmem:[%s0 + $0x1e4] sm:$0xff]
  %v82 = vld [vmem:[%s0 + $0x1ec] sm:$0xff]
  %v83 = vld [vmem:[%s0 + $0x1f4] sm:$0xf]
  %v84 = vld [vmem:[%s0 + $0x1f8] sm:$0xff]
  %v85 = vld [vmem:[%s0 + $0x200] sm:$0xff]
  %v86 = vld [vmem:[%s0 + $0x208] sm:$0xff]
  %v87 = vld [vmem:[%s0 + $0x210] sm:$0xf]
  %v88 = vld [vmem:[%s0 + $0x214] sm:$0xff]
  %v89 = vld [vmem:[%s0 + $0x21c] sm:$0xff]
  %v90 = vld [vmem:[%s0 + $0x224] sm:$0xff]
  %v91 = vld [vmem:[%s0 + $0x22c] sm:$0xf]
  %v92 = vld [vmem:[%s0 + $0x230] sm:$0xff]
  %v93 = vld [vmem:[%s0 + $0x238] sm:$0xff]
  %v94 = vld [vmem:[%s0 + $0x240] sm:$0xff]
  %v95 = vld [vmem:[%s0 + $0x248] sm:$0xf]
  %v96 = vld [vmem:[%s1] sm:$0xf]
  %v97 = vld [vmem:[%s1 + $0x4] sm:$0xf]
  %v98 = vld [vmem:[%s1 + $0x8] sm:$0xf]
  %v99 = vld [vmem:[%s1 + $0xc] sm:$0xf]
  %v100 = vld [vmem:[%s1 + $0x10] sm:$0xf]
  %v101 = vld [vmem:[%s1 + $0x14] sm:$0xf]
  %v102 = vld [vmem:[%s1 + $0x18] sm:$0xf]
  %v103 = vld [vmem:[%s1 + $0x1c] sm:$0xf]
  %v104 = vld [vmem:[%s1 + $0x20] sm:$0xf]
  %v105 = vld [vmem:[%s1 + $0x24] sm:$0xf]
  %v106 = vld [vmem:[%s1 + $0x28] sm:$0xf]
  %v107 = vld [vmem:[%s1 + $0x2c] sm:$0xf]
  %v108 = vld [vmem:[%s1 + $0x30] sm:$0xf]
  %v109 = vld [vmem:[%s1 + $0x34] sm:$0xf]
  %v110 = vld [vmem:[%s1 + $0x38] sm:$0xf]
  %v111 = vld [vmem:[%s1 + $0x3c] sm:$0xf]
  %v112 = vld [vmem:[%s1 + $0x40] sm:$0xf]
  %v113 = vld [vmem:[%s1 + $0x44] sm:$0xf]
  %v114 = vld [vmem:[%s1 + $0x48] sm:$0xf]
  %v115 = vld [vmem:[%s1 + $0x4c] sm:$0xf]
  %v116 = vld [vmem:[%s1 + $0x50] sm:$0xf]
  %v117 = vld [vmem:[%s1 + $0x54] sm:$0xf]
  %v118 = vld [vmem:[%s1 + $0x58] sm:$0xf]
  %v119 = vld [vmem:[%s1 + $0x5c] sm:$0xf]
  %v120 = vld [vmem:[%s1 + $0x60] sm:$0xf]
  %v121 = vld [vmem:[%s1 + $0x64] sm:$0xf]
  %v122 = vld [vmem:[%s1 + $0x68] sm:$0xf]
  %v123 = vld [vmem:[%s1 + $0x6c] sm:$0xf]
  %v124 = vld [vmem:[%s1 + $0x70] sm:$0xf]
  %v125 = vld [vmem:[%s1 + $0x74] sm:$0xf]
  %v126 = vld [vmem:[%s1 + $0x78] sm:$0xf]
  %v127 = vld [vmem:[%s1 + $0x7c] sm:$0xf]
  %v128 = vld [vmem:[%s1 + $0x80] sm:$0xf]
  %v129 = vld [vmem:[%s1 + $0x84] sm:$0xf]
  %v130 = vld [vmem:[%s1 + $0x88] sm:$0xf]
  %v131 = vld [vmem:[%s1 + $0x8c] sm:$0xf]
  %v132 = vld [vmem:[%s1 + $0x90] sm:$0xf]
  %v133 = vld [vmem:[%s1 + $0x94] sm:$0xf]
  %v134 = vld [vmem:[%s1 + $0x98] sm:$0xf]
  %v135 = vld [vmem:[%s1 + $0x9c] sm:$0xf]
  %v136 = vld [vmem:[%s1 + $0xa0] sm:$0xf]
  %v137 = vld [vmem:[%s1 + $0xa4] sm:$0xf]
  %v138 = vld [vmem:[%s1 + $0xa8] sm:$0xf]
  %v139 = vld [vmem:[%s1 + $0xac] sm:$0xf]
  %v140 = vld [vmem:[%s1 + $0xb0] sm:$0xf]
  %v141 = vld [vmem:[%s1 + $0xb4] sm:$0xf]
  %v142 = vld [vmem:[%s1 + $0xb8] sm:$0xf]
  %v143 = vld [vmem:[%s1 + $0xbc] sm:$0xf]
  %v144 = vld [vmem:[%s1 + $0xc0] sm:$0xf]
  %v145 = vld [vmem:[%s1 + $0xc4] sm:$0xf]
  %v146 = vld [vmem:[%s1 + $0xc8] sm:$0xf]
  %v147 = vld [vmem:[%s1 + $0xcc] sm:$0xf]
  %v148 = vld [vmem:[%s1 + $0xd0] sm:$0xf]
  %v149 = vld [vmem:[%s1 + $0xd4] sm:$0xf]
  %v150 = vld [vmem:[%s1 + $0xd8] sm:$0xf]
  %v151 = vld [vmem:[%s1 + $0xdc] sm:$0xf]
  %v152 = vld [vmem:[%s1 + $0xe0] sm:$0xf]
  %v153 = vld [vmem:[%s1 + $0xe4] sm:$0xf]
  %v154 = vld [vmem:[%s1 + $0xe8] sm:$0xf]
  %v155 = vld [vmem:[%s1 + $0xec] sm:$0xf]
  %v156 = vld [vmem:[%s1 + $0xf0] sm:$0xf]
  %v157 = vld [vmem:[%s1 + $0xf4] sm:$0xf]
  %v158 = vld [vmem:[%s1 + $0xf8] sm:$0xf]
  %v159 = vld [vmem:[%s1 + $0xfc] sm:$0xf]
  %v160 = vld [vmem:[%s1 + $0x100] sm:$0xf]
  %v161 = vld [vmem:[%s1 + $0x104] sm:$0xf]
  %v162 = vld [vmem:[%s1 + $0x108] sm:$0xf]
  %v163 = vld [vmem:[%s1 + $0x10c] sm:$0xf]
  %v164 = vld [vmem:[%s1 + $0x110] sm:$0xf]
  %v165 = vld [vmem:[%s1 + $0x114] sm:$0xf]
  %v166 = vld [vmem:[%s1 + $0x118] sm:$0xf]
  %v167 = vld [vmem:[%s1 + $0x11c] sm:$0xf]
  %v168 = vld [vmem:[%s1 + $0x120] sm:$0xf]
  %v169 = vld [vmem:[%s1 + $0x124] sm:$0xf]
  %v170 = vld [vmem:[%s1 + $0x128] sm:$0xf]
  %v171 = vld [vmem:[%s1 + $0x12c] sm:$0xf]
  %v172 = vld [vmem:[%s1 + $0x130] sm:$0xf]
  %v173 = vld [vmem:[%s1 + $0x134] sm:$0xf]
  %v174 = vld [vmem:[%s1 + $0x138] sm:$0xf]
  %v175 = vld [vmem:[%s1 + $0x13c] sm:$0xf]
  %v176 = vld [vmem:[%s1 + $0x140] sm:$0xf]
  %v177 = vld [vmem:[%s1 + $0x144] sm:$0xf]
  %v178 = vld [vmem:[%s1 + $0x148] sm:$0xf]
  %v179 = vld [vmem:[%s1 + $0x14c] sm:$0xf]
  %v180 = vld [vmem:[%s1 + $0x150] sm:$0xf]
  %v181 = vld [vmem:[%s1 + $0x154] sm:$0xf]
  %v182 = vld [vmem:[%s1 + $0x158] sm:$0xf]
  %v183 = vld [vmem:[%s1 + $0x15c] sm:$0xf]
  %v184 = vld [vmem:[%s1 + $0x160] sm:$0xf]
  %v185 = vld [vmem:[%s1 + $0x164] sm:$0xf]
  %v186 = vld [vmem:[%s1 + $0x168] sm:$0xf]
  %v187 = vld [vmem:[%s1 + $0x16c] sm:$0xf]
  %v188 = vld [vmem:[%s1 + $0x170] sm:$0xf]
  %v189 = vld [vmem:[%s1 + $0x174] sm:$0xf]
  %v190 = vld [vmem:[%s1 + $0x178] sm:$0xf]
  %v191 = vld [vmem:[%s1 + $0x17c] sm:$0xf]
  %v192 = vld [vmem:[%s1 + $0x180] sm:$0xf]
  %v193 = vld [vmem:[%s1 + $0x184] sm:$0xf]
  %v194 = vld [vmem:[%s1 + $0x188] sm:$0xf]
  %v195 = vld [vmem:[%s1 + $0x18c] sm:$0xf]
  %v196 = vld [vmem:[%s1 + $0x190] sm:$0xf]
  %v197 = vld [vmem:[%s1 + $0x194] sm:$0xf]
  %v198 = vld [vmem:[%s1 + $0x198] sm:$0xf]
  %v199 = vld [vmem:[%s1 + $0x19c] sm:$0xf]
  %v200 = vld [vmem:[%s1 + $0x1a0] sm:$0xf]
  %v201 = vld [vmem:[%s1 + $0x1a4] sm:$0xf]
  %v202 = vld [vmem:[%s1 + $0x1a8] sm:$0xf]
  %v203 = vld [vmem:[%s1 + $0x1ac] sm:$0xf]
  %v204 = vld [vmem:[%s1 + $0x1b0] sm:$0xf]
  %v205 = vld [vmem:[%s1 + $0x1b4] sm:$0xf]
  %v206 = vld [vmem:[%s1 + $0x1b8] sm:$0xf]
  %v207 = vld [vmem:[%s1 + $0x1bc] sm:$0xf]
  %v292 = vunpack.c.l.b16 %v12
  %v293 = vunpack.c.h.b16 %v12
  %v294 = vunpack.c.l.b16 %v13
  %v295 = vunpack.c.h.b16 %v13
  %v296 = vunpack.c.l.b16 %v14
  %v297 = vunpack.c.h.b16 %v14
  %v298 = vunpack.c.l.b16 %v15
  %v299 = vunpack.c.l.b16 %v16
  %v300 = vunpack.c.h.b16 %v16
  %v301 = vunpack.c.l.b16 %v17
  %v302 = vunpack.c.h.b16 %v17
  %v303 = vunpack.c.l.b16 %v18
  %v304 = vunpack.c.h.b16 %v18
  %v305 = vunpack.c.l.b16 %v19
  %v306 = vunpack.c.l.b16 %v20
  %v307 = vunpack.c.h.b16 %v20
  %v308 = vunpack.c.l.b16 %v21
  %v309 = vunpack.c.h.b16 %v21
  %v310 = vunpack.c.l.b16 %v22
  %v311 = vunpack.c.h.b16 %v22
  %v312 = vunpack.c.l.b16 %v23
  %v313 = vunpack.c.l.b16 %v24
  %v314 = vunpack.c.h.b16 %v24
  %v315 = vunpack.c.l.b16 %v25
  %v316 = vunpack.c.h.b16 %v25
  %v317 = vunpack.c.l.b16 %v26
  %v318 = vunpack.c.h.b16 %v26
  %v319 = vunpack.c.l.b16 %v27
  %v320 = vunpack.c.l.b16 %v28
  %v321 = vunpack.c.h.b16 %v28
  %v322 = vunpack.c.l.b16 %v29
  %v323 = vunpack.c.h.b16 %v29
  %v324 = vunpack.c.l.b16 %v30
  %v325 = vunpack.c.h.b16 %v30
  %v326 = vunpack.c.l.b16 %v31
  %v327 = vunpack.c.l.b16 %v32
  %v328 = vunpack.c.h.b16 %v32
  %v329 = vunpack.c.l.b16 %v33
  %v330 = vunpack.c.h.b16 %v33
  %v331 = vunpack.c.l.b16 %v34
  %v332 = vunpack.c.h.b16 %v34
  %v333 = vunpack.c.l.b16 %v35
  %v334 = vunpack.c.l.b16 %v36
  %v335 = vunpack.c.h.b16 %v36
  %v336 = vunpack.c.l.b16 %v37
  %v337 = vunpack.c.h.b16 %v37
  %v338 = vunpack.c.l.b16 %v38
  %v339 = vunpack.c.h.b16 %v38
  %v340 = vunpack.c.l.b16 %v39
  %v341 = vunpack.c.l.b16 %v40
  %v342 = vunpack.c.h.b16 %v40
  %v343 = vunpack.c.l.b16 %v41
  %v344 = vunpack.c.h.b16 %v41
  %v345 = vunpack.c.l.b16 %v42
  %v346 = vunpack.c.h.b16 %v42
  %v347 = vunpack.c.l.b16 %v43
  %v348 = vunpack.c.l.b16 %v44
  %v349 = vunpack.c.h.b16 %v44
  %v350 = vunpack.c.l.b16 %v45
  %v351 = vunpack.c.h.b16 %v45
  %v352 = vunpack.c.l.b16 %v46
  %v353 = vunpack.c.h.b16 %v46
  %v354 = vunpack.c.l.b16 %v47
  %v355 = vunpack.c.l.b16 %v48
  %v356 = vunpack.c.h.b16 %v48
  %v357 = vunpack.c.l.b16 %v49
  %v358 = vunpack.c.h.b16 %v49
  %v359 = vunpack.c.l.b16 %v50
  %v360 = vunpack.c.h.b16 %v50
  %v361 = vunpack.c.l.b16 %v51
  %v362 = vunpack.c.l.b16 %v52
  %v363 = vunpack.c.h.b16 %v52
  %v364 = vunpack.c.l.b16 %v53
  %v365 = vunpack.c.h.b16 %v53
  %v366 = vunpack.c.l.b16 %v54
  %v367 = vunpack.c.h.b16 %v54
  %v368 = vunpack.c.l.b16 %v55
  %v369 = vunpack.c.l.b16 %v56
  %v370 = vunpack.c.h.b16 %v56
  %v371 = vunpack.c.l.b16 %v57
  %v372 = vunpack.c.h.b16 %v57
  %v373 = vunpack.c.l.b16 %v58
  %v374 = vunpack.c.h.b16 %v58
  %v375 = vunpack.c.l.b16 %v59
  %v376 = vunpack.c.l.b16 %v60
  %v377 = vunpack.c.h.b16 %v60
  %v378 = vunpack.c.l.b16 %v61
  %v379 = vunpack.c.h.b16 %v61
  %v380 = vunpack.c.l.b16 %v62
  %v381 = vunpack.c.h.b16 %v62
  %v382 = vunpack.c.l.b16 %v63
  %v383 = vunpack.c.l.b16 %v64
  %v384 = vunpack.c.h.b16 %v64
  %v385 = vunpack.c.l.b16 %v65
  %v386 = vunpack.c.h.b16 %v65
  %v387 = vunpack.c.l.b16 %v66
  %v388 = vunpack.c.h.b16 %v66
  %v389 = vunpack.c.l.b16 %v67
  %v390 = vunpack.c.l.b16 %v68
  %v391 = vunpack.c.h.b16 %v68
  %v392 = vunpack.c.l.b16 %v69
  %v393 = vunpack.c.h.b16 %v69
  %v394 = vunpack.c.l.b16 %v70
  %v395 = vunpack.c.h.b16 %v70
  %v396 = vunpack.c.l.b16 %v71
  %v397 = vunpack.c.l.b16 %v72
  %v398 = vunpack.c.h.b16 %v72
  %v399 = vunpack.c.l.b16 %v73
  %v400 = vunpack.c.h.b16 %v73
  %v401 = vunpack.c.l.b16 %v74
  %v402 = vunpack.c.h.b16 %v74
  %v403 = vunpack.c.l.b16 %v75
  %v404 = vunpack.c.l.b16 %v76
  %v405 = vunpack.c.h.b16 %v76
  %v406 = vunpack.c.l.b16 %v77
  %v407 = vunpack.c.h.b16 %v77
  %v408 = vunpack.c.l.b16 %v78
  %v409 = vunpack.c.h.b16 %v78
  %v410 = vunpack.c.l.b16 %v79
  %v411 = vunpack.c.l.b16 %v80
  %v412 = vunpack.c.h.b16 %v80
  %v413 = vunpack.c.l.b16 %v81
  %v414 = vunpack.c.h.b16 %v81
  %v415 = vunpack.c.l.b16 %v82
  %v416 = vunpack.c.h.b16 %v82
  %v417 = vunpack.c.l.b16 %v83
  %v418 = vunpack.c.l.b16 %v84
  %v419 = vunpack.c.h.b16 %v84
  %v420 = vunpack.c.l.b16 %v85
  %v421 = vunpack.c.h.b16 %v85
  %v422 = vunpack.c.l.b16 %v86
  %v423 = vunpack.c.h.b16 %v86
  %v424 = vunpack.c.l.b16 %v87
  %v425 = vunpack.c.l.b16 %v88
  %v426 = vunpack.c.h.b16 %v88
  %v427 = vunpack.c.l.b16 %v89
  %v428 = vunpack.c.h.b16 %v89
  %v429 = vunpack.c.l.b16 %v90
  %v430 = vunpack.c.h.b16 %v90
  %v431 = vunpack.c.l.b16 %v91
  %v432 = vunpack.c.l.b16 %v92
  %v433 = vunpack.c.h.b16 %v92
  %v434 = vunpack.c.l.b16 %v93
  %v435 = vunpack.c.h.b16 %v93
  %v436 = vunpack.c.l.b16 %v94
  %v437 = vunpack.c.h.b16 %v94
  %v438 = vunpack.c.l.b16 %v95
  %v439 = vpack.c.b16 %v299, %v292
  %v440 = vpack.c.b16 %v300, %v293
  %v441 = vpack.c.b16 %v301, %v294
  %v442 = vpack.c.b16 %v302, %v295
  %v443 = vpack.c.b16 %v303, %v296
  %v444 = vpack.c.b16 %v304, %v297
  %v445 = vpack.c.b16 %v305, %v298
  %v446 = vpack.c.b16 %v313, %v306
  %v447 = vpack.c.b16 %v314, %v307
  %v448 = vpack.c.b16 %v315, %v308
  %v449 = vpack.c.b16 %v316, %v309
  %v450 = vpack.c.b16 %v317, %v310
  %v451 = vpack.c.b16 %v318, %v311
  %v452 = vpack.c.b16 %v319, %v312
  %v453 = vpack.c.b16 %v327, %v320
  %v454 = vpack.c.b16 %v328, %v321
  %v455 = vpack.c.b16 %v329, %v322
  %v456 = vpack.c.b16 %v330, %v323
  %v457 = vpack.c.b16 %v331, %v324
  %v458 = vpack.c.b16 %v332, %v325
  %v459 = vpack.c.b16 %v333, %v326
  %v460 = vpack.c.b16 %v341, %v334
  %v461 = vpack.c.b16 %v342, %v335
  %v462 = vpack.c.b16 %v343, %v336
  %v463 = vpack.c.b16 %v344, %v337
  %v464 = vpack.c.b16 %v345, %v338
  %v465 = vpack.c.b16 %v346, %v339
  %v466 = vpack.c.b16 %v347, %v340
  %v467 = vpack.c.b16 %v355, %v348
  %v468 = vpack.c.b16 %v356, %v349
  %v469 = vpack.c.b16 %v357, %v350
  %v470 = vpack.c.b16 %v358, %v351
  %v471 = vpack.c.b16 %v359, %v352
  %v472 = vpack.c.b16 %v360, %v353
  %v473 = vpack.c.b16 %v361, %v354
  %v474 = vpack.c.b16 %v369, %v362
  %v475 = vpack.c.b16 %v370, %v363
  %v476 = vpack.c.b16 %v371, %v364
  %v477 = vpack.c.b16 %v372, %v365
  %v478 = vpack.c.b16 %v373, %v366
  %v479 = vpack.c.b16 %v374, %v367
  %v480 = vpack.c.b16 %v375, %v368
  %v481 = vpack.c.b16 %v383, %v376
  %v482 = vpack.c.b16 %v384, %v377
  %v483 = vpack.c.b16 %v385, %v378
  %v484 = vpack.c.b16 %v386, %v379
  %v485 = vpack.c.b16 %v387, %v380
  %v486 = vpack.c.b16 %v388, %v381
  %v487 = vpack.c.b16 %v389, %v382
  %v488 = vpack.c.b16 %v397, %v390
  %v489 = vpack.c.b16 %v398, %v391
  %v490 = vpack.c.b16 %v399, %v392
  %v491 = vpack.c.b16 %v400, %v393
  %v492 = vpack.c.b16 %v401, %v394
  %v493 = vpack.c.b16 %v402, %v395
  %v494 = vpack.c.b16 %v403, %v396
  %v495 = vpack.c.b16 %v411, %v404
  %v496 = vpack.c.b16 %v412, %v405
  %v497 = vpack.c.b16 %v413, %v406
  %v498 = vpack.c.b16 %v414, %v407
  %v499 = vpack.c.b16 %v415, %v408
  %v500 = vpack.c.b16 %v416, %v409
  %v501 = vpack.c.b16 %v417, %v410
  %v502 = vpack.c.b16 %v425, %v418
  %v503 = vpack.c.b16 %v426, %v419
  %v504 = vpack.c.b16 %v427, %v420
  %v505 = vpack.c.b16 %v428, %v421
  %v506 = vpack.c.b16 %v429, %v422
  %v507 = vpack.c.b16 %v430, %v423
  %v508 = vpack.c.b16 %v431, %v424
  %v509 = vpack.c.b16 %v432, %v432
  %v510 = vpack.c.b16 %v433, %v433
  %v511 = vpack.c.b16 %v434, %v434
  %v512 = vpack.c.b16 %v435, %v435
  %v513 = vpack.c.b16 %v436, %v436
  %v514 = vpack.c.b16 %v437, %v437
  %v515 = vpack.c.b16 %v438, %v438
  %v705 = vunpack.c.l.b16 %v96
  %v706 = vunpack.c.l.b16 %v97
  %v707 = vunpack.c.l.b16 %v98
  %v708 = vunpack.c.l.b16 %v99
  %v709 = vunpack.c.l.b16 %v100
  %v710 = vunpack.c.l.b16 %v101
  %v711 = vunpack.c.l.b16 %v102
  %v712 = vunpack.c.l.b16 %v103
  %v713 = vunpack.c.l.b16 %v104
  %v714 = vunpack.c.l.b16 %v105
  %v715 = vunpack.c.l.b16 %v106
  %v716 = vunpack.c.l.b16 %v107
  %v717 = vunpack.c.l.b16 %v108
  %v718 = vunpack.c.l.b16 %v109
  %v719 = vunpack.c.l.b16 %v110
  %v720 = vunpack.c.l.b16 %v111
  %v721 = vunpack.c.l.b16 %v112
  %v722 = vunpack.c.l.b16 %v113
  %v723 = vunpack.c.l.b16 %v114
  %v724 = vunpack.c.l.b16 %v115
  %v725 = vunpack.c.l.b16 %v116
  %v726 = vunpack.c.l.b16 %v117
  %v727 = vunpack.c.l.b16 %v118
  %v728 = vunpack.c.l.b16 %v119
  %v729 = vunpack.c.l.b16 %v120
  %v730 = vunpack.c.l.b16 %v121
  %v731 = vunpack.c.l.b16 %v122
  %v732 = vunpack.c.l.b16 %v123
  %v733 = vunpack.c.l.b16 %v124
  %v734 = vunpack.c.l.b16 %v125
  %v735 = vunpack.c.l.b16 %v126
  %v736 = vunpack.c.l.b16 %v127
  %v737 = vunpack.c.l.b16 %v128
  %v738 = vunpack.c.l.b16 %v129
  %v739 = vunpack.c.l.b16 %v130
  %v740 = vunpack.c.l.b16 %v131
  %v741 = vunpack.c.l.b16 %v132
  %v742 = vunpack.c.l.b16 %v133
  %v743 = vunpack.c.l.b16 %v134
  %v744 = vunpack.c.l.b16 %v135
  %v745 = vunpack.c.l.b16 %v136
  %v746 = vunpack.c.l.b16 %v137
  %v747 = vunpack.c.l.b16 %v138
  %v748 = vunpack.c.l.b16 %v139
  %v749 = vunpack.c.l.b16 %v140
  %v750 = vunpack.c.l.b16 %v141
  %v751 = vunpack.c.l.b16 %v142
  %v752 = vunpack.c.l.b16 %v143
  %v753 = vunpack.c.l.b16 %v144
  %v754 = vunpack.c.l.b16 %v145
  %v755 = vunpack.c.l.b16 %v146
  %v756 = vunpack.c.l.b16 %v147
  %v757 = vunpack.c.l.b16 %v148
  %v758 = vunpack.c.l.b16 %v149
  %v759 = vunpack.c.l.b16 %v150
  %v760 = vunpack.c.l.b16 %v151
  %v761 = vunpack.c.l.b16 %v152
  %v762 = vunpack.c.l.b16 %v153
  %v763 = vunpack.c.l.b16 %v154
  %v764 = vunpack.c.l.b16 %v155
  %v765 = vunpack.c.l.b16 %v156
  %v766 = vunpack.c.l.b16 %v157
  %v767 = vunpack.c.l.b16 %v158
  %v768 = vunpack.c.l.b16 %v159
  %v769 = vunpack.c.l.b16 %v160
  %v770 = vunpack.c.l.b16 %v161
  %v771 = vunpack.c.l.b16 %v162
  %v772 = vunpack.c.l.b16 %v163
  %v773 = vunpack.c.l.b16 %v164
  %v774 = vunpack.c.l.b16 %v165
  %v775 = vunpack.c.l.b16 %v166
  %v776 = vunpack.c.l.b16 %v167
  %v777 = vunpack.c.l.b16 %v168
  %v778 = vunpack.c.l.b16 %v169
  %v779 = vunpack.c.l.b16 %v170
  %v780 = vunpack.c.l.b16 %v171
  %v781 = vunpack.c.l.b16 %v172
  %v782 = vunpack.c.l.b16 %v173
  %v783 = vunpack.c.l.b16 %v174
  %v784 = vunpack.c.l.b16 %v175
  %v785 = vunpack.c.l.b16 %v176
  %v786 = vunpack.c.l.b16 %v177
  %v787 = vunpack.c.l.b16 %v178
  %v788 = vunpack.c.l.b16 %v179
  %v789 = vunpack.c.l.b16 %v180
  %v790 = vunpack.c.l.b16 %v181
  %v791 = vunpack.c.l.b16 %v182
  %v792 = vunpack.c.l.b16 %v183
  %v793 = vunpack.c.l.b16 %v184
  %v794 = vunpack.c.l.b16 %v185
  %v795 = vunpack.c.l.b16 %v186
  %v796 = vunpack.c.l.b16 %v187
  %v797 = vunpack.c.l.b16 %v188
  %v798 = vunpack.c.l.b16 %v189
  %v799 = vunpack.c.l.b16 %v190
  %v800 = vunpack.c.l.b16 %v191
  %v801 = vunpack.c.l.b16 %v192
  %v802 = vunpack.c.l.b16 %v193
  %v803 = vunpack.c.l.b16 %v194
  %v804 = vunpack.c.l.b16 %v195
  %v805 = vunpack.c.l.b16 %v196
  %v806 = vunpack.c.l.b16 %v197
  %v807 = vunpack.c.l.b16 %v198
  %v808 = vunpack.c.l.b16 %v199
  %v809 = vunpack.c.l.b16 %v200
  %v810 = vunpack.c.l.b16 %v201
  %v811 = vunpack.c.l.b16 %v202
  %v812 = vunpack.c.l.b16 %v203
  %v813 = vunpack.c.l.b16 %v204
  %v814 = vunpack.c.l.b16 %v205
  %v815 = vunpack.c.l.b16 %v206
  %v816 = vunpack.c.l.b16 %v207
  %v817 = vpack.c.b16 %v706, %v705
  %v818 = vpack.c.b16 %v708, %v707
  %v819 = vpack.c.b16 %v710, %v709
  %v820 = vpack.c.b16 %v712, %v711
  %v821 = vpack.c.b16 %v714, %v713
  %v822 = vpack.c.b16 %v716, %v715
  %v823 = vpack.c.b16 %v718, %v717
  %v824 = vpack.c.b16 %v720, %v719
  %v825 = vpack.c.b16 %v722, %v721
  %v826 = vpack.c.b16 %v724, %v723
  %v827 = vpack.c.b16 %v726, %v725
  %v828 = vpack.c.b16 %v728, %v727
  %v829 = vpack.c.b16 %v730, %v729
  %v830 = vpack.c.b16 %v732, %v731
  %v831 = vpack.c.b16 %v734, %v733
  %v832 = vpack.c.b16 %v736, %v735
  %v833 = vpack.c.b16 %v738, %v737
  %v834 = vpack.c.b16 %v740, %v739
  %v835 = vpack.c.b16 %v742, %v741
  %v836 = vpack.c.b16 %v744, %v743
  %v837 = vpack.c.b16 %v746, %v745
  %v838 = vpack.c.b16 %v748, %v747
  %v839 = vpack.c.b16 %v750, %v749
  %v840 = vpack.c.b16 %v752, %v751
  %v841 = vpack.c.b16 %v754, %v753
  %v842 = vpack.c.b16 %v756, %v755
  %v843 = vpack.c.b16 %v758, %v757
  %v844 = vpack.c.b16 %v760, %v759
  %v845 = vpack.c.b16 %v762, %v761
  %v846 = vpack.c.b16 %v764, %v763
  %v847 = vpack.c.b16 %v766, %v765
  %v848 = vpack.c.b16 %v768, %v767
  %v849 = vpack.c.b16 %v770, %v769
  %v850 = vpack.c.b16 %v772, %v771
  %v851 = vpack.c.b16 %v774, %v773
  %v852 = vpack.c.b16 %v776, %v775
  %v853 = vpack.c.b16 %v778, %v777
  %v854 = vpack.c.b16 %v780, %v779
  %v855 = vpack.c.b16 %v782, %v781
  %v856 = vpack.c.b16 %v784, %v783
  %v857 = vpack.c.b16 %v786, %v785
  %v858 = vpack.c.b16 %v788, %v787
  %v859 = vpack.c.b16 %v790, %v789
  %v860 = vpack.c.b16 %v792, %v791
  %v861 = vpack.c.b16 %v794, %v793
  %v862 = vpack.c.b16 %v796, %v795
  %v863 = vpack.c.b16 %v798, %v797
  %v864 = vpack.c.b16 %v800, %v799
  %v865 = vpack.c.b16 %v802, %v801
  %v866 = vpack.c.b16 %v804, %v803
  %v867 = vpack.c.b16 %v806, %v805
  %v868 = vpack.c.b16 %v808, %v807
  %v869 = vpack.c.b16 %v810, %v809
  %v870 = vpack.c.b16 %v812, %v811
  %v871 = vpack.c.b16 %v814, %v813
  %v872 = vpack.c.b16 %v816, %v815
  %929 = vmatprep.subr.bf16.mxu0 0
  %930 = vmatpush1.bf16.msra.mxu0 %v817
  %931 = vmatprep.subr.bf16.mxu0 0
  %932 = vmatpush1.bf16.msra.mxu0 %v818
  %933 = vmatprep.subr.bf16.mxu0 0
  %934 = vmatpush1.bf16.msra.mxu0 %v819
  %935 = vmatprep.subr.bf16.mxu0 0
  %936 = vmatpush1.bf16.msra.mxu0 %v820
  %937 = vmatprep.subr.bf16.mxu0 0
  %938 = vmatpush1.bf16.msra.mxu0 %v821
  %939 = vmatprep.subr.bf16.mxu0 0
  %940 = vmatpush1.bf16.msra.mxu0 %v822
  %941 = vmatprep.subr.bf16.mxu0 0
  %942 = vmatpush1.bf16.msra.mxu0 %v823
  %943 = vmatprep.subr.bf16.mxu0 0
  %944 = vmatpush1.bf16.msra.mxu0 %v824
  %945 = vmatprep.subr.bf16.mxu0 0
  %946 = vmatpush1.bf16.msra.mxu0 %v825
  %947 = vmatprep.subr.bf16.mxu0 0
  %948 = vmatpush1.bf16.msra.mxu0 %v826
  %949 = vmatprep.subr.bf16.mxu0 0
  %950 = vmatpush1.bf16.msra.mxu0 %v827
  %951 = vmatprep.subr.bf16.mxu0 0
  %952 = vmatpush1.bf16.msra.mxu0 %v828
  %953 = vmatprep.subr.bf16.mxu0 0
  %954 = vmatpush1.bf16.msra.mxu0 %v829
  %955 = vmatprep.subr.bf16.mxu0 0
  %956 = vmatpush1.bf16.msra.mxu0 %v830
  %957 = vmatprep.subr.bf16.mxu0 0
  %958 = vmatpush1.bf16.msra.mxu0 %v831
  %959 = vmatprep.subr.bf16.mxu0 0
  %960 = vmatpush1.bf16.msra.mxu0 %v832
  %961 = vmatprep.mubr.bf16.mxu0 %v440
  %962 = vmatmul.mubr.bf16.gmra.mrb[0].mxu0 %v439
  %v963 = vpop.f32.mrb[0].mxu0
  %v964 = vadd.f32 0.0, %v963
  %v965 = vpop.f32.mrb[0].mxu0
  %v966 = vpop.f32.mrb[0].mxu0
  %v967 = vadd.f32 0.0, %v966
  %v968 = vpop.f32.mrb[0].mxu0
  %969 = vmatprep.mubr.bf16.mxu0 %v447
  %970 = vmatmul.mubr.bf16.gmra.mrb[0].mxu0 %v446
  %v971 = vpop.f32.mrb[0].mxu0
  %v972 = vadd.f32 0.0, %v971
  %v973 = vpop.f32.mrb[0].mxu0
  %v974 = vpop.f32.mrb[0].mxu0
  %v975 = vadd.f32 0.0, %v974
  %v976 = vpop.f32.mrb[0].mxu0
  %977 = vmatprep.mubr.bf16.mxu0 %v454
  %978 = vmatmul.mubr.bf16.gmra.mrb[0].mxu0 %v453
  %v979 = vpop.f32.mrb[0].mxu0
  %v980 = vadd.f32 0.0, %v979
  %v981 = vpop.f32.mrb[0].mxu0
  %v982 = vpop.f32.mrb[0].mxu0
  %v983 = vadd.f32 0.0, %v982
  %v984 = vpop.f32.mrb[0].mxu0
  %985 = vmatprep.mubr.bf16.mxu0 %v461
  %986 = vmatmul.mubr.bf16.gmra.mrb[0].mxu0 %v460
  %v987 = vpop.f32.mrb[0].mxu0
  %v988 = vadd.f32 0.0, %v987
  %v989 = vpop.f32.mrb[0].mxu0
  %v990 = vpop.f32.mrb[0].mxu0
  %v991 = vadd.f32 0.0, %v990
  %v992 = vpop.f32.mrb[0].mxu0
  %993 = vmatprep.mubr.bf16.mxu0 %v468
  %994 = vmatmul.mubr.bf16.gmra.mrb[0].mxu0 %v467
  %v995 = vpop.f32.mrb[0].mxu0
  %v996 = vadd.f32 0.0, %v995
  %v997 = vpop.f32.mrb[0].mxu0
  %v998 = vpop.f32.mrb[0].mxu0
  %v999 = vadd.f32 0.0, %v998
  %v1000 = vpop.f32.mrb[0].mxu0
  %1001 = vmatprep.mubr.bf16.mxu0 %v475
  %1002 = vmatmul.mubr.bf16.gmra.mrb[0].mxu0 %v474
  %v1003 = vpop.f32.mrb[0].mxu0
  %v1004 = vadd.f32 0.0, %v1003
  %v1005 = vpop.f32.mrb[0].mxu0
  %v1006 = vpop.f32.mrb[0].mxu0
  %v1007 = vadd.f32 0.0, %v1006
  %v1008 = vpop.f32.mrb[0].mxu0
  %1009 = vmatprep.mubr.bf16.mxu0 %v482
  %1010 = vmatmul.mubr.bf16.gmra.mrb[0].mxu0 %v481
  %v1011 = vpop.f32.mrb[0].mxu0
  %v1012 = vadd.f32 0.0, %v1011
  %v1013 = vpop.f32.mrb[0].mxu0
  %v1014 = vpop.f32.mrb[0].mxu0
  %v1015 = vadd.f32 0.0, %v1014
  %v1016 = vpop.f32.mrb[0].mxu0
  %1017 = vmatprep.mubr.bf16.mxu0 %v489
  %1018 = vmatmul.mubr.bf16.gmra.mrb[0].mxu0 %v488
  %v1019 = vpop.f32.mrb[0].mxu0
  %v1020 = vadd.f32 0.0, %v1019
  %v1021 = vpop.f32.mrb[0].mxu0
  %v1022 = vpop.f32.mrb[0].mxu0
  %v1023 = vadd.f32 0.0, %v1022
  %v1024 = vpop.f32.mrb[0].mxu0
  %1025 = vmatprep.mubr.bf16.mxu0 %v496
  %1026 = vmatmul.mubr.bf16.gmra.mrb[0].mxu0 %v495
  %v1027 = vpop.f32.mrb[0].mxu0
  %v1028 = vadd.f32 0.0, %v1027
  %v1029 = vpop.f32.mrb[0].mxu0
  %v1030 = vpop.f32.mrb[0].mxu0
  %v1031 = vadd.f32 0.0, %v1030
  %v1032 = vpop.f32.mrb[0].mxu0
  %1033 = vmatprep.mubr.bf16.mxu0 %v503
  %1034 = vmatmul.mubr.bf16.gmra.mrb[0].mxu0 %v502
  %v1035 = vpop.f32.mrb[0].mxu0
  %v1036 = vadd.f32 0.0, %v1035
  %v1037 = vpop.f32.mrb[0].mxu0
  %v1038 = vpop.f32.mrb[0].mxu0
  %v1039 = vadd.f32 0.0, %v1038
  %v1040 = vpop.f32.mrb[0].mxu0
  %1041 = vmatprep.mubr.bf16.mxu0 %v510
  %1042 = vmatmul.mubr.bf16.gmra.mrb[0].mxu0 %v509
  %v1043 = vpop.f32.mrb[0].mxu0
  %v1044 = vadd.f32 0.0, %v1043
  %v1045 = vpop.f32.mrb[0].mxu0
  %v1046 = vpop.f32.mrb[0].mxu0
  %v1047 = vpop.f32.mrb[0].mxu0
  %1048 = vdwg.mxu0
  %1049 = vmatprep.subr.bf16.mxu0 0
  %1050 = vmatpush1.bf16.msra.mxu0 %v833
  %1051 = vmatprep.subr.bf16.mxu0 0
  %1052 = vmatpush1.bf16.msra.mxu0 %v834
  %1053 = vmatprep.subr.bf16.mxu0 0
  %1054 = vmatpush1.bf16.msra.mxu0 %v835
  %1055 = vmatprep.subr.bf16.mxu0 0
  %1056 = vmatpush1.bf16.msra.mxu0 %v836
  %1057 = vmatprep.subr.bf16.mxu0 0
  %1058 = vmatpush1.bf16.msra.mxu0 %v837
  %1059 = vmatprep.subr.bf16.mxu0 0
  %1060 = vmatpush1.bf16.msra.mxu0 %v838
  %1061 = vmatprep.subr.bf16.mxu0 0
  %1062 = vmatpush1.bf16.msra.mxu0 %v839
  %1063 = vmatprep.subr.bf16.mxu0 0
  %1064 = vmatpush1.bf16.msra.mxu0 %v840
  %1065 = vmatprep.subr.bf16.mxu0 0
  %1066 = vmatpush1.bf16.msra.mxu0 %v841
  %1067 = vmatprep.subr.bf16.mxu0 0
  %1068 = vmatpush1.bf16.msra.mxu0 %v842
  %1069 = vmatprep.subr.bf16.mxu0 0
  %1070 = vmatpush1.bf16.msra.mxu0 %v843
  %1071 = vmatprep.subr.bf16.mxu0 0
  %1072 = vmatpush1.bf16.msra.mxu0 %v844
  %1073 = vmatprep.subr.bf16.mxu0 0
  %1074 = vmatpush1.bf16.msra.mxu0 %v845
  %1075 = vmatprep.subr.bf16.mxu0 0
  %1076 = vmatpush1.bf16.msra.mxu0 %v846
  %1077 = vmatprep.subr.bf16.mxu0 0
  %1078 = vmatpush1.bf16.msra.mxu0 %v847
  %1079 = vmatprep.subr.bf16.mxu0 0
  %1080 = vmatpush1.bf16.msra.mxu0 %v848
  %1081 = vmatprep.mubr.bf16.mxu0 %v442
  %1082 = vmatmul.mubr.bf16.gmra.mrb[0].mxu0 %v441
  %v1083 = vpop.f32.mrb[0].mxu0
  %v1084 = vadd.f32 %v964, %v1083
  %v1085 = vpop.f32.mrb[0].mxu0
  %v1086 = vpop.f32.mrb[0].mxu0
  %v1087 = vadd.f32 %v967, %v1086
  %v1088 = vpop.f32.mrb[0].mxu0
  %1089 = vmatprep.mubr.bf16.mxu0 %v449
  %1090 = vmatmul.mubr.bf16.gmra.mrb[0].mxu0 %v448
  %v1091 = vpop.f32.mrb[0].mxu0
  %v1092 = vadd.f32 %v972, %v1091
  %v1093 = vpop.f32.mrb[0].mxu0
  %v1094 = vpop.f32.mrb[0].mxu0
  %v1095 = vadd.f32 %v975, %v1094
  %v1096 = vpop.f32.mrb[0].mxu0
  %1097 = vmatprep.mubr.bf16.mxu0 %v456
  %1098 = vmatmul.mubr.bf16.gmra.mrb[0].mxu0 %v455
  %v1099 = vpop.f32.mrb[0].mxu0
  %v1100 = vadd.f32 %v980, %v1099
  %v1101 = vpop.f32.mrb[0].mxu0
  %v1102 = vpop.f32.mrb[0].mxu0
  %v1103 = vadd.f32 %v983, %v1102
  %v1104 = vpop.f32.mrb[0].mxu0
  %1105 = vmatprep.mubr.bf16.mxu0 %v463
  %1106 = vmatmul.mubr.bf16.gmra.mrb[0].mxu0 %v462
  %v1107 = vpop.f32.mrb[0].mxu0
  %v1108 = vadd.f32 %v988, %v1107
  %v1109 = vpop.f32.mrb[0].mxu0
  %v1110 = vpop.f32.mrb[0].mxu0
  %v1111 = vadd.f32 %v991, %v1110
  %v1112 = vpop.f32.mrb[0].mxu0
  %1113 = vmatprep.mubr.bf16.mxu0 %v470
  %1114 = vmatmul.mubr.bf16.gmra.mrb[0].mxu0 %v469
  %v1115 = vpop.f32.mrb[0].mxu0
  %v1116 = vadd.f32 %v996, %v1115
  %v1117 = vpop.f32.mrb[0].mxu0
  %v1118 = vpop.f32.mrb[0].mxu0
  %v1119 = vadd.f32 %v999, %v1118
  %v1120 = vpop.f32.mrb[0].mxu0
  %1121 = vmatprep.mubr.bf16.mxu0 %v477
  %1122 = vmatmul.mubr.bf16.gmra.mrb[0].mxu0 %v476
  %v1123 = vpop.f32.mrb[0].mxu0
  %v1124 = vadd.f32 %v1004, %v1123
  %v1125 = vpop.f32.mrb[0].mxu0
  %v1126 = vpop.f32.mrb[0].mxu0
  %v1127 = vadd.f32 %v1007, %v1126
  %v1128 = vpop.f32.mrb[0].mxu0
  %1129 = vmatprep.mubr.bf16.mxu0 %v484
  %1130 = vmatmul.mubr.bf16.gmra.mrb[0].mxu0 %v483
  %v1131 = vpop.f32.mrb[0].mxu0
  %v1132 = vadd.f32 %v1012, %v1131
  %v1133 = vpop.f32.mrb[0].mxu0
  %v1134 = vpop.f32.mrb[0].mxu0
  %v1135 = vadd.f32 %v1015, %v1134
  %v1136 = vpop.f32.mrb[0].mxu0
  %1137 = vmatprep.mubr.bf16.mxu0 %v491
  %1138 = vmatmul.mubr.bf16.gmra.mrb[0].mxu0 %v490
  %v1139 = vpop.f32.mrb[0].mxu0
  %v1140 = vadd.f32 %v1020, %v1139
  %v1141 = vpop.f32.mrb[0].mxu0
  %v1142 = vpop.f32.mrb[0].mxu0
  %v1143 = vadd.f32 %v1023, %v1142
  %v1144 = vpop.f32.mrb[0].mxu0
  %1145 = vmatprep.mubr.bf16.mxu0 %v498
  %1146 = vmatmul.mubr.bf16.gmra.mrb[0].mxu0 %v497
  %v1147 = vpop.f32.mrb[0].mxu0
  %v1148 = vadd.f32 %v1028, %v1147
  %v1149 = vpop.f32.mrb[0].mxu0
  %v1150 = vpop.f32.mrb[0].mxu0
  %v1151 = vadd.f32 %v1031, %v1150
  %v1152 = vpop.f32.mrb[0].mxu0
  %1153 = vmatprep.mubr.bf16.mxu0 %v505
  %1154 = vmatmul.mubr.bf16.gmra.mrb[0].mxu0 %v504
  %v1155 = vpop.f32.mrb[0].mxu0
  %v1156 = vadd.f32 %v1036, %v1155
  %v1157 = vpop.f32.mrb[0].mxu0
  %v1158 = vpop.f32.mrb[0].mxu0
  %v1159 = vadd.f32 %v1039, %v1158
  %v1160 = vpop.f32.mrb[0].mxu0
  %1161 = vmatprep.mubr.bf16.mxu0 %v512
  %1162 = vmatmul.mubr.bf16.gmra.mrb[0].mxu0 %v511
  %v1163 = vpop.f32.mrb[0].mxu0
  %v1164 = vadd.f32 %v1044, %v1163
  %v1165 = vpop.f32.mrb[0].mxu0
  %v1166 = vpop.f32.mrb[0].mxu0
  %v1167 = vpop.f32.mrb[0].mxu0
  %1168 = vdwg.mxu0
  %1169 = vmatprep.subr.bf16.mxu0 0
  %1170 = vmatpush1.bf16.msra.mxu0 %v849
  %1171 = vmatprep.subr.bf16.mxu0 0
  %1172 = vmatpush1.bf16.msra.mxu0 %v850
  %1173 = vmatprep.subr.bf16.mxu0 0
  %1174 = vmatpush1.bf16.msra.mxu0 %v851
  %1175 = vmatprep.subr.bf16.mxu0 0
  %1176 = vmatpush1.bf16.msra.mxu0 %v852
  %1177 = vmatprep.subr.bf16.mxu0 0
  %1178 = vmatpush1.bf16.msra.mxu0 %v853
  %1179 = vmatprep.subr.bf16.mxu0 0
  %1180 = vmatpush1.bf16.msra.mxu0 %v854
  %1181 = vmatprep.subr.bf16.mxu0 0
  %1182 = vmatpush1.bf16.msra.mxu0 %v855
  %1183 = vmatprep.subr.bf16.mxu0 0
  %1184 = vmatpush1.bf16.msra.mxu0 %v856
  %1185 = vmatprep.subr.bf16.mxu0 0
  %1186 = vmatpush1.bf16.msra.mxu0 %v857
  %1187 = vmatprep.subr.bf16.mxu0 0
  %1188 = vmatpush1.bf16.msra.mxu0 %v858
  %1189 = vmatprep.subr.bf16.mxu0 0
  %1190 = vmatpush1.bf16.msra.mxu0 %v859
  %1191 = vmatprep.subr.bf16.mxu0 0
  %1192 = vmatpush1.bf16.msra.mxu0 %v860
  %1193 = vmatprep.subr.bf16.mxu0 0
  %1194 = vmatpush1.bf16.msra.mxu0 %v861
  %1195 = vmatprep.subr.bf16.mxu0 0
  %1196 = vmatpush1.bf16.msra.mxu0 %v862
  %1197 = vmatprep.subr.bf16.mxu0 0
  %1198 = vmatpush1.bf16.msra.mxu0 %v863
  %1199 = vmatprep.subr.bf16.mxu0 0
  %1200 = vmatpush1.bf16.msra.mxu0 %v864
  %1201 = vmatprep.mubr.bf16.mxu0 %v444
  %1202 = vmatmul.mubr.bf16.gmra.mrb[0].mxu0 %v443
  %v1203 = vpop.f32.mrb[0].mxu0
  %v1204 = vadd.f32 %v1084, %v1203
  %v1205 = vpop.f32.mrb[0].mxu0
  %v1206 = vpop.f32.mrb[0].mxu0
  %v1207 = vadd.f32 %v1087, %v1206
  %v1208 = vpop.f32.mrb[0].mxu0
  %1209 = vmatprep.mubr.bf16.mxu0 %v451
  %1210 = vmatmul.mubr.bf16.gmra.mrb[0].mxu0 %v450
  %v1211 = vpop.f32.mrb[0].mxu0
  %v1212 = vadd.f32 %v1092, %v1211
  %v1213 = vpop.f32.mrb[0].mxu0
  %v1214 = vpop.f32.mrb[0].mxu0
  %v1215 = vadd.f32 %v1095, %v1214
  %v1216 = vpop.f32.mrb[0].mxu0
  %1217 = vmatprep.mubr.bf16.mxu0 %v458
  %1218 = vmatmul.mubr.bf16.gmra.mrb[0].mxu0 %v457
  %v1219 = vpop.f32.mrb[0].mxu0
  %v1220 = vadd.f32 %v1100, %v1219
  %v1221 = vpop.f32.mrb[0].mxu0
  %v1222 = vpop.f32.mrb[0].mxu0
  %v1223 = vadd.f32 %v1103, %v1222
  %v1224 = vpop.f32.mrb[0].mxu0
  %1225 = vmatprep.mubr.bf16.mxu0 %v465
  %1226 = vmatmul.mubr.bf16.gmra.mrb[0].mxu0 %v464
  %v1227 = vpop.f32.mrb[0].mxu0
  %v1228 = vadd.f32 %v1108, %v1227
  %v1229 = vpop.f32.mrb[0].mxu0
  %v1230 = vpop.f32.mrb[0].mxu0
  %v1231 = vadd.f32 %v1111, %v1230
  %v1232 = vpop.f32.mrb[0].mxu0
  %1233 = vmatprep.mubr.bf16.mxu0 %v472
  %1234 = vmatmul.mubr.bf16.gmra.mrb[0].mxu0 %v471
  %v1235 = vpop.f32.mrb[0].mxu0
  %v1236 = vadd.f32 %v1116, %v1235
  %v1237 = vpop.f32.mrb[0].mxu0
  %v1238 = vpop.f32.mrb[0].mxu0
  %v1239 = vadd.f32 %v1119, %v1238
  %v1240 = vpop.f32.mrb[0].mxu0
  %1241 = vmatprep.mubr.bf16.mxu0 %v479
  %1242 = vmatmul.mubr.bf16.gmra.mrb[0].mxu0 %v478
  %v1243 = vpop.f32.mrb[0].mxu0
  %v1244 = vadd.f32 %v1124, %v1243
  %v1245 = vpop.f32.mrb[0].mxu0
  %v1246 = vpop.f32.mrb[0].mxu0
  %v1247 = vadd.f32 %v1127, %v1246
  %v1248 = vpop.f32.mrb[0].mxu0
  %1249 = vmatprep.mubr.bf16.mxu0 %v486
  %1250 = vmatmul.mubr.bf16.gmra.mrb[0].mxu0 %v485
  %v1251 = vpop.f32.mrb[0].mxu0
  %v1252 = vadd.f32 %v1132, %v1251
  %v1253 = vpop.f32.mrb[0].mxu0
  %v1254 = vpop.f32.mrb[0].mxu0
  %v1255 = vadd.f32 %v1135, %v1254
  %v1256 = vpop.f32.mrb[0].mxu0
  %1257 = vmatprep.mubr.bf16.mxu0 %v493
  %1258 = vmatmul.mubr.bf16.gmra.mrb[0].mxu0 %v492
  %v1259 = vpop.f32.mrb[0].mxu0
  %v1260 = vadd.f32 %v1140, %v1259
  %v1261 = vpop.f32.mrb[0].mxu0
  %v1262 = vpop.f32.mrb[0].mxu0
  %v1263 = vadd.f32 %v1143, %v1262
  %v1264 = vpop.f32.mrb[0].mxu0
  %1265 = vmatprep.mubr.bf16.mxu0 %v500
  %1266 = vmatmul.mubr.bf16.gmra.mrb[0].mxu0 %v499
  %v1267 = vpop.f32.mrb[0].mxu0
  %v1268 = vadd.f32 %v1148, %v1267
  %v1269 = vpop.f32.mrb[0].mxu0
  %v1270 = vpop.f32.mrb[0].mxu0
  %v1271 = vadd.f32 %v1151, %v1270
  %v1272 = vpop.f32.mrb[0].mxu0
  %1273 = vmatprep.mubr.bf16.mxu0 %v507
  %1274 = vmatmul.mubr.bf16.gmra.mrb[0].mxu0 %v506
  %v1275 = vpop.f32.mrb[0].mxu0
  %v1276 = vadd.f32 %v1156, %v1275
  %v1277 = vpop.f32.mrb[0].mxu0
  %v1278 = vpop.f32.mrb[0].mxu0
  %v1279 = vadd.f32 %v1159, %v1278
  %v1280 = vpop.f32.mrb[0].mxu0
  %1281 = vmatprep.mubr.bf16.mxu0 %v514
  %1282 = vmatmul.mubr.bf16.gmra.mrb[0].mxu0 %v513
  %v1283 = vpop.f32.mrb[0].mxu0
  %v1284 = vadd.f32 %v1164, %v1283
  %v1285 = vpop.f32.mrb[0].mxu0
  %v1286 = vpop.f32.mrb[0].mxu0
  %v1287 = vpop.f32.mrb[0].mxu0
  %1288 = vdwg.mxu0
  %1289 = vmatprep.subr.bf16.mxu0 0
  %1290 = vmatpush1.bf16.msra.mxu0 %v865
  %1291 = vmatprep.subr.bf16.mxu0 0
  %1292 = vmatpush1.bf16.msra.mxu0 %v866
  %1293 = vmatprep.subr.bf16.mxu0 0
  %1294 = vmatpush1.bf16.msra.mxu0 %v867
  %1295 = vmatprep.subr.bf16.mxu0 0
  %1296 = vmatpush1.bf16.msra.mxu0 %v868
  %1297 = vmatprep.subr.bf16.mxu0 0
  %1298 = vmatpush1.bf16.msra.mxu0 %v869
  %1299 = vmatprep.subr.bf16.mxu0 0
  %1300 = vmatpush1.bf16.msra.mxu0 %v870
  %1301 = vmatprep.subr.bf16.mxu0 0
  %1302 = vmatpush1.bf16.msra.mxu0 %v871
  %1303 = vmatprep.subr.bf16.mxu0 0
  %1304 = vmatpush1.bf16.msra.mxu0 %v872
  %1305 = vmatprep.subr.bf16.mxu0 0
  %1306 = vmatpush1.bf16.msra.mxu0 0
  %1307 = vmatprep.subr.bf16.mxu0 0
  %1308 = vmatpush1.bf16.msra.mxu0 0
  %1309 = vmatprep.subr.bf16.mxu0 0
  %1310 = vmatpush1.bf16.msra.mxu0 0
  %1311 = vmatprep.subr.bf16.mxu0 0
  %1312 = vmatpush1.bf16.msra.mxu0 0
  %1313 = vmatprep.subr.bf16.mxu0 0
  %1314 = vmatpush1.bf16.msra.mxu0 0
  %1315 = vmatprep.subr.bf16.mxu0 0
  %1316 = vmatpush1.bf16.msra.mxu0 0
  %1317 = vmatprep.subr.bf16.mxu0 0
  %1318 = vmatpush1.bf16.msra.mxu0 0
  %1319 = vmatprep.subr.bf16.mxu0 0
  %1320 = vmatpush1.bf16.msra.mxu0 0
  %1321 = vmatprep.mubr.bf16.mxu0 0
  %1322 = vmatmul.mubr.bf16.gmra.mrb[0].mxu0 %v445
  %v1323 = vpop.f32.mrb[0].mxu0
  %v1324 = vadd.f32 %v1204, %v1323
  %v1325 = vpop.f32.mrb[0].mxu0
  %v1326 = vpop.f32.mrb[0].mxu0
  %v1327 = vadd.f32 %v1207, %v1326
  %v1328 = vpop.f32.mrb[0].mxu0
  %1329 = vmatprep.mubr.bf16.mxu0 0
  %1330 = vmatmul.mubr.bf16.gmra.mrb[0].mxu0 %v452
  %v1331 = vpop.f32.mrb[0].mxu0
  %v1332 = vadd.f32 %v1212, %v1331
  %v1333 = vpop.f32.mrb[0].mxu0
  %v1334 = vpop.f32.mrb[0].mxu0
  %v1335 = vadd.f32 %v1215, %v1334
  %v1336 = vpop.f32.mrb[0].mxu0
  %1337 = vmatprep.mubr.bf16.mxu0 0
  %1338 = vmatmul.mubr.bf16.gmra.mrb[0].mxu0 %v459
  %v1339 = vpop.f32.mrb[0].mxu0
  %v1340 = vadd.f32 %v1220, %v1339
  %v1341 = vpop.f32.mrb[0].mxu0
  %v1342 = vpop.f32.mrb[0].mxu0
  %v1343 = vadd.f32 %v1223, %v1342
  %v1344 = vpop.f32.mrb[0].mxu0
  %1345 = vmatprep.mubr.bf16.mxu0 0
  %1346 = vmatmul.mubr.bf16.gmra.mrb[0].mxu0 %v466
  %v1347 = vpop.f32.mrb[0].mxu0
  %v1348 = vadd.f32 %v1228, %v1347
  %v1349 = vpop.f32.mrb[0].mxu0
  %v1350 = vpop.f32.mrb[0].mxu0
  %v1351 = vadd.f32 %v1231, %v1350
  %v1352 = vpop.f32.mrb[0].mxu0
  %1353 = vmatprep.mubr.bf16.mxu0 0
  %1354 = vmatmul.mubr.bf16.gmra.mrb[0].mxu0 %v473
  %v1355 = vpop.f32.mrb[0].mxu0
  %v1356 = vadd.f32 %v1236, %v1355
  %v1357 = vpop.f32.mrb[0].mxu0
  %v1358 = vpop.f32.mrb[0].mxu0
  %v1359 = vadd.f32 %v1239, %v1358
  %v1360 = vpop.f32.mrb[0].mxu0
  %1361 = vmatprep.mubr.bf16.mxu0 0
  %1362 = vmatmul.mubr.bf16.gmra.mrb[0].mxu0 %v480
  %v1363 = vpop.f32.mrb[0].mxu0
  %v1364 = vadd.f32 %v1244, %v1363
  %v1365 = vpop.f32.mrb[0].mxu0
  %v1366 = vpop.f32.mrb[0].mxu0
  %v1367 = vadd.f32 %v1247, %v1366
  %v1368 = vpop.f32.mrb[0].mxu0
  %1369 = vmatprep.mubr.bf16.mxu0 0
  %1370 = vmatmul.mubr.bf16.gmra.mrb[0].mxu0 %v487
  %v1371 = vpop.f32.mrb[0].mxu0
  %v1372 = vadd.f32 %v1252, %v1371
  %v1373 = vpop.f32.mrb[0].mxu0
  %v1374 = vpop.f32.mrb[0].mxu0
  %v1375 = vadd.f32 %v1255, %v1374
  %v1376 = vpop.f32.mrb[0].mxu0
  %1377 = vmatprep.mubr.bf16.mxu0 0
  %1378 = vmatmul.mubr.bf16.gmra.mrb[0].mxu0 %v494
  %v1379 = vpop.f32.mrb[0].mxu0
  %v1380 = vadd.f32 %v1260, %v1379
  %v1381 = vpop.f32.mrb[0].mxu0
  %v1382 = vpop.f32.mrb[0].mxu0
  %v1383 = vadd.f32 %v1263, %v1382
  %v1384 = vpop.f32.mrb[0].mxu0
  %1385 = vmatprep.mubr.bf16.mxu0 0
  %1386 = vmatmul.mubr.bf16.gmra.mrb[0].mxu0 %v501
  %v1387 = vpop.f32.mrb[0].mxu0
  %v1388 = vadd.f32 %v1268, %v1387
  %v1389 = vpop.f32.mrb[0].mxu0
  %v1390 = vpop.f32.mrb[0].mxu0
  %v1391 = vadd.f32 %v1271, %v1390
  %v1392 = vpop.f32.mrb[0].mxu0
  %1393 = vmatprep.mubr.bf16.mxu0 0
  %1394 = vmatmul.mubr.bf16.gmra.mrb[0].mxu0 %v508
  %v1395 = vpop.f32.mrb[0].mxu0
  %v1396 = vadd.f32 %v1276, %v1395
  %v1397 = vpop.f32.mrb[0].mxu0
  %v1398 = vpop.f32.mrb[0].mxu0
  %v1399 = vadd.f32 %v1279, %v1398
  %v1400 = vpop.f32.mrb[0].mxu0
  %1401 = vmatprep.mubr.bf16.mxu0 0
  %1402 = vmatmul.mubr.bf16.gmra.mrb[0].mxu0 %v515
  %v1403 = vpop.f32.mrb[0].mxu0
  %v1404 = vadd.f32 %v1284, %v1403
  %v1405 = vpop.f32.mrb[0].mxu0
  %v1406 = vpop.f32.mrb[0].mxu0
  %v1407 = vpop.f32.mrb[0].mxu0
  %1408 = vdwg.mxu0
  %v1409 = vadd.f32 %v1324, %v1327
  %v1410 = vadd.f32 %v1409, %v1332
  %v1411 = vadd.f32 %v1410, %v1335
  %v1412 = vadd.f32 %v1411, %v1340
  %v1413 = vadd.f32 %v1412, %v1343
  %v1414 = vadd.f32 %v1413, %v1348
  %v1415 = vadd.f32 %v1414, %v1351
  %v1416 = vadd.f32 %v1415, %v1356
  %v1417 = vadd.f32 %v1416, %v1359
  %v1418 = vadd.f32 %v1417, %v1364
  %v1419 = vadd.f32 %v1418, %v1367
  %v1420 = vadd.f32 %v1419, %v1372
  %v1421 = vadd.f32 %v1420, %v1375
  %v1422 = vadd.f32 %v1421, %v1380
  %v1423 = vadd.f32 %v1422, %v1383
  %v1424 = vrot.slane %v1423, 4
  %v1425 = vadd.f32 %v1423, %v1424
  %v1426 = vrot.slane %v1425, 2
  %v1427 = vadd.f32 %v1425, %v1426
  %v1428 = vrot.slane %v1427, 1
  %v1429 = vadd.f32 %v1427, %v1428
  %v1430 = vmul.f32 %v1429, 0.0078125
  %v1431 = vmul.f32 %v1324, %v1324
  %v1432 = vmul.f32 %v1327, %v1327
  %v1433 = vmul.f32 %v1332, %v1332
  %v1434 = vmul.f32 %v1335, %v1335
  %v1435 = vmul.f32 %v1340, %v1340
  %v1436 = vmul.f32 %v1343, %v1343
  %v1437 = vmul.f32 %v1348, %v1348
  %v1438 = vmul.f32 %v1351, %v1351
  %v1439 = vmul.f32 %v1356, %v1356
  %v1440 = vmul.f32 %v1359, %v1359
  %v1441 = vmul.f32 %v1364, %v1364
  %v1442 = vmul.f32 %v1367, %v1367
  %v1443 = vmul.f32 %v1372, %v1372
  %v1444 = vmul.f32 %v1375, %v1375
  %v1445 = vmul.f32 %v1380, %v1380
  %v1446 = vmul.f32 %v1383, %v1383
  %v1447 = vadd.f32 %v1431, %v1432
  %v1448 = vadd.f32 %v1447, %v1433
  %v1449 = vadd.f32 %v1448, %v1434
  %v1450 = vadd.f32 %v1449, %v1435
  %v1451 = vadd.f32 %v1450, %v1436
  %v1452 = vadd.f32 %v1451, %v1437
  %v1453 = vadd.f32 %v1452, %v1438
  %v1454 = vadd.f32 %v1453, %v1439
  %v1455 = vadd.f32 %v1454, %v1440
  %v1456 = vadd.f32 %v1455, %v1441
  %v1457 = vadd.f32 %v1456, %v1442
  %v1458 = vadd.f32 %v1457, %v1443
  %v1459 = vadd.f32 %v1458, %v1444
  %v1460 = vadd.f32 %v1459, %v1445
  %v1461 = vadd.f32 %v1460, %v1446
  %v1462 = vrot.slane %v1461, 4
  %v1463 = vadd.f32 %v1461, %v1462
  %v1464 = vrot.slane %v1463, 2
  %v1465 = vadd.f32 %v1463, %v1464
  %v1466 = vrot.slane %v1465, 1
  %v1467 = vadd.f32 %v1465, %v1466
  %v1468 = vmul.f32 %v1467, 0.0078125
  %v1469 = vmul.f32 %v1430, %v1430
  %v1470 = vsub.f32 %v1468, %v1469
  %v1471 = vmax.f32 %v1470, 0.0
  %v1472 = vadd.f32 %v1471, 1e-05
  %v1473 = vrsqrt.pop %v1472
  %v1474 = vsub.f32 %v1324, %v1430
  %v1475 = vsub.f32 %v1327, %v1430
  %v1476 = vsub.f32 %v1332, %v1430
  %v1477 = vsub.f32 %v1335, %v1430
  %v1478 = vsub.f32 %v1340, %v1430
  %v1479 = vsub.f32 %v1343, %v1430
  %v1480 = vsub.f32 %v1348, %v1430
  %v1481 = vsub.f32 %v1351, %v1430
  %v1482 = vsub.f32 %v1356, %v1430
  %v1483 = vsub.f32 %v1359, %v1430
  %v1484 = vsub.f32 %v1364, %v1430
  %v1485 = vsub.f32 %v1367, %v1430
  %v1486 = vsub.f32 %v1372, %v1430
  %v1487 = vsub.f32 %v1375, %v1430
  %v1488 = vsub.f32 %v1380, %v1430
  %v1489 = vsub.f32 %v1383, %v1430
  %v1490 = vmul.f32 %v1474, %v1473
  %v1491 = vmul.f32 %v1475, %v1473
  %v1492 = vmul.f32 %v1476, %v1473
  %v1493 = vmul.f32 %v1477, %v1473
  %v1494 = vmul.f32 %v1478, %v1473
  %v1495 = vmul.f32 %v1479, %v1473
  %v1496 = vmul.f32 %v1480, %v1473
  %v1497 = vmul.f32 %v1481, %v1473
  %v1498 = vmul.f32 %v1482, %v1473
  %v1499 = vmul.f32 %v1483, %v1473
  %v1500 = vmul.f32 %v1484, %v1473
  %v1501 = vmul.f32 %v1485, %v1473
  %v1502 = vmul.f32 %v1486, %v1473
  %v1503 = vmul.f32 %v1487, %v1473
  %v1504 = vmul.f32 %v1488, %v1473
  %v1505 = vmul.f32 %v1489, %v1473
  %v1506 = vmax.f32 %v1490, 0.0
  %v1507 = vmax.f32 %v1491, 0.0
  %v1508 = vmax.f32 %v1492, 0.0
  %v1509 = vmax.f32 %v1493, 0.0
  %v1510 = vmax.f32 %v1494, 0.0
  %v1511 = vmax.f32 %v1495, 0.0
  %v1512 = vmax.f32 %v1496, 0.0
  %v1513 = vmax.f32 %v1497, 0.0
  %v1514 = vmax.f32 %v1498, 0.0
  %v1515 = vmax.f32 %v1499, 0.0
  %v1516 = vmax.f32 %v1500, 0.0
  %v1517 = vmax.f32 %v1501, 0.0
  %v1518 = vmax.f32 %v1502, 0.0
  %v1519 = vmax.f32 %v1503, 0.0
  %v1520 = vmax.f32 %v1504, 0.0
  %v1521 = vmax.f32 %v1505, 0.0
  %v1522 = vpack.c.bf16 %v1507, %v1506
  %v1523 = vpack.c.bf16 %v1509, %v1508
  %v1524 = vpack.c.bf16 %v1511, %v1510
  %v1525 = vpack.c.bf16 %v1513, %v1512
  %v1526 = vpack.c.bf16 %v1515, %v1514
  %v1527 = vpack.c.bf16 %v1517, %v1516
  %v1528 = vpack.c.bf16 %v1519, %v1518
  %v1529 = vpack.c.bf16 %v1521, %v1520
  %v1538 = vunpack.c.l.b16 %v1522
  %v1539 = vunpack.c.h.b16 %v1522
  %v1540 = vunpack.c.l.b16 %v1523
  %v1541 = vunpack.c.h.b16 %v1523
  %v1542 = vunpack.c.l.b16 %v1524
  %v1543 = vunpack.c.h.b16 %v1524
  %v1544 = vunpack.c.l.b16 %v1525
  %v1545 = vunpack.c.h.b16 %v1525
  %v1546 = vunpack.c.l.b16 %v1526
  %v1547 = vunpack.c.h.b16 %v1526
  %v1548 = vunpack.c.l.b16 %v1527
  %v1549 = vunpack.c.h.b16 %v1527
  %v1550 = vunpack.c.l.b16 %v1528
  %v1551 = vunpack.c.h.b16 %v1528
  %v1552 = vunpack.c.l.b16 %v1529
  %v1553 = vunpack.c.h.b16 %v1529
  %v1554 = vpack.c.b16 %v1538, %v1538
  %v1555 = vpack.c.b16 %v1539, %v1539
  %v1556 = vpack.c.b16 %v1540, %v1540
  %v1557 = vpack.c.b16 %v1541, %v1541
  %v1558 = vpack.c.b16 %v1542, %v1542
  %v1559 = vpack.c.b16 %v1543, %v1543
  %v1560 = vpack.c.b16 %v1544, %v1544
  %v1561 = vpack.c.b16 %v1545, %v1545
  %v1562 = vpack.c.b16 %v1546, %v1546
  %v1563 = vpack.c.b16 %v1547, %v1547
  %v1564 = vpack.c.b16 %v1548, %v1548
  %v1565 = vpack.c.b16 %v1549, %v1549
  %v1566 = vpack.c.b16 %v1550, %v1550
  %v1567 = vpack.c.b16 %v1551, %v1551
  %v1568 = vpack.c.b16 %v1552, %v1552
  %v1569 = vpack.c.b16 %v1553, %v1553
  %1586 = vst [vmem:[%s2] sm:$0xf] %v1554
  %1587 = vst [vmem:[%s2 + $0x4] sm:$0xf] %v1555
  %1588 = vst [vmem:[%s2 + $0x8] sm:$0xf] %v1556
  %1589 = vst [vmem:[%s2 + $0xc] sm:$0xf] %v1557
  %1590 = vst [vmem:[%s2 + $0x10] sm:$0xf] %v1558
  %1591 = vst [vmem:[%s2 + $0x14] sm:$0xf] %v1559
  %1592 = vst [vmem:[%s2 + $0x18] sm:$0xf] %v1560
  %1593 = vst [vmem:[%s2 + $0x1c] sm:$0xf] %v1561
  %1594 = vst [vmem:[%s2 + $0x20] sm:$0xf] %v1562
  %1595 = vst [vmem:[%s2 + $0x24] sm:$0xf] %v1563
  %1596 = vst [vmem:[%s2 + $0x28] sm:$0xf] %v1564
  %1597 = vst [vmem:[%s2 + $0x2c] sm:$0xf] %v1565
  %1598 = vst [vmem:[%s2 + $0x30] sm:$0xf] %v1566
  %1599 = vst [vmem:[%s2 + $0x34] sm:$0xf] %v1567
  %1600 = vst [vmem:[%s2 + $0x38] sm:$0xf] %v1568
  %1601 = vst [vmem:[%s2 + $0x3c] sm:$0xf] %v1569
  %v1602 = vadd.f32 %v1388, %v1391
  %v1603 = vadd.f32 %v1602, %v1396
  %v1604 = vadd.f32 %v1603, %v1399
  %v1605 = vrot.slane %v1604, 4
  %v1606 = vadd.f32 %v1604, %v1605
  %v1607 = vrot.slane %v1606, 2
  %v1608 = vadd.f32 %v1606, %v1607
  %v1609 = vrot.slane %v1608, 1
  %v1610 = vadd.f32 %v1608, %v1609
  %v1611 = vmul.f32 %v1610, 0.03125
  %v1612 = vmul.f32 %v1388, %v1388
  %v1613 = vmul.f32 %v1391, %v1391
  %v1614 = vmul.f32 %v1396, %v1396
  %v1615 = vmul.f32 %v1399, %v1399
  %v1616 = vadd.f32 %v1612, %v1613
  %v1617 = vadd.f32 %v1616, %v1614
  %v1618 = vadd.f32 %v1617, %v1615
  %v1619 = vrot.slane %v1618, 4
  %v1620 = vadd.f32 %v1618, %v1619
  %v1621 = vrot.slane %v1620, 2
  %v1622 = vadd.f32 %v1620, %v1621
  %v1623 = vrot.slane %v1622, 1
  %v1624 = vadd.f32 %v1622, %v1623
  %v1625 = vmul.f32 %v1624, 0.03125
  %v1626 = vmul.f32 %v1611, %v1611
  %v1627 = vsub.f32 %v1625, %v1626
  %v1628 = vmax.f32 %v1627, 0.0
  %v1629 = vadd.f32 %v1628, 1e-05
  %v1630 = vrsqrt.pop %v1629
  %v1631 = vsub.f32 %v1388, %v1611
  %v1632 = vsub.f32 %v1391, %v1611
  %v1633 = vsub.f32 %v1396, %v1611
  %v1634 = vsub.f32 %v1399, %v1611
  %v1635 = vmul.f32 %v1631, %v1630
  %v1636 = vmul.f32 %v1632, %v1630
  %v1637 = vmul.f32 %v1633, %v1630
  %v1638 = vmul.f32 %v1634, %v1630
  %v1639 = vmax.f32 %v1635, 0.0
  %v1640 = vmax.f32 %v1636, 0.0
  %v1641 = vmax.f32 %v1637, 0.0
  %v1642 = vmax.f32 %v1638, 0.0
  %v1643 = vpack.c.bf16 %v1640, %v1639
  %v1644 = vpack.c.bf16 %v1642, %v1641
  %v1647 = vunpack.c.l.b16 %v1643
  %v1648 = vunpack.c.h.b16 %v1643
  %v1649 = vunpack.c.l.b16 %v1644
  %v1650 = vunpack.c.h.b16 %v1644
  %v1651 = vpack.c.b16 %v1647, %v1647
  %v1652 = vpack.c.b16 %v1648, %v1648
  %v1653 = vpack.c.b16 %v1649, %v1649
  %v1654 = vpack.c.b16 %v1650, %v1650
  %1659 = vst [vmem:[%s2 + $0x40] sm:$0xf] %v1651
  %1660 = vst [vmem:[%s2 + $0x44] sm:$0xf] %v1652
  %1661 = vst [vmem:[%s2 + $0x48] sm:$0xf] %v1653
  %1662 = vst [vmem:[%s2 + $0x4c] sm:$0xf] %v1654
  %v1663 = vrot.slane %v1404, 4
  %v1664 = vadd.f32 %v1404, %v1663
  %v1665 = vrot.slane %v1664, 2
  %v1666 = vadd.f32 %v1664, %v1665
  %v1667 = vrot.slane %v1666, 1
  %v1668 = vadd.f32 %v1666, %v1667
  %v1669 = vmul.f32 %v1668, 0.125
  %v1670 = vmul.f32 %v1404, %v1404
  %v1671 = vrot.slane %v1670, 4
  %v1672 = vadd.f32 %v1670, %v1671
  %v1673 = vrot.slane %v1672, 2
  %v1674 = vadd.f32 %v1672, %v1673
  %v1675 = vrot.slane %v1674, 1
  %v1676 = vadd.f32 %v1674, %v1675
  %v1677 = vmul.f32 %v1676, 0.125
  %v1678 = vmul.f32 %v1669, %v1669
  %v1679 = vsub.f32 %v1677, %v1678
  %v1680 = vmax.f32 %v1679, 0.0
  %v1681 = vadd.f32 %v1680, 1e-05
  %v1682 = vrsqrt.pop %v1681
  %v1683 = vsub.f32 %v1404, %v1669
  %v1684 = vmul.f32 %v1683, %v1682
  %v1685 = vmax.f32 %v1684, 0.0
  %v1686 = vpack.c.bf16 %v1685, %v1685
  %1687 = vst [vmem:[%s2 + $0x50] sm:$0xf] %v1686
  // Predicated region
  $region10: #{mscdae_forward.9} parent=0 // pred_check
    _
  $region11: #{mscdae_forward.9} parent=0 // pred_check_branch
    %1689 = sbr.rel (0) target = $region13
  $region12: #{mscdae_forward.9} parent=0 // pred_region
    _
  $region13: #{mscdae_forward.9} parent=0 // pred_fallthru
    _
  // Predicated region
  $region14: #{mscdae_forward.9} parent=0 // pred_check
    _
  $region15: #{mscdae_forward.9} parent=0 // pred_check_branch
    %1691 = sbr.rel (0) target = $region17
  $region16: #{mscdae_forward.9} parent=0 // pred_region
    _
  $region17: #{mscdae_forward.9} parent=0 // pred_fallthru
    _

// kernel: mscdae_forward.10
$region0: #{mscdae_forward.10}
  #allocation0 [shape = 'u32[]', space=smem, size = 0x4, offset = 0x4, fixed_abs, tag = 'smem constant byte address 0x4 - core index']
  #allocation1 [shape = 'u32[144,128]{1,0:T(1,128)}', space=vmem, size = 0x12000, scoped, tag = 'internal scratch']
  %s0 = inlined_call_operand.vmem [shape: bf16[128,640], index: 0, kind: input, shape index: {}]
  %s1 = inlined_call_operand.vmem [shape: bf16[640,128], index: 1, kind: input, shape index: {}]
  %s2 = inlined_call_operand.vmem [shape: f32[1,128], index: 2, kind: input, shape index: {}]
  %s3 = inlined_call_operand.vmem [shape: bf16[128,128], index: 3, kind: output, shape index: {}]
  %s4 = sld [smem:[#allocation0]]
  $region22: #{mscdae_forward.10} parent=0
    _
  %s6 = ssub.s32 1, %s4
  %s7 = scalar_select 0, %s6, %s4
  // Predicated region
  $region2: #{mscdae_forward.10} parent=0 // pred_check
    _
  $region3: #{mscdae_forward.10} parent=0 // pred_check_branch
    %9 = sbr.rel (0) target = $region5
  $region4: #{mscdae_forward.10} parent=0 // pred_region
    _
  $region5: #{mscdae_forward.10} parent=0 // pred_fallthru
    _
  // Predicated region
  $region6: #{mscdae_forward.10} parent=0 // pred_check
    _
  $region7: #{mscdae_forward.10} parent=0 // pred_check_branch
    %11 = sbr.rel (0) target = $region9
  $region8: #{mscdae_forward.10} parent=0 // pred_region
    _
  $region9: #{mscdae_forward.10} parent=0 // pred_fallthru
    _
  // Predicated region
  $region10: #{mscdae_forward.10} parent=0 // pred_check
    _
  $region11: #{mscdae_forward.10} parent=0 // pred_check_branch
    %13 = sbr.rel (0) target = $region13
  $region12: #{mscdae_forward.10} parent=0 // pred_region
    _
  $region13: #{mscdae_forward.10} parent=0 // pred_fallthru
    _
  %v15 = vld [vmem:[%s0] sm:$0xff]
  %v16 = vld [vmem:[%s0 + $0x8] sm:$0xff]
  %v17 = vld [vmem:[%s0 + $0x10] sm:$0xf]
  %v18 = vld [vmem:[%s0 + $0x14] sm:$0xff]
  %v19 = vld [vmem:[%s0 + $0x1c] sm:$0xff]
  %v20 = vld [vmem:[%s0 + $0x24] sm:$0xf]
  %v21 = vld [vmem:[%s0 + $0x28] sm:$0xff]
  %v22 = vld [vmem:[%s0 + $0x30] sm:$0xff]
  %v23 = vld [vmem:[%s0 + $0x38] sm:$0xf]
  %v24 = vld [vmem:[%s0 + $0x3c] sm:$0xff]
  %v25 = vld [vmem:[%s0 + $0x44] sm:$0xff]
  %v26 = vld [vmem:[%s0 + $0x4c] sm:$0xf]
  %v27 = vld [vmem:[%s0 + $0x50] sm:$0xff]
  %v28 = vld [vmem:[%s0 + $0x58] sm:$0xff]
  %v29 = vld [vmem:[%s0 + $0x60] sm:$0xf]
  %v30 = vld [vmem:[%s0 + $0x64] sm:$0xff]
  %v31 = vld [vmem:[%s0 + $0x6c] sm:$0xff]
  %v32 = vld [vmem:[%s0 + $0x74] sm:$0xf]
  %v33 = vld [vmem:[%s0 + $0x78] sm:$0xff]
  %v34 = vld [vmem:[%s0 + $0x80] sm:$0xff]
  %v35 = vld [vmem:[%s0 + $0x88] sm:$0xf]
  %v36 = vld [vmem:[%s0 + $0x8c] sm:$0xff]
  %v37 = vld [vmem:[%s0 + $0x94] sm:$0xff]
  %v38 = vld [vmem:[%s0 + $0x9c] sm:$0xf]
  %v39 = vld [vmem:[%s0 + $0xa0] sm:$0xff]
  %v40 = vld [vmem:[%s0 + $0xa8] sm:$0xff]
  %v41 = vld [vmem:[%s0 + $0xb0] sm:$0xf]
  %v42 = vld [vmem:[%s0 + $0xb4] sm:$0xff]
  %v43 = vld [vmem:[%s0 + $0xbc] sm:$0xff]
  %v44 = vld [vmem:[%s0 + $0xc4] sm:$0xf]
  %v45 = vld [vmem:[%s0 + $0xc8] sm:$0xff]
  %v46 = vld [vmem:[%s0 + $0xd0] sm:$0xff]
  %v47 = vld [vmem:[%s0 + $0xd8] sm:$0xf]
  %v48 = vld [vmem:[%s0 + $0xdc] sm:$0xff]
  %v49 = vld [vmem:[%s0 + $0xe4] sm:$0xff]
  %v50 = vld [vmem:[%s0 + $0xec] sm:$0xf]
  %v51 = vld [vmem:[%s0 + $0xf0] sm:$0xff]
  %v52 = vld [vmem:[%s0 + $0xf8] sm:$0xff]
  %v53 = vld [vmem:[%s0 + $0x100] sm:$0xf]
  %v54 = vld [vmem:[%s0 + $0x104] sm:$0xff]
  %v55 = vld [vmem:[%s0 + $0x10c] sm:$0xff]
  %v56 = vld [vmem:[%s0 + $0x114] sm:$0xf]
  %v57 = vld [vmem:[%s0 + $0x118] sm:$0xff]
  %v58 = vld [vmem:[%s0 + $0x120] sm:$0xff]
  %v59 = vld [vmem:[%s0 + $0x128] sm:$0xf]
  %v60 = vld [vmem:[%s0 + $0x12c] sm:$0xff]
  %v61 = vld [vmem:[%s0 + $0x134] sm:$0xff]
  %v62 = vld [vmem:[%s0 + $0x13c] sm:$0xf]
  %v63 = vld [vmem:[%s1] sm:$0xf]
  %v64 = vld [vmem:[%s1 + $0x4] sm:$0xf]
  %v65 = vld [vmem:[%s1 + $0x8] sm:$0xf]
  %v66 = vld [vmem:[%s1 + $0xc] sm:$0xf]
  %v67 = vld [vmem:[%s1 + $0x10] sm:$0xf]
  %v68 = vld [vmem:[%s1 + $0x14] sm:$0xf]
  %v69 = vld [vmem:[%s1 + $0x18] sm:$0xf]
  %v70 = vld [vmem:[%s1 + $0x1c] sm:$0xf]
  %v71 = vld [vmem:[%s1 + $0x20] sm:$0xf]
  %v72 = vld [vmem:[%s1 + $0x24] sm:$0xf]
  %v73 = vld [vmem:[%s1 + $0x28] sm:$0xf]
  %v74 = vld [vmem:[%s1 + $0x2c] sm:$0xf]
  %v75 = vld [vmem:[%s1 + $0x30] sm:$0xf]
  %v76 = vld [vmem:[%s1 + $0x34] sm:$0xf]
  %v77 = vld [vmem:[%s1 + $0x38] sm:$0xf]
  %v78 = vld [vmem:[%s1 + $0x3c] sm:$0xf]
  %v79 = vld [vmem:[%s1 + $0x40] sm:$0xf]
  %v80 = vld [vmem:[%s1 + $0x44] sm:$0xf]
  %v81 = vld [vmem:[%s1 + $0x48] sm:$0xf]
  %v82 = vld [vmem:[%s1 + $0x4c] sm:$0xf]
  %v83 = vld [vmem:[%s1 + $0x50] sm:$0xf]
  %v84 = vld [vmem:[%s1 + $0x54] sm:$0xf]
  %v85 = vld [vmem:[%s1 + $0x58] sm:$0xf]
  %v86 = vld [vmem:[%s1 + $0x5c] sm:$0xf]
  %v87 = vld [vmem:[%s1 + $0x60] sm:$0xf]
  %v88 = vld [vmem:[%s1 + $0x64] sm:$0xf]
  %v89 = vld [vmem:[%s1 + $0x68] sm:$0xf]
  %v90 = vld [vmem:[%s1 + $0x6c] sm:$0xf]
  %v91 = vld [vmem:[%s1 + $0x70] sm:$0xf]
  %v92 = vld [vmem:[%s1 + $0x74] sm:$0xf]
  %v93 = vld [vmem:[%s1 + $0x78] sm:$0xf]
  %v94 = vld [vmem:[%s1 + $0x7c] sm:$0xf]
  %v95 = vld [vmem:[%s1 + $0x80] sm:$0xf]
  %v96 = vld [vmem:[%s1 + $0x84] sm:$0xf]
  %v97 = vld [vmem:[%s1 + $0x88] sm:$0xf]
  %v98 = vld [vmem:[%s1 + $0x8c] sm:$0xf]
  %v99 = vld [vmem:[%s1 + $0x90] sm:$0xf]
  %v100 = vld [vmem:[%s1 + $0x94] sm:$0xf]
  %v101 = vld [vmem:[%s1 + $0x98] sm:$0xf]
  %v102 = vld [vmem:[%s1 + $0x9c] sm:$0xf]
  %v103 = vld [vmem:[%s1 + $0xa0] sm:$0xf]
  %v104 = vld [vmem:[%s1 + $0xa4] sm:$0xf]
  %v105 = vld [vmem:[%s1 + $0xa8] sm:$0xf]
  %v106 = vld [vmem:[%s1 + $0xac] sm:$0xf]
  %v107 = vld [vmem:[%s1 + $0xb0] sm:$0xf]
  %v108 = vld [vmem:[%s1 + $0xb4] sm:$0xf]
  %v109 = vld [vmem:[%s1 + $0xb8] sm:$0xf]
  %v110 = vld [vmem:[%s1 + $0xbc] sm:$0xf]
  %v111 = vld [vmem:[%s1 + $0xc0] sm:$0xf]
  %v112 = vld [vmem:[%s1 + $0xc4] sm:$0xf]
  %v113 = vld [vmem:[%s1 + $0xc8] sm:$0xf]
  %v114 = vld [vmem:[%s1 + $0xcc] sm:$0xf]
  %v115 = vld [vmem:[%s1 + $0xd0] sm:$0xf]
  %v116 = vld [vmem:[%s1 + $0xd4] sm:$0xf]
  %v117 = vld [vmem:[%s1 + $0xd8] sm:$0xf]
  %v118 = vld [vmem:[%s1 + $0xdc] sm:$0xf]
  %v119 = vld [vmem:[%s1 + $0xe0] sm:$0xf]
  %v120 = vld [vmem:[%s1 + $0xe4] sm:$0xf]
  %v121 = vld [vmem:[%s1 + $0xe8] sm:$0xf]
  %v122 = vld [vmem:[%s1 + $0xec] sm:$0xf]
  %v123 = vld [vmem:[%s1 + $0xf0] sm:$0xf]
  %v124 = vld [vmem:[%s1 + $0xf4] sm:$0xf]
  %v125 = vld [vmem:[%s1 + $0xf8] sm:$0xf]
  %v126 = vld [vmem:[%s1 + $0xfc] sm:$0xf]
  %v127 = vld [vmem:[%s1 + $0x100] sm:$0xf]
  %v128 = vld [vmem:[%s1 + $0x104] sm:$0xf]
  %v129 = vld [vmem:[%s1 + $0x108] sm:$0xf]
  %v130 = vld [vmem:[%s1 + $0x10c] sm:$0xf]
  %v131 = vld [vmem:[%s1 + $0x110] sm:$0xf]
  %v132 = vld [vmem:[%s1 + $0x114] sm:$0xf]
  %v133 = vld [vmem:[%s1 + $0x118] sm:$0xf]
  %v134 = vld [vmem:[%s1 + $0x11c] sm:$0xf]
  %v135 = vld [vmem:[%s1 + $0x120] sm:$0xf]
  %v136 = vld [vmem:[%s1 + $0x124] sm:$0xf]
  %v137 = vld [vmem:[%s1 + $0x128] sm:$0xf]
  %v138 = vld [vmem:[%s1 + $0x12c] sm:$0xf]
  %v139 = vld [vmem:[%s1 + $0x130] sm:$0xf]
  %v140 = vld [vmem:[%s1 + $0x134] sm:$0xf]
  %v141 = vld [vmem:[%s1 + $0x138] sm:$0xf]
  %v142 = vld [vmem:[%s1 + $0x13c] sm:$0xf]
  %v143 = vld [vmem:[%s2] sm:$0x1]
  %v145 = vlaneseq
  %v146 = vshrl.u32 %v145, 7
  %v147 = vsub.s32 0, %v146
  %v148 = vrot.slane %v143, %v147
  %v198 = vunpack.c.l.b16 %v15
  %v199 = vunpack.c.h.b16 %v15
  %v200 = vunpack.c.l.b16 %v16
  %v201 = vunpack.c.h.b16 %v16
  %v202 = vunpack.c.l.b16 %v17
  %v203 = vunpack.c.l.b16 %v18
  %v204 = vunpack.c.h.b16 %v18
  %v205 = vunpack.c.l.b16 %v19
  %v206 = vunpack.c.h.b16 %v19
  %v207 = vunpack.c.l.b16 %v20
  %v208 = vunpack.c.l.b16 %v21
  %v209 = vunpack.c.h.b16 %v21
  %v210 = vunpack.c.l.b16 %v22
  %v211 = vunpack.c.h.b16 %v22
  %v212 = vunpack.c.l.b16 %v23
  %v213 = vunpack.c.l.b16 %v24
  %v214 = vunpack.c.h.b16 %v24
  %v215 = vunpack.c.l.b16 %v25
  %v216 = vunpack.c.h.b16 %v25
  %v217 = vunpack.c.l.b16 %v26
  %v218 = vunpack.c.l.b16 %v27
  %v219 = vunpack.c.h.b16 %v27
  %v220 = vunpack.c.l.b16 %v28
  %v221 = vunpack.c.h.b16 %v28
  %v222 = vunpack.c.l.b16 %v29
  %v223 = vunpack.c.l.b16 %v30
  %v224 = vunpack.c.h.b16 %v30
  %v225 = vunpack.c.l.b16 %v31
  %v226 = vunpack.c.h.b16 %v31
  %v227 = vunpack.c.l.b16 %v32
  %v228 = vunpack.c.l.b16 %v33
  %v229 = vunpack.c.h.b16 %v33
  %v230 = vunpack.c.l.b16 %v34
  %v231 = vunpack.c.h.b16 %v34
  %v232 = vunpack.c.l.b16 %v35
  %v233 = vunpack.c.l.b16 %v36
  %v234 = vunpack.c.h.b16 %v36
  %v235 = vunpack.c.l.b16 %v37
  %v236 = vunpack.c.h.b16 %v37
  %v237 = vunpack.c.l.b16 %v38
  %v238 = vunpack.c.l.b16 %v39
  %v239 = vunpack.c.h.b16 %v39
  %v240 = vunpack.c.l.b16 %v40
  %v241 = vunpack.c.h.b16 %v40
  %v242 = vunpack.c.l.b16 %v41
  %v243 = vunpack.c.l.b16 %v42
  %v244 = vunpack.c.h.b16 %v42
  %v245 = vunpack.c.l.b16 %v43
  %v246 = vunpack.c.h.b16 %v43
  %v247 = vunpack.c.l.b16 %v44
  %v248 = vunpack.c.l.b16 %v45
  %v249 = vunpack.c.h.b16 %v45
  %v250 = vunpack.c.l.b16 %v46
  %v251 = vunpack.c.h.b16 %v46
  %v252 = vunpack.c.l.b16 %v47
  %v253 = vunpack.c.l.b16 %v48
  %v254 = vunpack.c.h.b16 %v48
  %v255 = vunpack.c.l.b16 %v49
  %v256 = vunpack.c.h.b16 %v49
  %v257 = vunpack.c.l.b16 %v50
  %v258 = vunpack.c.l.b16 %v51
  %v259 = vunpack.c.h.b16 %v51
  %v260 = vunpack.c.l.b16 %v52
  %v261 = vunpack.c.h.b16 %v52
  %v262 = vunpack.c.l.b16 %v53
  %v263 = vunpack.c.l.b16 %v54
  %v264 = vunpack.c.h.b16 %v54
  %v265 = vunpack.c.l.b16 %v55
  %v266 = vunpack.c.h.b16 %v55
  %v267 = vunpack.c.l.b16 %v56
  %v268 = vunpack.c.l.b16 %v57
  %v269 = vunpack.c.h.b16 %v57
  %v270 = vunpack.c.l.b16 %v58
  %v271 = vunpack.c.h.b16 %v58
  %v272 = vunpack.c.l.b16 %v59
  %v273 = vunpack.c.l.b16 %v60
  %v274 = vunpack.c.h.b16 %v60
  %v275 = vunpack.c.l.b16 %v61
  %v276 = vunpack.c.h.b16 %v61
  %v277 = vunpack.c.l.b16 %v62
  %v278 = vpack.c.b16 %v203, %v198
  %v279 = vpack.c.b16 %v204, %v199
  %v280 = vpack.c.b16 %v205, %v200
  %v281 = vpack.c.b16 %v206, %v201
  %v282 = vpack.c.b16 %v207, %v202
  %v283 = vpack.c.b16 %v213, %v208
  %v284 = vpack.c.b16 %v214, %v209
  %v285 = vpack.c.b16 %v215, %v210
  %v286 = vpack.c.b16 %v216, %v211
  %v287 = vpack.c.b16 %v217, %v212
  %v288 = vpack.c.b16 %v223, %v218
  %v289 = vpack.c.b16 %v224, %v219
  %v290 = vpack.c.b16 %v225, %v220
  %v291 = vpack.c.b16 %v226, %v221
  %v292 = vpack.c.b16 %v227, %v222
  %v293 = vpack.c.b16 %v233, %v228
  %v294 = vpack.c.b16 %v234, %v229
  %v295 = vpack.c.b16 %v235, %v230
  %v296 = vpack.c.b16 %v236, %v231
  %v297 = vpack.c.b16 %v237, %v232
  %v298 = vpack.c.b16 %v243, %v238
  %v299 = vpack.c.b16 %v244, %v239
  %v300 = vpack.c.b16 %v245, %v240
  %v301 = vpack.c.b16 %v246, %v241
  %v302 = vpack.c.b16 %v247, %v242
  %v303 = vpack.c.b16 %v253, %v248
  %v304 = vpack.c.b16 %v254, %v249
  %v305 = vpack.c.b16 %v255, %v250
  %v306 = vpack.c.b16 %v256, %v251
  %v307 = vpack.c.b16 %v257, %v252
  %v308 = vpack.c.b16 %v263, %v258
  %v309 = vpack.c.b16 %v264, %v259
  %v310 = vpack.c.b16 %v265, %v260
  %v311 = vpack.c.b16 %v266, %v261
  %v312 = vpack.c.b16 %v267, %v262
  %v313 = vpack.c.b16 %v273, %v268
  %v314 = vpack.c.b16 %v274, %v269
  %v315 = vpack.c.b16 %v275, %v270
  %v316 = vpack.c.b16 %v276, %v271
  %v317 = vpack.c.b16 %v277, %v272
  %v438 = vunpack.c.l.b16 %v63
  %v439 = vunpack.c.l.b16 %v64
  %v440 = vunpack.c.l.b16 %v65
  %v441 = vunpack.c.l.b16 %v66
  %v442 = vunpack.c.l.b16 %v67
  %v443 = vunpack.c.l.b16 %v68
  %v444 = vunpack.c.l.b16 %v69
  %v445 = vunpack.c.l.b16 %v70
  %v446 = vunpack.c.l.b16 %v71
  %v447 = vunpack.c.l.b16 %v72
  %v448 = vunpack.c.l.b16 %v73
  %v449 = vunpack.c.l.b16 %v74
  %v450 = vunpack.c.l.b16 %v75
  %v451 = vunpack.c.l.b16 %v76
  %v452 = vunpack.c.l.b16 %v77
  %v453 = vunpack.c.l.b16 %v78
  %v454 = vunpack.c.l.b16 %v79
  %v455 = vunpack.c.l.b16 %v80
  %v456 = vunpack.c.l.b16 %v81
  %v457 = vunpack.c.l.b16 %v82
  %v458 = vunpack.c.l.b16 %v83
  %v459 = vunpack.c.l.b16 %v84
  %v460 = vunpack.c.l.b16 %v85
  %v461 = vunpack.c.l.b16 %v86
  %v462 = vunpack.c.l.b16 %v87
  %v463 = vunpack.c.l.b16 %v88
  %v464 = vunpack.c.l.b16 %v89
  %v465 = vunpack.c.l.b16 %v90
  %v466 = vunpack.c.l.b16 %v91
  %v467 = vunpack.c.l.b16 %v92
  %v468 = vunpack.c.l.b16 %v93
  %v469 = vunpack.c.l.b16 %v94
  %v470 = vunpack.c.l.b16 %v95
  %v471 = vunpack.c.l.b16 %v96
  %v472 = vunpack.c.l.b16 %v97
  %v473 = vunpack.c.l.b16 %v98
  %v474 = vunpack.c.l.b16 %v99
  %v475 = vunpack.c.l.b16 %v100
  %v476 = vunpack.c.l.b16 %v101
  %v477 = vunpack.c.l.b16 %v102
  %v478 = vunpack.c.l.b16 %v103
  %v479 = vunpack.c.l.b16 %v104
  %v480 = vunpack.c.l.b16 %v105
  %v481 = vunpack.c.l.b16 %v106
  %v482 = vunpack.c.l.b16 %v107
  %v483 = vunpack.c.l.b16 %v108
  %v484 = vunpack.c.l.b16 %v109
  %v485 = vunpack.c.l.b16 %v110
  %v486 = vunpack.c.l.b16 %v111
  %v487 = vunpack.c.l.b16 %v112
  %v488 = vunpack.c.l.b16 %v113
  %v489 = vunpack.c.l.b16 %v114
  %v490 = vunpack.c.l.b16 %v115
  %v491 = vunpack.c.l.b16 %v116
  %v492 = vunpack.c.l.b16 %v117
  %v493 = vunpack.c.l.b16 %v118
  %v494 = vunpack.c.l.b16 %v119
  %v495 = vunpack.c.l.b16 %v120
  %v496 = vunpack.c.l.b16 %v121
  %v497 = vunpack.c.l.b16 %v122
  %v498 = vunpack.c.l.b16 %v123
  %v499 = vunpack.c.l.b16 %v124
  %v500 = vunpack.c.l.b16 %v125
  %v501 = vunpack.c.l.b16 %v126
  %v502 = vunpack.c.l.b16 %v127
  %v503 = vunpack.c.l.b16 %v128
  %v504 = vunpack.c.l.b16 %v129
  %v505 = vunpack.c.l.b16 %v130
  %v506 = vunpack.c.l.b16 %v131
  %v507 = vunpack.c.l.b16 %v132
  %v508 = vunpack.c.l.b16 %v133
  %v509 = vunpack.c.l.b16 %v134
  %v510 = vunpack.c.l.b16 %v135
  %v511 = vunpack.c.l.b16 %v136
  %v512 = vunpack.c.l.b16 %v137
  %v513 = vunpack.c.l.b16 %v138
  %v514 = vunpack.c.l.b16 %v139
  %v515 = vunpack.c.l.b16 %v140
  %v516 = vunpack.c.l.b16 %v141
  %v517 = vunpack.c.l.b16 %v142
  %v518 = vpack.c.b16 %v439, %v438
  %v519 = vpack.c.b16 %v441, %v440
  %v520 = vpack.c.b16 %v443, %v442
  %v521 = vpack.c.b16 %v445, %v444
  %v522 = vpack.c.b16 %v447, %v446
  %v523 = vpack.c.b16 %v449, %v448
  %v524 = vpack.c.b16 %v451, %v450
  %v525 = vpack.c.b16 %v453, %v452
  %v526 = vpack.c.b16 %v455, %v454
  %v527 = vpack.c.b16 %v457, %v456
  %v528 = vpack.c.b16 %v459, %v458
  %v529 = vpack.c.b16 %v461, %v460
  %v530 = vpack.c.b16 %v463, %v462
  %v531 = vpack.c.b16 %v465, %v464
  %v532 = vpack.c.b16 %v467, %v466
  %v533 = vpack.c.b16 %v469, %v468
  %v534 = vpack.c.b16 %v471, %v470
  %v535 = vpack.c.b16 %v473, %v472
  %v536 = vpack.c.b16 %v475, %v474
  %v537 = vpack.c.b16 %v477, %v476
  %v538 = vpack.c.b16 %v479, %v478
  %v539 = vpack.c.b16 %v481, %v480
  %v540 = vpack.c.b16 %v483, %v482
  %v541 = vpack.c.b16 %v485, %v484
  %v542 = vpack.c.b16 %v487, %v486
  %v543 = vpack.c.b16 %v489, %v488
  %v544 = vpack.c.b16 %v491, %v490
  %v545 = vpack.c.b16 %v493, %v492
  %v546 = vpack.c.b16 %v495, %v494
  %v547 = vpack.c.b16 %v497, %v496
  %v548 = vpack.c.b16 %v499, %v498
  %v549 = vpack.c.b16 %v501, %v500
  %v550 = vpack.c.b16 %v503, %v502
  %v551 = vpack.c.b16 %v505, %v504
  %v552 = vpack.c.b16 %v507, %v506
  %v553 = vpack.c.b16 %v509, %v508
  %v554 = vpack.c.b16 %v511, %v510
  %v555 = vpack.c.b16 %v513, %v512
  %v556 = vpack.c.b16 %v515, %v514
  %v557 = vpack.c.b16 %v517, %v516
  %598 = vmatprep.subr.bf16.mxu0 0
  %599 = vmatpush1.bf16.msra.mxu0 %v518
  %600 = vmatprep.subr.bf16.mxu0 0
  %601 = vmatpush1.bf16.msra.mxu0 %v519
  %602 = vmatprep.subr.bf16.mxu0 0
  %603 = vmatpush1.bf16.msra.mxu0 %v520
  %604 = vmatprep.subr.bf16.mxu0 0
  %605 = vmatpush1.bf16.msra.mxu0 %v521
  %606 = vmatprep.subr.bf16.mxu0 0
  %607 = vmatpush1.bf16.msra.mxu0 %v522
  %608 = vmatprep.subr.bf16.mxu0 0
  %609 = vmatpush1.bf16.msra.mxu0 %v523
  %610 = vmatprep.subr.bf16.mxu0 0
  %611 = vmatpush1.bf16.msra.mxu0 %v524
  %612 = vmatprep.subr.bf16.mxu0 0
  %613 = vmatpush1.bf16.msra.mxu0 %v525
  %614 = vmatprep.subr.bf16.mxu0 0
  %615 = vmatpush1.bf16.msra.mxu0 %v526
  %616 = vmatprep.subr.bf16.mxu0 0
  %617 = vmatpush1.bf16.msra.mxu0 %v527
  %618 = vmatprep.subr.bf16.mxu0 0
  %619 = vmatpush1.bf16.msra.mxu0 %v528
  %620 = vmatprep.subr.bf16.mxu0 0
  %621 = vmatpush1.bf16.msra.mxu0 %v529
  %622 = vmatprep.subr.bf16.mxu0 0
  %623 = vmatpush1.bf16.msra.mxu0 %v530
  %624 = vmatprep.subr.bf16.mxu0 0
  %625 = vmatpush1.bf16.msra.mxu0 %v531
  %626 = vmatprep.subr.bf16.mxu0 0
  %627 = vmatpush1.bf16.msra.mxu0 %v532
  %628 = vmatprep.subr.bf16.mxu0 0
  %629 = vmatpush1.bf16.msra.mxu0 %v533
  %630 = vmatprep.mubr.bf16.mxu0 %v279
  %631 = vmatmul.mubr.bf16.gmra.mrb[0].mxu0 %v278
  %v632 = vpop.f32.mrb[0].mxu0
  %v633 = vadd.f32 %v148, %v632
  %v634 = vpop.f32.mrb[0].mxu0
  %v635 = vpop.f32.mrb[0].mxu0
  %v636 = vadd.f32 %v148, %v635
  %v637 = vpop.f32.mrb[0].mxu0
  %638 = vmatprep.mubr.bf16.mxu0 %v284
  %639 = vmatmul.mubr.bf16.gmra.mrb[0].mxu0 %v283
  %v640 = vpop.f32.mrb[0].mxu0
  %v641 = vadd.f32 %v148, %v640
  %v642 = vpop.f32.mrb[0].mxu0
  %v643 = vpop.f32.mrb[0].mxu0
  %v644 = vadd.f32 %v148, %v643
  %v645 = vpop.f32.mrb[0].mxu0
  %646 = vmatprep.mubr.bf16.mxu0 %v289
  %647 = vmatmul.mubr.bf16.gmra.mrb[0].mxu0 %v288
  %v648 = vpop.f32.mrb[0].mxu0
  %v649 = vadd.f32 %v148, %v648
  %v650 = vpop.f32.mrb[0].mxu0
  %v651 = vpop.f32.mrb[0].mxu0
  %v652 = vadd.f32 %v148, %v651
  %v653 = vpop.f32.mrb[0].mxu0
  %654 = vmatprep.mubr.bf16.mxu0 %v294
  %655 = vmatmul.mubr.bf16.gmra.mrb[0].mxu0 %v293
  %v656 = vpop.f32.mrb[0].mxu0
  %v657 = vadd.f32 %v148, %v656
  %v658 = vpop.f32.mrb[0].mxu0
  %v659 = vpop.f32.mrb[0].mxu0
  %v660 = vadd.f32 %v148, %v659
  %v661 = vpop.f32.mrb[0].mxu0
  %662 = vmatprep.mubr.bf16.mxu0 %v299
  %663 = vmatmul.mubr.bf16.gmra.mrb[0].mxu0 %v298
  %v664 = vpop.f32.mrb[0].mxu0
  %v665 = vadd.f32 %v148, %v664
  %v666 = vpop.f32.mrb[0].mxu0
  %v667 = vpop.f32.mrb[0].mxu0
  %v668 = vadd.f32 %v148, %v667
  %v669 = vpop.f32.mrb[0].mxu0
  %670 = vmatprep.mubr.bf16.mxu0 %v304
  %671 = vmatmul.mubr.bf16.gmra.mrb[0].mxu0 %v303
  %v672 = vpop.f32.mrb[0].mxu0
  %v673 = vadd.f32 %v148, %v672
  %v674 = vpop.f32.mrb[0].mxu0
  %v675 = vpop.f32.mrb[0].mxu0
  %v676 = vadd.f32 %v148, %v675
  %v677 = vpop.f32.mrb[0].mxu0
  %678 = vmatprep.mubr.bf16.mxu0 %v309
  %679 = vmatmul.mubr.bf16.gmra.mrb[0].mxu0 %v308
  %v680 = vpop.f32.mrb[0].mxu0
  %v681 = vadd.f32 %v148, %v680
  %v682 = vpop.f32.mrb[0].mxu0
  %v683 = vpop.f32.mrb[0].mxu0
  %v684 = vadd.f32 %v148, %v683
  %v685 = vpop.f32.mrb[0].mxu0
  %686 = vmatprep.mubr.bf16.mxu0 %v314
  %687 = vmatmul.mubr.bf16.gmra.mrb[0].mxu0 %v313
  %v688 = vpop.f32.mrb[0].mxu0
  %v689 = vadd.f32 %v148, %v688
  %v690 = vpop.f32.mrb[0].mxu0
  %v691 = vpop.f32.mrb[0].mxu0
  %v692 = vadd.f32 %v148, %v691
  %v693 = vpop.f32.mrb[0].mxu0
  %694 = vdwg.mxu0
  %695 = vmatprep.subr.bf16.mxu0 0
  %696 = vmatpush1.bf16.msra.mxu0 %v534
  %697 = vmatprep.subr.bf16.mxu0 0
  %698 = vmatpush1.bf16.msra.mxu0 %v535
  %699 = vmatprep.subr.bf16.mxu0 0
  %700 = vmatpush1.bf16.msra.mxu0 %v536
  %701 = vmatprep.subr.bf16.mxu0 0
  %702 = vmatpush1.bf16.msra.mxu0 %v537
  %703 = vmatprep.subr.bf16.mxu0 0
  %704 = vmatpush1.bf16.msra.mxu0 %v538
  %705 = vmatprep.subr.bf16.mxu0 0
  %706 = vmatpush1.bf16.msra.mxu0 %v539
  %707 = vmatprep.subr.bf16.mxu0 0
  %708 = vmatpush1.bf16.msra.mxu0 %v540
  %709 = vmatprep.subr.bf16.mxu0 0
  %710 = vmatpush1.bf16.msra.mxu0 %v541
  %711 = vmatprep.subr.bf16.mxu0 0
  %712 = vmatpush1.bf16.msra.mxu0 %v542
  %713 = vmatprep.subr.bf16.mxu0 0
  %714 = vmatpush1.bf16.msra.mxu0 %v543
  %715 = vmatprep.subr.bf16.mxu0 0
  %716 = vmatpush1.bf16.msra.mxu0 %v544
  %717 = vmatprep.subr.bf16.mxu0 0
  %718 = vmatpush1.bf16.msra.mxu0 %v545
  %719 = vmatprep.subr.bf16.mxu0 0
  %720 = vmatpush1.bf16.msra.mxu0 %v546
  %721 = vmatprep.subr.bf16.mxu0 0
  %722 = vmatpush1.bf16.msra.mxu0 %v547
  %723 = vmatprep.subr.bf16.mxu0 0
  %724 = vmatpush1.bf16.msra.mxu0 %v548
  %725 = vmatprep.subr.bf16.mxu0 0
  %726 = vmatpush1.bf16.msra.mxu0 %v549
  %727 = vmatprep.mubr.bf16.mxu0 %v281
  %728 = vmatmul.mubr.bf16.gmra.mrb[0].mxu0 %v280
  %v729 = vpop.f32.mrb[0].mxu0
  %v730 = vadd.f32 %v633, %v729
  %v731 = vpop.f32.mrb[0].mxu0
  %v732 = vpop.f32.mrb[0].mxu0
  %v733 = vadd.f32 %v636, %v732
  %v734 = vpop.f32.mrb[0].mxu0
  %735 = vmatprep.mubr.bf16.mxu0 %v286
  %736 = vmatmul.mubr.bf16.gmra.mrb[0].mxu0 %v285
  %v737 = vpop.f32.mrb[0].mxu0
  %v738 = vadd.f32 %v641, %v737
  %v739 = vpop.f32.mrb[0].mxu0
  %v740 = vpop.f32.mrb[0].mxu0
  %v741 = vadd.f32 %v644, %v740
  %v742 = vpop.f32.mrb[0].mxu0
  %743 = vmatprep.mubr.bf16.mxu0 %v291
  %744 = vmatmul.mubr.bf16.gmra.mrb[0].mxu0 %v290
  %v745 = vpop.f32.mrb[0].mxu0
  %v746 = vadd.f32 %v649, %v745
  %v747 = vpop.f32.mrb[0].mxu0
  %v748 = vpop.f32.mrb[0].mxu0
  %v749 = vadd.f32 %v652, %v748
  %v750 = vpop.f32.mrb[0].mxu0
  %751 = vmatprep.mubr.bf16.mxu0 %v296
  %752 = vmatmul.mubr.bf16.gmra.mrb[0].mxu0 %v295
  %v753 = vpop.f32.mrb[0].mxu0
  %v754 = vadd.f32 %v657, %v753
  %v755 = vpop.f32.mrb[0].mxu0
  %v756 = vpop.f32.mrb[0].mxu0
  %v757 = vadd.f32 %v660, %v756
  %v758 = vpop.f32.mrb[0].mxu0
  %759 = vmatprep.mubr.bf16.mxu0 %v301
  %760 = vmatmul.mubr.bf16.gmra.mrb[0].mxu0 %v300
  %v761 = vpop.f32.mrb[0].mxu0
  %v762 = vadd.f32 %v665, %v761
  %v763 = vpop.f32.mrb[0].mxu0
  %v764 = vpop.f32.mrb[0].mxu0
  %v765 = vadd.f32 %v668, %v764
  %v766 = vpop.f32.mrb[0].mxu0
  %767 = vmatprep.mubr.bf16.mxu0 %v306
  %768 = vmatmul.mubr.bf16.gmra.mrb[0].mxu0 %v305
  %v769 = vpop.f32.mrb[0].mxu0
  %v770 = vadd.f32 %v673, %v769
  %v771 = vpop.f32.mrb[0].mxu0
  %v772 = vpop.f32.mrb[0].mxu0
  %v773 = vadd.f32 %v676, %v772
  %v774 = vpop.f32.mrb[0].mxu0
  %775 = vmatprep.mubr.bf16.mxu0 %v311
  %776 = vmatmul.mubr.bf16.gmra.mrb[0].mxu0 %v310
  %v777 = vpop.f32.mrb[0].mxu0
  %v778 = vadd.f32 %v681, %v777
  %v779 = vpop.f32.mrb[0].mxu0
  %v780 = vpop.f32.mrb[0].mxu0
  %v781 = vadd.f32 %v684, %v780
  %v782 = vpop.f32.mrb[0].mxu0
  %783 = vmatprep.mubr.bf16.mxu0 %v316
  %784 = vmatmul.mubr.bf16.gmra.mrb[0].mxu0 %v315
  %v785 = vpop.f32.mrb[0].mxu0
  %v786 = vadd.f32 %v689, %v785
  %v787 = vpop.f32.mrb[0].mxu0
  %v788 = vpop.f32.mrb[0].mxu0
  %v789 = vadd.f32 %v692, %v788
  %v790 = vpop.f32.mrb[0].mxu0
  %791 = vdwg.mxu0
  %792 = vmatprep.subr.bf16.mxu0 0
  %793 = vmatpush1.bf16.msra.mxu0 %v550
  %794 = vmatprep.subr.bf16.mxu0 0
  %795 = vmatpush1.bf16.msra.mxu0 %v551
  %796 = vmatprep.subr.bf16.mxu0 0
  %797 = vmatpush1.bf16.msra.mxu0 %v552
  %798 = vmatprep.subr.bf16.mxu0 0
  %799 = vmatpush1.bf16.msra.mxu0 %v553
  %800 = vmatprep.subr.bf16.mxu0 0
  %801 = vmatpush1.bf16.msra.mxu0 %v554
  %802 = vmatprep.subr.bf16.mxu0 0
  %803 = vmatpush1.bf16.msra.mxu0 %v555
  %804 = vmatprep.subr.bf16.mxu0 0
  %805 = vmatpush1.bf16.msra.mxu0 %v556
  %806 = vmatprep.subr.bf16.mxu0 0
  %807 = vmatpush1.bf16.msra.mxu0 %v557
  %808 = vmatprep.subr.bf16.mxu0 0
  %809 = vmatpush1.bf16.msra.mxu0 0
  %810 = vmatprep.subr.bf16.mxu0 0
  %811 = vmatpush1.bf16.msra.mxu0 0
  %812 = vmatprep.subr.bf16.mxu0 0
  %813 = vmatpush1.bf16.msra.mxu0 0
  %814 = vmatprep.subr.bf16.mxu0 0
  %815 = vmatpush1.bf16.msra.mxu0 0
  %816 = vmatprep.subr.bf16.mxu0 0
  %817 = vmatpush1.bf16.msra.mxu0 0
  %818 = vmatprep.subr.bf16.mxu0 0
  %819 = vmatpush1.bf16.msra.mxu0 0
  %820 = vmatprep.subr.bf16.mxu0 0
  %821 = vmatpush1.bf16.msra.mxu0 0
  %822 = vmatprep.subr.bf16.mxu0 0
  %823 = vmatpush1.bf16.msra.mxu0 0
  %824 = vmatprep.mubr.bf16.mxu0 0
  %825 = vmatmul.mubr.bf16.gmra.mrb[0].mxu0 %v282
  %v826 = vpop.f32.mrb[0].mxu0
  %v827 = vadd.f32 %v730, %v826
  %v828 = vpop.f32.mrb[0].mxu0
  %v829 = vpop.f32.mrb[0].mxu0
  %v830 = vadd.f32 %v733, %v829
  %v831 = vpop.f32.mrb[0].mxu0
  %832 = vmatprep.mubr.bf16.mxu0 0
  %833 = vmatmul.mubr.bf16.gmra.mrb[0].mxu0 %v287
  %v834 = vpop.f32.mrb[0].mxu0
  %v835 = vadd.f32 %v738, %v834
  %v836 = vpop.f32.mrb[0].mxu0
  %v837 = vpop.f32.mrb[0].mxu0
  %v838 = vadd.f32 %v741, %v837
  %v839 = vpop.f32.mrb[0].mxu0
  %840 = vmatprep.mubr.bf16.mxu0 0
  %841 = vmatmul.mubr.bf16.gmra.mrb[0].mxu0 %v292
  %v842 = vpop.f32.mrb[0].mxu0
  %v843 = vadd.f32 %v746, %v842
  %v844 = vpop.f32.mrb[0].mxu0
  %v845 = vpop.f32.mrb[0].mxu0
  %v846 = vadd.f32 %v749, %v845
  %v847 = vpop.f32.mrb[0].mxu0
  %848 = vmatprep.mubr.bf16.mxu0 0
  %849 = vmatmul.mubr.bf16.gmra.mrb[0].mxu0 %v297
  %v850 = vpop.f32.mrb[0].mxu0
  %v851 = vadd.f32 %v754, %v850
  %v852 = vpop.f32.mrb[0].mxu0
  %v853 = vpop.f32.mrb[0].mxu0
  %v854 = vadd.f32 %v757, %v853
  %v855 = vpop.f32.mrb[0].mxu0
  %856 = vmatprep.mubr.bf16.mxu0 0
  %857 = vmatmul.mubr.bf16.gmra.mrb[0].mxu0 %v302
  %v858 = vpop.f32.mrb[0].mxu0
  %v859 = vadd.f32 %v762, %v858
  %v860 = vpop.f32.mrb[0].mxu0
  %v861 = vpop.f32.mrb[0].mxu0
  %v862 = vadd.f32 %v765, %v861
  %v863 = vpop.f32.mrb[0].mxu0
  %864 = vmatprep.mubr.bf16.mxu0 0
  %865 = vmatmul.mubr.bf16.gmra.mrb[0].mxu0 %v307
  %v866 = vpop.f32.mrb[0].mxu0
  %v867 = vadd.f32 %v770, %v866
  %v868 = vpop.f32.mrb[0].mxu0
  %v869 = vpop.f32.mrb[0].mxu0
  %v870 = vadd.f32 %v773, %v869
  %v871 = vpop.f32.mrb[0].mxu0
  %872 = vmatprep.mubr.bf16.mxu0 0
  %873 = vmatmul.mubr.bf16.gmra.mrb[0].mxu0 %v312
  %v874 = vpop.f32.mrb[0].mxu0
  %v875 = vadd.f32 %v778, %v874
  %v876 = vpop.f32.mrb[0].mxu0
  %v877 = vpop.f32.mrb[0].mxu0
  %v878 = vadd.f32 %v781, %v877
  %v879 = vpop.f32.mrb[0].mxu0
  %880 = vmatprep.mubr.bf16.mxu0 0
  %881 = vmatmul.mubr.bf16.gmra.mrb[0].mxu0 %v317
  %v882 = vpop.f32.mrb[0].mxu0
  %v883 = vadd.f32 %v786, %v882
  %v884 = vpop.f32.mrb[0].mxu0
  %v885 = vpop.f32.mrb[0].mxu0
  %v886 = vadd.f32 %v789, %v885
  %v887 = vpop.f32.mrb[0].mxu0
  %888 = vdwg.mxu0
  %v889 = vpack.c.bf16 %v830, %v827
  %v890 = vpack.c.bf16 %v838, %v835
  %v891 = vpack.c.bf16 %v846, %v843
  %v892 = vpack.c.bf16 %v854, %v851
  %v893 = vpack.c.bf16 %v862, %v859
  %v894 = vpack.c.bf16 %v870, %v867
  %v895 = vpack.c.bf16 %v878, %v875
  %v896 = vpack.c.bf16 %v886, %v883
  %v905 = vunpack.c.l.b16 %v889
  %v906 = vunpack.c.h.b16 %v889
  %v907 = vunpack.c.l.b16 %v890
  %v908 = vunpack.c.h.b16 %v890
  %v909 = vunpack.c.l.b16 %v891
  %v910 = vunpack.c.h.b16 %v891
  %v911 = vunpack.c.l.b16 %v892
  %v912 = vunpack.c.h.b16 %v892
  %v913 = vunpack.c.l.b16 %v893
  %v914 = vunpack.c.h.b16 %v893
  %v915 = vunpack.c.l.b16 %v894
  %v916 = vunpack.c.h.b16 %v894
  %v917 = vunpack.c.l.b16 %v895
  %v918 = vunpack.c.h.b16 %v895
  %v919 = vunpack.c.l.b16 %v896
  %v920 = vunpack.c.h.b16 %v896
  %v921 = vpack.c.b16 %v905, %v905
  %v922 = vpack.c.b16 %v906, %v906
  %v923 = vpack.c.b16 %v907, %v907
  %v924 = vpack.c.b16 %v908, %v908
  %v925 = vpack.c.b16 %v909, %v909
  %v926 = vpack.c.b16 %v910, %v910
  %v927 = vpack.c.b16 %v911, %v911
  %v928 = vpack.c.b16 %v912, %v912
  %v929 = vpack.c.b16 %v913, %v913
  %v930 = vpack.c.b16 %v914, %v914
  %v931 = vpack.c.b16 %v915, %v915
  %v932 = vpack.c.b16 %v916, %v916
  %v933 = vpack.c.b16 %v917, %v917
  %v934 = vpack.c.b16 %v918, %v918
  %v935 = vpack.c.b16 %v919, %v919
  %v936 = vpack.c.b16 %v920, %v920
  %953 = vst [vmem:[%s3] sm:$0xf] %v921
  %954 = vst [vmem:[%s3 + $0x4] sm:$0xf] %v922
  %955 = vst [vmem:[%s3 + $0x8] sm:$0xf] %v923
  %956 = vst [vmem:[%s3 + $0xc] sm:$0xf] %v924
  %957 = vst [vmem:[%s3 + $0x10] sm:$0xf] %v925
  %958 = vst [vmem:[%s3 + $0x14] sm:$0xf] %v926
  %959 = vst [vmem:[%s3 + $0x18] sm:$0xf] %v927
  %960 = vst [vmem:[%s3 + $0x1c] sm:$0xf] %v928
  %961 = vst [vmem:[%s3 + $0x20] sm:$0xf] %v929
  %962 = vst [vmem:[%s3 + $0x24] sm:$0xf] %v930
  %963 = vst [vmem:[%s3 + $0x28] sm:$0xf] %v931
  %964 = vst [vmem:[%s3 + $0x2c] sm:$0xf] %v932
  %965 = vst [vmem:[%s3 + $0x30] sm:$0xf] %v933
  %966 = vst [vmem:[%s3 + $0x34] sm:$0xf] %v934
  %967 = vst [vmem:[%s3 + $0x38] sm:$0xf] %v935
  %968 = vst [vmem:[%s3 + $0x3c] sm:$0xf] %v936
  // Predicated region
  $region14: #{mscdae_forward.10} parent=0 // pred_check
    _
  $region15: #{mscdae_forward.10} parent=0 // pred_check_branch
    %970 = sbr.rel (0) target = $region17
  $region16: #{mscdae_forward.10} parent=0 // pred_region
    _
  $region17: #{mscdae_forward.10} parent=0 // pred_fallthru
    _
  // Predicated region
  $region18: #{mscdae_forward.10} parent=0 // pred_check
    _
  $region19: #{mscdae_forward.10} parent=0 // pred_check_branch
    %972 = sbr.rel (0) target = $region21
  $region20: #{mscdae_forward.10} parent=0 // pred_region
    _
  $region21: #{mscdae_forward.10} parent=0 // pred_fallthru
    _

// kernel: mscdae_forward.11
$region0: #{mscdae_forward.11}
  #allocation0 [shape = 'u32[]', space=smem, size = 0x4, offset = 0x4, fixed_abs, tag = 'smem constant byte address 0x4 - core index']
  #allocation1 [shape = 'u32[144,128]{1,0:T(1,128)}', space=vmem, size = 0x12000, scoped, tag = 'internal scratch']
  %s0 = inlined_call_operand.vmem [shape: bf16[672,512], index: 0, kind: input, shape index: {}]
  %s1 = inlined_call_operand.vmem [shape: bf16[512,128], index: 1, kind: input, shape index: {}]
  %s2 = inlined_call_operand.vmem [shape: bf16[672,128], index: 2, kind: output, shape index: {}]
  %s3 = sld [smem:[#allocation0]]
  $region18: #{mscdae_forward.11} parent=0
    _
  %s5 = ssub.s32 1, %s3
  %s6 = scalar_select 0, %s5, %s3
  // Predicated region
  $region2: #{mscdae_forward.11} parent=0 // pred_check
    _
  $region3: #{mscdae_forward.11} parent=0 // pred_check_branch
    %8 = sbr.rel (0) target = $region5
  $region4: #{mscdae_forward.11} parent=0 // pred_region
    _
  $region5: #{mscdae_forward.11} parent=0 // pred_fallthru
    _
  // Predicated region
  $region6: #{mscdae_forward.11} parent=0 // pred_check
    _
  $region7: #{mscdae_forward.11} parent=0 // pred_check_branch
    %10 = sbr.rel (0) target = $region9
  $region8: #{mscdae_forward.11} parent=0 // pred_region
    _
  $region9: #{mscdae_forward.11} parent=0 // pred_fallthru
    _
  %v12 = vld [vmem:[%s0] sm:$0xff]
  %v13 = vld [vmem:[%s0 + $0x8] sm:$0xff]
  %v14 = vld [vmem:[%s0 + $0x10] sm:$0xff]
  %v15 = vld [vmem:[%s0 + $0x18] sm:$0xff]
  %v16 = vld [vmem:[%s0 + $0x20] sm:$0xff]
  %v17 = vld [vmem:[%s0 + $0x28] sm:$0xff]
  %v18 = vld [vmem:[%s0 + $0x30] sm:$0xff]
  %v19 = vld [vmem:[%s0 + $0x38] sm:$0xff]
  %v20 = vld [vmem:[%s0 + $0x40] sm:$0xff]
  %v21 = vld [vmem:[%s0 + $0x48] sm:$0xff]
  %v22 = vld [vmem:[%s0 + $0x50] sm:$0xff]
  %v23 = vld [vmem:[%s0 + $0x58] sm:$0xff]
  %v24 = vld [vmem:[%s0 + $0x60] sm:$0xff]
  %v25 = vld [vmem:[%s0 + $0x68] sm:$0xff]
  %v26 = vld [vmem:[%s0 + $0x70] sm:$0xff]
  %v27 = vld [vmem:[%s0 + $0x78] sm:$0xff]
  %v28 = vld [vmem:[%s0 + $0x80] sm:$0xff]
  %v29 = vld [vmem:[%s0 + $0x88] sm:$0xff]
  %v30 = vld [vmem:[%s0 + $0x90] sm:$0xff]
  %v31 = vld [vmem:[%s0 + $0x98] sm:$0xff]
  %v32 = vld [vmem:[%s0 + $0xa0] sm:$0xff]
  %v33 = vld [vmem:[%s0 + $0xa8] sm:$0xff]
  %v34 = vld [vmem:[%s0 + $0xb0] sm:$0xff]
  %v35 = vld [vmem:[%s0 + $0xb8] sm:$0xff]
  %v36 = vld [vmem:[%s0 + $0xc0] sm:$0xff]
  %v37 = vld [vmem:[%s0 + $0xc8] sm:$0xff]
  %v38 = vld [vmem:[%s0 + $0xd0] sm:$0xff]
  %v39 = vld [vmem:[%s0 + $0xd8] sm:$0xff]
  %v40 = vld [vmem:[%s0 + $0xe0] sm:$0xff]
  %v41 = vld [vmem:[%s0 + $0xe8] sm:$0xff]
  %v42 = vld [vmem:[%s0 + $0xf0] sm:$0xff]
  %v43 = vld [vmem:[%s0 + $0xf8] sm:$0xff]
  %v44 = vld [vmem:[%s0 + $0x100] sm:$0xff]
  %v45 = vld [vmem:[%s0 + $0x108] sm:$0xff]
  %v46 = vld [vmem:[%s0 + $0x110] sm:$0xff]
  %v47 = vld [vmem:[%s0 + $0x118] sm:$0xff]
  %v48 = vld [vmem:[%s0 + $0x120] sm:$0xff]
  %v49 = vld [vmem:[%s0 + $0x128] sm:$0xff]
  %v50 = vld [vmem:[%s0 + $0x130] sm:$0xff]
  %v51 = vld [vmem:[%s0 + $0x138] sm:$0xff]
  %v52 = vld [vmem:[%s0 + $0x140] sm:$0xff]
  %v53 = vld [vmem:[%s0 + $0x148] sm:$0xff]
  %v54 = vld [vmem:[%s0 + $0x150] sm:$0xff]
  %v55 = vld [vmem:[%s0 + $0x158] sm:$0xff]
  %v56 = vld [vmem:[%s0 + $0x160] sm:$0xff]
  %v57 = vld [vmem:[%s0 + $0x168] sm:$0xff]
  %v58 = vld [vmem:[%s0 + $0x170] sm:$0xff]
  %v59 = vld [vmem:[%s0 + $0x178] sm:$0xff]
  %v60 = vld [vmem:[%s0 + $0x180] sm:$0xff]
  %v61 = vld [vmem:[%s0 + $0x188] sm:$0xff]
  %v62 = vld [vmem:[%s0 + $0x190] sm:$0xff]
  %v63 = vld [vmem:[%s0 + $0x198] sm:$0xff]
  %v64 = vld [vmem:[%s0 + $0x1a0] sm:$0xff]
  %v65 = vld [vmem:[%s0 + $0x1a8] sm:$0xff]
  %v66 = vld [vmem:[%s0 + $0x1b0] sm:$0xff]
  %v67 = vld [vmem:[%s0 + $0x1b8] sm:$0xff]
  %v68 = vld [vmem:[%s0 + $0x1c0] sm:$0xff]
  %v69 = vld [vmem:[%s0 + $0x1c8] sm:$0xff]
  %v70 = vld [vmem:[%s0 + $0x1d0] sm:$0xff]
  %v71 = vld [vmem:[%s0 + $0x1d8] sm:$0xff]
  %v72 = vld [vmem:[%s0 + $0x1e0] sm:$0xff]
  %v73 = vld [vmem:[%s0 + $0x1e8] sm:$0xff]
  %v74 = vld [vmem:[%s0 + $0x1f0] sm:$0xff]
  %v75 = vld [vmem:[%s0 + $0x1f8] sm:$0xff]
  %v76 = vld [vmem:[%s0 + $0x200] sm:$0xff]
  %v77 = vld [vmem:[%s0 + $0x208] sm:$0xff]
  %v78 = vld [vmem:[%s0 + $0x210] sm:$0xff]
  %v79 = vld [vmem:[%s0 + $0x218] sm:$0xff]
  %v80 = vld [vmem:[%s0 + $0x220] sm:$0xff]
  %v81 = vld [vmem:[%s0 + $0x228] sm:$0xff]
  %v82 = vld [vmem:[%s0 + $0x230] sm:$0xff]
  %v83 = vld [vmem:[%s0 + $0x238] sm:$0xff]
  %v84 = vld [vmem:[%s0 + $0x240] sm:$0xff]
  %v85 = vld [vmem:[%s0 + $0x248] sm:$0xff]
  %v86 = vld [vmem:[%s0 + $0x250] sm:$0xff]
  %v87 = vld [vmem:[%s0 + $0x258] sm:$0xff]
  %v88 = vld [vmem:[%s0 + $0x260] sm:$0xff]
  %v89 = vld [vmem:[%s0 + $0x268] sm:$0xff]
  %v90 = vld [vmem:[%s0 + $0x270] sm:$0xff]
  %v91 = vld [vmem:[%s0 + $0x278] sm:$0xff]
  %v92 = vld [vmem:[%s0 + $0x280] sm:$0xff]
  %v93 = vld [vmem:[%s0 + $0x288] sm:$0xff]
  %v94 = vld [vmem:[%s0 + $0x290] sm:$0xff]
  %v95 = vld [vmem:[%s0 + $0x298] sm:$0xff]
  %v96 = vld [vmem:[%s0 + $0x2a0] sm:$0xff]
  %v97 = vld [vmem:[%s0 + $0x2a8] sm:$0xff]
  %v98 = vld [vmem:[%s0 + $0x2b0] sm:$0xff]
  %v99 = vld [vmem:[%s0 + $0x2b8] sm:$0xff]
  %v100 = vld [vmem:[%s0 + $0x2c0] sm:$0xff]
  %v101 = vld [vmem:[%s0 + $0x2c8] sm:$0xff]
  %v102 = vld [vmem:[%s0 + $0x2d0] sm:$0xff]
  %v103 = vld [vmem:[%s0 + $0x2d8] sm:$0xff]
  %v104 = vld [vmem:[%s0 + $0x2e0] sm:$0xff]
  %v105 = vld [vmem:[%s0 + $0x2e8] sm:$0xff]
  %v106 = vld [vmem:[%s0 + $0x2f0] sm:$0xff]
  %v107 = vld [vmem:[%s0 + $0x2f8] sm:$0xff]
  %v108 = vld [vmem:[%s0 + $0x300] sm:$0xff]
  %v109 = vld [vmem:[%s0 + $0x308] sm:$0xff]
  %v110 = vld [vmem:[%s0 + $0x310] sm:$0xff]
  %v111 = vld [vmem:[%s0 + $0x318] sm:$0xff]
  %v112 = vld [vmem:[%s0 + $0x320] sm:$0xff]
  %v113 = vld [vmem:[%s0 + $0x328] sm:$0xff]
  %v114 = vld [vmem:[%s0 + $0x330] sm:$0xff]
  %v115 = vld [vmem:[%s0 + $0x338] sm:$0xff]
  %v116 = vld [vmem:[%s0 + $0x340] sm:$0xff]
  %v117 = vld [vmem:[%s0 + $0x348] sm:$0xff]
  %v118 = vld [vmem:[%s0 + $0x350] sm:$0xff]
  %v119 = vld [vmem:[%s0 + $0x358] sm:$0xff]
  %v120 = vld [vmem:[%s0 + $0x360] sm:$0xff]
  %v121 = vld [vmem:[%s0 + $0x368] sm:$0xff]
  %v122 = vld [vmem:[%s0 + $0x370] sm:$0xff]
  %v123 = vld [vmem:[%s0 + $0x378] sm:$0xff]
  %v124 = vld [vmem:[%s0 + $0x380] sm:$0xff]
  %v125 = vld [vmem:[%s0 + $0x388] sm:$0xff]
  %v126 = vld [vmem:[%s0 + $0x390] sm:$0xff]
  %v127 = vld [vmem:[%s0 + $0x398] sm:$0xff]
  %v128 = vld [vmem:[%s0 + $0x3a0] sm:$0xff]
  %v129 = vld [vmem:[%s0 + $0x3a8] sm:$0xff]
  %v130 = vld [vmem:[%s0 + $0x3b0] sm:$0xff]
  %v131 = vld [vmem:[%s0 + $0x3b8] sm:$0xff]
  %v132 = vld [vmem:[%s0 + $0x3c0] sm:$0xff]
  %v133 = vld [vmem:[%s0 + $0x3c8] sm:$0xff]
  %v134 = vld [vmem:[%s0 + $0x3d0] sm:$0xff]
  %v135 = vld [vmem:[%s0 + $0x3d8] sm:$0xff]
  %v136 = vld [vmem:[%s0 + $0x3e0] sm:$0xff]
  %v137 = vld [vmem:[%s0 + $0x3e8] sm:$0xff]
  %v138 = vld [vmem:[%s0 + $0x3f0] sm:$0xff]
  %v139 = vld [vmem:[%s0 + $0x3f8] sm:$0xff]
  %v140 = vld [vmem:[%s0 + $0x400] sm:$0xff]
  %v141 = vld [vmem:[%s0 + $0x408] sm:$0xff]
  %v142 = vld [vmem:[%s0 + $0x410] sm:$0xff]
  %v143 = vld [vmem:[%s0 + $0x418] sm:$0xff]
  %v144 = vld [vmem:[%s0 + $0x420] sm:$0xff]
  %v145 = vld [vmem:[%s0 + $0x428] sm:$0xff]
  %v146 = vld [vmem:[%s0 + $0x430] sm:$0xff]
  %v147 = vld [vmem:[%s0 + $0x438] sm:$0xff]
  %v148 = vld [vmem:[%s0 + $0x440] sm:$0xff]
  %v149 = vld [vmem:[%s0 + $0x448] sm:$0xff]
  %v150 = vld [vmem:[%s0 + $0x450] sm:$0xff]
  %v151 = vld [vmem:[%s0 + $0x458] sm:$0xff]
  %v152 = vld [vmem:[%s0 + $0x460] sm:$0xff]
  %v153 = vld [vmem:[%s0 + $0x468] sm:$0xff]
  %v154 = vld [vmem:[%s0 + $0x470] sm:$0xff]
  %v155 = vld [vmem:[%s0 + $0x478] sm:$0xff]
  %v156 = vld [vmem:[%s0 + $0x480] sm:$0xff]
  %v157 = vld [vmem:[%s0 + $0x488] sm:$0xff]
  %v158 = vld [vmem:[%s0 + $0x490] sm:$0xff]
  %v159 = vld [vmem:[%s0 + $0x498] sm:$0xff]
  %v160 = vld [vmem:[%s0 + $0x4a0] sm:$0xff]
  %v161 = vld [vmem:[%s0 + $0x4a8] sm:$0xff]
  %v162 = vld [vmem:[%s0 + $0x4b0] sm:$0xff]
  %v163 = vld [vmem:[%s0 + $0x4b8] sm:$0xff]
  %v164 = vld [vmem:[%s0 + $0x4c0] sm:$0xff]
  %v165 = vld [vmem:[%s0 + $0x4c8] sm:$0xff]
  %v166 = vld [vmem:[%s0 + $0x4d0] sm:$0xff]
  %v167 = vld [vmem:[%s0 + $0x4d8] sm:$0xff]
  %v168 = vld [vmem:[%s0 + $0x4e0] sm:$0xff]
  %v169 = vld [vmem:[%s0 + $0x4e8] sm:$0xff]
  %v170 = vld [vmem:[%s0 + $0x4f0] sm:$0xff]
  %v171 = vld [vmem:[%s0 + $0x4f8] sm:$0xff]
  %v172 = vld [vmem:[%s0 + $0x500] sm:$0xff]
  %v173 = vld [vmem:[%s0 + $0x508] sm:$0xff]
  %v174 = vld [vmem:[%s0 + $0x510] sm:$0xff]
  %v175 = vld [vmem:[%s0 + $0x518] sm:$0xff]
  %v176 = vld [vmem:[%s0 + $0x520] sm:$0xff]
  %v177 = vld [vmem:[%s0 + $0x528] sm:$0xff]
  %v178 = vld [vmem:[%s0 + $0x530] sm:$0xff]
  %v179 = vld [vmem:[%s0 + $0x538] sm:$0xff]
  %v180 = vld [vmem:[%s1] sm:$0xf]
  %v181 = vld [vmem:[%s1 + $0x4] sm:$0xf]
  %v182 = vld [vmem:[%s1 + $0x8] sm:$0xf]
  %v183 = vld [vmem:[%s1 + $0xc] sm:$0xf]
  %v184 = vld [vmem:[%s1 + $0x10] sm:$0xf]
  %v185 = vld [vmem:[%s1 + $0x14] sm:$0xf]
  %v186 = vld [vmem:[%s1 + $0x18] sm:$0xf]
  %v187 = vld [vmem:[%s1 + $0x1c] sm:$0xf]
  %v188 = vld [vmem:[%s1 + $0x20] sm:$0xf]
  %v189 = vld [vmem:[%s1 + $0x24] sm:$0xf]
  %v190 = vld [vmem:[%s1 + $0x28] sm:$0xf]
  %v191 = vld [vmem:[%s1 + $0x2c] sm:$0xf]
  %v192 = vld [vmem:[%s1 + $0x30] sm:$0xf]
  %v193 = vld [vmem:[%s1 + $0x34] sm:$0xf]
  %v194 = vld [vmem:[%s1 + $0x38] sm:$0xf]
  %v195 = vld [vmem:[%s1 + $0x3c] sm:$0xf]
  %v196 = vld [vmem:[%s1 + $0x40] sm:$0xf]
  %v197 = vld [vmem:[%s1 + $0x44] sm:$0xf]
  %v198 = vld [vmem:[%s1 + $0x48] sm:$0xf]
  %v199 = vld [vmem:[%s1 + $0x4c] sm:$0xf]
  %v200 = vld [vmem:[%s1 + $0x50] sm:$0xf]
  %v201 = vld [vmem:[%s1 + $0x54] sm:$0xf]
  %v202 = vld [vmem:[%s1 + $0x58] sm:$0xf]
  %v203 = vld [vmem:[%s1 + $0x5c] sm:$0xf]
  %v204 = vld [vmem:[%s1 + $0x60] sm:$0xf]
  %v205 = vld [vmem:[%s1 + $0x64] sm:$0xf]
  %v206 = vld [vmem:[%s1 + $0x68] sm:$0xf]
  %v207 = vld [vmem:[%s1 + $0x6c] sm:$0xf]
  %v208 = vld [vmem:[%s1 + $0x70] sm:$0xf]
  %v209 = vld [vmem:[%s1 + $0x74] sm:$0xf]
  %v210 = vld [vmem:[%s1 + $0x78] sm:$0xf]
  %v211 = vld [vmem:[%s1 + $0x7c] sm:$0xf]
  %v212 = vld [vmem:[%s1 + $0x80] sm:$0xf]
  %v213 = vld [vmem:[%s1 + $0x84] sm:$0xf]
  %v214 = vld [vmem:[%s1 + $0x88] sm:$0xf]
  %v215 = vld [vmem:[%s1 + $0x8c] sm:$0xf]
  %v216 = vld [vmem:[%s1 + $0x90] sm:$0xf]
  %v217 = vld [vmem:[%s1 + $0x94] sm:$0xf]
  %v218 = vld [vmem:[%s1 + $0x98] sm:$0xf]
  %v219 = vld [vmem:[%s1 + $0x9c] sm:$0xf]
  %v220 = vld [vmem:[%s1 + $0xa0] sm:$0xf]
  %v221 = vld [vmem:[%s1 + $0xa4] sm:$0xf]
  %v222 = vld [vmem:[%s1 + $0xa8] sm:$0xf]
  %v223 = vld [vmem:[%s1 + $0xac] sm:$0xf]
  %v224 = vld [vmem:[%s1 + $0xb0] sm:$0xf]
  %v225 = vld [vmem:[%s1 + $0xb4] sm:$0xf]
  %v226 = vld [vmem:[%s1 + $0xb8] sm:$0xf]
  %v227 = vld [vmem:[%s1 + $0xbc] sm:$0xf]
  %v228 = vld [vmem:[%s1 + $0xc0] sm:$0xf]
  %v229 = vld [vmem:[%s1 + $0xc4] sm:$0xf]
  %v230 = vld [vmem:[%s1 + $0xc8] sm:$0xf]
  %v231 = vld [vmem:[%s1 + $0xcc] sm:$0xf]
  %v232 = vld [vmem:[%s1 + $0xd0] sm:$0xf]
  %v233 = vld [vmem:[%s1 + $0xd4] sm:$0xf]
  %v234 = vld [vmem:[%s1 + $0xd8] sm:$0xf]
  %v235 = vld [vmem:[%s1 + $0xdc] sm:$0xf]
  %v236 = vld [vmem:[%s1 + $0xe0] sm:$0xf]
  %v237 = vld [vmem:[%s1 + $0xe4] sm:$0xf]
  %v238 = vld [vmem:[%s1 + $0xe8] sm:$0xf]
  %v239 = vld [vmem:[%s1 + $0xec] sm:$0xf]
  %v240 = vld [vmem:[%s1 + $0xf0] sm:$0xf]
  %v241 = vld [vmem:[%s1 + $0xf4] sm:$0xf]
  %v242 = vld [vmem:[%s1 + $0xf8] sm:$0xf]
  %v243 = vld [vmem:[%s1 + $0xfc] sm:$0xf]
  %v412 = vunpack.c.l.b16 %v12
  %v413 = vunpack.c.h.b16 %v12
  %v414 = vunpack.c.l.b16 %v13
  %v415 = vunpack.c.h.b16 %v13
  %v416 = vunpack.c.l.b16 %v14
  %v417 = vunpack.c.h.b16 %v14
  %v418 = vunpack.c.l.b16 %v15
  %v419 = vunpack.c.h.b16 %v15
  %v420 = vunpack.c.l.b16 %v16
  %v421 = vunpack.c.h.b16 %v16
  %v422 = vunpack.c.l.b16 %v17
  %v423 = vunpack.c.h.b16 %v17
  %v424 = vunpack.c.l.b16 %v18
  %v425 = vunpack.c.h.b16 %v18
  %v426 = vunpack.c.l.b16 %v19
  %v427 = vunpack.c.h.b16 %v19
  %v428 = vunpack.c.l.b16 %v20
  %v429 = vunpack.c.h.b16 %v20
  %v430 = vunpack.c.l.b16 %v21
  %v431 = vunpack.c.h.b16 %v21
  %v432 = vunpack.c.l.b16 %v22
  %v433 = vunpack.c.h.b16 %v22
  %v434 = vunpack.c.l.b16 %v23
  %v435 = vunpack.c.h.b16 %v23
  %v436 = vunpack.c.l.b16 %v24
  %v437 = vunpack.c.h.b16 %v24
  %v438 = vunpack.c.l.b16 %v25
  %v439 = vunpack.c.h.b16 %v25
  %v440 = vunpack.c.l.b16 %v26
  %v441 = vunpack.c.h.b16 %v26
  %v442 = vunpack.c.l.b16 %v27
  %v443 = vunpack.c.h.b16 %v27
  %v444 = vunpack.c.l.b16 %v28
  %v445 = vunpack.c.h.b16 %v28
  %v446 = vunpack.c.l.b16 %v29
  %v447 = vunpack.c.h.b16 %v29
  %v448 = vunpack.c.l.b16 %v30
  %v449 = vunpack.c.h.b16 %v30
  %v450 = vunpack.c.l.b16 %v31
  %v451 = vunpack.c.h.b16 %v31
  %v452 = vunpack.c.l.b16 %v32
  %v453 = vunpack.c.h.b16 %v32
  %v454 = vunpack.c.l.b16 %v33
  %v455 = vunpack.c.h.b16 %v33
  %v456 = vunpack.c.l.b16 %v34
  %v457 = vunpack.c.h.b16 %v34
  %v458 = vunpack.c.l.b16 %v35
  %v459 = vunpack.c.h.b16 %v35
  %v460 = vunpack.c.l.b16 %v36
  %v461 = vunpack.c.h.b16 %v36
  %v462 = vunpack.c.l.b16 %v37
  %v463 = vunpack.c.h.b16 %v37
  %v464 = vunpack.c.l.b16 %v38
  %v465 = vunpack.c.h.b16 %v38
  %v466 = vunpack.c.l.b16 %v39
  %v467 = vunpack.c.h.b16 %v39
  %v468 = vunpack.c.l.b16 %v40
  %v469 = vunpack.c.h.b16 %v40
  %v470 = vunpack.c.l.b16 %v41
  %v471 = vunpack.c.h.b16 %v41
  %v472 = vunpack.c.l.b16 %v42
  %v473 = vunpack.c.h.b16 %v42
  %v474 = vunpack.c.l.b16 %v43
  %v475 = vunpack.c.h.b16 %v43
  %v476 = vunpack.c.l.b16 %v44
  %v477 = vunpack.c.h.b16 %v44
  %v478 = vunpack.c.l.b16 %v45
  %v479 = vunpack.c.h.b16 %v45
  %v480 = vunpack.c.l.b16 %v46
  %v481 = vunpack.c.h.b16 %v46
  %v482 = vunpack.c.l.b16 %v47
  %v483 = vunpack.c.h.b16 %v47
  %v484 = vunpack.c.l.b16 %v48
  %v485 = vunpack.c.h.b16 %v48
  %v486 = vunpack.c.l.b16 %v49
  %v487 = vunpack.c.h.b16 %v49
  %v488 = vunpack.c.l.b16 %v50
  %v489 = vunpack.c.h.b16 %v50
  %v490 = vunpack.c.l.b16 %v51
  %v491 = vunpack.c.h.b16 %v51
  %v492 = vunpack.c.l.b16 %v52
  %v493 = vunpack.c.h.b16 %v52
  %v494 = vunpack.c.l.b16 %v53
  %v495 = vunpack.c.h.b16 %v53
  %v496 = vunpack.c.l.b16 %v54
  %v497 = vunpack.c.h.b16 %v54
  %v498 = vunpack.c.l.b16 %v55
  %v499 = vunpack.c.h.b16 %v55
  %v500 = vunpack.c.l.b16 %v56
  %v501 = vunpack.c.h.b16 %v56
  %v502 = vunpack.c.l.b16 %v57
  %v503 = vunpack.c.h.b16 %v57
  %v504 = vunpack.c.l.b16 %v58
  %v505 = vunpack.c.h.b16 %v58
  %v506 = vunpack.c.l.b16 %v59
  %v507 = vunpack.c.h.b16 %v59
  %v508 = vunpack.c.l.b16 %v60
  %v509 = vunpack.c.h.b16 %v60
  %v510 = vunpack.c.l.b16 %v61
  %v511 = vunpack.c.h.b16 %v61
  %v512 = vunpack.c.l.b16 %v62
  %v513 = vunpack.c.h.b16 %v62
  %v514 = vunpack.c.l.b16 %v63
  %v515 = vunpack.c.h.b16 %v63
  %v516 = vunpack.c.l.b16 %v64
  %v517 = vunpack.c.h.b16 %v64
  %v518 = vunpack.c.l.b16 %v65
  %v519 = vunpack.c.h.b16 %v65
  %v520 = vunpack.c.l.b16 %v66
  %v521 = vunpack.c.h.b16 %v66
  %v522 = vunpack.c.l.b16 %v67
  %v523 = vunpack.c.h.b16 %v67
  %v524 = vunpack.c.l.b16 %v68
  %v525 = vunpack.c.h.b16 %v68
  %v526 = vunpack.c.l.b16 %v69
  %v527 = vunpack.c.h.b16 %v69
  %v528 = vunpack.c.l.b16 %v70
  %v529 = vunpack.c.h.b16 %v70
  %v530 = vunpack.c.l.b16 %v71
  %v531 = vunpack.c.h.b16 %v71
  %v532 = vunpack.c.l.b16 %v72
  %v533 = vunpack.c.h.b16 %v72
  %v534 = vunpack.c.l.b16 %v73
  %v535 = vunpack.c.h.b16 %v73
  %v536 = vunpack.c.l.b16 %v74
  %v537 = vunpack.c.h.b16 %v74
  %v538 = vunpack.c.l.b16 %v75
  %v539 = vunpack.c.h.b16 %v75
  %v540 = vunpack.c.l.b16 %v76
  %v541 = vunpack.c.h.b16 %v76
  %v542 = vunpack.c.l.b16 %v77
  %v543 = vunpack.c.h.b16 %v77
  %v544 = vunpack.c.l.b16 %v78
  %v545 = vunpack.c.h.b16 %v78
  %v546 = vunpack.c.l.b16 %v79
  %v547 = vunpack.c.h.b16 %v79
  %v548 = vunpack.c.l.b16 %v80
  %v549 = vunpack.c.h.b16 %v80
  %v550 = vunpack.c.l.b16 %v81
  %v551 = vunpack.c.h.b16 %v81
  %v552 = vunpack.c.l.b16 %v82
  %v553 = vunpack.c.h.b16 %v82
  %v554 = vunpack.c.l.b16 %v83
  %v555 = vunpack.c.h.b16 %v83
  %v556 = vunpack.c.l.b16 %v84
  %v557 = vunpack.c.h.b16 %v84
  %v558 = vunpack.c.l.b16 %v85
  %v559 = vunpack.c.h.b16 %v85
  %v560 = vunpack.c.l.b16 %v86
  %v561 = vunpack.c.h.b16 %v86
  %v562 = vunpack.c.l.b16 %v87
  %v563 = vunpack.c.h.b16 %v87
  %v564 = vunpack.c.l.b16 %v88
  %v565 = vunpack.c.h.b16 %v88
  %v566 = vunpack.c.l.b16 %v89
  %v567 = vunpack.c.h.b16 %v89
  %v568 = vunpack.c.l.b16 %v90
  %v569 = vunpack.c.h.b16 %v90
  %v570 = vunpack.c.l.b16 %v91
  %v571 = vunpack.c.h.b16 %v91
  %v572 = vunpack.c.l.b16 %v92
  %v573 = vunpack.c.h.b16 %v92
  %v574 = vunpack.c.l.b16 %v93
  %v575 = vunpack.c.h.b16 %v93
  %v576 = vunpack.c.l.b16 %v94
  %v577 = vunpack.c.h.b16 %v94
  %v578 = vunpack.c.l.b16 %v95
  %v579 = vunpack.c.h.b16 %v95
  %v580 = vunpack.c.l.b16 %v96
  %v581 = vunpack.c.h.b16 %v96
  %v582 = vunpack.c.l.b16 %v97
  %v583 = vunpack.c.h.b16 %v97
  %v584 = vunpack.c.l.b16 %v98
  %v585 = vunpack.c.h.b16 %v98
  %v586 = vunpack.c.l.b16 %v99
  %v587 = vunpack.c.h.b16 %v99
  %v588 = vunpack.c.l.b16 %v100
  %v589 = vunpack.c.h.b16 %v100
  %v590 = vunpack.c.l.b16 %v101
  %v591 = vunpack.c.h.b16 %v101
  %v592 = vunpack.c.l.b16 %v102
  %v593 = vunpack.c.h.b16 %v102
  %v594 = vunpack.c.l.b16 %v103
  %v595 = vunpack.c.h.b16 %v103
  %v596 = vunpack.c.l.b16 %v104
  %v597 = vunpack.c.h.b16 %v104
  %v598 = vunpack.c.l.b16 %v105
  %v599 = vunpack.c.h.b16 %v105
  %v600 = vunpack.c.l.b16 %v106
  %v601 = vunpack.c.h.b16 %v106
  %v602 = vunpack.c.l.b16 %v107
  %v603 = vunpack.c.h.b16 %v107
  %v604 = vunpack.c.l.b16 %v108
  %v605 = vunpack.c.h.b16 %v108
  %v606 = vunpack.c.l.b16 %v109
  %v607 = vunpack.c.h.b16 %v109
  %v608 = vunpack.c.l.b16 %v110
  %v609 = vunpack.c.h.b16 %v110
  %v610 = vunpack.c.l.b16 %v111
  %v611 = vunpack.c.h.b16 %v111
  %v612 = vunpack.c.l.b16 %v112
  %v613 = vunpack.c.h.b16 %v112
  %v614 = vunpack.c.l.b16 %v113
  %v615 = vunpack.c.h.b16 %v113
  %v616 = vunpack.c.l.b16 %v114
  %v617 = vunpack.c.h.b16 %v114
  %v618 = vunpack.c.l.b16 %v115
  %v619 = vunpack.c.h.b16 %v115
  %v620 = vunpack.c.l.b16 %v116
  %v621 = vunpack.c.h.b16 %v116
  %v622 = vunpack.c.l.b16 %v117
  %v623 = vunpack.c.h.b16 %v117
  %v624 = vunpack.c.l.b16 %v118
  %v625 = vunpack.c.h.b16 %v118
  %v626 = vunpack.c.l.b16 %v119
  %v627 = vunpack.c.h.b16 %v119
  %v628 = vunpack.c.l.b16 %v120
  %v629 = vunpack.c.h.b16 %v120
  %v630 = vunpack.c.l.b16 %v121
  %v631 = vunpack.c.h.b16 %v121
  %v632 = vunpack.c.l.b16 %v122
  %v633 = vunpack.c.h.b16 %v122
  %v634 = vunpack.c.l.b16 %v123
  %v635 = vunpack.c.h.b16 %v123
  %v636 = vunpack.c.l.b16 %v124
  %v637 = vunpack.c.h.b16 %v124
  %v638 = vunpack.c.l.b16 %v125
  %v639 = vunpack.c.h.b16 %v125
  %v640 = vunpack.c.l.b16 %v126
  %v641 = vunpack.c.h.b16 %v126
  %v642 = vunpack.c.l.b16 %v127
  %v643 = vunpack.c.h.b16 %v127
  %v644 = vunpack.c.l.b16 %v128
  %v645 = vunpack.c.h.b16 %v128
  %v646 = vunpack.c.l.b16 %v129
  %v647 = vunpack.c.h.b16 %v129
  %v648 = vunpack.c.l.b16 %v130
  %v649 = vunpack.c.h.b16 %v130
  %v650 = vunpack.c.l.b16 %v131
  %v651 = vunpack.c.h.b16 %v131
  %v652 = vunpack.c.l.b16 %v132
  %v653 = vunpack.c.h.b16 %v132
  %v654 = vunpack.c.l.b16 %v133
  %v655 = vunpack.c.h.b16 %v133
  %v656 = vunpack.c.l.b16 %v134
  %v657 = vunpack.c.h.b16 %v134
  %v658 = vunpack.c.l.b16 %v135
  %v659 = vunpack.c.h.b16 %v135
  %v660 = vunpack.c.l.b16 %v136
  %v661 = vunpack.c.h.b16 %v136
  %v662 = vunpack.c.l.b16 %v137
  %v663 = vunpack.c.h.b16 %v137
  %v664 = vunpack.c.l.b16 %v138
  %v665 = vunpack.c.h.b16 %v138
  %v666 = vunpack.c.l.b16 %v139
  %v667 = vunpack.c.h.b16 %v139
  %v668 = vunpack.c.l.b16 %v140
  %v669 = vunpack.c.h.b16 %v140
  %v670 = vunpack.c.l.b16 %v141
  %v671 = vunpack.c.h.b16 %v141
  %v672 = vunpack.c.l.b16 %v142
  %v673 = vunpack.c.h.b16 %v142
  %v674 = vunpack.c.l.b16 %v143
  %v675 = vunpack.c.h.b16 %v143
  %v676 = vunpack.c.l.b16 %v144
  %v677 = vunpack.c.h.b16 %v144
  %v678 = vunpack.c.l.b16 %v145
  %v679 = vunpack.c.h.b16 %v145
  %v680 = vunpack.c.l.b16 %v146
  %v681 = vunpack.c.h.b16 %v146
  %v682 = vunpack.c.l.b16 %v147
  %v683 = vunpack.c.h.b16 %v147
  %v684 = vunpack.c.l.b16 %v148
  %v685 = vunpack.c.h.b16 %v148
  %v686 = vunpack.c.l.b16 %v149
  %v687 = vunpack.c.h.b16 %v149
  %v688 = vunpack.c.l.b16 %v150
  %v689 = vunpack.c.h.b16 %v150
  %v690 = vunpack.c.l.b16 %v151
  %v691 = vunpack.c.h.b16 %v151
  %v692 = vunpack.c.l.b16 %v152
  %v693 = vunpack.c.h.b16 %v152
  %v694 = vunpack.c.l.b16 %v153
  %v695 = vunpack.c.h.b16 %v153
  %v696 = vunpack.c.l.b16 %v154
  %v697 = vunpack.c.h.b16 %v154
  %v698 = vunpack.c.l.b16 %v155
  %v699 = vunpack.c.h.b16 %v155
  %v700 = vunpack.c.l.b16 %v156
  %v701 = vunpack.c.h.b16 %v156
  %v702 = vunpack.c.l.b16 %v157
  %v703 = vunpack.c.h.b16 %v157
  %v704 = vunpack.c.l.b16 %v158
  %v705 = vunpack.c.h.b16 %v158
  %v706 = vunpack.c.l.b16 %v159
  %v707 = vunpack.c.h.b16 %v159
  %v708 = vunpack.c.l.b16 %v160
  %v709 = vunpack.c.h.b16 %v160
  %v710 = vunpack.c.l.b16 %v161
  %v711 = vunpack.c.h.b16 %v161
  %v712 = vunpack.c.l.b16 %v162
  %v713 = vunpack.c.h.b16 %v162
  %v714 = vunpack.c.l.b16 %v163
  %v715 = vunpack.c.h.b16 %v163
  %v716 = vunpack.c.l.b16 %v164
  %v717 = vunpack.c.h.b16 %v164
  %v718 = vunpack.c.l.b16 %v165
  %v719 = vunpack.c.h.b16 %v165
  %v720 = vunpack.c.l.b16 %v166
  %v721 = vunpack.c.h.b16 %v166
  %v722 = vunpack.c.l.b16 %v167
  %v723 = vunpack.c.h.b16 %v167
  %v724 = vunpack.c.l.b16 %v168
  %v725 = vunpack.c.h.b16 %v168
  %v726 = vunpack.c.l.b16 %v169
  %v727 = vunpack.c.h.b16 %v169
  %v728 = vunpack.c.l.b16 %v170
  %v729 = vunpack.c.h.b16 %v170
  %v730 = vunpack.c.l.b16 %v171
  %v731 = vunpack.c.h.b16 %v171
  %v732 = vunpack.c.l.b16 %v172
  %v733 = vunpack.c.h.b16 %v172
  %v734 = vunpack.c.l.b16 %v173
  %v735 = vunpack.c.h.b16 %v173
  %v736 = vunpack.c.l.b16 %v174
  %v737 = vunpack.c.h.b16 %v174
  %v738 = vunpack.c.l.b16 %v175
  %v739 = vunpack.c.h.b16 %v175
  %v740 = vunpack.c.l.b16 %v176
  %v741 = vunpack.c.h.b16 %v176
  %v742 = vunpack.c.l.b16 %v177
  %v743 = vunpack.c.h.b16 %v177
  %v744 = vunpack.c.l.b16 %v178
  %v745 = vunpack.c.h.b16 %v178
  %v746 = vunpack.c.l.b16 %v179
  %v747 = vunpack.c.h.b16 %v179
  %v748 = vpack.c.b16 %v416, %v412
  %v749 = vpack.c.b16 %v417, %v413
  %v750 = vpack.c.b16 %v418, %v414
  %v751 = vpack.c.b16 %v419, %v415
  %v752 = vpack.c.b16 %v424, %v420
  %v753 = vpack.c.b16 %v425, %v421
  %v754 = vpack.c.b16 %v426, %v422
  %v755 = vpack.c.b16 %v427, %v423
  %v756 = vpack.c.b16 %v432, %v428
  %v757 = vpack.c.b16 %v433, %v429
  %v758 = vpack.c.b16 %v434, %v430
  %v759 = vpack.c.b16 %v435, %v431
  %v760 = vpack.c.b16 %v440, %v436
  %v761 = vpack.c.b16 %v441, %v437
  %v762 = vpack.c.b16 %v442, %v438
  %v763 = vpack.c.b16 %v443, %v439
  %v764 = vpack.c.b16 %v448, %v444
  %v765 = vpack.c.b16 %v449, %v445
  %v766 = vpack.c.b16 %v450, %v446
  %v767 = vpack.c.b16 %v451, %v447
  %v768 = vpack.c.b16 %v456, %v452
  %v769 = vpack.c.b16 %v457, %v453
  %v770 = vpack.c.b16 %v458, %v454
  %v771 = vpack.c.b16 %v459, %v455
  %v772 = vpack.c.b16 %v464, %v460
  %v773 = vpack.c.b16 %v465, %v461
  %v774 = vpack.c.b16 %v466, %v462
  %v775 = vpack.c.b16 %v467, %v463
  %v776 = vpack.c.b16 %v472, %v468
  %v777 = vpack.c.b16 %v473, %v469
  %v778 = vpack.c.b16 %v474, %v470
  %v779 = vpack.c.b16 %v475, %v471
  %v780 = vpack.c.b16 %v480, %v476
  %v781 = vpack.c.b16 %v481, %v477
  %v782 = vpack.c.b16 %v482, %v478
  %v783 = vpack.c.b16 %v483, %v479
  %v784 = vpack.c.b16 %v488, %v484
  %v785 = vpack.c.b16 %v489, %v485
  %v786 = vpack.c.b16 %v490, %v486
  %v787 = vpack.c.b16 %v491, %v487
  %v788 = vpack.c.b16 %v496, %v492
  %v789 = vpack.c.b16 %v497, %v493
  %v790 = vpack.c.b16 %v498, %v494
  %v791 = vpack.c.b16 %v499, %v495
  %v792 = vpack.c.b16 %v504, %v500
  %v793 = vpack.c.b16 %v505, %v501
  %v794 = vpack.c.b16 %v506, %v502
  %v795 = vpack.c.b16 %v507, %v503
  %v796 = vpack.c.b16 %v512, %v508
  %v797 = vpack.c.b16 %v513, %v509
  %v798 = vpack.c.b16 %v514, %v510
  %v799 = vpack.c.b16 %v515, %v511
  %v800 = vpack.c.b16 %v520, %v516
  %v801 = vpack.c.b16 %v521, %v517
  %v802 = vpack.c.b16 %v522, %v518
  %v803 = vpack.c.b16 %v523, %v519
  %v804 = vpack.c.b16 %v528, %v524
  %v805 = vpack.c.b16 %v529, %v525
  %v806 = vpack.c.b16 %v530, %v526
  %v807 = vpack.c.b16 %v531, %v527
  %v808 = vpack.c.b16 %v536, %v532
  %v809 = vpack.c.b16 %v537, %v533
  %v810 = vpack.c.b16 %v538, %v534
  %v811 = vpack.c.b16 %v539, %v535
  %v812 = vpack.c.b16 %v544, %v540
  %v813 = vpack.c.b16 %v545, %v541
  %v814 = vpack.c.b16 %v546, %v542
  %v815 = vpack.c.b16 %v547, %v543
  %v816 = vpack.c.b16 %v552, %v548
  %v817 = vpack.c.b16 %v553, %v549
  %v818 = vpack.c.b16 %v554, %v550
  %v819 = vpack.c.b16 %v555, %v551
  %v820 = vpack.c.b16 %v560, %v556
  %v821 = vpack.c.b16 %v561, %v557
  %v822 = vpack.c.b16 %v562, %v558
  %v823 = vpack.c.b16 %v563, %v559
  %v824 = vpack.c.b16 %v568, %v564
  %v825 = vpack.c.b16 %v569, %v565
  %v826 = vpack.c.b16 %v570, %v566
  %v827 = vpack.c.b16 %v571, %v567
  %v828 = vpack.c.b16 %v576, %v572
  %v829 = vpack.c.b16 %v577, %v573
  %v830 = vpack.c.b16 %v578, %v574
  %v831 = vpack.c.b16 %v579, %v575
  %v832 = vpack.c.b16 %v584, %v580
  %v833 = vpack.c.b16 %v585, %v581
  %v834 = vpack.c.b16 %v586, %v582
  %v835 = vpack.c.b16 %v587, %v583
  %v836 = vpack.c.b16 %v592, %v588
  %v837 = vpack.c.b16 %v593, %v589
  %v838 = vpack.c.b16 %v594, %v590
  %v839 = vpack.c.b16 %v595, %v591
  %v840 = vpack.c.b16 %v600, %v596
  %v841 = vpack.c.b16 %v601, %v597
  %v842 = vpack.c.b16 %v602, %v598
  %v843 = vpack.c.b16 %v603, %v599
  %v844 = vpack.c.b16 %v608, %v604
  %v845 = vpack.c.b16 %v609, %v605
  %v846 = vpack.c.b16 %v610, %v606
  %v847 = vpack.c.b16 %v611, %v607
  %v848 = vpack.c.b16 %v616, %v612
  %v849 = vpack.c.b16 %v617, %v613
  %v850 = vpack.c.b16 %v618, %v614
  %v851 = vpack.c.b16 %v619, %v615
  %v852 = vpack.c.b16 %v624, %v620
  %v853 = vpack.c.b16 %v625, %v621
  %v854 = vpack.c.b16 %v626, %v622
  %v855 = vpack.c.b16 %v627, %v623
  %v856 = vpack.c.b16 %v632, %v628
  %v857 = vpack.c.b16 %v633, %v629
  %v858 = vpack.c.b16 %v634, %v630
  %v859 = vpack.c.b16 %v635, %v631
  %v860 = vpack.c.b16 %v640, %v636
  %v861 = vpack.c.b16 %v641, %v637
  %v862 = vpack.c.b16 %v642, %v638
  %v863 = vpack.c.b16 %v643, %v639
  %v864 = vpack.c.b16 %v648, %v644
  %v865 = vpack.c.b16 %v649, %v645
  %v866 = vpack.c.b16 %v650, %v646
  %v867 = vpack.c.b16 %v651, %v647
  %v868 = vpack.c.b16 %v656, %v652
  %v869 = vpack.c.b16 %v657, %v653
  %v870 = vpack.c.b16 %v658, %v654
  %v871 = vpack.c.b16 %v659, %v655
  %v872 = vpack.c.b16 %v664, %v660
  %v873 = vpack.c.b16 %v665, %v661
  %v874 = vpack.c.b16 %v666, %v662
  %v875 = vpack.c.b16 %v667, %v663
  %v876 = vpack.c.b16 %v672, %v668
  %v877 = vpack.c.b16 %v673, %v669
  %v878 = vpack.c.b16 %v674, %v670
  %v879 = vpack.c.b16 %v675, %v671
  %v880 = vpack.c.b16 %v680, %v676
  %v881 = vpack.c.b16 %v681, %v677
  %v882 = vpack.c.b16 %v682, %v678
  %v883 = vpack.c.b16 %v683, %v679
  %v884 = vpack.c.b16 %v688, %v684
  %v885 = vpack.c.b16 %v689, %v685
  %v886 = vpack.c.b16 %v690, %v686
  %v887 = vpack.c.b16 %v691, %v687
  %v888 = vpack.c.b16 %v696, %v692
  %v889 = vpack.c.b16 %v697, %v693
  %v890 = vpack.c.b16 %v698, %v694
  %v891 = vpack.c.b16 %v699, %v695
  %v892 = vpack.c.b16 %v704, %v700
  %v893 = vpack.c.b16 %v705, %v701
  %v894 = vpack.c.b16 %v706, %v702
  %v895 = vpack.c.b16 %v707, %v703
  %v896 = vpack.c.b16 %v712, %v708
  %v897 = vpack.c.b16 %v713, %v709
  %v898 = vpack.c.b16 %v714, %v710
  %v899 = vpack.c.b16 %v715, %v711
  %v900 = vpack.c.b16 %v720, %v716
  %v901 = vpack.c.b16 %v721, %v717
  %v902 = vpack.c.b16 %v722, %v718
  %v903 = vpack.c.b16 %v723, %v719
  %v904 = vpack.c.b16 %v728, %v724
  %v905 = vpack.c.b16 %v729, %v725
  %v906 = vpack.c.b16 %v730, %v726
  %v907 = vpack.c.b16 %v731, %v727
  %v908 = vpack.c.b16 %v736, %v732
  %v909 = vpack.c.b16 %v737, %v733
  %v910 = vpack.c.b16 %v738, %v734
  %v911 = vpack.c.b16 %v739, %v735
  %v912 = vpack.c.b16 %v744, %v740
  %v913 = vpack.c.b16 %v745, %v741
  %v914 = vpack.c.b16 %v746, %v742
  %v915 = vpack.c.b16 %v747, %v743
  %v1148 = vunpack.c.l.b16 %v180
  %v1149 = vunpack.c.l.b16 %v181
  %v1150 = vunpack.c.l.b16 %v182
  %v1151 = vunpack.c.l.b16 %v183
  %v1152 = vunpack.c.l.b16 %v184
  %v1153 = vunpack.c.l.b16 %v185
  %v1154 = vunpack.c.l.b16 %v186
  %v1155 = vunpack.c.l.b16 %v187
  %v1156 = vunpack.c.l.b16 %v188
  %v1157 = vunpack.c.l.b16 %v189
  %v1158 = vunpack.c.l.b16 %v190
  %v1159 = vunpack.c.l.b16 %v191
  %v1160 = vunpack.c.l.b16 %v192
  %v1161 = vunpack.c.l.b16 %v193
  %v1162 = vunpack.c.l.b16 %v194
  %v1163 = vunpack.c.l.b16 %v195
  %v1164 = vunpack.c.l.b16 %v196
  %v1165 = vunpack.c.l.b16 %v197
  %v1166 = vunpack.c.l.b16 %v198
  %v1167 = vunpack.c.l.b16 %v199
  %v1168 = vunpack.c.l.b16 %v200
  %v1169 = vunpack.c.l.b16 %v201
  %v1170 = vunpack.c.l.b16 %v202
  %v1171 = vunpack.c.l.b16 %v203
  %v1172 = vunpack.c.l.b16 %v204
  %v1173 = vunpack.c.l.b16 %v205
  %v1174 = vunpack.c.l.b16 %v206
  %v1175 = vunpack.c.l.b16 %v207
  %v1176 = vunpack.c.l.b16 %v208
  %v1177 = vunpack.c.l.b16 %v209
  %v1178 = vunpack.c.l.b16 %v210
  %v1179 = vunpack.c.l.b16 %v211
  %v1180 = vunpack.c.l.b16 %v212
  %v1181 = vunpack.c.l.b16 %v213
  %v1182 = vunpack.c.l.b16 %v214
  %v1183 = vunpack.c.l.b16 %v215
  %v1184 = vunpack.c.l.b16 %v216
  %v1185 = vunpack.c.l.b16 %v217
  %v1186 = vunpack.c.l.b16 %v218
  %v1187 = vunpack.c.l.b16 %v219
  %v1188 = vunpack.c.l.b16 %v220
  %v1189 = vunpack.c.l.b16 %v221
  %v1190 = vunpack.c.l.b16 %v222
  %v1191 = vunpack.c.l.b16 %v223
  %v1192 = vunpack.c.l.b16 %v224
  %v1193 = vunpack.c.l.b16 %v225
  %v1194 = vunpack.c.l.b16 %v226
  %v1195 = vunpack.c.l.b16 %v227
  %v1196 = vunpack.c.l.b16 %v228
  %v1197 = vunpack.c.l.b16 %v229
  %v1198 = vunpack.c.l.b16 %v230
  %v1199 = vunpack.c.l.b16 %v231
  %v1200 = vunpack.c.l.b16 %v232
  %v1201 = vunpack.c.l.b16 %v233
  %v1202 = vunpack.c.l.b16 %v234
  %v1203 = vunpack.c.l.b16 %v235
  %v1204 = vunpack.c.l.b16 %v236
  %v1205 = vunpack.c.l.b16 %v237
  %v1206 = vunpack.c.l.b16 %v238
  %v1207 = vunpack.c.l.b16 %v239
  %v1208 = vunpack.c.l.b16 %v240
  %v1209 = vunpack.c.l.b16 %v241
  %v1210 = vunpack.c.l.b16 %v242
  %v1211 = vunpack.c.l.b16 %v243
  %v1212 = vpack.c.b16 %v1149, %v1148
  %v1213 = vpack.c.b16 %v1151, %v1150
  %v1214 = vpack.c.b16 %v1153, %v1152
  %v1215 = vpack.c.b16 %v1155, %v1154
  %v1216 = vpack.c.b16 %v1157, %v1156
  %v1217 = vpack.c.b16 %v1159, %v1158
  %v1218 = vpack.c.b16 %v1161, %v1160
  %v1219 = vpack.c.b16 %v1163, %v1162
  %v1220 = vpack.c.b16 %v1165, %v1164
  %v1221 = vpack.c.b16 %v1167, %v1166
  %v1222 = vpack.c.b16 %v1169, %v1168
  %v1223 = vpack.c.b16 %v1171, %v1170
  %v1224 = vpack.c.b16 %v1173, %v1172
  %v1225 = vpack.c.b16 %v1175, %v1174
  %v1226 = vpack.c.b16 %v1177, %v1176
  %v1227 = vpack.c.b16 %v1179, %v1178
  %v1228 = vpack.c.b16 %v1181, %v1180
  %v1229 = vpack.c.b16 %v1183, %v1182
  %v1230 = vpack.c.b16 %v1185, %v1184
  %v1231 = vpack.c.b16 %v1187, %v1186
  %v1232 = vpack.c.b16 %v1189, %v1188
  %v1233 = vpack.c.b16 %v1191, %v1190
  %v1234 = vpack.c.b16 %v1193, %v1192
  %v1235 = vpack.c.b16 %v1195, %v1194
  %v1236 = vpack.c.b16 %v1197, %v1196
  %v1237 = vpack.c.b16 %v1199, %v1198
  %v1238 = vpack.c.b16 %v1201, %v1200
  %v1239 = vpack.c.b16 %v1203, %v1202
  %v1240 = vpack.c.b16 %v1205, %v1204
  %v1241 = vpack.c.b16 %v1207, %v1206
  %v1242 = vpack.c.b16 %v1209, %v1208
  %v1243 = vpack.c.b16 %v1211, %v1210
  %1276 = vmatprep.subr.bf16.mxu0 0
  %1277 = vmatpush1.bf16.msra.mxu0 %v1212
  %1278 = vmatprep.subr.bf16.mxu0 0
  %1279 = vmatpush1.bf16.msra.mxu0 %v1213
  %1280 = vmatprep.subr.bf16.mxu0 0
  %1281 = vmatpush1.bf16.msra.mxu0 %v1214
  %1282 = vmatprep.subr.bf16.mxu0 0
  %1283 = vmatpush1.bf16.msra.mxu0 %v1215
  %1284 = vmatprep.subr.bf16.mxu0 0
  %1285 = vmatpush1.bf16.msra.mxu0 %v1216
  %1286 = vmatprep.subr.bf16.mxu0 0
  %1287 = vmatpush1.bf16.msra.mxu0 %v1217
  %1288 = vmatprep.subr.bf16.mxu0 0
  %1289 = vmatpush1.bf16.msra.mxu0 %v1218
  %1290 = vmatprep.subr.bf16.mxu0 0
  %1291 = vmatpush1.bf16.msra.mxu0 %v1219
  %1292 = vmatprep.subr.bf16.mxu0 0
  %1293 = vmatpush1.bf16.msra.mxu0 %v1220
  %1294 = vmatprep.subr.bf16.mxu0 0
  %1295 = vmatpush1.bf16.msra.mxu0 %v1221
  %1296 = vmatprep.subr.bf16.mxu0 0
  %1297 = vmatpush1.bf16.msra.mxu0 %v1222
  %1298 = vmatprep.subr.bf16.mxu0 0
  %1299 = vmatpush1.bf16.msra.mxu0 %v1223
  %1300 = vmatprep.subr.bf16.mxu0 0
  %1301 = vmatpush1.bf16.msra.mxu0 %v1224
  %1302 = vmatprep.subr.bf16.mxu0 0
  %1303 = vmatpush1.bf16.msra.mxu0 %v1225
  %1304 = vmatprep.subr.bf16.mxu0 0
  %1305 = vmatpush1.bf16.msra.mxu0 %v1226
  %1306 = vmatprep.subr.bf16.mxu0 0
  %1307 = vmatpush1.bf16.msra.mxu0 %v1227
  %1308 = vmatprep.mubr.bf16.mxu0 %v749
  %1309 = vmatmul.mubr.bf16.gmra.mrb[0].mxu0 %v748
  %v1310 = vpop.f32.mrb[0].mxu0
  %v1311 = vadd.f32 0.0, %v1310
  %v1312 = vpop.f32.mrb[0].mxu0
  %v1313 = vpop.f32.mrb[0].mxu0
  %v1314 = vadd.f32 0.0, %v1313
  %v1315 = vpop.f32.mrb[0].mxu0
  %1316 = vmatprep.mubr.bf16.mxu0 %v753
  %1317 = vmatmul.mubr.bf16.gmra.mrb[0].mxu0 %v752
  %v1318 = vpop.f32.mrb[0].mxu0
  %v1319 = vadd.f32 0.0, %v1318
  %v1320 = vpop.f32.mrb[0].mxu0
  %v1321 = vpop.f32.mrb[0].mxu0
  %v1322 = vadd.f32 0.0, %v1321
  %v1323 = vpop.f32.mrb[0].mxu0
  %1324 = vmatprep.mubr.bf16.mxu0 %v757
  %1325 = vmatmul.mubr.bf16.gmra.mrb[0].mxu0 %v756
  %v1326 = vpop.f32.mrb[0].mxu0
  %v1327 = vadd.f32 0.0, %v1326
  %v1328 = vpop.f32.mrb[0].mxu0
  %v1329 = vpop.f32.mrb[0].mxu0
  %v1330 = vadd.f32 0.0, %v1329
  %v1331 = vpop.f32.mrb[0].mxu0
  %1332 = vmatprep.mubr.bf16.mxu0 %v761
  %1333 = vmatmul.mubr.bf16.gmra.mrb[0].mxu0 %v760
  %v1334 = vpop.f32.mrb[0].mxu0
  %v1335 = vadd.f32 0.0, %v1334
  %v1336 = vpop.f32.mrb[0].mxu0
  %v1337 = vpop.f32.mrb[0].mxu0
  %v1338 = vadd.f32 0.0, %v1337
  %v1339 = vpop.f32.mrb[0].mxu0
  %1340 = vmatprep.mubr.bf16.mxu0 %v765
  %1341 = vmatmul.mubr.bf16.gmra.mrb[0].mxu0 %v764
  %v1342 = vpop.f32.mrb[0].mxu0
  %v1343 = vadd.f32 0.0, %v1342
  %v1344 = vpop.f32.mrb[0].mxu0
  %v1345 = vpop.f32.mrb[0].mxu0
  %v1346 = vadd.f32 0.0, %v1345
  %v1347 = vpop.f32.mrb[0].mxu0
  %1348 = vmatprep.mubr.bf16.mxu0 %v769
  %1349 = vmatmul.mubr.bf16.gmra.mrb[0].mxu0 %v768
  %v1350 = vpop.f32.mrb[0].mxu0
  %v1351 = vadd.f32 0.0, %v1350
  %v1352 = vpop.f32.mrb[0].mxu0
  %v1353 = vpop.f32.mrb[0].mxu0
  %v1354 = vadd.f32 0.0, %v1353
  %v1355 = vpop.f32.mrb[0].mxu0
  %1356 = vmatprep.mubr.bf16.mxu0 %v773
  %1357 = vmatmul.mubr.bf16.gmra.mrb[0].mxu0 %v772
  %v1358 = vpop.f32.mrb[0].mxu0
  %v1359 = vadd.f32 0.0, %v1358
  %v1360 = vpop.f32.mrb[0].mxu0
  %v1361 = vpop.f32.mrb[0].mxu0
  %v1362 = vadd.f32 0.0, %v1361
  %v1363 = vpop.f32.mrb[0].mxu0
  %1364 = vmatprep.mubr.bf16.mxu0 %v777
  %1365 = vmatmul.mubr.bf16.gmra.mrb[0].mxu0 %v776
  %v1366 = vpop.f32.mrb[0].mxu0
  %v1367 = vadd.f32 0.0, %v1366
  %v1368 = vpop.f32.mrb[0].mxu0
  %v1369 = vpop.f32.mrb[0].mxu0
  %v1370 = vadd.f32 0.0, %v1369
  %v1371 = vpop.f32.mrb[0].mxu0
  %1372 = vmatprep.mubr.bf16.mxu0 %v781
  %1373 = vmatmul.mubr.bf16.gmra.mrb[0].mxu0 %v780
  %v1374 = vpop.f32.mrb[0].mxu0
  %v1375 = vadd.f32 0.0, %v1374
  %v1376 = vpop.f32.mrb[0].mxu0
  %v1377 = vpop.f32.mrb[0].mxu0
  %v1378 = vadd.f32 0.0, %v1377
  %v1379 = vpop.f32.mrb[0].mxu0
  %1380 = vmatprep.mubr.bf16.mxu0 %v785
  %1381 = vmatmul.mubr.bf16.gmra.mrb[0].mxu0 %v784
  %v1382 = vpop.f32.mrb[0].mxu0
  %v1383 = vadd.f32 0.0, %v1382
  %v1384 = vpop.f32.mrb[0].mxu0
  %v1385 = vpop.f32.mrb[0].mxu0
  %v1386 = vadd.f32 0.0, %v1385
  %v1387 = vpop.f32.mrb[0].mxu0
  %1388 = vmatprep.mubr.bf16.mxu0 %v789
  %1389 = vmatmul.mubr.bf16.gmra.mrb[0].mxu0 %v788
  %v1390 = vpop.f32.mrb[0].mxu0
  %v1391 = vadd.f32 0.0, %v1390
  %v1392 = vpop.f32.mrb[0].mxu0
  %v1393 = vpop.f32.mrb[0].mxu0
  %v1394 = vadd.f32 0.0, %v1393
  %v1395 = vpop.f32.mrb[0].mxu0
  %1396 = vmatprep.mubr.bf16.mxu0 %v793
  %1397 = vmatmul.mubr.bf16.gmra.mrb[0].mxu0 %v792
  %v1398 = vpop.f32.mrb[0].mxu0
  %v1399 = vadd.f32 0.0, %v1398
  %v1400 = vpop.f32.mrb[0].mxu0
  %v1401 = vpop.f32.mrb[0].mxu0
  %v1402 = vadd.f32 0.0, %v1401
  %v1403 = vpop.f32.mrb[0].mxu0
  %1404 = vmatprep.mubr.bf16.mxu0 %v797
  %1405 = vmatmul.mubr.bf16.gmra.mrb[0].mxu0 %v796
  %v1406 = vpop.f32.mrb[0].mxu0
  %v1407 = vadd.f32 0.0, %v1406
  %v1408 = vpop.f32.mrb[0].mxu0
  %v1409 = vpop.f32.mrb[0].mxu0
  %v1410 = vadd.f32 0.0, %v1409
  %v1411 = vpop.f32.mrb[0].mxu0
  %1412 = vmatprep.mubr.bf16.mxu0 %v801
  %1413 = vmatmul.mubr.bf16.gmra.mrb[0].mxu0 %v800
  %v1414 = vpop.f32.mrb[0].mxu0
  %v1415 = vadd.f32 0.0, %v1414
  %v1416 = vpop.f32.mrb[0].mxu0
  %v1417 = vpop.f32.mrb[0].mxu0
  %v1418 = vadd.f32 0.0, %v1417
  %v1419 = vpop.f32.mrb[0].mxu0
  %1420 = vmatprep.mubr.bf16.mxu0 %v805
  %1421 = vmatmul.mubr.bf16.gmra.mrb[0].mxu0 %v804
  %v1422 = vpop.f32.mrb[0].mxu0
  %v1423 = vadd.f32 0.0, %v1422
  %v1424 = vpop.f32.mrb[0].mxu0
  %v1425 = vpop.f32.mrb[0].mxu0
  %v1426 = vadd.f32 0.0, %v1425
  %v1427 = vpop.f32.mrb[0].mxu0
  %1428 = vmatprep.mubr.bf16.mxu0 %v809
  %1429 = vmatmul.mubr.bf16.gmra.mrb[0].mxu0 %v808
  %v1430 = vpop.f32.mrb[0].mxu0
  %v1431 = vadd.f32 0.0, %v1430
  %v1432 = vpop.f32.mrb[0].mxu0
  %v1433 = vpop.f32.mrb[0].mxu0
  %v1434 = vadd.f32 0.0, %v1433
  %v1435 = vpop.f32.mrb[0].mxu0
  %1436 = vmatprep.mubr.bf16.mxu0 %v813
  %1437 = vmatmul.mubr.bf16.gmra.mrb[0].mxu0 %v812
  %v1438 = vpop.f32.mrb[0].mxu0
  %v1439 = vadd.f32 0.0, %v1438
  %v1440 = vpop.f32.mrb[0].mxu0
  %v1441 = vpop.f32.mrb[0].mxu0
  %v1442 = vadd.f32 0.0, %v1441
  %v1443 = vpop.f32.mrb[0].mxu0
  %1444 = vmatprep.mubr.bf16.mxu0 %v817
  %1445 = vmatmul.mubr.bf16.gmra.mrb[0].mxu0 %v816
  %v1446 = vpop.f32.mrb[0].mxu0
  %v1447 = vadd.f32 0.0, %v1446
  %v1448 = vpop.f32.mrb[0].mxu0
  %v1449 = vpop.f32.mrb[0].mxu0
  %v1450 = vadd.f32 0.0, %v1449
  %v1451 = vpop.f32.mrb[0].mxu0
  %1452 = vmatprep.mubr.bf16.mxu0 %v821
  %1453 = vmatmul.mubr.bf16.gmra.mrb[0].mxu0 %v820
  %v1454 = vpop.f32.mrb[0].mxu0
  %v1455 = vadd.f32 0.0, %v1454
  %v1456 = vpop.f32.mrb[0].mxu0
  %v1457 = vpop.f32.mrb[0].mxu0
  %v1458 = vadd.f32 0.0, %v1457
  %v1459 = vpop.f32.mrb[0].mxu0
  %1460 = vmatprep.mubr.bf16.mxu0 %v825
  %1461 = vmatmul.mubr.bf16.gmra.mrb[0].mxu0 %v824
  %v1462 = vpop.f32.mrb[0].mxu0
  %v1463 = vadd.f32 0.0, %v1462
  %v1464 = vpop.f32.mrb[0].mxu0
  %v1465 = vpop.f32.mrb[0].mxu0
  %v1466 = vadd.f32 0.0, %v1465
  %v1467 = vpop.f32.mrb[0].mxu0
  %1468 = vmatprep.mubr.bf16.mxu0 %v829
  %1469 = vmatmul.mubr.bf16.gmra.mrb[0].mxu0 %v828
  %v1470 = vpop.f32.mrb[0].mxu0
  %v1471 = vadd.f32 0.0, %v1470
  %v1472 = vpop.f32.mrb[0].mxu0
  %v1473 = vpop.f32.mrb[0].mxu0
  %v1474 = vadd.f32 0.0, %v1473
  %v1475 = vpop.f32.mrb[0].mxu0
  %1476 = vmatprep.mubr.bf16.mxu0 %v833
  %1477 = vmatmul.mubr.bf16.gmra.mrb[0].mxu0 %v832
  %v1478 = vpop.f32.mrb[0].mxu0
  %v1479 = vadd.f32 0.0, %v1478
  %v1480 = vpop.f32.mrb[0].mxu0
  %v1481 = vpop.f32.mrb[0].mxu0
  %v1482 = vadd.f32 0.0, %v1481
  %v1483 = vpop.f32.mrb[0].mxu0
  %1484 = vmatprep.mubr.bf16.mxu0 %v837
  %1485 = vmatmul.mubr.bf16.gmra.mrb[0].mxu0 %v836
  %v1486 = vpop.f32.mrb[0].mxu0
  %v1487 = vadd.f32 0.0, %v1486
  %v1488 = vpop.f32.mrb[0].mxu0
  %v1489 = vpop.f32.mrb[0].mxu0
  %v1490 = vadd.f32 0.0, %v1489
  %v1491 = vpop.f32.mrb[0].mxu0
  %1492 = vmatprep.mubr.bf16.mxu0 %v841
  %1493 = vmatmul.mubr.bf16.gmra.mrb[0].mxu0 %v840
  %v1494 = vpop.f32.mrb[0].mxu0
  %v1495 = vadd.f32 0.0, %v1494
  %v1496 = vpop.f32.mrb[0].mxu0
  %v1497 = vpop.f32.mrb[0].mxu0
  %v1498 = vadd.f32 0.0, %v1497
  %v1499 = vpop.f32.mrb[0].mxu0
  %1500 = vmatprep.mubr.bf16.mxu0 %v845
  %1501 = vmatmul.mubr.bf16.gmra.mrb[0].mxu0 %v844
  %v1502 = vpop.f32.mrb[0].mxu0
  %v1503 = vadd.f32 0.0, %v1502
  %v1504 = vpop.f32.mrb[0].mxu0
  %v1505 = vpop.f32.mrb[0].mxu0
  %v1506 = vadd.f32 0.0, %v1505
  %v1507 = vpop.f32.mrb[0].mxu0
  %1508 = vmatprep.mubr.bf16.mxu0 %v849
  %1509 = vmatmul.mubr.bf16.gmra.mrb[0].mxu0 %v848
  %v1510 = vpop.f32.mrb[0].mxu0
  %v1511 = vadd.f32 0.0, %v1510
  %v1512 = vpop.f32.mrb[0].mxu0
  %v1513 = vpop.f32.mrb[0].mxu0
  %v1514 = vadd.f32 0.0, %v1513
  %v1515 = vpop.f32.mrb[0].mxu0
  %1516 = vmatprep.mubr.bf16.mxu0 %v853
  %1517 = vmatmul.mubr.bf16.gmra.mrb[0].mxu0 %v852
  %v1518 = vpop.f32.mrb[0].mxu0
  %v1519 = vadd.f32 0.0, %v1518
  %v1520 = vpop.f32.mrb[0].mxu0
  %v1521 = vpop.f32.mrb[0].mxu0
  %v1522 = vadd.f32 0.0, %v1521
  %v1523 = vpop.f32.mrb[0].mxu0
  %1524 = vmatprep.mubr.bf16.mxu0 %v857
  %1525 = vmatmul.mubr.bf16.gmra.mrb[0].mxu0 %v856
  %v1526 = vpop.f32.mrb[0].mxu0
  %v1527 = vadd.f32 0.0, %v1526
  %v1528 = vpop.f32.mrb[0].mxu0
  %v1529 = vpop.f32.mrb[0].mxu0
  %v1530 = vadd.f32 0.0, %v1529
  %v1531 = vpop.f32.mrb[0].mxu0
  %1532 = vmatprep.mubr.bf16.mxu0 %v861
  %1533 = vmatmul.mubr.bf16.gmra.mrb[0].mxu0 %v860
  %v1534 = vpop.f32.mrb[0].mxu0
  %v1535 = vadd.f32 0.0, %v1534
  %v1536 = vpop.f32.mrb[0].mxu0
  %v1537 = vpop.f32.mrb[0].mxu0
  %v1538 = vadd.f32 0.0, %v1537
  %v1539 = vpop.f32.mrb[0].mxu0
  %1540 = vmatprep.mubr.bf16.mxu0 %v865
  %1541 = vmatmul.mubr.bf16.gmra.mrb[0].mxu0 %v864
  %v1542 = vpop.f32.mrb[0].mxu0
  %v1543 = vadd.f32 0.0, %v1542
  %v1544 = vpop.f32.mrb[0].mxu0
  %v1545 = vpop.f32.mrb[0].mxu0
  %v1546 = vadd.f32 0.0, %v1545
  %v1547 = vpop.f32.mrb[0].mxu0
  %1548 = vmatprep.mubr.bf16.mxu0 %v869
  %1549 = vmatmul.mubr.bf16.gmra.mrb[0].mxu0 %v868
  %v1550 = vpop.f32.mrb[0].mxu0
  %v1551 = vadd.f32 0.0, %v1550
  %v1552 = vpop.f32.mrb[0].mxu0
  %v1553 = vpop.f32.mrb[0].mxu0
  %v1554 = vadd.f32 0.0, %v1553
  %v1555 = vpop.f32.mrb[0].mxu0
  %1556 = vmatprep.mubr.bf16.mxu0 %v873
  %1557 = vmatmul.mubr.bf16.gmra.mrb[0].mxu0 %v872
  %v1558 = vpop.f32.mrb[0].mxu0
  %v1559 = vadd.f32 0.0, %v1558
  %v1560 = vpop.f32.mrb[0].mxu0
  %v1561 = vpop.f32.mrb[0].mxu0
  %v1562 = vadd.f32 0.0, %v1561
  %v1563 = vpop.f32.mrb[0].mxu0
  %1564 = vmatprep.mubr.bf16.mxu0 %v877
  %1565 = vmatmul.mubr.bf16.gmra.mrb[0].mxu0 %v876
  %v1566 = vpop.f32.mrb[0].mxu0
  %v1567 = vadd.f32 0.0, %v1566
  %v1568 = vpop.f32.mrb[0].mxu0
  %v1569 = vpop.f32.mrb[0].mxu0
  %v1570 = vadd.f32 0.0, %v1569
  %v1571 = vpop.f32.mrb[0].mxu0
  %1572 = vmatprep.mubr.bf16.mxu0 %v881
  %1573 = vmatmul.mubr.bf16.gmra.mrb[0].mxu0 %v880
  %v1574 = vpop.f32.mrb[0].mxu0
  %v1575 = vadd.f32 0.0, %v1574
  %v1576 = vpop.f32.mrb[0].mxu0
  %v1577 = vpop.f32.mrb[0].mxu0
  %v1578 = vadd.f32 0.0, %v1577
  %v1579 = vpop.f32.mrb[0].mxu0
  %1580 = vmatprep.mubr.bf16.mxu0 %v885
  %1581 = vmatmul.mubr.bf16.gmra.mrb[0].mxu0 %v884
  %v1582 = vpop.f32.mrb[0].mxu0
  %v1583 = vadd.f32 0.0, %v1582
  %v1584 = vpop.f32.mrb[0].mxu0
  %v1585 = vpop.f32.mrb[0].mxu0
  %v1586 = vadd.f32 0.0, %v1585
  %v1587 = vpop.f32.mrb[0].mxu0
  %1588 = vmatprep.mubr.bf16.mxu0 %v889
  %1589 = vmatmul.mubr.bf16.gmra.mrb[0].mxu0 %v888
  %v1590 = vpop.f32.mrb[0].mxu0
  %v1591 = vadd.f32 0.0, %v1590
  %v1592 = vpop.f32.mrb[0].mxu0
  %v1593 = vpop.f32.mrb[0].mxu0
  %v1594 = vadd.f32 0.0, %v1593
  %v1595 = vpop.f32.mrb[0].mxu0
  %1596 = vmatprep.mubr.bf16.mxu0 %v893
  %1597 = vmatmul.mubr.bf16.gmra.mrb[0].mxu0 %v892
  %v1598 = vpop.f32.mrb[0].mxu0
  %v1599 = vadd.f32 0.0, %v1598
  %v1600 = vpop.f32.mrb[0].mxu0
  %v1601 = vpop.f32.mrb[0].mxu0
  %v1602 = vadd.f32 0.0, %v1601
  %v1603 = vpop.f32.mrb[0].mxu0
  %1604 = vmatprep.mubr.bf16.mxu0 %v897
  %1605 = vmatmul.mubr.bf16.gmra.mrb[0].mxu0 %v896
  %v1606 = vpop.f32.mrb[0].mxu0
  %v1607 = vadd.f32 0.0, %v1606
  %v1608 = vpop.f32.mrb[0].mxu0
  %v1609 = vpop.f32.mrb[0].mxu0
  %v1610 = vadd.f32 0.0, %v1609
  %v1611 = vpop.f32.mrb[0].mxu0
  %1612 = vmatprep.mubr.bf16.mxu0 %v901
  %1613 = vmatmul.mubr.bf16.gmra.mrb[0].mxu0 %v900
  %v1614 = vpop.f32.mrb[0].mxu0
  %v1615 = vadd.f32 0.0, %v1614
  %v1616 = vpop.f32.mrb[0].mxu0
  %v1617 = vpop.f32.mrb[0].mxu0
  %v1618 = vadd.f32 0.0, %v1617
  %v1619 = vpop.f32.mrb[0].mxu0
  %1620 = vmatprep.mubr.bf16.mxu0 %v905
  %1621 = vmatmul.mubr.bf16.gmra.mrb[0].mxu0 %v904
  %v1622 = vpop.f32.mrb[0].mxu0
  %v1623 = vadd.f32 0.0, %v1622
  %v1624 = vpop.f32.mrb[0].mxu0
  %v1625 = vpop.f32.mrb[0].mxu0
  %v1626 = vadd.f32 0.0, %v1625
  %v1627 = vpop.f32.mrb[0].mxu0
  %1628 = vmatprep.mubr.bf16.mxu0 %v909
  %1629 = vmatmul.mubr.bf16.gmra.mrb[0].mxu0 %v908
  %v1630 = vpop.f32.mrb[0].mxu0
  %v1631 = vadd.f32 0.0, %v1630
  %v1632 = vpop.f32.mrb[0].mxu0
  %v1633 = vpop.f32.mrb[0].mxu0
  %v1634 = vadd.f32 0.0, %v1633
  %v1635 = vpop.f32.mrb[0].mxu0
  %1636 = vmatprep.mubr.bf16.mxu0 %v913
  %1637 = vmatmul.mubr.bf16.gmra.mrb[0].mxu0 %v912
  %v1638 = vpop.f32.mrb[0].mxu0
  %v1639 = vadd.f32 0.0, %v1638
  %v1640 = vpop.f32.mrb[0].mxu0
  %v1641 = vpop.f32.mrb[0].mxu0
  %v1642 = vadd.f32 0.0, %v1641
  %v1643 = vpop.f32.mrb[0].mxu0
  %1644 = vdwg.mxu0
  %1645 = vmatprep.subr.bf16.mxu0 0
  %1646 = vmatpush1.bf16.msra.mxu0 %v1228
  %1647 = vmatprep.subr.bf16.mxu0 0
  %1648 = vmatpush1.bf16.msra.mxu0 %v1229
  %1649 = vmatprep.subr.bf16.mxu0 0
  %1650 = vmatpush1.bf16.msra.mxu0 %v1230
  %1651 = vmatprep.subr.bf16.mxu0 0
  %1652 = vmatpush1.bf16.msra.mxu0 %v1231
  %1653 = vmatprep.subr.bf16.mxu0 0
  %1654 = vmatpush1.bf16.msra.mxu0 %v1232
  %1655 = vmatprep.subr.bf16.mxu0 0
  %1656 = vmatpush1.bf16.msra.mxu0 %v1233
  %1657 = vmatprep.subr.bf16.mxu0 0
  %1658 = vmatpush1.bf16.msra.mxu0 %v1234
  %1659 = vmatprep.subr.bf16.mxu0 0
  %1660 = vmatpush1.bf16.msra.mxu0 %v1235
  %1661 = vmatprep.subr.bf16.mxu0 0
  %1662 = vmatpush1.bf16.msra.mxu0 %v1236
  %1663 = vmatprep.subr.bf16.mxu0 0
  %1664 = vmatpush1.bf16.msra.mxu0 %v1237
  %1665 = vmatprep.subr.bf16.mxu0 0
  %1666 = vmatpush1.bf16.msra.mxu0 %v1238
  %1667 = vmatprep.subr.bf16.mxu0 0
  %1668 = vmatpush1.bf16.msra.mxu0 %v1239
  %1669 = vmatprep.subr.bf16.mxu0 0
  %1670 = vmatpush1.bf16.msra.mxu0 %v1240
  %1671 = vmatprep.subr.bf16.mxu0 0
  %1672 = vmatpush1.bf16.msra.mxu0 %v1241
  %1673 = vmatprep.subr.bf16.mxu0 0
  %1674 = vmatpush1.bf16.msra.mxu0 %v1242
  %1675 = vmatprep.subr.bf16.mxu0 0
  %1676 = vmatpush1.bf16.msra.mxu0 %v1243
  %1677 = vmatprep.mubr.bf16.mxu0 %v751
  %1678 = vmatmul.mubr.bf16.gmra.mrb[0].mxu0 %v750
  %v1679 = vpop.f32.mrb[0].mxu0
  %v1680 = vadd.f32 %v1311, %v1679
  %v1681 = vpop.f32.mrb[0].mxu0
  %v1682 = vpop.f32.mrb[0].mxu0
  %v1683 = vadd.f32 %v1314, %v1682
  %v1684 = vpop.f32.mrb[0].mxu0
  %1685 = vmatprep.mubr.bf16.mxu0 %v755
  %1686 = vmatmul.mubr.bf16.gmra.mrb[0].mxu0 %v754
  %v1687 = vpop.f32.mrb[0].mxu0
  %v1688 = vadd.f32 %v1319, %v1687
  %v1689 = vpop.f32.mrb[0].mxu0
  %v1690 = vpop.f32.mrb[0].mxu0
  %v1691 = vadd.f32 %v1322, %v1690
  %v1692 = vpop.f32.mrb[0].mxu0
  %1693 = vmatprep.mubr.bf16.mxu0 %v759
  %1694 = vmatmul.mubr.bf16.gmra.mrb[0].mxu0 %v758
  %v1695 = vpop.f32.mrb[0].mxu0
  %v1696 = vadd.f32 %v1327, %v1695
  %v1697 = vpop.f32.mrb[0].mxu0
  %v1698 = vpop.f32.mrb[0].mxu0
  %v1699 = vadd.f32 %v1330, %v1698
  %v1700 = vpop.f32.mrb[0].mxu0
  %1701 = vmatprep.mubr.bf16.mxu0 %v763
  %1702 = vmatmul.mubr.bf16.gmra.mrb[0].mxu0 %v762
  %v1703 = vpop.f32.mrb[0].mxu0
  %v1704 = vadd.f32 %v1335, %v1703
  %v1705 = vpop.f32.mrb[0].mxu0
  %v1706 = vpop.f32.mrb[0].mxu0
  %v1707 = vadd.f32 %v1338, %v1706
  %v1708 = vpop.f32.mrb[0].mxu0
  %1709 = vmatprep.mubr.bf16.mxu0 %v767
  %1710 = vmatmul.mubr.bf16.gmra.mrb[0].mxu0 %v766
  %v1711 = vpop.f32.mrb[0].mxu0
  %v1712 = vadd.f32 %v1343, %v1711
  %v1713 = vpop.f32.mrb[0].mxu0
  %v1714 = vpop.f32.mrb[0].mxu0
  %v1715 = vadd.f32 %v1346, %v1714
  %v1716 = vpop.f32.mrb[0].mxu0
  %1717 = vmatprep.mubr.bf16.mxu0 %v771
  %1718 = vmatmul.mubr.bf16.gmra.mrb[0].mxu0 %v770
  %v1719 = vpop.f32.mrb[0].mxu0
  %v1720 = vadd.f32 %v1351, %v1719
  %v1721 = vpop.f32.mrb[0].mxu0
  %v1722 = vpop.f32.mrb[0].mxu0
  %v1723 = vadd.f32 %v1354, %v1722
  %v1724 = vpop.f32.mrb[0].mxu0
  %1725 = vmatprep.mubr.bf16.mxu0 %v775
  %1726 = vmatmul.mubr.bf16.gmra.mrb[0].mxu0 %v774
  %v1727 = vpop.f32.mrb[0].mxu0
  %v1728 = vadd.f32 %v1359, %v1727
  %v1729 = vpop.f32.mrb[0].mxu0
  %v1730 = vpop.f32.mrb[0].mxu0
  %v1731 = vadd.f32 %v1362, %v1730
  %v1732 = vpop.f32.mrb[0].mxu0
  %1733 = vmatprep.mubr.bf16.mxu0 %v779
  %1734 = vmatmul.mubr.bf16.gmra.mrb[0].mxu0 %v778
  %v1735 = vpop.f32.mrb[0].mxu0
  %v1736 = vadd.f32 %v1367, %v1735
  %v1737 = vpop.f32.mrb[0].mxu0
  %v1738 = vpop.f32.mrb[0].mxu0
  %v1739 = vadd.f32 %v1370, %v1738
  %v1740 = vpop.f32.mrb[0].mxu0
  %1741 = vmatprep.mubr.bf16.mxu0 %v783
  %1742 = vmatmul.mubr.bf16.gmra.mrb[0].mxu0 %v782
  %v1743 = vpop.f32.mrb[0].mxu0
  %v1744 = vadd.f32 %v1375, %v1743
  %v1745 = vpop.f32.mrb[0].mxu0
  %v1746 = vpop.f32.mrb[0].mxu0
  %v1747 = vadd.f32 %v1378, %v1746
  %v1748 = vpop.f32.mrb[0].mxu0
  %1749 = vmatprep.mubr.bf16.mxu0 %v787
  %1750 = vmatmul.mubr.bf16.gmra.mrb[0].mxu0 %v786
  %v1751 = vpop.f32.mrb[0].mxu0
  %v1752 = vadd.f32 %v1383, %v1751
  %v1753 = vpop.f32.mrb[0].mxu0
  %v1754 = vpop.f32.mrb[0].mxu0
  %v1755 = vadd.f32 %v1386, %v1754
  %v1756 = vpop.f32.mrb[0].mxu0
  %1757 = vmatprep.mubr.bf16.mxu0 %v791
  %1758 = vmatmul.mubr.bf16.gmra.mrb[0].mxu0 %v790
  %v1759 = vpop.f32.mrb[0].mxu0
  %v1760 = vadd.f32 %v1391, %v1759
  %v1761 = vpop.f32.mrb[0].mxu0
  %v1762 = vpop.f32.mrb[0].mxu0
  %v1763 = vadd.f32 %v1394, %v1762
  %v1764 = vpop.f32.mrb[0].mxu0
  %1765 = vmatprep.mubr.bf16.mxu0 %v795
  %1766 = vmatmul.mubr.bf16.gmra.mrb[0].mxu0 %v794
  %v1767 = vpop.f32.mrb[0].mxu0
  %v1768 = vadd.f32 %v1399, %v1767
  %v1769 = vpop.f32.mrb[0].mxu0
  %v1770 = vpop.f32.mrb[0].mxu0
  %v1771 = vadd.f32 %v1402, %v1770
  %v1772 = vpop.f32.mrb[0].mxu0
  %1773 = vmatprep.mubr.bf16.mxu0 %v799
  %1774 = vmatmul.mubr.bf16.gmra.mrb[0].mxu0 %v798
  %v1775 = vpop.f32.mrb[0].mxu0
  %v1776 = vadd.f32 %v1407, %v1775
  %v1777 = vpop.f32.mrb[0].mxu0
  %v1778 = vpop.f32.mrb[0].mxu0
  %v1779 = vadd.f32 %v1410, %v1778
  %v1780 = vpop.f32.mrb[0].mxu0
  %1781 = vmatprep.mubr.bf16.mxu0 %v803
  %1782 = vmatmul.mubr.bf16.gmra.mrb[0].mxu0 %v802
  %v1783 = vpop.f32.mrb[0].mxu0
  %v1784 = vadd.f32 %v1415, %v1783
  %v1785 = vpop.f32.mrb[0].mxu0
  %v1786 = vpop.f32.mrb[0].mxu0
  %v1787 = vadd.f32 %v1418, %v1786
  %v1788 = vpop.f32.mrb[0].mxu0
  %1789 = vmatprep.mubr.bf16.mxu0 %v807
  %1790 = vmatmul.mubr.bf16.gmra.mrb[0].mxu0 %v806
  %v1791 = vpop.f32.mrb[0].mxu0
  %v1792 = vadd.f32 %v1423, %v1791
  %v1793 = vpop.f32.mrb[0].mxu0
  %v1794 = vpop.f32.mrb[0].mxu0
  %v1795 = vadd.f32 %v1426, %v1794
  %v1796 = vpop.f32.mrb[0].mxu0
  %1797 = vmatprep.mubr.bf16.mxu0 %v811
  %1798 = vmatmul.mubr.bf16.gmra.mrb[0].mxu0 %v810
  %v1799 = vpop.f32.mrb[0].mxu0
  %v1800 = vadd.f32 %v1431, %v1799
  %v1801 = vpop.f32.mrb[0].mxu0
  %v1802 = vpop.f32.mrb[0].mxu0
  %v1803 = vadd.f32 %v1434, %v1802
  %v1804 = vpop.f32.mrb[0].mxu0
  %1805 = vmatprep.mubr.bf16.mxu0 %v815
  %1806 = vmatmul.mubr.bf16.gmra.mrb[0].mxu0 %v814
  %v1807 = vpop.f32.mrb[0].mxu0
  %v1808 = vadd.f32 %v1439, %v1807
  %v1809 = vpop.f32.mrb[0].mxu0
  %v1810 = vpop.f32.mrb[0].mxu0
  %v1811 = vadd.f32 %v1442, %v1810
  %v1812 = vpop.f32.mrb[0].mxu0
  %1813 = vmatprep.mubr.bf16.mxu0 %v819
  %1814 = vmatmul.mubr.bf16.gmra.mrb[0].mxu0 %v818
  %v1815 = vpop.f32.mrb[0].mxu0
  %v1816 = vadd.f32 %v1447, %v1815
  %v1817 = vpop.f32.mrb[0].mxu0
  %v1818 = vpop.f32.mrb[0].mxu0
  %v1819 = vadd.f32 %v1450, %v1818
  %v1820 = vpop.f32.mrb[0].mxu0
  %1821 = vmatprep.mubr.bf16.mxu0 %v823
  %1822 = vmatmul.mubr.bf16.gmra.mrb[0].mxu0 %v822
  %v1823 = vpop.f32.mrb[0].mxu0
  %v1824 = vadd.f32 %v1455, %v1823
  %v1825 = vpop.f32.mrb[0].mxu0
  %v1826 = vpop.f32.mrb[0].mxu0
  %v1827 = vadd.f32 %v1458, %v1826
  %v1828 = vpop.f32.mrb[0].mxu0
  %1829 = vmatprep.mubr.bf16.mxu0 %v827
  %1830 = vmatmul.mubr.bf16.gmra.mrb[0].mxu0 %v826
  %v1831 = vpop.f32.mrb[0].mxu0
  %v1832 = vadd.f32 %v1463, %v1831
  %v1833 = vpop.f32.mrb[0].mxu0
  %v1834 = vpop.f32.mrb[0].mxu0
  %v1835 = vadd.f32 %v1466, %v1834
  %v1836 = vpop.f32.mrb[0].mxu0
  %1837 = vmatprep.mubr.bf16.mxu0 %v831
  %1838 = vmatmul.mubr.bf16.gmra.mrb[0].mxu0 %v830
  %v1839 = vpop.f32.mrb[0].mxu0
  %v1840 = vadd.f32 %v1471, %v1839
  %v1841 = vpop.f32.mrb[0].mxu0
  %v1842 = vpop.f32.mrb[0].mxu0
  %v1843 = vadd.f32 %v1474, %v1842
  %v1844 = vpop.f32.mrb[0].mxu0
  %1845 = vmatprep.mubr.bf16.mxu0 %v835
  %1846 = vmatmul.mubr.bf16.gmra.mrb[0].mxu0 %v834
  %v1847 = vpop.f32.mrb[0].mxu0
  %v1848 = vadd.f32 %v1479, %v1847
  %v1849 = vpop.f32.mrb[0].mxu0
  %v1850 = vpop.f32.mrb[0].mxu0
  %v1851 = vadd.f32 %v1482, %v1850
  %v1852 = vpop.f32.mrb[0].mxu0
  %1853 = vmatprep.mubr.bf16.mxu0 %v839
  %1854 = vmatmul.mubr.bf16.gmra.mrb[0].mxu0 %v838
  %v1855 = vpop.f32.mrb[0].mxu0
  %v1856 = vadd.f32 %v1487, %v1855
  %v1857 = vpop.f32.mrb[0].mxu0
  %v1858 = vpop.f32.mrb[0].mxu0
  %v1859 = vadd.f32 %v1490, %v1858
  %v1860 = vpop.f32.mrb[0].mxu0
  %1861 = vmatprep.mubr.bf16.mxu0 %v843
  %1862 = vmatmul.mubr.bf16.gmra.mrb[0].mxu0 %v842
  %v1863 = vpop.f32.mrb[0].mxu0
  %v1864 = vadd.f32 %v1495, %v1863
  %v1865 = vpop.f32.mrb[0].mxu0
  %v1866 = vpop.f32.mrb[0].mxu0
  %v1867 = vadd.f32 %v1498, %v1866
  %v1868 = vpop.f32.mrb[0].mxu0
  %1869 = vmatprep.mubr.bf16.mxu0 %v847
  %1870 = vmatmul.mubr.bf16.gmra.mrb[0].mxu0 %v846
  %v1871 = vpop.f32.mrb[0].mxu0
  %v1872 = vadd.f32 %v1503, %v1871
  %v1873 = vpop.f32.mrb[0].mxu0
  %v1874 = vpop.f32.mrb[0].mxu0
  %v1875 = vadd.f32 %v1506, %v1874
  %v1876 = vpop.f32.mrb[0].mxu0
  %1877 = vmatprep.mubr.bf16.mxu0 %v851
  %1878 = vmatmul.mubr.bf16.gmra.mrb[0].mxu0 %v850
  %v1879 = vpop.f32.mrb[0].mxu0
  %v1880 = vadd.f32 %v1511, %v1879
  %v1881 = vpop.f32.mrb[0].mxu0
  %v1882 = vpop.f32.mrb[0].mxu0
  %v1883 = vadd.f32 %v1514, %v1882
  %v1884 = vpop.f32.mrb[0].mxu0
  %1885 = vmatprep.mubr.bf16.mxu0 %v855
  %1886 = vmatmul.mubr.bf16.gmra.mrb[0].mxu0 %v854
  %v1887 = vpop.f32.mrb[0].mxu0
  %v1888 = vadd.f32 %v1519, %v1887
  %v1889 = vpop.f32.mrb[0].mxu0
  %v1890 = vpop.f32.mrb[0].mxu0
  %v1891 = vadd.f32 %v1522, %v1890
  %v1892 = vpop.f32.mrb[0].mxu0
  %1893 = vmatprep.mubr.bf16.mxu0 %v859
  %1894 = vmatmul.mubr.bf16.gmra.mrb[0].mxu0 %v858
  %v1895 = vpop.f32.mrb[0].mxu0
  %v1896 = vadd.f32 %v1527, %v1895
  %v1897 = vpop.f32.mrb[0].mxu0
  %v1898 = vpop.f32.mrb[0].mxu0
  %v1899 = vadd.f32 %v1530, %v1898
  %v1900 = vpop.f32.mrb[0].mxu0
  %1901 = vmatprep.mubr.bf16.mxu0 %v863
  %1902 = vmatmul.mubr.bf16.gmra.mrb[0].mxu0 %v862
  %v1903 = vpop.f32.mrb[0].mxu0
  %v1904 = vadd.f32 %v1535, %v1903
  %v1905 = vpop.f32.mrb[0].mxu0
  %v1906 = vpop.f32.mrb[0].mxu0
  %v1907 = vadd.f32 %v1538, %v1906
  %v1908 = vpop.f32.mrb[0].mxu0
  %1909 = vmatprep.mubr.bf16.mxu0 %v867
  %1910 = vmatmul.mubr.bf16.gmra.mrb[0].mxu0 %v866
  %v1911 = vpop.f32.mrb[0].mxu0
  %v1912 = vadd.f32 %v1543, %v1911
  %v1913 = vpop.f32.mrb[0].mxu0
  %v1914 = vpop.f32.mrb[0].mxu0
  %v1915 = vadd.f32 %v1546, %v1914
  %v1916 = vpop.f32.mrb[0].mxu0
  %1917 = vmatprep.mubr.bf16.mxu0 %v871
  %1918 = vmatmul.mubr.bf16.gmra.mrb[0].mxu0 %v870
  %v1919 = vpop.f32.mrb[0].mxu0
  %v1920 = vadd.f32 %v1551, %v1919
  %v1921 = vpop.f32.mrb[0].mxu0
  %v1922 = vpop.f32.mrb[0].mxu0
  %v1923 = vadd.f32 %v1554, %v1922
  %v1924 = vpop.f32.mrb[0].mxu0
  %1925 = vmatprep.mubr.bf16.mxu0 %v875
  %1926 = vmatmul.mubr.bf16.gmra.mrb[0].mxu0 %v874
  %v1927 = vpop.f32.mrb[0].mxu0
  %v1928 = vadd.f32 %v1559, %v1927
  %v1929 = vpop.f32.mrb[0].mxu0
  %v1930 = vpop.f32.mrb[0].mxu0
  %v1931 = vadd.f32 %v1562, %v1930
  %v1932 = vpop.f32.mrb[0].mxu0
  %1933 = vmatprep.mubr.bf16.mxu0 %v879
  %1934 = vmatmul.mubr.bf16.gmra.mrb[0].mxu0 %v878
  %v1935 = vpop.f32.mrb[0].mxu0
  %v1936 = vadd.f32 %v1567, %v1935
  %v1937 = vpop.f32.mrb[0].mxu0
  %v1938 = vpop.f32.mrb[0].mxu0
  %v1939 = vadd.f32 %v1570, %v1938
  %v1940 = vpop.f32.mrb[0].mxu0
  %1941 = vmatprep.mubr.bf16.mxu0 %v883
  %1942 = vmatmul.mubr.bf16.gmra.mrb[0].mxu0 %v882
  %v1943 = vpop.f32.mrb[0].mxu0
  %v1944 = vadd.f32 %v1575, %v1943
  %v1945 = vpop.f32.mrb[0].mxu0
  %v1946 = vpop.f32.mrb[0].mxu0
  %v1947 = vadd.f32 %v1578, %v1946
  %v1948 = vpop.f32.mrb[0].mxu0
  %1949 = vmatprep.mubr.bf16.mxu0 %v887
  %1950 = vmatmul.mubr.bf16.gmra.mrb[0].mxu0 %v886
  %v1951 = vpop.f32.mrb[0].mxu0
  %v1952 = vadd.f32 %v1583, %v1951
  %v1953 = vpop.f32.mrb[0].mxu0
  %v1954 = vpop.f32.mrb[0].mxu0
  %v1955 = vadd.f32 %v1586, %v1954
  %v1956 = vpop.f32.mrb[0].mxu0
  %1957 = vmatprep.mubr.bf16.mxu0 %v891
  %1958 = vmatmul.mubr.bf16.gmra.mrb[0].mxu0 %v890
  %v1959 = vpop.f32.mrb[0].mxu0
  %v1960 = vadd.f32 %v1591, %v1959
  %v1961 = vpop.f32.mrb[0].mxu0
  %v1962 = vpop.f32.mrb[0].mxu0
  %v1963 = vadd.f32 %v1594, %v1962
  %v1964 = vpop.f32.mrb[0].mxu0
  %1965 = vmatprep.mubr.bf16.mxu0 %v895
  %1966 = vmatmul.mubr.bf16.gmra.mrb[0].mxu0 %v894
  %v1967 = vpop.f32.mrb[0].mxu0
  %v1968 = vadd.f32 %v1599, %v1967
  %v1969 = vpop.f32.mrb[0].mxu0
  %v1970 = vpop.f32.mrb[0].mxu0
  %v1971 = vadd.f32 %v1602, %v1970
  %v1972 = vpop.f32.mrb[0].mxu0
  %1973 = vmatprep.mubr.bf16.mxu0 %v899
  %1974 = vmatmul.mubr.bf16.gmra.mrb[0].mxu0 %v898
  %v1975 = vpop.f32.mrb[0].mxu0
  %v1976 = vadd.f32 %v1607, %v1975
  %v1977 = vpop.f32.mrb[0].mxu0
  %v1978 = vpop.f32.mrb[0].mxu0
  %v1979 = vadd.f32 %v1610, %v1978
  %v1980 = vpop.f32.mrb[0].mxu0
  %1981 = vmatprep.mubr.bf16.mxu0 %v903
  %1982 = vmatmul.mubr.bf16.gmra.mrb[0].mxu0 %v902
  %v1983 = vpop.f32.mrb[0].mxu0
  %v1984 = vadd.f32 %v1615, %v1983
  %v1985 = vpop.f32.mrb[0].mxu0
  %v1986 = vpop.f32.mrb[0].mxu0
  %v1987 = vadd.f32 %v1618, %v1986
  %v1988 = vpop.f32.mrb[0].mxu0
  %1989 = vmatprep.mubr.bf16.mxu0 %v907
  %1990 = vmatmul.mubr.bf16.gmra.mrb[0].mxu0 %v906
  %v1991 = vpop.f32.mrb[0].mxu0
  %v1992 = vadd.f32 %v1623, %v1991
  %v1993 = vpop.f32.mrb[0].mxu0
  %v1994 = vpop.f32.mrb[0].mxu0
  %v1995 = vadd.f32 %v1626, %v1994
  %v1996 = vpop.f32.mrb[0].mxu0
  %1997 = vmatprep.mubr.bf16.mxu0 %v911
  %1998 = vmatmul.mubr.bf16.gmra.mrb[0].mxu0 %v910
  %v1999 = vpop.f32.mrb[0].mxu0
  %v2000 = vadd.f32 %v1631, %v1999
  %v2001 = vpop.f32.mrb[0].mxu0
  %v2002 = vpop.f32.mrb[0].mxu0
  %v2003 = vadd.f32 %v1634, %v2002
  %v2004 = vpop.f32.mrb[0].mxu0
  %2005 = vmatprep.mubr.bf16.mxu0 %v915
  %2006 = vmatmul.mubr.bf16.gmra.mrb[0].mxu0 %v914
  %v2007 = vpop.f32.mrb[0].mxu0
  %v2008 = vadd.f32 %v1639, %v2007
  %v2009 = vpop.f32.mrb[0].mxu0
  %v2010 = vpop.f32.mrb[0].mxu0
  %v2011 = vadd.f32 %v1642, %v2010
  %v2012 = vpop.f32.mrb[0].mxu0
  %2013 = vdwg.mxu0
  %v2014 = vadd.f32 %v1680, %v1683
  %v2015 = vadd.f32 %v2014, %v1688
  %v2016 = vadd.f32 %v2015, %v1691
  %v2017 = vadd.f32 %v2016, %v1696
  %v2018 = vadd.f32 %v2017, %v1699
  %v2019 = vadd.f32 %v2018, %v1704
  %v2020 = vadd.f32 %v2019, %v1707
  %v2021 = vadd.f32 %v2020, %v1712
  %v2022 = vadd.f32 %v2021, %v1715
  %v2023 = vadd.f32 %v2022, %v1720
  %v2024 = vadd.f32 %v2023, %v1723
  %v2025 = vadd.f32 %v2024, %v1728
  %v2026 = vadd.f32 %v2025, %v1731
  %v2027 = vadd.f32 %v2026, %v1736
  %v2028 = vadd.f32 %v2027, %v1739
  %v2029 = vadd.f32 %v2028, %v1744
  %v2030 = vadd.f32 %v2029, %v1747
  %v2031 = vadd.f32 %v2030, %v1752
  %v2032 = vadd.f32 %v2031, %v1755
  %v2033 = vadd.f32 %v2032, %v1760
  %v2034 = vadd.f32 %v2033, %v1763
  %v2035 = vadd.f32 %v2034, %v1768
  %v2036 = vadd.f32 %v2035, %v1771
  %v2037 = vadd.f32 %v2036, %v1776
  %v2038 = vadd.f32 %v2037, %v1779
  %v2039 = vadd.f32 %v2038, %v1784
  %v2040 = vadd.f32 %v2039, %v1787
  %v2041 = vadd.f32 %v2040, %v1792
  %v2042 = vadd.f32 %v2041, %v1795
  %v2043 = vadd.f32 %v2042, %v1800
  %v2044 = vadd.f32 %v2043, %v1803
  %v2045 = vadd.f32 %v2044, %v1808
  %v2046 = vadd.f32 %v2045, %v1811
  %v2047 = vadd.f32 %v2046, %v1816
  %v2048 = vadd.f32 %v2047, %v1819
  %v2049 = vadd.f32 %v2048, %v1824
  %v2050 = vadd.f32 %v2049, %v1827
  %v2051 = vadd.f32 %v2050, %v1832
  %v2052 = vadd.f32 %v2051, %v1835
  %v2053 = vadd.f32 %v2052, %v1840
  %v2054 = vadd.f32 %v2053, %v1843
  %v2055 = vadd.f32 %v2054, %v1848
  %v2056 = vadd.f32 %v2055, %v1851
  %v2057 = vadd.f32 %v2056, %v1856
  %v2058 = vadd.f32 %v2057, %v1859
  %v2059 = vadd.f32 %v2058, %v1864
  %v2060 = vadd.f32 %v2059, %v1867
  %v2061 = vadd.f32 %v2060, %v1872
  %v2062 = vadd.f32 %v2061, %v1875
  %v2063 = vadd.f32 %v2062, %v1880
  %v2064 = vadd.f32 %v2063, %v1883
  %v2065 = vadd.f32 %v2064, %v1888
  %v2066 = vadd.f32 %v2065, %v1891
  %v2067 = vadd.f32 %v2066, %v1896
  %v2068 = vadd.f32 %v2067, %v1899
  %v2069 = vadd.f32 %v2068, %v1904
  %v2070 = vadd.f32 %v2069, %v1907
  %v2071 = vadd.f32 %v2070, %v1912
  %v2072 = vadd.f32 %v2071, %v1915
  %v2073 = vadd.f32 %v2072, %v1920
  %v2074 = vadd.f32 %v2073, %v1923
  %v2075 = vadd.f32 %v2074, %v1928
  %v2076 = vadd.f32 %v2075, %v1931
  %v2077 = vrot.slane %v2076, 4
  %v2078 = vadd.f32 %v2076, %v2077
  %v2079 = vrot.slane %v2078, 2
  %v2080 = vadd.f32 %v2078, %v2079
  %v2081 = vrot.slane %v2080, 1
  %v2082 = vadd.f32 %v2080, %v2081
  %v2083 = vmul.f32 %v2082, 0.001953125
  %v2084 = vmul.f32 %v1680, %v1680
  %v2085 = vmul.f32 %v1683, %v1683
  %v2086 = vmul.f32 %v1688, %v1688
  %v2087 = vmul.f32 %v1691, %v1691
  %v2088 = vmul.f32 %v1696, %v1696
  %v2089 = vmul.f32 %v1699, %v1699
  %v2090 = vmul.f32 %v1704, %v1704
  %v2091 = vmul.f32 %v1707, %v1707
  %v2092 = vmul.f32 %v1712, %v1712
  %v2093 = vmul.f32 %v1715, %v1715
  %v2094 = vmul.f32 %v1720, %v1720
  %v2095 = vmul.f32 %v1723, %v1723
  %v2096 = vmul.f32 %v1728, %v1728
  %v2097 = vmul.f32 %v1731, %v1731
  %v2098 = vmul.f32 %v1736, %v1736
  %v2099 = vmul.f32 %v1739, %v1739
  %v2100 = vmul.f32 %v1744, %v1744
  %v2101 = vmul.f32 %v1747, %v1747
  %v2102 = vmul.f32 %v1752, %v1752
  %v2103 = vmul.f32 %v1755, %v1755
  %v2104 = vmul.f32 %v1760, %v1760
  %v2105 = vmul.f32 %v1763, %v1763
  %v2106 = vmul.f32 %v1768, %v1768
  %v2107 = vmul.f32 %v1771, %v1771
  %v2108 = vmul.f32 %v1776, %v1776
  %v2109 = vmul.f32 %v1779, %v1779
  %v2110 = vmul.f32 %v1784, %v1784
  %v2111 = vmul.f32 %v1787, %v1787
  %v2112 = vmul.f32 %v1792, %v1792
  %v2113 = vmul.f32 %v1795, %v1795
  %v2114 = vmul.f32 %v1800, %v1800
  %v2115 = vmul.f32 %v1803, %v1803
  %v2116 = vmul.f32 %v1808, %v1808
  %v2117 = vmul.f32 %v1811, %v1811
  %v2118 = vmul.f32 %v1816, %v1816
  %v2119 = vmul.f32 %v1819, %v1819
  %v2120 = vmul.f32 %v1824, %v1824
  %v2121 = vmul.f32 %v1827, %v1827
  %v2122 = vmul.f32 %v1832, %v1832
  %v2123 = vmul.f32 %v1835, %v1835
  %v2124 = vmul.f32 %v1840, %v1840
  %v2125 = vmul.f32 %v1843, %v1843
  %v2126 = vmul.f32 %v1848, %v1848
  %v2127 = vmul.f32 %v1851, %v1851
  %v2128 = vmul.f32 %v1856, %v1856
  %v2129 = vmul.f32 %v1859, %v1859
  %v2130 = vmul.f32 %v1864, %v1864
  %v2131 = vmul.f32 %v1867, %v1867
  %v2132 = vmul.f32 %v1872, %v1872
  %v2133 = vmul.f32 %v1875, %v1875
  %v2134 = vmul.f32 %v1880, %v1880
  %v2135 = vmul.f32 %v1883, %v1883
  %v2136 = vmul.f32 %v1888, %v1888
  %v2137 = vmul.f32 %v1891, %v1891
  %v2138 = vmul.f32 %v1896, %v1896
  %v2139 = vmul.f32 %v1899, %v1899
  %v2140 = vmul.f32 %v1904, %v1904
  %v2141 = vmul.f32 %v1907, %v1907
  %v2142 = vmul.f32 %v1912, %v1912
  %v2143 = vmul.f32 %v1915, %v1915
  %v2144 = vmul.f32 %v1920, %v1920
  %v2145 = vmul.f32 %v1923, %v1923
  %v2146 = vmul.f32 %v1928, %v1928
  %v2147 = vmul.f32 %v1931, %v1931
  %v2148 = vadd.f32 %v2084, %v2085
  %v2149 = vadd.f32 %v2148, %v2086
  %v2150 = vadd.f32 %v2149, %v2087
  %v2151 = vadd.f32 %v2150, %v2088
  %v2152 = vadd.f32 %v2151, %v2089
  %v2153 = vadd.f32 %v2152, %v2090
  %v2154 = vadd.f32 %v2153, %v2091
  %v2155 = vadd.f32 %v2154, %v2092
  %v2156 = vadd.f32 %v2155, %v2093
  %v2157 = vadd.f32 %v2156, %v2094
  %v2158 = vadd.f32 %v2157, %v2095
  %v2159 = vadd.f32 %v2158, %v2096
  %v2160 = vadd.f32 %v2159, %v2097
  %v2161 = vadd.f32 %v2160, %v2098
  %v2162 = vadd.f32 %v2161, %v2099
  %v2163 = vadd.f32 %v2162, %v2100
  %v2164 = vadd.f32 %v2163, %v2101
  %v2165 = vadd.f32 %v2164, %v2102
  %v2166 = vadd.f32 %v2165, %v2103
  %v2167 = vadd.f32 %v2166, %v2104
  %v2168 = vadd.f32 %v2167, %v2105
  %v2169 = vadd.f32 %v2168, %v2106
  %v2170 = vadd.f32 %v2169, %v2107
  %v2171 = vadd.f32 %v2170, %v2108
  %v2172 = vadd.f32 %v2171, %v2109
  %v2173 = vadd.f32 %v2172, %v2110
  %v2174 = vadd.f32 %v2173, %v2111
  %v2175 = vadd.f32 %v2174, %v2112
  %v2176 = vadd.f32 %v2175, %v2113
  %v2177 = vadd.f32 %v2176, %v2114
  %v2178 = vadd.f32 %v2177, %v2115
  %v2179 = vadd.f32 %v2178, %v2116
  %v2180 = vadd.f32 %v2179, %v2117
  %v2181 = vadd.f32 %v2180, %v2118
  %v2182 = vadd.f32 %v2181, %v2119
  %v2183 = vadd.f32 %v2182, %v2120
  %v2184 = vadd.f32 %v2183, %v2121
  %v2185 = vadd.f32 %v2184, %v2122
  %v2186 = vadd.f32 %v2185, %v2123
  %v2187 = vadd.f32 %v2186, %v2124
  %v2188 = vadd.f32 %v2187, %v2125
  %v2189 = vadd.f32 %v2188, %v2126
  %v2190 = vadd.f32 %v2189, %v2127
  %v2191 = vadd.f32 %v2190, %v2128
  %v2192 = vadd.f32 %v2191, %v2129
  %v2193 = vadd.f32 %v2192, %v2130
  %v2194 = vadd.f32 %v2193, %v2131
  %v2195 = vadd.f32 %v2194, %v2132
  %v2196 = vadd.f32 %v2195, %v2133
  %v2197 = vadd.f32 %v2196, %v2134
  %v2198 = vadd.f32 %v2197, %v2135
  %v2199 = vadd.f32 %v2198, %v2136
  %v2200 = vadd.f32 %v2199, %v2137
  %v2201 = vadd.f32 %v2200, %v2138
  %v2202 = vadd.f32 %v2201, %v2139
  %v2203 = vadd.f32 %v2202, %v2140
  %v2204 = vadd.f32 %v2203, %v2141
  %v2205 = vadd.f32 %v2204, %v2142
  %v2206 = vadd.f32 %v2205, %v2143
  %v2207 = vadd.f32 %v2206, %v2144
  %v2208 = vadd.f32 %v2207, %v2145
  %v2209 = vadd.f32 %v2208, %v2146
  %v2210 = vadd.f32 %v2209, %v2147
  %v2211 = vrot.slane %v2210, 4
  %v2212 = vadd.f32 %v2210, %v2211
  %v2213 = vrot.slane %v2212, 2
  %v2214 = vadd.f32 %v2212, %v2213
  %v2215 = vrot.slane %v2214, 1
  %v2216 = vadd.f32 %v2214, %v2215
  %v2217 = vmul.f32 %v2216, 0.001953125
  %v2218 = vmul.f32 %v2083, %v2083
  %v2219 = vsub.f32 %v2217, %v2218
  %v2220 = vmax.f32 %v2219, 0.0
  %v2221 = vadd.f32 %v2220, 1e-05
  %v2222 = vrsqrt.pop %v2221
  %v2223 = vsub.f32 %v1680, %v2083
  %v2224 = vsub.f32 %v1683, %v2083
  %v2225 = vsub.f32 %v1688, %v2083
  %v2226 = vsub.f32 %v1691, %v2083
  %v2227 = vsub.f32 %v1696, %v2083
  %v2228 = vsub.f32 %v1699, %v2083
  %v2229 = vsub.f32 %v1704, %v2083
  %v2230 = vsub.f32 %v1707, %v2083
  %v2231 = vsub.f32 %v1712, %v2083
  %v2232 = vsub.f32 %v1715, %v2083
  %v2233 = vsub.f32 %v1720, %v2083
  %v2234 = vsub.f32 %v1723, %v2083
  %v2235 = vsub.f32 %v1728, %v2083
  %v2236 = vsub.f32 %v1731, %v2083
  %v2237 = vsub.f32 %v1736, %v2083
  %v2238 = vsub.f32 %v1739, %v2083
  %v2239 = vsub.f32 %v1744, %v2083
  %v2240 = vsub.f32 %v1747, %v2083
  %v2241 = vsub.f32 %v1752, %v2083
  %v2242 = vsub.f32 %v1755, %v2083
  %v2243 = vsub.f32 %v1760, %v2083
  %v2244 = vsub.f32 %v1763, %v2083
  %v2245 = vsub.f32 %v1768, %v2083
  %v2246 = vsub.f32 %v1771, %v2083
  %v2247 = vsub.f32 %v1776, %v2083
  %v2248 = vsub.f32 %v1779, %v2083
  %v2249 = vsub.f32 %v1784, %v2083
  %v2250 = vsub.f32 %v1787, %v2083
  %v2251 = vsub.f32 %v1792, %v2083
  %v2252 = vsub.f32 %v1795, %v2083
  %v2253 = vsub.f32 %v1800, %v2083
  %v2254 = vsub.f32 %v1803, %v2083
  %v2255 = vsub.f32 %v1808, %v2083
  %v2256 = vsub.f32 %v1811, %v2083
  %v2257 = vsub.f32 %v1816, %v2083
  %v2258 = vsub.f32 %v1819, %v2083
  %v2259 = vsub.f32 %v1824, %v2083
  %v2260 = vsub.f32 %v1827, %v2083
  %v2261 = vsub.f32 %v1832, %v2083
  %v2262 = vsub.f32 %v1835, %v2083
  %v2263 = vsub.f32 %v1840, %v2083
  %v2264 = vsub.f32 %v1843, %v2083
  %v2265 = vsub.f32 %v1848, %v2083
  %v2266 = vsub.f32 %v1851, %v2083
  %v2267 = vsub.f32 %v1856, %v2083
  %v2268 = vsub.f32 %v1859, %v2083
  %v2269 = vsub.f32 %v1864, %v2083
  %v2270 = vsub.f32 %v1867, %v2083
  %v2271 = vsub.f32 %v1872, %v2083
  %v2272 = vsub.f32 %v1875, %v2083
  %v2273 = vsub.f32 %v1880, %v2083
  %v2274 = vsub.f32 %v1883, %v2083
  %v2275 = vsub.f32 %v1888, %v2083
  %v2276 = vsub.f32 %v1891, %v2083
  %v2277 = vsub.f32 %v1896, %v2083
  %v2278 = vsub.f32 %v1899, %v2083
  %v2279 = vsub.f32 %v1904, %v2083
  %v2280 = vsub.f32 %v1907, %v2083
  %v2281 = vsub.f32 %v1912, %v2083
  %v2282 = vsub.f32 %v1915, %v2083
  %v2283 = vsub.f32 %v1920, %v2083
  %v2284 = vsub.f32 %v1923, %v2083
  %v2285 = vsub.f32 %v1928, %v2083
  %v2286 = vsub.f32 %v1931, %v2083
  %v2287 = vmul.f32 %v2223, %v2222
  %v2288 = vmul.f32 %v2224, %v2222
  %v2289 = vmul.f32 %v2225, %v2222
  %v2290 = vmul.f32 %v2226, %v2222
  %v2291 = vmul.f32 %v2227, %v2222
  %v2292 = vmul.f32 %v2228, %v2222
  %v2293 = vmul.f32 %v2229, %v2222
  %v2294 = vmul.f32 %v2230, %v2222
  %v2295 = vmul.f32 %v2231, %v2222
  %v2296 = vmul.f32 %v2232, %v2222
  %v2297 = vmul.f32 %v2233, %v2222
  %v2298 = vmul.f32 %v2234, %v2222
  %v2299 = vmul.f32 %v2235, %v2222
  %v2300 = vmul.f32 %v2236, %v2222
  %v2301 = vmul.f32 %v2237, %v2222
  %v2302 = vmul.f32 %v2238, %v2222
  %v2303 = vmul.f32 %v2239, %v2222
  %v2304 = vmul.f32 %v2240, %v2222
  %v2305 = vmul.f32 %v2241, %v2222
  %v2306 = vmul.f32 %v2242, %v2222
  %v2307 = vmul.f32 %v2243, %v2222
  %v2308 = vmul.f32 %v2244, %v2222
  %v2309 = vmul.f32 %v2245, %v2222
  %v2310 = vmul.f32 %v2246, %v2222
  %v2311 = vmul.f32 %v2247, %v2222
  %v2312 = vmul.f32 %v2248, %v2222
  %v2313 = vmul.f32 %v2249, %v2222
  %v2314 = vmul.f32 %v2250, %v2222
  %v2315 = vmul.f32 %v2251, %v2222
  %v2316 = vmul.f32 %v2252, %v2222
  %v2317 = vmul.f32 %v2253, %v2222
  %v2318 = vmul.f32 %v2254, %v2222
  %v2319 = vmul.f32 %v2255, %v2222
  %v2320 = vmul.f32 %v2256, %v2222
  %v2321 = vmul.f32 %v2257, %v2222
  %v2322 = vmul.f32 %v2258, %v2222
  %v2323 = vmul.f32 %v2259, %v2222
  %v2324 = vmul.f32 %v2260, %v2222
  %v2325 = vmul.f32 %v2261, %v2222
  %v2326 = vmul.f32 %v2262, %v2222
  %v2327 = vmul.f32 %v2263, %v2222
  %v2328 = vmul.f32 %v2264, %v2222
  %v2329 = vmul.f32 %v2265, %v2222
  %v2330 = vmul.f32 %v2266, %v2222
  %v2331 = vmul.f32 %v2267, %v2222
  %v2332 = vmul.f32 %v2268, %v2222
  %v2333 = vmul.f32 %v2269, %v2222
  %v2334 = vmul.f32 %v2270, %v2222
  %v2335 = vmul.f32 %v2271, %v2222
  %v2336 = vmul.f32 %v2272, %v2222
  %v2337 = vmul.f32 %v2273, %v2222
  %v2338 = vmul.f32 %v2274, %v2222
  %v2339 = vmul.f32 %v2275, %v2222
  %v2340 = vmul.f32 %v2276, %v2222
  %v2341 = vmul.f32 %v2277, %v2222
  %v2342 = vmul.f32 %v2278, %v2222
  %v2343 = vmul.f32 %v2279, %v2222
  %v2344 = vmul.f32 %v2280, %v2222
  %v2345 = vmul.f32 %v2281, %v2222
  %v2346 = vmul.f32 %v2282, %v2222
  %v2347 = vmul.f32 %v2283, %v2222
  %v2348 = vmul.f32 %v2284, %v2222
  %v2349 = vmul.f32 %v2285, %v2222
  %v2350 = vmul.f32 %v2286, %v2222
  %v2351 = vmax.f32 %v2287, 0.0
  %v2352 = vmax.f32 %v2288, 0.0
  %v2353 = vmax.f32 %v2289, 0.0
  %v2354 = vmax.f32 %v2290, 0.0
  %v2355 = vmax.f32 %v2291, 0.0
  %v2356 = vmax.f32 %v2292, 0.0
  %v2357 = vmax.f32 %v2293, 0.0
  %v2358 = vmax.f32 %v2294, 0.0
  %v2359 = vmax.f32 %v2295, 0.0
  %v2360 = vmax.f32 %v2296, 0.0
  %v2361 = vmax.f32 %v2297, 0.0
  %v2362 = vmax.f32 %v2298, 0.0
  %v2363 = vmax.f32 %v2299, 0.0
  %v2364 = vmax.f32 %v2300, 0.0
  %v2365 = vmax.f32 %v2301, 0.0
  %v2366 = vmax.f32 %v2302, 0.0
  %v2367 = vmax.f32 %v2303, 0.0
  %v2368 = vmax.f32 %v2304, 0.0
  %v2369 = vmax.f32 %v2305, 0.0
  %v2370 = vmax.f32 %v2306, 0.0
  %v2371 = vmax.f32 %v2307, 0.0
  %v2372 = vmax.f32 %v2308, 0.0
  %v2373 = vmax.f32 %v2309, 0.0
  %v2374 = vmax.f32 %v2310, 0.0
  %v2375 = vmax.f32 %v2311, 0.0
  %v2376 = vmax.f32 %v2312, 0.0
  %v2377 = vmax.f32 %v2313, 0.0
  %v2378 = vmax.f32 %v2314, 0.0
  %v2379 = vmax.f32 %v2315, 0.0
  %v2380 = vmax.f32 %v2316, 0.0
  %v2381 = vmax.f32 %v2317, 0.0
  %v2382 = vmax.f32 %v2318, 0.0
  %v2383 = vmax.f32 %v2319, 0.0
  %v2384 = vmax.f32 %v2320, 0.0
  %v2385 = vmax.f32 %v2321, 0.0
  %v2386 = vmax.f32 %v2322, 0.0
  %v2387 = vmax.f32 %v2323, 0.0
  %v2388 = vmax.f32 %v2324, 0.0
  %v2389 = vmax.f32 %v2325, 0.0
  %v2390 = vmax.f32 %v2326, 0.0
  %v2391 = vmax.f32 %v2327, 0.0
  %v2392 = vmax.f32 %v2328, 0.0
  %v2393 = vmax.f32 %v2329, 0.0
  %v2394 = vmax.f32 %v2330, 0.0
  %v2395 = vmax.f32 %v2331, 0.0
  %v2396 = vmax.f32 %v2332, 0.0
  %v2397 = vmax.f32 %v2333, 0.0
  %v2398 = vmax.f32 %v2334, 0.0
  %v2399 = vmax.f32 %v2335, 0.0
  %v2400 = vmax.f32 %v2336, 0.0
  %v2401 = vmax.f32 %v2337, 0.0
  %v2402 = vmax.f32 %v2338, 0.0
  %v2403 = vmax.f32 %v2339, 0.0
  %v2404 = vmax.f32 %v2340, 0.0
  %v2405 = vmax.f32 %v2341, 0.0
  %v2406 = vmax.f32 %v2342, 0.0
  %v2407 = vmax.f32 %v2343, 0.0
  %v2408 = vmax.f32 %v2344, 0.0
  %v2409 = vmax.f32 %v2345, 0.0
  %v2410 = vmax.f32 %v2346, 0.0
  %v2411 = vmax.f32 %v2347, 0.0
  %v2412 = vmax.f32 %v2348, 0.0
  %v2413 = vmax.f32 %v2349, 0.0
  %v2414 = vmax.f32 %v2350, 0.0
  %v2415 = vpack.c.bf16 %v2352, %v2351
  %v2416 = vpack.c.bf16 %v2354, %v2353
  %v2417 = vpack.c.bf16 %v2356, %v2355
  %v2418 = vpack.c.bf16 %v2358, %v2357
  %v2419 = vpack.c.bf16 %v2360, %v2359
  %v2420 = vpack.c.bf16 %v2362, %v2361
  %v2421 = vpack.c.bf16 %v2364, %v2363
  %v2422 = vpack.c.bf16 %v2366, %v2365
  %v2423 = vpack.c.bf16 %v2368, %v2367
  %v2424 = vpack.c.bf16 %v2370, %v2369
  %v2425 = vpack.c.bf16 %v2372, %v2371
  %v2426 = vpack.c.bf16 %v2374, %v2373
  %v2427 = vpack.c.bf16 %v2376, %v2375
  %v2428 = vpack.c.bf16 %v2378, %v2377
  %v2429 = vpack.c.bf16 %v2380, %v2379
  %v2430 = vpack.c.bf16 %v2382, %v2381
  %v2431 = vpack.c.bf16 %v2384, %v2383
  %v2432 = vpack.c.bf16 %v2386, %v2385
  %v2433 = vpack.c.bf16 %v2388, %v2387
  %v2434 = vpack.c.bf16 %v2390, %v2389
  %v2435 = vpack.c.bf16 %v2392, %v2391
  %v2436 = vpack.c.bf16 %v2394, %v2393
  %v2437 = vpack.c.bf16 %v2396, %v2395
  %v2438 = vpack.c.bf16 %v2398, %v2397
  %v2439 = vpack.c.bf16 %v2400, %v2399
  %v2440 = vpack.c.bf16 %v2402, %v2401
  %v2441 = vpack.c.bf16 %v2404, %v2403
  %v2442 = vpack.c.bf16 %v2406, %v2405
  %v2443 = vpack.c.bf16 %v2408, %v2407
  %v2444 = vpack.c.bf16 %v2410, %v2409
  %v2445 = vpack.c.bf16 %v2412, %v2411
  %v2446 = vpack.c.bf16 %v2414, %v2413
  %v2479 = vunpack.c.l.b16 %v2415
  %v2480 = vunpack.c.h.b16 %v2415
  %v2481 = vunpack.c.l.b16 %v2416
  %v2482 = vunpack.c.h.b16 %v2416
  %v2483 = vunpack.c.l.b16 %v2417
  %v2484 = vunpack.c.h.b16 %v2417
  %v2485 = vunpack.c.l.b16 %v2418
  %v2486 = vunpack.c.h.b16 %v2418
  %v2487 = vunpack.c.l.b16 %v2419
  %v2488 = vunpack.c.h.b16 %v2419
  %v2489 = vunpack.c.l.b16 %v2420
  %v2490 = vunpack.c.h.b16 %v2420
  %v2491 = vunpack.c.l.b16 %v2421
  %v2492 = vunpack.c.h.b16 %v2421
  %v2493 = vunpack.c.l.b16 %v2422
  %v2494 = vunpack.c.h.b16 %v2422
  %v2495 = vunpack.c.l.b16 %v2423
  %v2496 = vunpack.c.h.b16 %v2423
  %v2497 = vunpack.c.l.b16 %v2424
  %v2498 = vunpack.c.h.b16 %v2424
  %v2499 = vunpack.c.l.b16 %v2425
  %v2500 = vunpack.c.h.b16 %v2425
  %v2501 = vunpack.c.l.b16 %v2426
  %v2502 = vunpack.c.h.b16 %v2426
  %v2503 = vunpack.c.l.b16 %v2427
  %v2504 = vunpack.c.h.b16 %v2427
  %v2505 = vunpack.c.l.b16 %v2428
  %v2506 = vunpack.c.h.b16 %v2428
  %v2507 = vunpack.c.l.b16 %v2429
  %v2508 = vunpack.c.h.b16 %v2429
  %v2509 = vunpack.c.l.b16 %v2430
  %v2510 = vunpack.c.h.b16 %v2430
  %v2511 = vunpack.c.l.b16 %v2431
  %v2512 = vunpack.c.h.b16 %v2431
  %v2513 = vunpack.c.l.b16 %v2432
  %v2514 = vunpack.c.h.b16 %v2432
  %v2515 = vunpack.c.l.b16 %v2433
  %v2516 = vunpack.c.h.b16 %v2433
  %v2517 = vunpack.c.l.b16 %v2434
  %v2518 = vunpack.c.h.b16 %v2434
  %v2519 = vunpack.c.l.b16 %v2435
  %v2520 = vunpack.c.h.b16 %v2435
  %v2521 = vunpack.c.l.b16 %v2436
  %v2522 = vunpack.c.h.b16 %v2436
  %v2523 = vunpack.c.l.b16 %v2437
  %v2524 = vunpack.c.h.b16 %v2437
  %v2525 = vunpack.c.l.b16 %v2438
  %v2526 = vunpack.c.h.b16 %v2438
  %v2527 = vunpack.c.l.b16 %v2439
  %v2528 = vunpack.c.h.b16 %v2439
  %v2529 = vunpack.c.l.b16 %v2440
  %v2530 = vunpack.c.h.b16 %v2440
  %v2531 = vunpack.c.l.b16 %v2441
  %v2532 = vunpack.c.h.b16 %v2441
  %v2533 = vunpack.c.l.b16 %v2442
  %v2534 = vunpack.c.h.b16 %v2442
  %v2535 = vunpack.c.l.b16 %v2443
  %v2536 = vunpack.c.h.b16 %v2443
  %v2537 = vunpack.c.l.b16 %v2444
  %v2538 = vunpack.c.h.b16 %v2444
  %v2539 = vunpack.c.l.b16 %v2445
  %v2540 = vunpack.c.h.b16 %v2445
  %v2541 = vunpack.c.l.b16 %v2446
  %v2542 = vunpack.c.h.b16 %v2446
  %v2543 = vpack.c.b16 %v2479, %v2479
  %v2544 = vpack.c.b16 %v2480, %v2480
  %v2545 = vpack.c.b16 %v2481, %v2481
  %v2546 = vpack.c.b16 %v2482, %v2482
  %v2547 = vpack.c.b16 %v2483, %v2483
  %v2548 = vpack.c.b16 %v2484, %v2484
  %v2549 = vpack.c.b16 %v2485, %v2485
  %v2550 = vpack.c.b16 %v2486, %v2486
  %v2551 = vpack.c.b16 %v2487, %v2487
  %v2552 = vpack.c.b16 %v2488, %v2488
  %v2553 = vpack.c.b16 %v2489, %v2489
  %v2554 = vpack.c.b16 %v2490, %v2490
  %v2555 = vpack.c.b16 %v2491, %v2491
  %v2556 = vpack.c.b16 %v2492, %v2492
  %v2557 = vpack.c.b16 %v2493, %v2493
  %v2558 = vpack.c.b16 %v2494, %v2494
  %v2559 = vpack.c.b16 %v2495, %v2495
  %v2560 = vpack.c.b16 %v2496, %v2496
  %v2561 = vpack.c.b16 %v2497, %v2497
  %v2562 = vpack.c.b16 %v2498, %v2498
  %v2563 = vpack.c.b16 %v2499, %v2499
  %v2564 = vpack.c.b16 %v2500, %v2500
  %v2565 = vpack.c.b16 %v2501, %v2501
  %v2566 = vpack.c.b16 %v2502, %v2502
  %v2567 = vpack.c.b16 %v2503, %v2503
  %v2568 = vpack.c.b16 %v2504, %v2504
  %v2569 = vpack.c.b16 %v2505, %v2505
  %v2570 = vpack.c.b16 %v2506, %v2506
  %v2571 = vpack.c.b16 %v2507, %v2507
  %v2572 = vpack.c.b16 %v2508, %v2508
  %v2573 = vpack.c.b16 %v2509, %v2509
  %v2574 = vpack.c.b16 %v2510, %v2510
  %v2575 = vpack.c.b16 %v2511, %v2511
  %v2576 = vpack.c.b16 %v2512, %v2512
  %v2577 = vpack.c.b16 %v2513, %v2513
  %v2578 = vpack.c.b16 %v2514, %v2514
  %v2579 = vpack.c.b16 %v2515, %v2515
  %v2580 = vpack.c.b16 %v2516, %v2516
  %v2581 = vpack.c.b16 %v2517, %v2517
  %v2582 = vpack.c.b16 %v2518, %v2518
  %v2583 = vpack.c.b16 %v2519, %v2519
  %v2584 = vpack.c.b16 %v2520, %v2520
  %v2585 = vpack.c.b16 %v2521, %v2521
  %v2586 = vpack.c.b16 %v2522, %v2522
  %v2587 = vpack.c.b16 %v2523, %v2523
  %v2588 = vpack.c.b16 %v2524, %v2524
  %v2589 = vpack.c.b16 %v2525, %v2525
  %v2590 = vpack.c.b16 %v2526, %v2526
  %v2591 = vpack.c.b16 %v2527, %v2527
  %v2592 = vpack.c.b16 %v2528, %v2528
  %v2593 = vpack.c.b16 %v2529, %v2529
  %v2594 = vpack.c.b16 %v2530, %v2530
  %v2595 = vpack.c.b16 %v2531, %v2531
  %v2596 = vpack.c.b16 %v2532, %v2532
  %v2597 = vpack.c.b16 %v2533, %v2533
  %v2598 = vpack.c.b16 %v2534, %v2534
  %v2599 = vpack.c.b16 %v2535, %v2535
  %v2600 = vpack.c.b16 %v2536, %v2536
  %v2601 = vpack.c.b16 %v2537, %v2537
  %v2602 = vpack.c.b16 %v2538, %v2538
  %v2603 = vpack.c.b16 %v2539, %v2539
  %v2604 = vpack.c.b16 %v2540, %v2540
  %v2605 = vpack.c.b16 %v2541, %v2541
  %v2606 = vpack.c.b16 %v2542, %v2542
  %2671 = vst [vmem:[%s2] sm:$0xf] %v2543
  %2672 = vst [vmem:[%s2 + $0x4] sm:$0xf] %v2544
  %2673 = vst [vmem:[%s2 + $0x8] sm:$0xf] %v2545
  %2674 = vst [vmem:[%s2 + $0xc] sm:$0xf] %v2546
  %2675 = vst [vmem:[%s2 + $0x10] sm:$0xf] %v2547
  %2676 = vst [vmem:[%s2 + $0x14] sm:$0xf] %v2548
  %2677 = vst [vmem:[%s2 + $0x18] sm:$0xf] %v2549
  %2678 = vst [vmem:[%s2 + $0x1c] sm:$0xf] %v2550
  %2679 = vst [vmem:[%s2 + $0x20] sm:$0xf] %v2551
  %2680 = vst [vmem:[%s2 + $0x24] sm:$0xf] %v2552
  %2681 = vst [vmem:[%s2 + $0x28] sm:$0xf] %v2553
  %2682 = vst [vmem:[%s2 + $0x2c] sm:$0xf] %v2554
  %2683 = vst [vmem:[%s2 + $0x30] sm:$0xf] %v2555
  %2684 = vst [vmem:[%s2 + $0x34] sm:$0xf] %v2556
  %2685 = vst [vmem:[%s2 + $0x38] sm:$0xf] %v2557
  %2686 = vst [vmem:[%s2 + $0x3c] sm:$0xf] %v2558
  %2687 = vst [vmem:[%s2 + $0x40] sm:$0xf] %v2559
  %2688 = vst [vmem:[%s2 + $0x44] sm:$0xf] %v2560
  %2689 = vst [vmem:[%s2 + $0x48] sm:$0xf] %v2561
  %2690 = vst [vmem:[%s2 + $0x4c] sm:$0xf] %v2562
  %2691 = vst [vmem:[%s2 + $0x50] sm:$0xf] %v2563
  %2692 = vst [vmem:[%s2 + $0x54] sm:$0xf] %v2564
  %2693 = vst [vmem:[%s2 + $0x58] sm:$0xf] %v2565
  %2694 = vst [vmem:[%s2 + $0x5c] sm:$0xf] %v2566
  %2695 = vst [vmem:[%s2 + $0x60] sm:$0xf] %v2567
  %2696 = vst [vmem:[%s2 + $0x64] sm:$0xf] %v2568
  %2697 = vst [vmem:[%s2 + $0x68] sm:$0xf] %v2569
  %2698 = vst [vmem:[%s2 + $0x6c] sm:$0xf] %v2570
  %2699 = vst [vmem:[%s2 + $0x70] sm:$0xf] %v2571
  %2700 = vst [vmem:[%s2 + $0x74] sm:$0xf] %v2572
  %2701 = vst [vmem:[%s2 + $0x78] sm:$0xf] %v2573
  %2702 = vst [vmem:[%s2 + $0x7c] sm:$0xf] %v2574
  %2703 = vst [vmem:[%s2 + $0x80] sm:$0xf] %v2575
  %2704 = vst [vmem:[%s2 + $0x84] sm:$0xf] %v2576
  %2705 = vst [vmem:[%s2 + $0x88] sm:$0xf] %v2577
  %2706 = vst [vmem:[%s2 + $0x8c] sm:$0xf] %v2578
  %2707 = vst [vmem:[%s2 + $0x90] sm:$0xf] %v2579
  %2708 = vst [vmem:[%s2 + $0x94] sm:$0xf] %v2580
  %2709 = vst [vmem:[%s2 + $0x98] sm:$0xf] %v2581
  %2710 = vst [vmem:[%s2 + $0x9c] sm:$0xf] %v2582
  %2711 = vst [vmem:[%s2 + $0xa0] sm:$0xf] %v2583
  %2712 = vst [vmem:[%s2 + $0xa4] sm:$0xf] %v2584
  %2713 = vst [vmem:[%s2 + $0xa8] sm:$0xf] %v2585
  %2714 = vst [vmem:[%s2 + $0xac] sm:$0xf] %v2586
  %2715 = vst [vmem:[%s2 + $0xb0] sm:$0xf] %v2587
  %2716 = vst [vmem:[%s2 + $0xb4] sm:$0xf] %v2588
  %2717 = vst [vmem:[%s2 + $0xb8] sm:$0xf] %v2589
  %2718 = vst [vmem:[%s2 + $0xbc] sm:$0xf] %v2590
  %2719 = vst [vmem:[%s2 + $0xc0] sm:$0xf] %v2591
  %2720 = vst [vmem:[%s2 + $0xc4] sm:$0xf] %v2592
  %2721 = vst [vmem:[%s2 + $0xc8] sm:$0xf] %v2593
  %2722 = vst [vmem:[%s2 + $0xcc] sm:$0xf] %v2594
  %2723 = vst [vmem:[%s2 + $0xd0] sm:$0xf] %v2595
  %2724 = vst [vmem:[%s2 + $0xd4] sm:$0xf] %v2596
  %2725 = vst [vmem:[%s2 + $0xd8] sm:$0xf] %v2597
  %2726 = vst [vmem:[%s2 + $0xdc] sm:$0xf] %v2598
  %2727 = vst [vmem:[%s2 + $0xe0] sm:$0xf] %v2599
  %2728 = vst [vmem:[%s2 + $0xe4] sm:$0xf] %v2600
  %2729 = vst [vmem:[%s2 + $0xe8] sm:$0xf] %v2601
  %2730 = vst [vmem:[%s2 + $0xec] sm:$0xf] %v2602
  %2731 = vst [vmem:[%s2 + $0xf0] sm:$0xf] %v2603
  %2732 = vst [vmem:[%s2 + $0xf4] sm:$0xf] %v2604
  %2733 = vst [vmem:[%s2 + $0xf8] sm:$0xf] %v2605
  %2734 = vst [vmem:[%s2 + $0xfc] sm:$0xf] %v2606
  %v2735 = vadd.f32 %v1936, %v1939
  %v2736 = vadd.f32 %v2735, %v1944
  %v2737 = vadd.f32 %v2736, %v1947
  %v2738 = vadd.f32 %v2737, %v1952
  %v2739 = vadd.f32 %v2738, %v1955
  %v2740 = vadd.f32 %v2739, %v1960
  %v2741 = vadd.f32 %v2740, %v1963
  %v2742 = vadd.f32 %v2741, %v1968
  %v2743 = vadd.f32 %v2742, %v1971
  %v2744 = vadd.f32 %v2743, %v1976
  %v2745 = vadd.f32 %v2744, %v1979
  %v2746 = vadd.f32 %v2745, %v1984
  %v2747 = vadd.f32 %v2746, %v1987
  %v2748 = vadd.f32 %v2747, %v1992
  %v2749 = vadd.f32 %v2748, %v1995
  %v2750 = vrot.slane %v2749, 4
  %v2751 = vadd.f32 %v2749, %v2750
  %v2752 = vrot.slane %v2751, 2
  %v2753 = vadd.f32 %v2751, %v2752
  %v2754 = vrot.slane %v2753, 1
  %v2755 = vadd.f32 %v2753, %v2754
  %v2756 = vmul.f32 %v2755, 0.0078125
  %v2757 = vmul.f32 %v1936, %v1936
  %v2758 = vmul.f32 %v1939, %v1939
  %v2759 = vmul.f32 %v1944, %v1944
  %v2760 = vmul.f32 %v1947, %v1947
  %v2761 = vmul.f32 %v1952, %v1952
  %v2762 = vmul.f32 %v1955, %v1955
  %v2763 = vmul.f32 %v1960, %v1960
  %v2764 = vmul.f32 %v1963, %v1963
  %v2765 = vmul.f32 %v1968, %v1968
  %v2766 = vmul.f32 %v1971, %v1971
  %v2767 = vmul.f32 %v1976, %v1976
  %v2768 = vmul.f32 %v1979, %v1979
  %v2769 = vmul.f32 %v1984, %v1984
  %v2770 = vmul.f32 %v1987, %v1987
  %v2771 = vmul.f32 %v1992, %v1992
  %v2772 = vmul.f32 %v1995, %v1995
  %v2773 = vadd.f32 %v2757, %v2758
  %v2774 = vadd.f32 %v2773, %v2759
  %v2775 = vadd.f32 %v2774, %v2760
  %v2776 = vadd.f32 %v2775, %v2761
  %v2777 = vadd.f32 %v2776, %v2762
  %v2778 = vadd.f32 %v2777, %v2763
  %v2779 = vadd.f32 %v2778, %v2764
  %v2780 = vadd.f32 %v2779, %v2765
  %v2781 = vadd.f32 %v2780, %v2766
  %v2782 = vadd.f32 %v2781, %v2767
  %v2783 = vadd.f32 %v2782, %v2768
  %v2784 = vadd.f32 %v2783, %v2769
  %v2785 = vadd.f32 %v2784, %v2770
  %v2786 = vadd.f32 %v2785, %v2771
  %v2787 = vadd.f32 %v2786, %v2772
  %v2788 = vrot.slane %v2787, 4
  %v2789 = vadd.f32 %v2787, %v2788
  %v2790 = vrot.slane %v2789, 2
  %v2791 = vadd.f32 %v2789, %v2790
  %v2792 = vrot.slane %v2791, 1
  %v2793 = vadd.f32 %v2791, %v2792
  %v2794 = vmul.f32 %v2793, 0.0078125
  %v2795 = vmul.f32 %v2756, %v2756
  %v2796 = vsub.f32 %v2794, %v2795
  %v2797 = vmax.f32 %v2796, 0.0
  %v2798 = vadd.f32 %v2797, 1e-05
  %v2799 = vrsqrt.pop %v2798
  %v2800 = vsub.f32 %v1936, %v2756
  %v2801 = vsub.f32 %v1939, %v2756
  %v2802 = vsub.f32 %v1944, %v2756
  %v2803 = vsub.f32 %v1947, %v2756
  %v2804 = vsub.f32 %v1952, %v2756
  %v2805 = vsub.f32 %v1955, %v2756
  %v2806 = vsub.f32 %v1960, %v2756
  %v2807 = vsub.f32 %v1963, %v2756
  %v2808 = vsub.f32 %v1968, %v2756
  %v2809 = vsub.f32 %v1971, %v2756
  %v2810 = vsub.f32 %v1976, %v2756
  %v2811 = vsub.f32 %v1979, %v2756
  %v2812 = vsub.f32 %v1984, %v2756
  %v2813 = vsub.f32 %v1987, %v2756
  %v2814 = vsub.f32 %v1992, %v2756
  %v2815 = vsub.f32 %v1995, %v2756
  %v2816 = vmul.f32 %v2800, %v2799
  %v2817 = vmul.f32 %v2801, %v2799
  %v2818 = vmul.f32 %v2802, %v2799
  %v2819 = vmul.f32 %v2803, %v2799
  %v2820 = vmul.f32 %v2804, %v2799
  %v2821 = vmul.f32 %v2805, %v2799
  %v2822 = vmul.f32 %v2806, %v2799
  %v2823 = vmul.f32 %v2807, %v2799
  %v2824 = vmul.f32 %v2808, %v2799
  %v2825 = vmul.f32 %v2809, %v2799
  %v2826 = vmul.f32 %v2810, %v2799
  %v2827 = vmul.f32 %v2811, %v2799
  %v2828 = vmul.f32 %v2812, %v2799
  %v2829 = vmul.f32 %v2813, %v2799
  %v2830 = vmul.f32 %v2814, %v2799
  %v2831 = vmul.f32 %v2815, %v2799
  %v2832 = vmax.f32 %v2816, 0.0
  %v2833 = vmax.f32 %v2817, 0.0
  %v2834 = vmax.f32 %v2818, 0.0
  %v2835 = vmax.f32 %v2819, 0.0
  %v2836 = vmax.f32 %v2820, 0.0
  %v2837 = vmax.f32 %v2821, 0.0
  %v2838 = vmax.f32 %v2822, 0.0
  %v2839 = vmax.f32 %v2823, 0.0
  %v2840 = vmax.f32 %v2824, 0.0
  %v2841 = vmax.f32 %v2825, 0.0
  %v2842 = vmax.f32 %v2826, 0.0
  %v2843 = vmax.f32 %v2827, 0.0
  %v2844 = vmax.f32 %v2828, 0.0
  %v2845 = vmax.f32 %v2829, 0.0
  %v2846 = vmax.f32 %v2830, 0.0
  %v2847 = vmax.f32 %v2831, 0.0
  %v2848 = vpack.c.bf16 %v2833, %v2832
  %v2849 = vpack.c.bf16 %v2835, %v2834
  %v2850 = vpack.c.bf16 %v2837, %v2836
  %v2851 = vpack.c.bf16 %v2839, %v2838
  %v2852 = vpack.c.bf16 %v2841, %v2840
  %v2853 = vpack.c.bf16 %v2843, %v2842
  %v2854 = vpack.c.bf16 %v2845, %v2844
  %v2855 = vpack.c.bf16 %v2847, %v2846
  %v2864 = vunpack.c.l.b16 %v2848
  %v2865 = vunpack.c.h.b16 %v2848
  %v2866 = vunpack.c.l.b16 %v2849
  %v2867 = vunpack.c.h.b16 %v2849
  %v2868 = vunpack.c.l.b16 %v2850
  %v2869 = vunpack.c.h.b16 %v2850
  %v2870 = vunpack.c.l.b16 %v2851
  %v2871 = vunpack.c.h.b16 %v2851
  %v2872 = vunpack.c.l.b16 %v2852
  %v2873 = vunpack.c.h.b16 %v2852
  %v2874 = vunpack.c.l.b16 %v2853
  %v2875 = vunpack.c.h.b16 %v2853
  %v2876 = vunpack.c.l.b16 %v2854
  %v2877 = vunpack.c.h.b16 %v2854
  %v2878 = vunpack.c.l.b16 %v2855
  %v2879 = vunpack.c.h.b16 %v2855
  %v2880 = vpack.c.b16 %v2864, %v2864
  %v2881 = vpack.c.b16 %v2865, %v2865
  %v2882 = vpack.c.b16 %v2866, %v2866
  %v2883 = vpack.c.b16 %v2867, %v2867
  %v2884 = vpack.c.b16 %v2868, %v2868
  %v2885 = vpack.c.b16 %v2869, %v2869
  %v2886 = vpack.c.b16 %v2870, %v2870
  %v2887 = vpack.c.b16 %v2871, %v2871
  %v2888 = vpack.c.b16 %v2872, %v2872
  %v2889 = vpack.c.b16 %v2873, %v2873
  %v2890 = vpack.c.b16 %v2874, %v2874
  %v2891 = vpack.c.b16 %v2875, %v2875
  %v2892 = vpack.c.b16 %v2876, %v2876
  %v2893 = vpack.c.b16 %v2877, %v2877
  %v2894 = vpack.c.b16 %v2878, %v2878
  %v2895 = vpack.c.b16 %v2879, %v2879
  %2912 = vst [vmem:[%s2 + $0x100] sm:$0xf] %v2880
  %2913 = vst [vmem:[%s2 + $0x104] sm:$0xf] %v2881
  %2914 = vst [vmem:[%s2 + $0x108] sm:$0xf] %v2882
  %2915 = vst [vmem:[%s2 + $0x10c] sm:$0xf] %v2883
  %2916 = vst [vmem:[%s2 + $0x110] sm:$0xf] %v2884
  %2917 = vst [vmem:[%s2 + $0x114] sm:$0xf] %v2885
  %2918 = vst [vmem:[%s2 + $0x118] sm:$0xf] %v2886
  %2919 = vst [vmem:[%s2 + $0x11c] sm:$0xf] %v2887
  %2920 = vst [vmem:[%s2 + $0x120] sm:$0xf] %v2888
  %2921 = vst [vmem:[%s2 + $0x124] sm:$0xf] %v2889
  %2922 = vst [vmem:[%s2 + $0x128] sm:$0xf] %v2890
  %2923 = vst [vmem:[%s2 + $0x12c] sm:$0xf] %v2891
  %2924 = vst [vmem:[%s2 + $0x130] sm:$0xf] %v2892
  %2925 = vst [vmem:[%s2 + $0x134] sm:$0xf] %v2893
  %2926 = vst [vmem:[%s2 + $0x138] sm:$0xf] %v2894
  %2927 = vst [vmem:[%s2 + $0x13c] sm:$0xf] %v2895
  %v2928 = vadd.f32 %v2000, %v2003
  %v2929 = vadd.f32 %v2928, %v2008
  %v2930 = vadd.f32 %v2929, %v2011
  %v2931 = vrot.slane %v2930, 4
  %v2932 = vadd.f32 %v2930, %v2931
  %v2933 = vrot.slane %v2932, 2
  %v2934 = vadd.f32 %v2932, %v2933
  %v2935 = vrot.slane %v2934, 1
  %v2936 = vadd.f32 %v2934, %v2935
  %v2937 = vmul.f32 %v2936, 0.03125
  %v2938 = vmul.f32 %v2000, %v2000
  %v2939 = vmul.f32 %v2003, %v2003
  %v2940 = vmul.f32 %v2008, %v2008
  %v2941 = vmul.f32 %v2011, %v2011
  %v2942 = vadd.f32 %v2938, %v2939
  %v2943 = vadd.f32 %v2942, %v2940
  %v2944 = vadd.f32 %v2943, %v2941
  %v2945 = vrot.slane %v2944, 4
  %v2946 = vadd.f32 %v2944, %v2945
  %v2947 = vrot.slane %v2946, 2
  %v2948 = vadd.f32 %v2946, %v2947
  %v2949 = vrot.slane %v2948, 1
  %v2950 = vadd.f32 %v2948, %v2949
  %v2951 = vmul.f32 %v2950, 0.03125
  %v2952 = vmul.f32 %v2937, %v2937
  %v2953 = vsub.f32 %v2951, %v2952
  %v2954 = vmax.f32 %v2953, 0.0
  %v2955 = vadd.f32 %v2954, 1e-05
  %v2956 = vrsqrt.pop %v2955
  %v2957 = vsub.f32 %v2000, %v2937
  %v2958 = vsub.f32 %v2003, %v2937
  %v2959 = vsub.f32 %v2008, %v2937
  %v2960 = vsub.f32 %v2011, %v2937
  %v2961 = vmul.f32 %v2957, %v2956
  %v2962 = vmul.f32 %v2958, %v2956
  %v2963 = vmul.f32 %v2959, %v2956
  %v2964 = vmul.f32 %v2960, %v2956
  %v2965 = vmax.f32 %v2961, 0.0
  %v2966 = vmax.f32 %v2962, 0.0
  %v2967 = vmax.f32 %v2963, 0.0
  %v2968 = vmax.f32 %v2964, 0.0
  %v2969 = vpack.c.bf16 %v2966, %v2965
  %v2970 = vpack.c.bf16 %v2968, %v2967
  %v2973 = vunpack.c.l.b16 %v2969
  %v2974 = vunpack.c.h.b16 %v2969
  %v2975 = vunpack.c.l.b16 %v2970
  %v2976 = vunpack.c.h.b16 %v2970
  %v2977 = vpack.c.b16 %v2973, %v2973
  %v2978 = vpack.c.b16 %v2974, %v2974
  %v2979 = vpack.c.b16 %v2975, %v2975
  %v2980 = vpack.c.b16 %v2976, %v2976
  %2985 = vst [vmem:[%s2 + $0x140] sm:$0xf] %v2977
  %2986 = vst [vmem:[%s2 + $0x144] sm:$0xf] %v2978
  %2987 = vst [vmem:[%s2 + $0x148] sm:$0xf] %v2979
  %2988 = vst [vmem:[%s2 + $0x14c] sm:$0xf] %v2980
  // Predicated region
  $region10: #{mscdae_forward.11} parent=0 // pred_check
    _
  $region11: #{mscdae_forward.11} parent=0 // pred_check_branch
    %2990 = sbr.rel (0) target = $region13
  $region12: #{mscdae_forward.11} parent=0 // pred_region
    _
  $region13: #{mscdae_forward.11} parent=0 // pred_fallthru
    _
  // Predicated region
  $region14: #{mscdae_forward.11} parent=0 // pred_check
    _
  $region15: #{mscdae_forward.11} parent=0 // pred_check_branch
    %2992 = sbr.rel (0) target = $region17
  $region16: #{mscdae_forward.11} parent=0 // pred_region
    _
  $region17: #{mscdae_forward.11} parent=0 // pred_fallthru
    _

</llo_original>
